<compile_context>
chip_gen: v7x
topology: tpu7x:2x2x1
jax: 0.10.0
libtpu: 0.0.40
codegen_flags: <defaults>
</compile_context>

<pallas_src>
import functools

import jax
import jax.numpy as jnp
from jax import lax
from jax.experimental import pallas as pl
from jax.experimental.pallas import tpu as pltpu


def _round_up(x, m):
    return (x + m - 1) // m * m


def _conv_tanh_kernel(x_ref, w_ref, b_ref, o_ref, *, K, Wp, out_l):
    """One batch item per grid step.

    x_ref: (1, C, L)      bf16, row-major flattened reflect-padded image + tail pad
    w_ref: (K*K, OC, C)   bf16, w_ref[kh*K + kw, oc, c] == weight[oc, c, kh, kw]
    b_ref: (OC, 1)        f32
    o_ref: (1, OC, out_l) f32; column h*Wp + w holds out[oc, h, w]
    """
    oc = o_ref.shape[1]
    acc = jnp.zeros((oc, out_l), dtype=jnp.float32)
    # 49 shifted sub-matmuls: tap (kh, kw) is just a static lane offset into the
    # flat image, so no im2col buffer is ever materialized (in HBM or VMEM).
    for kh in range(K):
        for kw in range(K):
            off = kh * Wp + kw                         # static offset
            slab = x_ref[0, :, pl.ds(off, out_l)]      # (C, out_l) VMEM load
            wk = w_ref[kh * K + kw]                    # (OC, C)
            acc = acc + jnp.dot(wk, slab, preferred_element_type=jnp.float32)
    # bias + tanh epilogue in f32 (broadcast hoisted out of the tap loop).
    o_ref[0] = jnp.tanh(acc + b_ref[...]).astype(o_ref.dtype)


def conv_tanh(x, weight, bias, *, kernel_size=7, stride=1, padding=3,
              compute_dtype=jnp.bfloat16):
    """x: (N, C, H, W) f32; weight: (OC, C, K, K); bias: (OC,) -> (N, OC, H, W) f32."""
    assert stride == 1, "only stride=1 implemented"
    N, C, H, W = x.shape
    OC, IC, KH, KW = weight.shape
    assert IC == C and KH == kernel_size and KW == kernel_size and KH == KW
    K, P = KH, padding
    assert H > P and W > P, "reflect padding requires H, W > padding"

    Hp, Wp = H + 2 * P, W + 2 * P

    # ---- glue (plain JAX, ~1x data): reflect pad + flatten spatial ----
    xp = jnp.pad(x, ((0, 0), (0, 0), (P, P), (P, P)), mode="reflect")
    out_l = _round_up(H * Wp, 128)                       # lane-dense out width
    L = _round_up((K - 1) * Wp + (K - 1) + out_l, 128)   # flat len incl. halo + tail
    xflat = xp.reshape(N, C, Hp * Wp)
    xflat = jnp.pad(xflat, ((0, 0), (0, 0), (0, L - Hp * Wp)))
    xflat = xflat.astype(compute_dtype)

    # weights: (K*K, OC, C); index [kh*K+kw, oc, c] == weight[oc, c, kh, kw]
    w2 = weight.transpose(2, 3, 0, 1).reshape(K * K, OC, C).astype(compute_dtype)
    b2 = bias.reshape(OC, 1).astype(jnp.float32)

    kernel = functools.partial(_conv_tanh_kernel, K=K, Wp=Wp, out_l=out_l)

    out_flat = pl.pallas_call(
        kernel,
        out_shape=jax.ShapeDtypeStruct((N, OC, out_l), jnp.float32),
        grid_spec=pltpu.PrefetchScalarGridSpec(
            num_scalar_prefetch=0,
            grid=(N,),
            in_specs=[
                pl.BlockSpec((1, C, L), lambda n: (n, 0, 0)),
                pl.BlockSpec((K * K, OC, C), lambda n: (0, 0, 0)),  # VMEM-resident
                pl.BlockSpec((OC, 1), lambda n: (0, 0)),            # VMEM-resident
            ],
            out_specs=pl.BlockSpec((1, OC, out_l), lambda n: (n, 0, 0)),
        ),
        compiler_params=pltpu.CompilerParams(
            dimension_semantics=("parallel",),   # batch split across TCs (v7x)
        ),
    )(xflat, w2, b2)

    # Valid outputs sit at columns h*Wp + w (w < W): reshape+slice -> NCHW,
    # no transpose needed.
    out = out_flat[:, :, :H * Wp].reshape(N, OC, H, Wp)[:, :, :, :W]
    return out


def _reference(x, weight, bias, padding=3):
    xp = jnp.pad(x, ((0, 0), (0, 0), (padding, padding), (padding, padding)),
                 mode="reflect")
    y = lax.conv_general_dilated(
        xp, weight, window_strides=(1, 1), padding="VALID",
        dimension_numbers=("NCHW", "OIHW", "NCHW"),
        precision=lax.Precision.HIGHEST)
    return jnp.tanh(y + bias.reshape(1, -1, 1, 1))


if __name__ == "__main__":
    key = jax.random.PRNGKey(0)
    k_x, k_w, k_b = jax.random.split(key, 3)

    N, C_in, C_out, H, W = 2, 4, 8, 16, 16
    K = 7

    x = jax.random.normal(k_x, (N, C_in, H, W), dtype=jnp.float32)
    # deterministic init (uniform, PyTorch-like fan_in scaling)
    fan_in = C_in * K * K
    bound = 1.0 / (fan_in ** 0.5)
    weight = jax.random.uniform(k_w, (C_out, C_in, K, K), minval=-bound,
                                maxval=bound, dtype=jnp.float32)
    bias = jax.random.uniform(k_b, (C_out,), minval=-bound, maxval=bound,
                              dtype=jnp.float32)

    out = jax.block_until_ready(conv_tanh(x, weight, bias))
    assert out.shape == (N, C_out, H, W)

    # Module-level semantics (f32 conv + tanh); bf16 inputs -> loose tolerance.
    ref = _reference(x, weight, bias)
    err = float(jnp.max(jnp.abs(out - ref)))
    assert err < 3e-2, f"mismatch vs f32 reference (max abs err {err})"

    # Kernel-math check: same bf16-rounded inputs through XLA conv -> tight.
    ref_bf16 = _reference(x.astype(jnp.bfloat16).astype(jnp.float32),
                          weight.astype(jnp.bfloat16).astype(jnp.float32), bias)
    err_bf16 = float(jnp.max(jnp.abs(out - ref_bf16)))
    assert err_bf16 < 1e-3, f"mismatch vs bf16-rounded reference (max abs err {err_bf16})"

    print("KERNEL_OK")
</pallas_src>

<mosaic_0001>
module attributes {stable_mosaic.version = 11 : i64} {
  func.func @_conv_tanh_kernel(%arg0: i32, %arg1: memref<1x4x640xbf16, #tpu.memory_space<vmem>>, %arg2: memref<49x8x4xbf16, #tpu.memory_space<vmem>>, %arg3: memref<8x1xf32, #tpu.memory_space<vmem>>, %arg4: memref<1x8x384xf32, #tpu.memory_space<vmem>>) attributes {dimension_semantics = [#tpu.dimension_semantics<parallel>], iteration_bounds = array<i64: 2>, scalar_prefetch = 0 : i64, scratch_operands = 0 : i64, tpu.core_type = #tpu.core_type<tc>, window_params = [{transform_indices = @transform_0, window_bounds = array<i64: 1, 4, 640>}, {pipeline_mode = #tpu.pipeline_mode<synchronous>, transform_indices = @transform_1, window_bounds = array<i64: 49, 8, 4>}, {pipeline_mode = #tpu.pipeline_mode<synchronous>, transform_indices = @transform_2, window_bounds = array<i64: 8, 1>}, {transform_indices = @transform_3, window_bounds = array<i64: 1, 8, 384>}]} {
    %cst = arith.constant 0.000000e+00 : f32
    %0 = vector.broadcast %cst : f32 to vector<8x384xf32>
    %c0 = arith.constant 0 : index
    %c0_0 = arith.constant 0 : index
    %c0_1 = arith.constant 0 : index
    %1 = vector.load %arg1[%c0, %c0_0, %c0_1] : memref<1x4x640xbf16, #tpu.memory_space<vmem>>, vector<1x4x384xbf16>
    %2 = vector.shape_cast %1 : vector<1x4x384xbf16> to vector<4x384xbf16>
    %c0_2 = arith.constant 0 : index
    %c0_3 = arith.constant 0 : index
    %c0_4 = arith.constant 0 : index
    %3 = vector.load %arg2[%c0_2, %c0_3, %c0_4] : memref<49x8x4xbf16, #tpu.memory_space<vmem>>, vector<1x8x4xbf16>
    %4 = vector.shape_cast %3 : vector<1x8x4xbf16> to vector<8x4xbf16>
    %cst_5 = arith.constant dense<0.000000e+00> : vector<8x384xf32>
    %5 = tpu.matmul %4, %2, %cst_5 {dimension_numbers = #tpu.dot_dimension_numbers<[1], [0], [0], [1], [0, 0, 1, 1], [], []>} : vector<8x4xbf16>, vector<4x384xbf16>, vector<8x384xf32> -> vector<8x384xf32>
    %6 = arith.addf %0, %5 : vector<8x384xf32>
    %c0_6 = arith.constant 0 : index
    %c0_7 = arith.constant 0 : index
    %c1 = arith.constant 1 : index
    %7 = vector.load %arg1[%c0_6, %c0_7, %c1] : memref<1x4x640xbf16, #tpu.memory_space<vmem>>, vector<1x4x384xbf16>
    %8 = vector.shape_cast %7 : vector<1x4x384xbf16> to vector<4x384xbf16>
    %c1_8 = arith.constant 1 : index
    %c0_9 = arith.constant 0 : index
    %c0_10 = arith.constant 0 : index
    %9 = vector.load %arg2[%c1_8, %c0_9, %c0_10] : memref<49x8x4xbf16, #tpu.memory_space<vmem>>, vector<1x8x4xbf16>
    %10 = vector.shape_cast %9 : vector<1x8x4xbf16> to vector<8x4xbf16>
    %cst_11 = arith.constant dense<0.000000e+00> : vector<8x384xf32>
    %11 = tpu.matmul %10, %8, %cst_11 {dimension_numbers = #tpu.dot_dimension_numbers<[1], [0], [0], [1], [0, 0, 1, 1], [], []>} : vector<8x4xbf16>, vector<4x384xbf16>, vector<8x384xf32> -> vector<8x384xf32>
    %12 = arith.addf %6, %11 : vector<8x384xf32>
    %c0_12 = arith.constant 0 : index
    %c0_13 = arith.constant 0 : index
    %c2 = arith.constant 2 : index
    %13 = vector.load %arg1[%c0_12, %c0_13, %c2] : memref<1x4x640xbf16, #tpu.memory_space<vmem>>, vector<1x4x384xbf16>
    %14 = vector.shape_cast %13 : vector<1x4x384xbf16> to vector<4x384xbf16>
    %c2_14 = arith.constant 2 : index
    %c0_15 = arith.constant 0 : index
    %c0_16 = arith.constant 0 : index
    %15 = vector.load %arg2[%c2_14, %c0_15, %c0_16] : memref<49x8x4xbf16, #tpu.memory_space<vmem>>, vector<1x8x4xbf16>
    %16 = vector.shape_cast %15 : vector<1x8x4xbf16> to vector<8x4xbf16>
    %cst_17 = arith.constant dense<0.000000e+00> : vector<8x384xf32>
    %17 = tpu.matmul %16, %14, %cst_17 {dimension_numbers = #tpu.dot_dimension_numbers<[1], [0], [0], [1], [0, 0, 1, 1], [], []>} : vector<8x4xbf16>, vector<4x384xbf16>, vector<8x384xf32> -> vector<8x384xf32>
    %18 = arith.addf %12, %17 : vector<8x384xf32>
    %c0_18 = arith.constant 0 : index
    %c0_19 = arith.constant 0 : index
    %c3 = arith.constant 3 : index
    %19 = vector.load %arg1[%c0_18, %c0_19, %c3] : memref<1x4x640xbf16, #tpu.memory_space<vmem>>, vector<1x4x384xbf16>
    %20 = vector.shape_cast %19 : vector<1x4x384xbf16> to vector<4x384xbf16>
    %c3_20 = arith.constant 3 : index
    %c0_21 = arith.constant 0 : index
    %c0_22 = arith.constant 0 : index
    %21 = vector.load %arg2[%c3_20, %c0_21, %c0_22] : memref<49x8x4xbf16, #tpu.memory_space<vmem>>, vector<1x8x4xbf16>
    %22 = vector.shape_cast %21 : vector<1x8x4xbf16> to vector<8x4xbf16>
    %cst_23 = arith.constant dense<0.000000e+00> : vector<8x384xf32>
    %23 = tpu.matmul %22, %20, %cst_23 {dimension_numbers = #tpu.dot_dimension_numbers<[1], [0], [0], [1], [0, 0, 1, 1], [], []>} : vector<8x4xbf16>, vector<4x384xbf16>, vector<8x384xf32> -> vector<8x384xf32>
    %24 = arith.addf %18, %23 : vector<8x384xf32>
    %c0_24 = arith.constant 0 : index
    %c0_25 = arith.constant 0 : index
    %c4 = arith.constant 4 : index
    %25 = vector.load %arg1[%c0_24, %c0_25, %c4] : memref<1x4x640xbf16, #tpu.memory_space<vmem>>, vector<1x4x384xbf16>
    %26 = vector.shape_cast %25 : vector<1x4x384xbf16> to vector<4x384xbf16>
    %c4_26 = arith.constant 4 : index
    %c0_27 = arith.constant 0 : index
    %c0_28 = arith.constant 0 : index
    %27 = vector.load %arg2[%c4_26, %c0_27, %c0_28] : memref<49x8x4xbf16, #tpu.memory_space<vmem>>, vector<1x8x4xbf16>
    %28 = vector.shape_cast %27 : vector<1x8x4xbf16> to vector<8x4xbf16>
    %cst_29 = arith.constant dense<0.000000e+00> : vector<8x384xf32>
    %29 = tpu.matmul %28, %26, %cst_29 {dimension_numbers = #tpu.dot_dimension_numbers<[1], [0], [0], [1], [0, 0, 1, 1], [], []>} : vector<8x4xbf16>, vector<4x384xbf16>, vector<8x384xf32> -> vector<8x384xf32>
    %30 = arith.addf %24, %29 : vector<8x384xf32>
    %c0_30 = arith.constant 0 : index
    %c0_31 = arith.constant 0 : index
    %c5 = arith.constant 5 : index
    %31 = vector.load %arg1[%c0_30, %c0_31, %c5] : memref<1x4x640xbf16, #tpu.memory_space<vmem>>, vector<1x4x384xbf16>
    %32 = vector.shape_cast %31 : vector<1x4x384xbf16> to vector<4x384xbf16>
    %c5_32 = arith.constant 5 : index
    %c0_33 = arith.constant 0 : index
    %c0_34 = arith.constant 0 : index
    %33 = vector.load %arg2[%c5_32, %c0_33, %c0_34] : memref<49x8x4xbf16, #tpu.memory_space<vmem>>, vector<1x8x4xbf16>
    %34 = vector.shape_cast %33 : vector<1x8x4xbf16> to vector<8x4xbf16>
    %cst_35 = arith.constant dense<0.000000e+00> : vector<8x384xf32>
    %35 = tpu.matmul %34, %32, %cst_35 {dimension_numbers = #tpu.dot_dimension_numbers<[1], [0], [0], [1], [0, 0, 1, 1], [], []>} : vector<8x4xbf16>, vector<4x384xbf16>, vector<8x384xf32> -> vector<8x384xf32>
    %36 = arith.addf %30, %35 : vector<8x384xf32>
    %c0_36 = arith.constant 0 : index
    %c0_37 = arith.constant 0 : index
    %c6 = arith.constant 6 : index
    %37 = vector.load %arg1[%c0_36, %c0_37, %c6] : memref<1x4x640xbf16, #tpu.memory_space<vmem>>, vector<1x4x384xbf16>
    %38 = vector.shape_cast %37 : vector<1x4x384xbf16> to vector<4x384xbf16>
    %c6_38 = arith.constant 6 : index
    %c0_39 = arith.constant 0 : index
    %c0_40 = arith.constant 0 : index
    %39 = vector.load %arg2[%c6_38, %c0_39, %c0_40] : memref<49x8x4xbf16, #tpu.memory_space<vmem>>, vector<1x8x4xbf16>
    %40 = vector.shape_cast %39 : vector<1x8x4xbf16> to vector<8x4xbf16>
    %cst_41 = arith.constant dense<0.000000e+00> : vector<8x384xf32>
    %41 = tpu.matmul %40, %38, %cst_41 {dimension_numbers = #tpu.dot_dimension_numbers<[1], [0], [0], [1], [0, 0, 1, 1], [], []>} : vector<8x4xbf16>, vector<4x384xbf16>, vector<8x384xf32> -> vector<8x384xf32>
    %42 = arith.addf %36, %41 : vector<8x384xf32>
    %c0_42 = arith.constant 0 : index
    %c0_43 = arith.constant 0 : index
    %c22 = arith.constant 22 : index
    %43 = vector.load %arg1[%c0_42, %c0_43, %c22] : memref<1x4x640xbf16, #tpu.memory_space<vmem>>, vector<1x4x384xbf16>
    %44 = vector.shape_cast %43 : vector<1x4x384xbf16> to vector<4x384xbf16>
    %c7 = arith.constant 7 : index
    %c0_44 = arith.constant 0 : index
    %c0_45 = arith.constant 0 : index
    %45 = vector.load %arg2[%c7, %c0_44, %c0_45] : memref<49x8x4xbf16, #tpu.memory_space<vmem>>, vector<1x8x4xbf16>
    %46 = vector.shape_cast %45 : vector<1x8x4xbf16> to vector<8x4xbf16>
    %cst_46 = arith.constant dense<0.000000e+00> : vector<8x384xf32>
    %47 = tpu.matmul %46, %44, %cst_46 {dimension_numbers = #tpu.dot_dimension_numbers<[1], [0], [0], [1], [0, 0, 1, 1], [], []>} : vector<8x4xbf16>, vector<4x384xbf16>, vector<8x384xf32> -> vector<8x384xf32>
    %48 = arith.addf %42, %47 : vector<8x384xf32>
    %c0_47 = arith.constant 0 : index
    %c0_48 = arith.constant 0 : index
    %c23 = arith.constant 23 : index
    %49 = vector.load %arg1[%c0_47, %c0_48, %c23] : memref<1x4x640xbf16, #tpu.memory_space<vmem>>, vector<1x4x384xbf16>
    %50 = vector.shape_cast %49 : vector<1x4x384xbf16> to vector<4x384xbf16>
    %c8 = arith.constant 8 : index
    %c0_49 = arith.constant 0 : index
    %c0_50 = arith.constant 0 : index
    %51 = vector.load %arg2[%c8, %c0_49, %c0_50] : memref<49x8x4xbf16, #tpu.memory_space<vmem>>, vector<1x8x4xbf16>
    %52 = vector.shape_cast %51 : vector<1x8x4xbf16> to vector<8x4xbf16>
    %cst_51 = arith.constant dense<0.000000e+00> : vector<8x384xf32>
    %53 = tpu.matmul %52, %50, %cst_51 {dimension_numbers = #tpu.dot_dimension_numbers<[1], [0], [0], [1], [0, 0, 1, 1], [], []>} : vector<8x4xbf16>, vector<4x384xbf16>, vector<8x384xf32> -> vector<8x384xf32>
    %54 = arith.addf %48, %53 : vector<8x384xf32>
    %c0_52 = arith.constant 0 : index
    %c0_53 = arith.constant 0 : index
    %c24 = arith.constant 24 : index
    %55 = vector.load %arg1[%c0_52, %c0_53, %c24] : memref<1x4x640xbf16, #tpu.memory_space<vmem>>, vector<1x4x384xbf16>
    %56 = vector.shape_cast %55 : vector<1x4x384xbf16> to vector<4x384xbf16>
    %c9 = arith.constant 9 : index
    %c0_54 = arith.constant 0 : index
    %c0_55 = arith.constant 0 : index
    %57 = vector.load %arg2[%c9, %c0_54, %c0_55] : memref<49x8x4xbf16, #tpu.memory_space<vmem>>, vector<1x8x4xbf16>
    %58 = vector.shape_cast %57 : vector<1x8x4xbf16> to vector<8x4xbf16>
    %cst_56 = arith.constant dense<0.000000e+00> : vector<8x384xf32>
    %59 = tpu.matmul %58, %56, %cst_56 {dimension_numbers = #tpu.dot_dimension_numbers<[1], [0], [0], [1], [0, 0, 1, 1], [], []>} : vector<8x4xbf16>, vector<4x384xbf16>, vector<8x384xf32> -> vector<8x384xf32>
    %60 = arith.addf %54, %59 : vector<8x384xf32>
    %c0_57 = arith.constant 0 : index
    %c0_58 = arith.constant 0 : index
    %c25 = arith.constant 25 : index
    %61 = vector.load %arg1[%c0_57, %c0_58, %c25] : memref<1x4x640xbf16, #tpu.memory_space<vmem>>, vector<1x4x384xbf16>
    %62 = vector.shape_cast %61 : vector<1x4x384xbf16> to vector<4x384xbf16>
    %c10 = arith.constant 10 : index
    %c0_59 = arith.constant 0 : index
    %c0_60 = arith.constant 0 : index
    %63 = vector.load %arg2[%c10, %c0_59, %c0_60] : memref<49x8x4xbf16, #tpu.memory_space<vmem>>, vector<1x8x4xbf16>
    %64 = vector.shape_cast %63 : vector<1x8x4xbf16> to vector<8x4xbf16>
    %cst_61 = arith.constant dense<0.000000e+00> : vector<8x384xf32>
    %65 = tpu.matmul %64, %62, %cst_61 {dimension_numbers = #tpu.dot_dimension_numbers<[1], [0], [0], [1], [0, 0, 1, 1], [], []>} : vector<8x4xbf16>, vector<4x384xbf16>, vector<8x384xf32> -> vector<8x384xf32>
    %66 = arith.addf %60, %65 : vector<8x384xf32>
    %c0_62 = arith.constant 0 : index
    %c0_63 = arith.constant 0 : index
    %c26 = arith.constant 26 : index
    %67 = vector.load %arg1[%c0_62, %c0_63, %c26] : memref<1x4x640xbf16, #tpu.memory_space<vmem>>, vector<1x4x384xbf16>
    %68 = vector.shape_cast %67 : vector<1x4x384xbf16> to vector<4x384xbf16>
    %c11 = arith.constant 11 : index
    %c0_64 = arith.constant 0 : index
    %c0_65 = arith.constant 0 : index
    %69 = vector.load %arg2[%c11, %c0_64, %c0_65] : memref<49x8x4xbf16, #tpu.memory_space<vmem>>, vector<1x8x4xbf16>
    %70 = vector.shape_cast %69 : vector<1x8x4xbf16> to vector<8x4xbf16>
    %cst_66 = arith.constant dense<0.000000e+00> : vector<8x384xf32>
    %71 = tpu.matmul %70, %68, %cst_66 {dimension_numbers = #tpu.dot_dimension_numbers<[1], [0], [0], [1], [0, 0, 1, 1], [], []>} : vector<8x4xbf16>, vector<4x384xbf16>, vector<8x384xf32> -> vector<8x384xf32>
    %72 = arith.addf %66, %71 : vector<8x384xf32>
    %c0_67 = arith.constant 0 : index
    %c0_68 = arith.constant 0 : index
    %c27 = arith.constant 27 : index
    %73 = vector.load %arg1[%c0_67, %c0_68, %c27] : memref<1x4x640xbf16, #tpu.memory_space<vmem>>, vector<1x4x384xbf16>
    %74 = vector.shape_cast %73 : vector<1x4x384xbf16> to vector<4x384xbf16>
    %c12 = arith.constant 12 : index
    %c0_69 = arith.constant 0 : index
    %c0_70 = arith.constant 0 : index
    %75 = vector.load %arg2[%c12, %c0_69, %c0_70] : memref<49x8x4xbf16, #tpu.memory_space<vmem>>, vector<1x8x4xbf16>
    %76 = vector.shape_cast %75 : vector<1x8x4xbf16> to vector<8x4xbf16>
    %cst_71 = arith.constant dense<0.000000e+00> : vector<8x384xf32>
    %77 = tpu.matmul %76, %74, %cst_71 {dimension_numbers = #tpu.dot_dimension_numbers<[1], [0], [0], [1], [0, 0, 1, 1], [], []>} : vector<8x4xbf16>, vector<4x384xbf16>, vector<8x384xf32> -> vector<8x384xf32>
    %78 = arith.addf %72, %77 : vector<8x384xf32>
    %c0_72 = arith.constant 0 : index
    %c0_73 = arith.constant 0 : index
    %c28 = arith.constant 28 : index
    %79 = vector.load %arg1[%c0_72, %c0_73, %c28] : memref<1x4x640xbf16, #tpu.memory_space<vmem>>, vector<1x4x384xbf16>
    %80 = vector.shape_cast %79 : vector<1x4x384xbf16> to vector<4x384xbf16>
    %c13 = arith.constant 13 : index
    %c0_74 = arith.constant 0 : index
    %c0_75 = arith.constant 0 : index
    %81 = vector.load %arg2[%c13, %c0_74, %c0_75] : memref<49x8x4xbf16, #tpu.memory_space<vmem>>, vector<1x8x4xbf16>
    %82 = vector.shape_cast %81 : vector<1x8x4xbf16> to vector<8x4xbf16>
    %cst_76 = arith.constant dense<0.000000e+00> : vector<8x384xf32>
    %83 = tpu.matmul %82, %80, %cst_76 {dimension_numbers = #tpu.dot_dimension_numbers<[1], [0], [0], [1], [0, 0, 1, 1], [], []>} : vector<8x4xbf16>, vector<4x384xbf16>, vector<8x384xf32> -> vector<8x384xf32>
    %84 = arith.addf %78, %83 : vector<8x384xf32>
    %c0_77 = arith.constant 0 : index
    %c0_78 = arith.constant 0 : index
    %c44 = arith.constant 44 : index
    %85 = vector.load %arg1[%c0_77, %c0_78, %c44] : memref<1x4x640xbf16, #tpu.memory_space<vmem>>, vector<1x4x384xbf16>
    %86 = vector.shape_cast %85 : vector<1x4x384xbf16> to vector<4x384xbf16>
    %c14 = arith.constant 14 : index
    %c0_79 = arith.constant 0 : index
    %c0_80 = arith.constant 0 : index
    %87 = vector.load %arg2[%c14, %c0_79, %c0_80] : memref<49x8x4xbf16, #tpu.memory_space<vmem>>, vector<1x8x4xbf16>
    %88 = vector.shape_cast %87 : vector<1x8x4xbf16> to vector<8x4xbf16>
    %cst_81 = arith.constant dense<0.000000e+00> : vector<8x384xf32>
    %89 = tpu.matmul %88, %86, %cst_81 {dimension_numbers = #tpu.dot_dimension_numbers<[1], [0], [0], [1], [0, 0, 1, 1], [], []>} : vector<8x4xbf16>, vector<4x384xbf16>, vector<8x384xf32> -> vector<8x384xf32>
    %90 = arith.addf %84, %89 : vector<8x384xf32>
    %c0_82 = arith.constant 0 : index
    %c0_83 = arith.constant 0 : index
    %c45 = arith.constant 45 : index
    %91 = vector.load %arg1[%c0_82, %c0_83, %c45] : memref<1x4x640xbf16, #tpu.memory_space<vmem>>, vector<1x4x384xbf16>
    %92 = vector.shape_cast %91 : vector<1x4x384xbf16> to vector<4x384xbf16>
    %c15 = arith.constant 15 : index
    %c0_84 = arith.constant 0 : index
    %c0_85 = arith.constant 0 : index
    %93 = vector.load %arg2[%c15, %c0_84, %c0_85] : memref<49x8x4xbf16, #tpu.memory_space<vmem>>, vector<1x8x4xbf16>
    %94 = vector.shape_cast %93 : vector<1x8x4xbf16> to vector<8x4xbf16>
    %cst_86 = arith.constant dense<0.000000e+00> : vector<8x384xf32>
    %95 = tpu.matmul %94, %92, %cst_86 {dimension_numbers = #tpu.dot_dimension_numbers<[1], [0], [0], [1], [0, 0, 1, 1], [], []>} : vector<8x4xbf16>, vector<4x384xbf16>, vector<8x384xf32> -> vector<8x384xf32>
    %96 = arith.addf %90, %95 : vector<8x384xf32>
    %c0_87 = arith.constant 0 : index
    %c0_88 = arith.constant 0 : index
    %c46 = arith.constant 46 : index
    %97 = vector.load %arg1[%c0_87, %c0_88, %c46] : memref<1x4x640xbf16, #tpu.memory_space<vmem>>, vector<1x4x384xbf16>
    %98 = vector.shape_cast %97 : vector<1x4x384xbf16> to vector<4x384xbf16>
    %c16 = arith.constant 16 : index
    %c0_89 = arith.constant 0 : index
    %c0_90 = arith.constant 0 : index
    %99 = vector.load %arg2[%c16, %c0_89, %c0_90] : memref<49x8x4xbf16, #tpu.memory_space<vmem>>, vector<1x8x4xbf16>
    %100 = vector.shape_cast %99 : vector<1x8x4xbf16> to vector<8x4xbf16>
    %cst_91 = arith.constant dense<0.000000e+00> : vector<8x384xf32>
    %101 = tpu.matmul %100, %98, %cst_91 {dimension_numbers = #tpu.dot_dimension_numbers<[1], [0], [0], [1], [0, 0, 1, 1], [], []>} : vector<8x4xbf16>, vector<4x384xbf16>, vector<8x384xf32> -> vector<8x384xf32>
    %102 = arith.addf %96, %101 : vector<8x384xf32>
    %c0_92 = arith.constant 0 : index
    %c0_93 = arith.constant 0 : index
    %c47 = arith.constant 47 : index
    %103 = vector.load %arg1[%c0_92, %c0_93, %c47] : memref<1x4x640xbf16, #tpu.memory_space<vmem>>, vector<1x4x384xbf16>
    %104 = vector.shape_cast %103 : vector<1x4x384xbf16> to vector<4x384xbf16>
    %c17 = arith.constant 17 : index
    %c0_94 = arith.constant 0 : index
    %c0_95 = arith.constant 0 : index
    %105 = vector.load %arg2[%c17, %c0_94, %c0_95] : memref<49x8x4xbf16, #tpu.memory_space<vmem>>, vector<1x8x4xbf16>
    %106 = vector.shape_cast %105 : vector<1x8x4xbf16> to vector<8x4xbf16>
    %cst_96 = arith.constant dense<0.000000e+00> : vector<8x384xf32>
    %107 = tpu.matmul %106, %104, %cst_96 {dimension_numbers = #tpu.dot_dimension_numbers<[1], [0], [0], [1], [0, 0, 1, 1], [], []>} : vector<8x4xbf16>, vector<4x384xbf16>, vector<8x384xf32> -> vector<8x384xf32>
    %108 = arith.addf %102, %107 : vector<8x384xf32>
    %c0_97 = arith.constant 0 : index
    %c0_98 = arith.constant 0 : index
    %c48 = arith.constant 48 : index
    %109 = vector.load %arg1[%c0_97, %c0_98, %c48] : memref<1x4x640xbf16, #tpu.memory_space<vmem>>, vector<1x4x384xbf16>
    %110 = vector.shape_cast %109 : vector<1x4x384xbf16> to vector<4x384xbf16>
    %c18 = arith.constant 18 : index
    %c0_99 = arith.constant 0 : index
    %c0_100 = arith.constant 0 : index
    %111 = vector.load %arg2[%c18, %c0_99, %c0_100] : memref<49x8x4xbf16, #tpu.memory_space<vmem>>, vector<1x8x4xbf16>
    %112 = vector.shape_cast %111 : vector<1x8x4xbf16> to vector<8x4xbf16>
    %cst_101 = arith.constant dense<0.000000e+00> : vector<8x384xf32>
    %113 = tpu.matmul %112, %110, %cst_101 {dimension_numbers = #tpu.dot_dimension_numbers<[1], [0], [0], [1], [0, 0, 1, 1], [], []>} : vector<8x4xbf16>, vector<4x384xbf16>, vector<8x384xf32> -> vector<8x384xf32>
    %114 = arith.addf %108, %113 : vector<8x384xf32>
    %c0_102 = arith.constant 0 : index
    %c0_103 = arith.constant 0 : index
    %c49 = arith.constant 49 : index
    %115 = vector.load %arg1[%c0_102, %c0_103, %c49] : memref<1x4x640xbf16, #tpu.memory_space<vmem>>, vector<1x4x384xbf16>
    %116 = vector.shape_cast %115 : vector<1x4x384xbf16> to vector<4x384xbf16>
    %c19 = arith.constant 19 : index
    %c0_104 = arith.constant 0 : index
    %c0_105 = arith.constant 0 : index
    %117 = vector.load %arg2[%c19, %c0_104, %c0_105] : memref<49x8x4xbf16, #tpu.memory_space<vmem>>, vector<1x8x4xbf16>
    %118 = vector.shape_cast %117 : vector<1x8x4xbf16> to vector<8x4xbf16>
    %cst_106 = arith.constant dense<0.000000e+00> : vector<8x384xf32>
    %119 = tpu.matmul %118, %116, %cst_106 {dimension_numbers = #tpu.dot_dimension_numbers<[1], [0], [0], [1], [0, 0, 1, 1], [], []>} : vector<8x4xbf16>, vector<4x384xbf16>, vector<8x384xf32> -> vector<8x384xf32>
    %120 = arith.addf %114, %119 : vector<8x384xf32>
    %c0_107 = arith.constant 0 : index
    %c0_108 = arith.constant 0 : index
    %c50 = arith.constant 50 : index
    %121 = vector.load %arg1[%c0_107, %c0_108, %c50] : memref<1x4x640xbf16, #tpu.memory_space<vmem>>, vector<1x4x384xbf16>
    %122 = vector.shape_cast %121 : vector<1x4x384xbf16> to vector<4x384xbf16>
    %c20 = arith.constant 20 : index
    %c0_109 = arith.constant 0 : index
    %c0_110 = arith.constant 0 : index
    %123 = vector.load %arg2[%c20, %c0_109, %c0_110] : memref<49x8x4xbf16, #tpu.memory_space<vmem>>, vector<1x8x4xbf16>
    %124 = vector.shape_cast %123 : vector<1x8x4xbf16> to vector<8x4xbf16>
    %cst_111 = arith.constant dense<0.000000e+00> : vector<8x384xf32>
    %125 = tpu.matmul %124, %122, %cst_111 {dimension_numbers = #tpu.dot_dimension_numbers<[1], [0], [0], [1], [0, 0, 1, 1], [], []>} : vector<8x4xbf16>, vector<4x384xbf16>, vector<8x384xf32> -> vector<8x384xf32>
    %126 = arith.addf %120, %125 : vector<8x384xf32>
    %c0_112 = arith.constant 0 : index
    %c0_113 = arith.constant 0 : index
    %c66 = arith.constant 66 : index
    %127 = vector.load %arg1[%c0_112, %c0_113, %c66] : memref<1x4x640xbf16, #tpu.memory_space<vmem>>, vector<1x4x384xbf16>
    %128 = vector.shape_cast %127 : vector<1x4x384xbf16> to vector<4x384xbf16>
    %c21 = arith.constant 21 : index
    %c0_114 = arith.constant 0 : index
    %c0_115 = arith.constant 0 : index
    %129 = vector.load %arg2[%c21, %c0_114, %c0_115] : memref<49x8x4xbf16, #tpu.memory_space<vmem>>, vector<1x8x4xbf16>
    %130 = vector.shape_cast %129 : vector<1x8x4xbf16> to vector<8x4xbf16>
    %cst_116 = arith.constant dense<0.000000e+00> : vector<8x384xf32>
    %131 = tpu.matmul %130, %128, %cst_116 {dimension_numbers = #tpu.dot_dimension_numbers<[1], [0], [0], [1], [0, 0, 1, 1], [], []>} : vector<8x4xbf16>, vector<4x384xbf16>, vector<8x384xf32> -> vector<8x384xf32>
    %132 = arith.addf %126, %131 : vector<8x384xf32>
    %c0_117 = arith.constant 0 : index
    %c0_118 = arith.constant 0 : index
    %c67 = arith.constant 67 : index
    %133 = vector.load %arg1[%c0_117, %c0_118, %c67] : memref<1x4x640xbf16, #tpu.memory_space<vmem>>, vector<1x4x384xbf16>
    %134 = vector.shape_cast %133 : vector<1x4x384xbf16> to vector<4x384xbf16>
    %c22_119 = arith.constant 22 : index
    %c0_120 = arith.constant 0 : index
    %c0_121 = arith.constant 0 : index
    %135 = vector.load %arg2[%c22_119, %c0_120, %c0_121] : memref<49x8x4xbf16, #tpu.memory_space<vmem>>, vector<1x8x4xbf16>
    %136 = vector.shape_cast %135 : vector<1x8x4xbf16> to vector<8x4xbf16>
    %cst_122 = arith.constant dense<0.000000e+00> : vector<8x384xf32>
    %137 = tpu.matmul %136, %134, %cst_122 {dimension_numbers = #tpu.dot_dimension_numbers<[1], [0], [0], [1], [0, 0, 1, 1], [], []>} : vector<8x4xbf16>, vector<4x384xbf16>, vector<8x384xf32> -> vector<8x384xf32>
    %138 = arith.addf %132, %137 : vector<8x384xf32>
    %c0_123 = arith.constant 0 : index
    %c0_124 = arith.constant 0 : index
    %c68 = arith.constant 68 : index
    %139 = vector.load %arg1[%c0_123, %c0_124, %c68] : memref<1x4x640xbf16, #tpu.memory_space<vmem>>, vector<1x4x384xbf16>
    %140 = vector.shape_cast %139 : vector<1x4x384xbf16> to vector<4x384xbf16>
    %c23_125 = arith.constant 23 : index
    %c0_126 = arith.constant 0 : index
    %c0_127 = arith.constant 0 : index
    %141 = vector.load %arg2[%c23_125, %c0_126, %c0_127] : memref<49x8x4xbf16, #tpu.memory_space<vmem>>, vector<1x8x4xbf16>
    %142 = vector.shape_cast %141 : vector<1x8x4xbf16> to vector<8x4xbf16>
    %cst_128 = arith.constant dense<0.000000e+00> : vector<8x384xf32>
    %143 = tpu.matmul %142, %140, %cst_128 {dimension_numbers = #tpu.dot_dimension_numbers<[1], [0], [0], [1], [0, 0, 1, 1], [], []>} : vector<8x4xbf16>, vector<4x384xbf16>, vector<8x384xf32> -> vector<8x384xf32>
    %144 = arith.addf %138, %143 : vector<8x384xf32>
    %c0_129 = arith.constant 0 : index
    %c0_130 = arith.constant 0 : index
    %c69 = arith.constant 69 : index
    %145 = vector.load %arg1[%c0_129, %c0_130, %c69] : memref<1x4x640xbf16, #tpu.memory_space<vmem>>, vector<1x4x384xbf16>
    %146 = vector.shape_cast %145 : vector<1x4x384xbf16> to vector<4x384xbf16>
    %c24_131 = arith.constant 24 : index
    %c0_132 = arith.constant 0 : index
    %c0_133 = arith.constant 0 : index
    %147 = vector.load %arg2[%c24_131, %c0_132, %c0_133] : memref<49x8x4xbf16, #tpu.memory_space<vmem>>, vector<1x8x4xbf16>
    %148 = vector.shape_cast %147 : vector<1x8x4xbf16> to vector<8x4xbf16>
    %cst_134 = arith.constant dense<0.000000e+00> : vector<8x384xf32>
    %149 = tpu.matmul %148, %146, %cst_134 {dimension_numbers = #tpu.dot_dimension_numbers<[1], [0], [0], [1], [0, 0, 1, 1], [], []>} : vector<8x4xbf16>, vector<4x384xbf16>, vector<8x384xf32> -> vector<8x384xf32>
    %150 = arith.addf %144, %149 : vector<8x384xf32>
    %c0_135 = arith.constant 0 : index
    %c0_136 = arith.constant 0 : index
    %c70 = arith.constant 70 : index
    %151 = vector.load %arg1[%c0_135, %c0_136, %c70] : memref<1x4x640xbf16, #tpu.memory_space<vmem>>, vector<1x4x384xbf16>
    %152 = vector.shape_cast %151 : vector<1x4x384xbf16> to vector<4x384xbf16>
    %c25_137 = arith.constant 25 : index
    %c0_138 = arith.constant 0 : index
    %c0_139 = arith.constant 0 : index
    %153 = vector.load %arg2[%c25_137, %c0_138, %c0_139] : memref<49x8x4xbf16, #tpu.memory_space<vmem>>, vector<1x8x4xbf16>
    %154 = vector.shape_cast %153 : vector<1x8x4xbf16> to vector<8x4xbf16>
    %cst_140 = arith.constant dense<0.000000e+00> : vector<8x384xf32>
    %155 = tpu.matmul %154, %152, %cst_140 {dimension_numbers = #tpu.dot_dimension_numbers<[1], [0], [0], [1], [0, 0, 1, 1], [], []>} : vector<8x4xbf16>, vector<4x384xbf16>, vector<8x384xf32> -> vector<8x384xf32>
    %156 = arith.addf %150, %155 : vector<8x384xf32>
    %c0_141 = arith.constant 0 : index
    %c0_142 = arith.constant 0 : index
    %c71 = arith.constant 71 : index
    %157 = vector.load %arg1[%c0_141, %c0_142, %c71] : memref<1x4x640xbf16, #tpu.memory_space<vmem>>, vector<1x4x384xbf16>
    %158 = vector.shape_cast %157 : vector<1x4x384xbf16> to vector<4x384xbf16>
    %c26_143 = arith.constant 26 : index
    %c0_144 = arith.constant 0 : index
    %c0_145 = arith.constant 0 : index
    %159 = vector.load %arg2[%c26_143, %c0_144, %c0_145] : memref<49x8x4xbf16, #tpu.memory_space<vmem>>, vector<1x8x4xbf16>
    %160 = vector.shape_cast %159 : vector<1x8x4xbf16> to vector<8x4xbf16>
    %cst_146 = arith.constant dense<0.000000e+00> : vector<8x384xf32>
    %161 = tpu.matmul %160, %158, %cst_146 {dimension_numbers = #tpu.dot_dimension_numbers<[1], [0], [0], [1], [0, 0, 1, 1], [], []>} : vector<8x4xbf16>, vector<4x384xbf16>, vector<8x384xf32> -> vector<8x384xf32>
    %162 = arith.addf %156, %161 : vector<8x384xf32>
    %c0_147 = arith.constant 0 : index
    %c0_148 = arith.constant 0 : index
    %c72 = arith.constant 72 : index
    %163 = vector.load %arg1[%c0_147, %c0_148, %c72] : memref<1x4x640xbf16, #tpu.memory_space<vmem>>, vector<1x4x384xbf16>
    %164 = vector.shape_cast %163 : vector<1x4x384xbf16> to vector<4x384xbf16>
    %c27_149 = arith.constant 27 : index
    %c0_150 = arith.constant 0 : index
    %c0_151 = arith.constant 0 : index
    %165 = vector.load %arg2[%c27_149, %c0_150, %c0_151] : memref<49x8x4xbf16, #tpu.memory_space<vmem>>, vector<1x8x4xbf16>
    %166 = vector.shape_cast %165 : vector<1x8x4xbf16> to vector<8x4xbf16>
    %cst_152 = arith.constant dense<0.000000e+00> : vector<8x384xf32>
    %167 = tpu.matmul %166, %164, %cst_152 {dimension_numbers = #tpu.dot_dimension_numbers<[1], [0], [0], [1], [0, 0, 1, 1], [], []>} : vector<8x4xbf16>, vector<4x384xbf16>, vector<8x384xf32> -> vector<8x384xf32>
    %168 = arith.addf %162, %167 : vector<8x384xf32>
    %c0_153 = arith.constant 0 : index
    %c0_154 = arith.constant 0 : index
    %c88 = arith.constant 88 : index
    %169 = vector.load %arg1[%c0_153, %c0_154, %c88] : memref<1x4x640xbf16, #tpu.memory_space<vmem>>, vector<1x4x384xbf16>
    %170 = vector.shape_cast %169 : vector<1x4x384xbf16> to vector<4x384xbf16>
    %c28_155 = arith.constant 28 : index
    %c0_156 = arith.constant 0 : index
    %c0_157 = arith.constant 0 : index
    %171 = vector.load %arg2[%c28_155, %c0_156, %c0_157] : memref<49x8x4xbf16, #tpu.memory_space<vmem>>, vector<1x8x4xbf16>
    %172 = vector.shape_cast %171 : vector<1x8x4xbf16> to vector<8x4xbf16>
    %cst_158 = arith.constant dense<0.000000e+00> : vector<8x384xf32>
    %173 = tpu.matmul %172, %170, %cst_158 {dimension_numbers = #tpu.dot_dimension_numbers<[1], [0], [0], [1], [0, 0, 1, 1], [], []>} : vector<8x4xbf16>, vector<4x384xbf16>, vector<8x384xf32> -> vector<8x384xf32>
    %174 = arith.addf %168, %173 : vector<8x384xf32>
    %c0_159 = arith.constant 0 : index
    %c0_160 = arith.constant 0 : index
    %c89 = arith.constant 89 : index
    %175 = vector.load %arg1[%c0_159, %c0_160, %c89] : memref<1x4x640xbf16, #tpu.memory_space<vmem>>, vector<1x4x384xbf16>
    %176 = vector.shape_cast %175 : vector<1x4x384xbf16> to vector<4x384xbf16>
    %c29 = arith.constant 29 : index
    %c0_161 = arith.constant 0 : index
    %c0_162 = arith.constant 0 : index
    %177 = vector.load %arg2[%c29, %c0_161, %c0_162] : memref<49x8x4xbf16, #tpu.memory_space<vmem>>, vector<1x8x4xbf16>
    %178 = vector.shape_cast %177 : vector<1x8x4xbf16> to vector<8x4xbf16>
    %cst_163 = arith.constant dense<0.000000e+00> : vector<8x384xf32>
    %179 = tpu.matmul %178, %176, %cst_163 {dimension_numbers = #tpu.dot_dimension_numbers<[1], [0], [0], [1], [0, 0, 1, 1], [], []>} : vector<8x4xbf16>, vector<4x384xbf16>, vector<8x384xf32> -> vector<8x384xf32>
    %180 = arith.addf %174, %179 : vector<8x384xf32>
    %c0_164 = arith.constant 0 : index
    %c0_165 = arith.constant 0 : index
    %c90 = arith.constant 90 : index
    %181 = vector.load %arg1[%c0_164, %c0_165, %c90] : memref<1x4x640xbf16, #tpu.memory_space<vmem>>, vector<1x4x384xbf16>
    %182 = vector.shape_cast %181 : vector<1x4x384xbf16> to vector<4x384xbf16>
    %c30 = arith.constant 30 : index
    %c0_166 = arith.constant 0 : index
    %c0_167 = arith.constant 0 : index
    %183 = vector.load %arg2[%c30, %c0_166, %c0_167] : memref<49x8x4xbf16, #tpu.memory_space<vmem>>, vector<1x8x4xbf16>
    %184 = vector.shape_cast %183 : vector<1x8x4xbf16> to vector<8x4xbf16>
    %cst_168 = arith.constant dense<0.000000e+00> : vector<8x384xf32>
    %185 = tpu.matmul %184, %182, %cst_168 {dimension_numbers = #tpu.dot_dimension_numbers<[1], [0], [0], [1], [0, 0, 1, 1], [], []>} : vector<8x4xbf16>, vector<4x384xbf16>, vector<8x384xf32> -> vector<8x384xf32>
    %186 = arith.addf %180, %185 : vector<8x384xf32>
    %c0_169 = arith.constant 0 : index
    %c0_170 = arith.constant 0 : index
    %c91 = arith.constant 91 : index
    %187 = vector.load %arg1[%c0_169, %c0_170, %c91] : memref<1x4x640xbf16, #tpu.memory_space<vmem>>, vector<1x4x384xbf16>
    %188 = vector.shape_cast %187 : vector<1x4x384xbf16> to vector<4x384xbf16>
    %c31 = arith.constant 31 : index
    %c0_171 = arith.constant 0 : index
    %c0_172 = arith.constant 0 : index
    %189 = vector.load %arg2[%c31, %c0_171, %c0_172] : memref<49x8x4xbf16, #tpu.memory_space<vmem>>, vector<1x8x4xbf16>
    %190 = vector.shape_cast %189 : vector<1x8x4xbf16> to vector<8x4xbf16>
    %cst_173 = arith.constant dense<0.000000e+00> : vector<8x384xf32>
    %191 = tpu.matmul %190, %188, %cst_173 {dimension_numbers = #tpu.dot_dimension_numbers<[1], [0], [0], [1], [0, 0, 1, 1], [], []>} : vector<8x4xbf16>, vector<4x384xbf16>, vector<8x384xf32> -> vector<8x384xf32>
    %192 = arith.addf %186, %191 : vector<8x384xf32>
    %c0_174 = arith.constant 0 : index
    %c0_175 = arith.constant 0 : index
    %c92 = arith.constant 92 : index
    %193 = vector.load %arg1[%c0_174, %c0_175, %c92] : memref<1x4x640xbf16, #tpu.memory_space<vmem>>, vector<1x4x384xbf16>
    %194 = vector.shape_cast %193 : vector<1x4x384xbf16> to vector<4x384xbf16>
    %c32 = arith.constant 32 : index
    %c0_176 = arith.constant 0 : index
    %c0_177 = arith.constant 0 : index
    %195 = vector.load %arg2[%c32, %c0_176, %c0_177] : memref<49x8x4xbf16, #tpu.memory_space<vmem>>, vector<1x8x4xbf16>
    %196 = vector.shape_cast %195 : vector<1x8x4xbf16> to vector<8x4xbf16>
    %cst_178 = arith.constant dense<0.000000e+00> : vector<8x384xf32>
    %197 = tpu.matmul %196, %194, %cst_178 {dimension_numbers = #tpu.dot_dimension_numbers<[1], [0], [0], [1], [0, 0, 1, 1], [], []>} : vector<8x4xbf16>, vector<4x384xbf16>, vector<8x384xf32> -> vector<8x384xf32>
    %198 = arith.addf %192, %197 : vector<8x384xf32>
    %c0_179 = arith.constant 0 : index
    %c0_180 = arith.constant 0 : index
    %c93 = arith.constant 93 : index
    %199 = vector.load %arg1[%c0_179, %c0_180, %c93] : memref<1x4x640xbf16, #tpu.memory_space<vmem>>, vector<1x4x384xbf16>
    %200 = vector.shape_cast %199 : vector<1x4x384xbf16> to vector<4x384xbf16>
    %c33 = arith.constant 33 : index
    %c0_181 = arith.constant 0 : index
    %c0_182 = arith.constant 0 : index
    %201 = vector.load %arg2[%c33, %c0_181, %c0_182] : memref<49x8x4xbf16, #tpu.memory_space<vmem>>, vector<1x8x4xbf16>
    %202 = vector.shape_cast %201 : vector<1x8x4xbf16> to vector<8x4xbf16>
    %cst_183 = arith.constant dense<0.000000e+00> : vector<8x384xf32>
    %203 = tpu.matmul %202, %200, %cst_183 {dimension_numbers = #tpu.dot_dimension_numbers<[1], [0], [0], [1], [0, 0, 1, 1], [], []>} : vector<8x4xbf16>, vector<4x384xbf16>, vector<8x384xf32> -> vector<8x384xf32>
    %204 = arith.addf %198, %203 : vector<8x384xf32>
    %c0_184 = arith.constant 0 : index
    %c0_185 = arith.constant 0 : index
    %c94 = arith.constant 94 : index
    %205 = vector.load %arg1[%c0_184, %c0_185, %c94] : memref<1x4x640xbf16, #tpu.memory_space<vmem>>, vector<1x4x384xbf16>
    %206 = vector.shape_cast %205 : vector<1x4x384xbf16> to vector<4x384xbf16>
    %c34 = arith.constant 34 : index
    %c0_186 = arith.constant 0 : index
    %c0_187 = arith.constant 0 : index
    %207 = vector.load %arg2[%c34, %c0_186, %c0_187] : memref<49x8x4xbf16, #tpu.memory_space<vmem>>, vector<1x8x4xbf16>
    %208 = vector.shape_cast %207 : vector<1x8x4xbf16> to vector<8x4xbf16>
    %cst_188 = arith.constant dense<0.000000e+00> : vector<8x384xf32>
    %209 = tpu.matmul %208, %206, %cst_188 {dimension_numbers = #tpu.dot_dimension_numbers<[1], [0], [0], [1], [0, 0, 1, 1], [], []>} : vector<8x4xbf16>, vector<4x384xbf16>, vector<8x384xf32> -> vector<8x384xf32>
    %210 = arith.addf %204, %209 : vector<8x384xf32>
    %c0_189 = arith.constant 0 : index
    %c0_190 = arith.constant 0 : index
    %c110 = arith.constant 110 : index
    %211 = vector.load %arg1[%c0_189, %c0_190, %c110] : memref<1x4x640xbf16, #tpu.memory_space<vmem>>, vector<1x4x384xbf16>
    %212 = vector.shape_cast %211 : vector<1x4x384xbf16> to vector<4x384xbf16>
    %c35 = arith.constant 35 : index
    %c0_191 = arith.constant 0 : index
    %c0_192 = arith.constant 0 : index
    %213 = vector.load %arg2[%c35, %c0_191, %c0_192] : memref<49x8x4xbf16, #tpu.memory_space<vmem>>, vector<1x8x4xbf16>
    %214 = vector.shape_cast %213 : vector<1x8x4xbf16> to vector<8x4xbf16>
    %cst_193 = arith.constant dense<0.000000e+00> : vector<8x384xf32>
    %215 = tpu.matmul %214, %212, %cst_193 {dimension_numbers = #tpu.dot_dimension_numbers<[1], [0], [0], [1], [0, 0, 1, 1], [], []>} : vector<8x4xbf16>, vector<4x384xbf16>, vector<8x384xf32> -> vector<8x384xf32>
    %216 = arith.addf %210, %215 : vector<8x384xf32>
    %c0_194 = arith.constant 0 : index
    %c0_195 = arith.constant 0 : index
    %c111 = arith.constant 111 : index
    %217 = vector.load %arg1[%c0_194, %c0_195, %c111] : memref<1x4x640xbf16, #tpu.memory_space<vmem>>, vector<1x4x384xbf16>
    %218 = vector.shape_cast %217 : vector<1x4x384xbf16> to vector<4x384xbf16>
    %c36 = arith.constant 36 : index
    %c0_196 = arith.constant 0 : index
    %c0_197 = arith.constant 0 : index
    %219 = vector.load %arg2[%c36, %c0_196, %c0_197] : memref<49x8x4xbf16, #tpu.memory_space<vmem>>, vector<1x8x4xbf16>
    %220 = vector.shape_cast %219 : vector<1x8x4xbf16> to vector<8x4xbf16>
    %cst_198 = arith.constant dense<0.000000e+00> : vector<8x384xf32>
    %221 = tpu.matmul %220, %218, %cst_198 {dimension_numbers = #tpu.dot_dimension_numbers<[1], [0], [0], [1], [0, 0, 1, 1], [], []>} : vector<8x4xbf16>, vector<4x384xbf16>, vector<8x384xf32> -> vector<8x384xf32>
    %222 = arith.addf %216, %221 : vector<8x384xf32>
    %c0_199 = arith.constant 0 : index
    %c0_200 = arith.constant 0 : index
    %c112 = arith.constant 112 : index
    %223 = vector.load %arg1[%c0_199, %c0_200, %c112] : memref<1x4x640xbf16, #tpu.memory_space<vmem>>, vector<1x4x384xbf16>
    %224 = vector.shape_cast %223 : vector<1x4x384xbf16> to vector<4x384xbf16>
    %c37 = arith.constant 37 : index
    %c0_201 = arith.constant 0 : index
    %c0_202 = arith.constant 0 : index
    %225 = vector.load %arg2[%c37, %c0_201, %c0_202] : memref<49x8x4xbf16, #tpu.memory_space<vmem>>, vector<1x8x4xbf16>
    %226 = vector.shape_cast %225 : vector<1x8x4xbf16> to vector<8x4xbf16>
    %cst_203 = arith.constant dense<0.000000e+00> : vector<8x384xf32>
    %227 = tpu.matmul %226, %224, %cst_203 {dimension_numbers = #tpu.dot_dimension_numbers<[1], [0], [0], [1], [0, 0, 1, 1], [], []>} : vector<8x4xbf16>, vector<4x384xbf16>, vector<8x384xf32> -> vector<8x384xf32>
    %228 = arith.addf %222, %227 : vector<8x384xf32>
    %c0_204 = arith.constant 0 : index
    %c0_205 = arith.constant 0 : index
    %c113 = arith.constant 113 : index
    %229 = vector.load %arg1[%c0_204, %c0_205, %c113] : memref<1x4x640xbf16, #tpu.memory_space<vmem>>, vector<1x4x384xbf16>
    %230 = vector.shape_cast %229 : vector<1x4x384xbf16> to vector<4x384xbf16>
    %c38 = arith.constant 38 : index
    %c0_206 = arith.constant 0 : index
    %c0_207 = arith.constant 0 : index
    %231 = vector.load %arg2[%c38, %c0_206, %c0_207] : memref<49x8x4xbf16, #tpu.memory_space<vmem>>, vector<1x8x4xbf16>
    %232 = vector.shape_cast %231 : vector<1x8x4xbf16> to vector<8x4xbf16>
    %cst_208 = arith.constant dense<0.000000e+00> : vector<8x384xf32>
    %233 = tpu.matmul %232, %230, %cst_208 {dimension_numbers = #tpu.dot_dimension_numbers<[1], [0], [0], [1], [0, 0, 1, 1], [], []>} : vector<8x4xbf16>, vector<4x384xbf16>, vector<8x384xf32> -> vector<8x384xf32>
    %234 = arith.addf %228, %233 : vector<8x384xf32>
    %c0_209 = arith.constant 0 : index
    %c0_210 = arith.constant 0 : index
    %c114 = arith.constant 114 : index
    %235 = vector.load %arg1[%c0_209, %c0_210, %c114] : memref<1x4x640xbf16, #tpu.memory_space<vmem>>, vector<1x4x384xbf16>
    %236 = vector.shape_cast %235 : vector<1x4x384xbf16> to vector<4x384xbf16>
    %c39 = arith.constant 39 : index
    %c0_211 = arith.constant 0 : index
    %c0_212 = arith.constant 0 : index
    %237 = vector.load %arg2[%c39, %c0_211, %c0_212] : memref<49x8x4xbf16, #tpu.memory_space<vmem>>, vector<1x8x4xbf16>
    %238 = vector.shape_cast %237 : vector<1x8x4xbf16> to vector<8x4xbf16>
    %cst_213 = arith.constant dense<0.000000e+00> : vector<8x384xf32>
    %239 = tpu.matmul %238, %236, %cst_213 {dimension_numbers = #tpu.dot_dimension_numbers<[1], [0], [0], [1], [0, 0, 1, 1], [], []>} : vector<8x4xbf16>, vector<4x384xbf16>, vector<8x384xf32> -> vector<8x384xf32>
    %240 = arith.addf %234, %239 : vector<8x384xf32>
    %c0_214 = arith.constant 0 : index
    %c0_215 = arith.constant 0 : index
    %c115 = arith.constant 115 : index
    %241 = vector.load %arg1[%c0_214, %c0_215, %c115] : memref<1x4x640xbf16, #tpu.memory_space<vmem>>, vector<1x4x384xbf16>
    %242 = vector.shape_cast %241 : vector<1x4x384xbf16> to vector<4x384xbf16>
    %c40 = arith.constant 40 : index
    %c0_216 = arith.constant 0 : index
    %c0_217 = arith.constant 0 : index
    %243 = vector.load %arg2[%c40, %c0_216, %c0_217] : memref<49x8x4xbf16, #tpu.memory_space<vmem>>, vector<1x8x4xbf16>
    %244 = vector.shape_cast %243 : vector<1x8x4xbf16> to vector<8x4xbf16>
    %cst_218 = arith.constant dense<0.000000e+00> : vector<8x384xf32>
    %245 = tpu.matmul %244, %242, %cst_218 {dimension_numbers = #tpu.dot_dimension_numbers<[1], [0], [0], [1], [0, 0, 1, 1], [], []>} : vector<8x4xbf16>, vector<4x384xbf16>, vector<8x384xf32> -> vector<8x384xf32>
    %246 = arith.addf %240, %245 : vector<8x384xf32>
    %c0_219 = arith.constant 0 : index
    %c0_220 = arith.constant 0 : index
    %c116 = arith.constant 116 : index
    %247 = vector.load %arg1[%c0_219, %c0_220, %c116] : memref<1x4x640xbf16, #tpu.memory_space<vmem>>, vector<1x4x384xbf16>
    %248 = vector.shape_cast %247 : vector<1x4x384xbf16> to vector<4x384xbf16>
    %c41 = arith.constant 41 : index
    %c0_221 = arith.constant 0 : index
    %c0_222 = arith.constant 0 : index
    %249 = vector.load %arg2[%c41, %c0_221, %c0_222] : memref<49x8x4xbf16, #tpu.memory_space<vmem>>, vector<1x8x4xbf16>
    %250 = vector.shape_cast %249 : vector<1x8x4xbf16> to vector<8x4xbf16>
    %cst_223 = arith.constant dense<0.000000e+00> : vector<8x384xf32>
    %251 = tpu.matmul %250, %248, %cst_223 {dimension_numbers = #tpu.dot_dimension_numbers<[1], [0], [0], [1], [0, 0, 1, 1], [], []>} : vector<8x4xbf16>, vector<4x384xbf16>, vector<8x384xf32> -> vector<8x384xf32>
    %252 = arith.addf %246, %251 : vector<8x384xf32>
    %c0_224 = arith.constant 0 : index
    %c0_225 = arith.constant 0 : index
    %c132 = arith.constant 132 : index
    %253 = vector.load %arg1[%c0_224, %c0_225, %c132] : memref<1x4x640xbf16, #tpu.memory_space<vmem>>, vector<1x4x384xbf16>
    %254 = vector.shape_cast %253 : vector<1x4x384xbf16> to vector<4x384xbf16>
    %c42 = arith.constant 42 : index
    %c0_226 = arith.constant 0 : index
    %c0_227 = arith.constant 0 : index
    %255 = vector.load %arg2[%c42, %c0_226, %c0_227] : memref<49x8x4xbf16, #tpu.memory_space<vmem>>, vector<1x8x4xbf16>
    %256 = vector.shape_cast %255 : vector<1x8x4xbf16> to vector<8x4xbf16>
    %cst_228 = arith.constant dense<0.000000e+00> : vector<8x384xf32>
    %257 = tpu.matmul %256, %254, %cst_228 {dimension_numbers = #tpu.dot_dimension_numbers<[1], [0], [0], [1], [0, 0, 1, 1], [], []>} : vector<8x4xbf16>, vector<4x384xbf16>, vector<8x384xf32> -> vector<8x384xf32>
    %258 = arith.addf %252, %257 : vector<8x384xf32>
    %c0_229 = arith.constant 0 : index
    %c0_230 = arith.constant 0 : index
    %c133 = arith.constant 133 : index
    %259 = vector.load %arg1[%c0_229, %c0_230, %c133] : memref<1x4x640xbf16, #tpu.memory_space<vmem>>, vector<1x4x384xbf16>
    %260 = vector.shape_cast %259 : vector<1x4x384xbf16> to vector<4x384xbf16>
    %c43 = arith.constant 43 : index
    %c0_231 = arith.constant 0 : index
    %c0_232 = arith.constant 0 : index
    %261 = vector.load %arg2[%c43, %c0_231, %c0_232] : memref<49x8x4xbf16, #tpu.memory_space<vmem>>, vector<1x8x4xbf16>
    %262 = vector.shape_cast %261 : vector<1x8x4xbf16> to vector<8x4xbf16>
    %cst_233 = arith.constant dense<0.000000e+00> : vector<8x384xf32>
    %263 = tpu.matmul %262, %260, %cst_233 {dimension_numbers = #tpu.dot_dimension_numbers<[1], [0], [0], [1], [0, 0, 1, 1], [], []>} : vector<8x4xbf16>, vector<4x384xbf16>, vector<8x384xf32> -> vector<8x384xf32>
    %264 = arith.addf %258, %263 : vector<8x384xf32>
    %c0_234 = arith.constant 0 : index
    %c0_235 = arith.constant 0 : index
    %c134 = arith.constant 134 : index
    %265 = vector.load %arg1[%c0_234, %c0_235, %c134] : memref<1x4x640xbf16, #tpu.memory_space<vmem>>, vector<1x4x384xbf16>
    %266 = vector.shape_cast %265 : vector<1x4x384xbf16> to vector<4x384xbf16>
    %c44_236 = arith.constant 44 : index
    %c0_237 = arith.constant 0 : index
    %c0_238 = arith.constant 0 : index
    %267 = vector.load %arg2[%c44_236, %c0_237, %c0_238] : memref<49x8x4xbf16, #tpu.memory_space<vmem>>, vector<1x8x4xbf16>
    %268 = vector.shape_cast %267 : vector<1x8x4xbf16> to vector<8x4xbf16>
    %cst_239 = arith.constant dense<0.000000e+00> : vector<8x384xf32>
    %269 = tpu.matmul %268, %266, %cst_239 {dimension_numbers = #tpu.dot_dimension_numbers<[1], [0], [0], [1], [0, 0, 1, 1], [], []>} : vector<8x4xbf16>, vector<4x384xbf16>, vector<8x384xf32> -> vector<8x384xf32>
    %270 = arith.addf %264, %269 : vector<8x384xf32>
    %c0_240 = arith.constant 0 : index
    %c0_241 = arith.constant 0 : index
    %c135 = arith.constant 135 : index
    %271 = vector.load %arg1[%c0_240, %c0_241, %c135] : memref<1x4x640xbf16, #tpu.memory_space<vmem>>, vector<1x4x384xbf16>
    %272 = vector.shape_cast %271 : vector<1x4x384xbf16> to vector<4x384xbf16>
    %c45_242 = arith.constant 45 : index
    %c0_243 = arith.constant 0 : index
    %c0_244 = arith.constant 0 : index
    %273 = vector.load %arg2[%c45_242, %c0_243, %c0_244] : memref<49x8x4xbf16, #tpu.memory_space<vmem>>, vector<1x8x4xbf16>
    %274 = vector.shape_cast %273 : vector<1x8x4xbf16> to vector<8x4xbf16>
    %cst_245 = arith.constant dense<0.000000e+00> : vector<8x384xf32>
    %275 = tpu.matmul %274, %272, %cst_245 {dimension_numbers = #tpu.dot_dimension_numbers<[1], [0], [0], [1], [0, 0, 1, 1], [], []>} : vector<8x4xbf16>, vector<4x384xbf16>, vector<8x384xf32> -> vector<8x384xf32>
    %276 = arith.addf %270, %275 : vector<8x384xf32>
    %c0_246 = arith.constant 0 : index
    %c0_247 = arith.constant 0 : index
    %c136 = arith.constant 136 : index
    %277 = vector.load %arg1[%c0_246, %c0_247, %c136] : memref<1x4x640xbf16, #tpu.memory_space<vmem>>, vector<1x4x384xbf16>
    %278 = vector.shape_cast %277 : vector<1x4x384xbf16> to vector<4x384xbf16>
    %c46_248 = arith.constant 46 : index
    %c0_249 = arith.constant 0 : index
    %c0_250 = arith.constant 0 : index
    %279 = vector.load %arg2[%c46_248, %c0_249, %c0_250] : memref<49x8x4xbf16, #tpu.memory_space<vmem>>, vector<1x8x4xbf16>
    %280 = vector.shape_cast %279 : vector<1x8x4xbf16> to vector<8x4xbf16>
    %cst_251 = arith.constant dense<0.000000e+00> : vector<8x384xf32>
    %281 = tpu.matmul %280, %278, %cst_251 {dimension_numbers = #tpu.dot_dimension_numbers<[1], [0], [0], [1], [0, 0, 1, 1], [], []>} : vector<8x4xbf16>, vector<4x384xbf16>, vector<8x384xf32> -> vector<8x384xf32>
    %282 = arith.addf %276, %281 : vector<8x384xf32>
    %c0_252 = arith.constant 0 : index
    %c0_253 = arith.constant 0 : index
    %c137 = arith.constant 137 : index
    %283 = vector.load %arg1[%c0_252, %c0_253, %c137] : memref<1x4x640xbf16, #tpu.memory_space<vmem>>, vector<1x4x384xbf16>
    %284 = vector.shape_cast %283 : vector<1x4x384xbf16> to vector<4x384xbf16>
    %c47_254 = arith.constant 47 : index
    %c0_255 = arith.constant 0 : index
    %c0_256 = arith.constant 0 : index
    %285 = vector.load %arg2[%c47_254, %c0_255, %c0_256] : memref<49x8x4xbf16, #tpu.memory_space<vmem>>, vector<1x8x4xbf16>
    %286 = vector.shape_cast %285 : vector<1x8x4xbf16> to vector<8x4xbf16>
    %cst_257 = arith.constant dense<0.000000e+00> : vector<8x384xf32>
    %287 = tpu.matmul %286, %284, %cst_257 {dimension_numbers = #tpu.dot_dimension_numbers<[1], [0], [0], [1], [0, 0, 1, 1], [], []>} : vector<8x4xbf16>, vector<4x384xbf16>, vector<8x384xf32> -> vector<8x384xf32>
    %288 = arith.addf %282, %287 : vector<8x384xf32>
    %c0_258 = arith.constant 0 : index
    %c0_259 = arith.constant 0 : index
    %c138 = arith.constant 138 : index
    %289 = vector.load %arg1[%c0_258, %c0_259, %c138] : memref<1x4x640xbf16, #tpu.memory_space<vmem>>, vector<1x4x384xbf16>
    %290 = vector.shape_cast %289 : vector<1x4x384xbf16> to vector<4x384xbf16>
    %c48_260 = arith.constant 48 : index
    %c0_261 = arith.constant 0 : index
    %c0_262 = arith.constant 0 : index
    %291 = vector.load %arg2[%c48_260, %c0_261, %c0_262] : memref<49x8x4xbf16, #tpu.memory_space<vmem>>, vector<1x8x4xbf16>
    %292 = vector.shape_cast %291 : vector<1x8x4xbf16> to vector<8x4xbf16>
    %cst_263 = arith.constant dense<0.000000e+00> : vector<8x384xf32>
    %293 = tpu.matmul %292, %290, %cst_263 {dimension_numbers = #tpu.dot_dimension_numbers<[1], [0], [0], [1], [0, 0, 1, 1], [], []>} : vector<8x4xbf16>, vector<4x384xbf16>, vector<8x384xf32> -> vector<8x384xf32>
    %294 = arith.addf %288, %293 : vector<8x384xf32>
    %c0_264 = arith.constant 0 : index
    %c0_265 = arith.constant 0 : index
    %295 = vector.load %arg3[%c0_264, %c0_265] : memref<8x1xf32, #tpu.memory_space<vmem>>, vector<8x1xf32>
    %296 = vector.broadcast %295 : vector<8x1xf32> to vector<8x384xf32>
    %297 = arith.addf %294, %296 : vector<8x384xf32>
    %298 = math.tanh %297 : vector<8x384xf32>
    %c0_266 = arith.constant 0 : index
    %c0_267 = arith.constant 0 : index
    %c0_268 = arith.constant 0 : index
    %299 = vector.load %arg4[%c0_266, %c0_267, %c0_268] : memref<1x8x384xf32, #tpu.memory_space<vmem>>, vector<1x8x384xf32>
    %300 = vector.shape_cast %299 : vector<1x8x384xf32> to vector<8x384xf32>
    %301 = vector.shape_cast %298 : vector<8x384xf32> to vector<1x8x384xf32>
    tpu.vector_store %arg4[%c0_266, %c0_267, %c0_268], %301 {strides = array<i32>} : memref<1x8x384xf32, #tpu.memory_space<vmem>>, vector<1x8x384xf32>,
    return
  }
  func.func @transform_0(%arg0: i32) -> (i32, i32, i32) {
    %c0_i32 = arith.constant 0 : i32
    %c0_i32_0 = arith.constant 0 : i32
    %c0_i32_1 = arith.constant 0 : i32
    return %arg0, %c0_i32, %c0_i32_0 : i32, i32, i32
  }
  func.func @transform_1(%arg0: i32) -> (i32, i32, i32) {
    %c0_i32 = arith.constant 0 : i32
    %c0_i32_0 = arith.constant 0 : i32
    %c0_i32_1 = arith.constant 0 : i32
    %c0_i32_2 = arith.constant 0 : i32
    return %c0_i32, %c0_i32_0, %c0_i32_1 : i32, i32, i32
  }
  func.func @transform_2(%arg0: i32) -> (i32, i32) {
    %c0_i32 = arith.constant 0 : i32
    %c0_i32_0 = arith.constant 0 : i32
    %c0_i32_1 = arith.constant 0 : i32
    return %c0_i32, %c0_i32_0 : i32, i32
  }
  func.func @transform_3(%arg0: i32) -> (i32, i32, i32) {
    %c0_i32 = arith.constant 0 : i32
    %c0_i32_0 = arith.constant 0 : i32
    %c0_i32_1 = arith.constant 0 : i32
    return %arg0, %c0_i32, %c0_i32_0 : i32, i32, i32
  }
}

</mosaic_0001>

<llo_original>
// kernel: tpu_custom_call.1
$region0: #{tpu_custom_call.1}
  #allocation0 [shape = 'u32[]', space=smem, size = 0x4, offset = 0x4, fixed_abs, tag = 'smem constant byte address 0x4 - core index']
  #allocation1 [shape = 'u32[144,128]{1,0:T(1,128)}', space=vmem, size = 0x12000, scoped, tag = 'internal scratch']
  %s0 = inlined_call_operand.vmem [shape: bf16[2,4,640], index: 0, kind: input, shape index: {}]
  %s1 = inlined_call_operand.vmem [shape: bf16[49,8,4], index: 1, kind: input, shape index: {}]
  %s2 = inlined_call_operand.vmem [shape: f32[8,1], index: 2, kind: input, shape index: {}]
  %s3 = inlined_call_operand.hbm [shape: f32[2,8,384], index: 3, kind: output, shape index: {}]
  %s4 = sld [smem:[#allocation0]]
  $region45: #{tpu_custom_call.1} parent=0
    _
  %s6 = ssub.s32 1, %s4
  %s7 = scalar_select 0, %s6, %s4
  $region1: #{tpu_custom_call.1} parent=0
    #allocation2 [shape = 'u8[24576]{0}', space=vmem, size = 0x6000, scoped, tag = 'output window, operand 0']
    #allocation3 [shape = 's32[2]{0}', space=sflag, size = 0x8, scoped, tag = 'scoped memory for tpu_custom_call.1']
    %8 = vsyncpa [#allocation3], 0
    %s9 = scalar_lea.sflag [#allocation3], 1
    %10 = vsyncpa %s9, 0
    loop: start=0, step=1, limit=4
    $region2: #{tpu_custom_call.1} parent=1 // loop_pre_header
      _
    $region3: #{tpu_custom_call.1} parent=1 // loop_header
      %s12 = sphi 0, %s16
      %p13 = scmp.ge.s32.totalorder %s12, 4
      %s22 = sphi 0, %s24
      %s25 = sphi 0, %s22
      %s26 = sphi 0, %s25
      %s42 = sphi 0, %s26
      %s46 = sphi 0, %s46
      %s48 = sphi 0, %s46
      %s49 = sphi 0, %s48
      %s63 = sphi 0, %s49
      %s67 = sphi 0, %s67
      %s69 = sphi 0, %s67
      %s70 = sphi 0, %s69
      %s84 = sphi 0, %s70
      %s90 = sphi 0, %s92
      %s93 = sphi 0, %s90
      %s94 = sphi 0, %s93
      %s110 = sphi 0, %s94
    $region4: #{tpu_custom_call.1} parent=1 // loop_header_branch
      %15 = sbr.rel (%p13) target = $region8
    $region5: #{tpu_custom_call.1} parent=1 // loop_body
      %s17 = ssub.s32 %s12, 1
      %s18 = ssub.s32 %s12, 2
      %s19 = sadd.s32 %s12, 1
      %s20 = ssub.s32 %s12, %s19
      %p21 = scmp.eq.s32.totalorder %s20, 0
      %s23 = sadd.s32 %s22, 1
      %s24 = scalar_select %p21, %s22, %s23
      %p27 = pneg %p21
      %p28 = scmp.eq.s32.totalorder %s12, 1
      %p29 = por %p27, %p28
      %p30 = scmp.ne.s32.totalorder %s22, %s25
      %p31 = scmp.eq.s32.totalorder %s12, 0
      %p32 = por %p30, %p31
      %p33 = scmp.ne.s32.totalorder %s22, %s25
      %p34 = scmp.eq.s32.totalorder %s17, 1
      %p35 = por %p33, %p34
      %p36 = scmp.ne.s32.totalorder %s25, %s26
      %p37 = scmp.eq.s32.totalorder %s17, 0
      %p38 = por %p36, %p37
      %p39 = scmp.ne.s32.totalorder %s25, %s26
      %p40 = scmp.eq.s32.totalorder %s18, 1
      %p41 = por %p39, %p40
      %p43 = scmp.ne.s32.totalorder %s26, %s42
      %p44 = scmp.eq.s32.totalorder %s18, 0
      %p45 = por %p43, %p44
      %s47 = sadd.s32 %s46, 1
      %p50 = scmp.eq.s32.totalorder %s12, 1
      %p51 = scmp.ne.s32.totalorder %s46, %s48
      %p52 = scmp.eq.s32.totalorder %s12, 0
      %p53 = por %p51, %p52
      %p54 = scmp.ne.s32.totalorder %s46, %s48
      %p55 = scmp.eq.s32.totalorder %s17, 1
      %p56 = por %p54, %p55
      %p57 = scmp.ne.s32.totalorder %s48, %s49
      %p58 = scmp.eq.s32.totalorder %s17, 0
      %p59 = por %p57, %p58
      %p60 = scmp.ne.s32.totalorder %s48, %s49
      %p61 = scmp.eq.s32.totalorder %s18, 1
      %p62 = por %p60, %p61
      %p64 = scmp.ne.s32.totalorder %s49, %s63
      %p65 = scmp.eq.s32.totalorder %s18, 0
      %p66 = por %p64, %p65
      %s68 = sadd.s32 %s67, 1
      %p71 = scmp.eq.s32.totalorder %s12, 1
      %p72 = scmp.ne.s32.totalorder %s67, %s69
      %p73 = scmp.eq.s32.totalorder %s12, 0
      %p74 = por %p72, %p73
      %p75 = scmp.ne.s32.totalorder %s67, %s69
      %p76 = scmp.eq.s32.totalorder %s17, 1
      %p77 = por %p75, %p76
      %p78 = scmp.ne.s32.totalorder %s69, %s70
      %p79 = scmp.eq.s32.totalorder %s17, 0
      %p80 = por %p78, %p79
      %p81 = scmp.ne.s32.totalorder %s69, %s70
      %p82 = scmp.eq.s32.totalorder %s18, 1
      %p83 = por %p81, %p82
      %p85 = scmp.ne.s32.totalorder %s70, %s84
      %p86 = scmp.eq.s32.totalorder %s18, 0
      %p87 = por %p85, %p86
      %s88 = ssub.s32 %s12, %s19
      %p89 = scmp.eq.s32.totalorder %s88, 0
      %s91 = sadd.s32 %s90, 1
      %s92 = scalar_select %p89, %s90, %s91
      %p95 = pneg %p89
      %p96 = scmp.eq.s32.totalorder %s12, 1
      %p97 = por %p95, %p96
      %p98 = scmp.ne.s32.totalorder %s90, %s93
      %p99 = scmp.eq.s32.totalorder %s12, 0
      %p100 = por %p98, %p99
      %p101 = scmp.ne.s32.totalorder %s90, %s93
      %p102 = scmp.eq.s32.totalorder %s17, 1
      %p103 = por %p101, %p102
      %p104 = scmp.ne.s32.totalorder %s93, %s94
      %p105 = scmp.eq.s32.totalorder %s17, 0
      %p106 = por %p104, %p105
      %p107 = scmp.ne.s32.totalorder %s93, %s94
      %p108 = scmp.eq.s32.totalorder %s18, 1
      %p109 = por %p107, %p108
      %p111 = scmp.ne.s32.totalorder %s94, %s110
      %p112 = scmp.eq.s32.totalorder %s18, 0
      %p113 = por %p111, %p112
      %p114 = scmp.le.s32.totalorder 1, %s12
      %p115 = scmp.lt.s32.totalorder %s12, 3
      %p116 = pnand %p114, %p115
      %p117 = pneg %p116
      // Predicated region
      $region9: #{tpu_custom_call.1} parent=5 // pred_check
        _
      $region10: #{tpu_custom_call.1} parent=5 // pred_check_branch
        %119 = sbr.rel (%p116) target = $region12
      $region11: #{tpu_custom_call.1} parent=5 // pred_region
        %s120 = ssub.s32 %s12, 1
        // Predicated region
        $region13: #{tpu_custom_call.1} parent=11 // pred_check
          %p121 = pneg %p59
        $region14: #{tpu_custom_call.1} parent=11 // pred_check_branch
          %123 = sbr.rel (%p121) target = $region16
        $region15: #{tpu_custom_call.1} parent=11 // pred_region
          _
        $region16: #{tpu_custom_call.1} parent=11 // pred_fallthru
          _
        // Predicated region
        $region17: #{tpu_custom_call.1} parent=11 // pred_check
          %p124 = pneg %p80
        $region18: #{tpu_custom_call.1} parent=11 // pred_check_branch
          %126 = sbr.rel (%p124) target = $region20
        $region19: #{tpu_custom_call.1} parent=11 // pred_region
          _
        $region20: #{tpu_custom_call.1} parent=11 // pred_fallthru
          _
      $region12: #{tpu_custom_call.1} parent=5 // pred_fallthru
        _
      %p127 = scmp.lt.s32.totalorder %s12, 2
      // Predicated region
      $region21: #{tpu_custom_call.1} parent=5 // pred_check
        %p128 = pneg %p127
      $region22: #{tpu_custom_call.1} parent=5 // pred_check_branch
        %130 = sbr.rel (%p128) target = $region24
      $region23: #{tpu_custom_call.1} parent=5 // pred_region
        // Predicated region
        $region25: #{tpu_custom_call.1} parent=23 // pred_check
          %p131 = pneg %p32
        $region26: #{tpu_custom_call.1} parent=23 // pred_check_branch
          %133 = sbr.rel (%p131) target = $region28
        $region27: #{tpu_custom_call.1} parent=23 // pred_region
          %p134 = scmp.lt.s32.totalorder %s12, 1
          %s135 = scalar_select %p134, %s12, 1
          %s136 = smul.addr %s135, 5
          %s137 = smul.addr %s136, 2
          %s138 = scalar_lea.vmem %s0, %s137
        $region28: #{tpu_custom_call.1} parent=23 // pred_fallthru
          _
      $region24: #{tpu_custom_call.1} parent=5 // pred_fallthru
        _
      %p139 = scmp.le.s32.totalorder 1, %s12
      %p140 = scmp.lt.s32.totalorder %s12, 3
      %p141 = pnand %p139, %p140
      %p142 = pneg %p141
      // Predicated region
      $region29: #{tpu_custom_call.1} parent=5 // pred_check
        _
      $region30: #{tpu_custom_call.1} parent=5 // pred_check_branch
        %144 = sbr.rel (%p141) target = $region32
      $region31: #{tpu_custom_call.1} parent=5 // pred_region
        %s145 = ssub.s32 %s12, 1
        %p146 = scmp.lt.s32.totalorder %s17, 1
        %s147 = scalar_select %p146, %s17, 1
        %s148 = smul.addr %s147, 5
        %s149 = smul.addr %s148, 2
        %s150 = scalar_lea.vmem %s0, %s149
        %p151 = pneg %p38
        %p152 = pneg %p35
        %p153 = pneg %p59
        %p154 = pneg %p56
        %p155 = pneg %p80
        %p156 = pneg %p77
        %p157 = pneg %p106
        %p158 = pneg %p103
        %s159 = sand.u32 %s93, 1
        %s160 = scalar_lea.sflag [#allocation3], %s159
        %s161 = sand.u32 %s93, 1
        %s162 = smul.addr %s161, 24
        %s163 = scalar_lea.vmem [#allocation2], %s162
        %p164 = scmp.lt.s32.totalorder %s17, 1
        %s165 = scalar_select %p164, %s17, 1
        %s166 = smul.addr %s165, 5
        %s167 = smul.addr %s166, 2
        %s168 = scalar_lea.vmem %s0, %s167
        %v170 = vld [vmem:[%s168] sm:$0x3f]
        %v171 = vld [vmem:[%s1] sm:$0xf]
        %v172 = vld [vmem:[%s168] sm:$0xff]
        %s173 = scalar_lea.vmem %s1, 4
        %v174 = vld [vmem:[%s173] sm:$0xf]
        %v176 = vcombine.high %v172, %v172
        %v178 = vunpack.c.l.s4 1983009808
        %v179 = vunpack.c.0.s8 %v178
        %v180 = vlaneseq
        %v181 = vshrl.u32 %v180, 7
        %v182 = vsub.s32 %v179, %v181
        %v183 = vrot.slane %v172, %v182
        %v185 = vunpack.c.l.s4 1983009808
        %v186 = vunpack.c.0.s8 %v185
        %v187 = vlaneseq
        %v188 = vshrl.u32 %v187, 7
        %v189 = vsub.s32 %v186, %v188
        %v190 = vrot.slane %v176, %v189
        %v191 = vcombine.high %v183, %v183
        %v192 = vcombine.high %v190, %v190
        %193 = vrot.lane.b32.xlu0 %v183, 127
        %v194 = vpop.permute.xlu0 %193
        %195 = vrot.lane.b32.xlu0 %v191, 127
        %v196 = vpop.permute.xlu0 %195
        %197 = vrot.lane.b32.xlu0 %v190, 127
        %v198 = vpop.permute.xlu0 %197
        %199 = vrot.lane.b32.xlu0 %v192, 127
        %v200 = vpop.permute.xlu0 %199
        %vm201 = vcmask 1039360
        %v202 = vsel %vm201, %v194, %v196
        %v203 = vsel %vm201, %v196, %v198
        %v204 = vsel %vm201, %v198, %v200
        %vm205 = vcmask 31744
        %v207 = vsel %vm205, %v174, 0
        %vm209 = vcmask 1041408
        %v211 = vsel %vm209, %v202, 0
        %v214 = vsel %vm209, %v203, 0
        %v217 = vsel %vm209, %v204, 0
        %219 = vmatprep.subr.bf16.mxu0 %v214
        %220 = vmatpush1.bf16.msra.mxu0 %v211
        %221 = vmatprep.subr.bf16.mxu0 0
        %222 = vmatpush1.bf16.msra.mxu0 0
        %223 = vmatprep.subr.bf16.mxu0 0
        %224 = vmatpush1.bf16.msra.mxu0 0
        %225 = vmatprep.subr.bf16.mxu0 0
        %226 = vmatpush1.bf16.msra.mxu0 0
        %227 = vmatprep.subr.bf16.mxu0 0
        %228 = vmatpush1.bf16.msra.mxu0 0
        %229 = vmatprep.subr.bf16.mxu0 0
        %230 = vmatpush1.bf16.msra.mxu0 0
        %231 = vmatprep.subr.bf16.mxu0 0
        %232 = vmatpush1.bf16.msra.mxu0 0
        %233 = vmatprep.subr.bf16.mxu0 0
        %234 = vmatpush1.bf16.msra.mxu0 0
        %235 = vmatprep.subr.bf16.mxu0 0
        %236 = vmatpush1.bf16.msra.mxu0 0
        %237 = vmatprep.subr.bf16.mxu0 0
        %238 = vmatpush1.bf16.msra.mxu0 0
        %239 = vmatprep.subr.bf16.mxu0 0
        %240 = vmatpush1.bf16.msra.mxu0 0
        %241 = vmatprep.subr.bf16.mxu0 0
        %242 = vmatpush1.bf16.msra.mxu0 0
        %243 = vmatprep.subr.bf16.mxu0 0
        %244 = vmatpush1.bf16.msra.mxu0 0
        %245 = vmatprep.subr.bf16.mxu0 0
        %246 = vmatpush1.bf16.msra.mxu0 0
        %247 = vmatprep.subr.bf16.mxu0 0
        %248 = vmatpush1.bf16.msra.mxu0 0
        %249 = vmatprep.subr.bf16.mxu0 0
        %250 = vmatpush1.bf16.msra.mxu0 0
        %251 = vmatprep.mubr.bf16.mxu0 0
        %252 = vmatmul.mubr.bf16.gmra.mrb[0].mxu0 %v207
        %v253 = vpop.f32.mrb[0].mxu0
        %v254 = vadd.f32 0.0, %v253
        %v255 = vpop.f32.mrb[0].mxu0
        %v256 = vadd.f32 0.0, %v255
        %v257 = vpop.f32.mrb[0].mxu0
        %v258 = vpop.f32.mrb[0].mxu0
        %259 = vdwg.mxu0
        %260 = vmatprep.subr.bf16.mxu0 0
        %261 = vmatpush1.bf16.msra.mxu0 %v217
        %262 = vmatprep.subr.bf16.mxu0 0
        %263 = vmatpush1.bf16.msra.mxu0 0
        %264 = vmatprep.subr.bf16.mxu0 0
        %265 = vmatpush1.bf16.msra.mxu0 0
        %266 = vmatprep.subr.bf16.mxu0 0
        %267 = vmatpush1.bf16.msra.mxu0 0
        %268 = vmatprep.subr.bf16.mxu0 0
        %269 = vmatpush1.bf16.msra.mxu0 0
        %270 = vmatprep.subr.bf16.mxu0 0
        %271 = vmatpush1.bf16.msra.mxu0 0
        %272 = vmatprep.subr.bf16.mxu0 0
        %273 = vmatpush1.bf16.msra.mxu0 0
        %274 = vmatprep.subr.bf16.mxu0 0
        %275 = vmatpush1.bf16.msra.mxu0 0
        %276 = vmatprep.subr.bf16.mxu0 0
        %277 = vmatpush1.bf16.msra.mxu0 0
        %278 = vmatprep.subr.bf16.mxu0 0
        %279 = vmatpush1.bf16.msra.mxu0 0
        %280 = vmatprep.subr.bf16.mxu0 0
        %281 = vmatpush1.bf16.msra.mxu0 0
        %282 = vmatprep.subr.bf16.mxu0 0
        %283 = vmatpush1.bf16.msra.mxu0 0
        %284 = vmatprep.subr.bf16.mxu0 0
        %285 = vmatpush1.bf16.msra.mxu0 0
        %286 = vmatprep.subr.bf16.mxu0 0
        %287 = vmatpush1.bf16.msra.mxu0 0
        %288 = vmatprep.subr.bf16.mxu0 0
        %289 = vmatpush1.bf16.msra.mxu0 0
        %290 = vmatprep.subr.bf16.mxu0 0
        %291 = vmatpush1.bf16.msra.mxu0 0
        %292 = vmatprep.mubr.bf16.mxu0 0
        %293 = vmatmul.mubr.bf16.gmra.mrb[0].mxu0 %v207
        %v294 = vpop.f32.mrb[0].mxu0
        %v295 = vadd.f32 0.0, %v294
        %v296 = vpop.f32.mrb[0].mxu0
        %v297 = vpop.f32.mrb[0].mxu0
        %v298 = vpop.f32.mrb[0].mxu0
        %299 = vdwg.mxu0
        %v301 = vcombine.high %v170, %v170
        %v303 = vunpack.c.l.s4 1983009808
        %v304 = vunpack.c.0.s8 %v303
        %v305 = vlaneseq
        %v306 = vshrl.u32 %v305, 7
        %v307 = vsub.s32 %v304, %v306
        %v308 = vrot.slane %v170, %v307
        %v310 = vunpack.c.l.s4 1983009808
        %v311 = vunpack.c.0.s8 %v310
        %v312 = vlaneseq
        %v313 = vshrl.u32 %v312, 7
        %v314 = vsub.s32 %v311, %v313
        %v315 = vrot.slane %v301, %v314
        %v316 = vcombine.high %v308, %v308
        %v318 = vsel %vm205, %v171, 0
        %v321 = vsel %vm209, %v308, 0
        %v324 = vsel %vm209, %v316, 0
        %v327 = vsel %vm209, %v315, 0
        %329 = vmatprep.subr.bf16.mxu0 %v324
        %330 = vmatpush1.bf16.msra.mxu0 %v321
        %331 = vmatprep.subr.bf16.mxu0 0
        %332 = vmatpush1.bf16.msra.mxu0 0
        %333 = vmatprep.subr.bf16.mxu0 0
        %334 = vmatpush1.bf16.msra.mxu0 0
        %335 = vmatprep.subr.bf16.mxu0 0
        %336 = vmatpush1.bf16.msra.mxu0 0
        %337 = vmatprep.subr.bf16.mxu0 0
        %338 = vmatpush1.bf16.msra.mxu0 0
        %339 = vmatprep.subr.bf16.mxu0 0
        %340 = vmatpush1.bf16.msra.mxu0 0
        %341 = vmatprep.subr.bf16.mxu0 0
        %342 = vmatpush1.bf16.msra.mxu0 0
        %343 = vmatprep.subr.bf16.mxu0 0
        %344 = vmatpush1.bf16.msra.mxu0 0
        %345 = vmatprep.subr.bf16.mxu0 0
        %346 = vmatpush1.bf16.msra.mxu0 0
        %347 = vmatprep.subr.bf16.mxu0 0
        %348 = vmatpush1.bf16.msra.mxu0 0
        %349 = vmatprep.subr.bf16.mxu0 0
        %350 = vmatpush1.bf16.msra.mxu0 0
        %351 = vmatprep.subr.bf16.mxu0 0
        %352 = vmatpush1.bf16.msra.mxu0 0
        %353 = vmatprep.subr.bf16.mxu0 0
        %354 = vmatpush1.bf16.msra.mxu0 0
        %355 = vmatprep.subr.bf16.mxu0 0
        %356 = vmatpush1.bf16.msra.mxu0 0
        %357 = vmatprep.subr.bf16.mxu0 0
        %358 = vmatpush1.bf16.msra.mxu0 0
        %359 = vmatprep.subr.bf16.mxu0 0
        %360 = vmatpush1.bf16.msra.mxu0 0
        %361 = vmatprep.mubr.bf16.mxu0 0
        %362 = vmatmul.mubr.bf16.gmra.mrb[0].mxu0 %v318
        %v363 = vpop.f32.mrb[0].mxu0
        %v364 = vadd.f32 %v254, %v363
        %v365 = vpop.f32.mrb[0].mxu0
        %v366 = vadd.f32 %v256, %v365
        %v367 = vpop.f32.mrb[0].mxu0
        %v368 = vpop.f32.mrb[0].mxu0
        %369 = vdwg.mxu0
        %370 = vmatprep.subr.bf16.mxu0 0
        %371 = vmatpush1.bf16.msra.mxu0 %v327
        %372 = vmatprep.subr.bf16.mxu0 0
        %373 = vmatpush1.bf16.msra.mxu0 0
        %374 = vmatprep.subr.bf16.mxu0 0
        %375 = vmatpush1.bf16.msra.mxu0 0
        %376 = vmatprep.subr.bf16.mxu0 0
        %377 = vmatpush1.bf16.msra.mxu0 0
        %378 = vmatprep.subr.bf16.mxu0 0
        %379 = vmatpush1.bf16.msra.mxu0 0
        %380 = vmatprep.subr.bf16.mxu0 0
        %381 = vmatpush1.bf16.msra.mxu0 0
        %382 = vmatprep.subr.bf16.mxu0 0
        %383 = vmatpush1.bf16.msra.mxu0 0
        %384 = vmatprep.subr.bf16.mxu0 0
        %385 = vmatpush1.bf16.msra.mxu0 0
        %386 = vmatprep.subr.bf16.mxu0 0
        %387 = vmatpush1.bf16.msra.mxu0 0
        %388 = vmatprep.subr.bf16.mxu0 0
        %389 = vmatpush1.bf16.msra.mxu0 0
        %390 = vmatprep.subr.bf16.mxu0 0
        %391 = vmatpush1.bf16.msra.mxu0 0
        %392 = vmatprep.subr.bf16.mxu0 0
        %393 = vmatpush1.bf16.msra.mxu0 0
        %394 = vmatprep.subr.bf16.mxu0 0
        %395 = vmatpush1.bf16.msra.mxu0 0
        %396 = vmatprep.subr.bf16.mxu0 0
        %397 = vmatpush1.bf16.msra.mxu0 0
        %398 = vmatprep.subr.bf16.mxu0 0
        %399 = vmatpush1.bf16.msra.mxu0 0
        %400 = vmatprep.subr.bf16.mxu0 0
        %401 = vmatpush1.bf16.msra.mxu0 0
        %402 = vmatprep.mubr.bf16.mxu0 0
        %403 = vmatmul.mubr.bf16.gmra.mrb[0].mxu0 %v318
        %v404 = vpop.f32.mrb[0].mxu0
        %v405 = vadd.f32 %v295, %v404
        %v406 = vpop.f32.mrb[0].mxu0
        %v407 = vpop.f32.mrb[0].mxu0
        %v408 = vpop.f32.mrb[0].mxu0
        %409 = vdwg.mxu0
        %v410 = vld [vmem:[%s168] sm:$0xff]
        %s411 = scalar_lea.vmem %s1, 8
        %v412 = vld [vmem:[%s411] sm:$0xf]
        %v414 = vcombine.high %v410, %v410
        %v416 = vunpack.c.l.s4 1983009808
        %v417 = vunpack.c.0.s8 %v416
        %v418 = vlaneseq
        %v419 = vshrl.u32 %v418, 7
        %v420 = vsub.s32 %v417, %v419
        %v421 = vrot.slane %v410, %v420
        %v423 = vunpack.c.l.s4 1983009808
        %v424 = vunpack.c.0.s8 %v423
        %v425 = vlaneseq
        %v426 = vshrl.u32 %v425, 7
        %v427 = vsub.s32 %v424, %v426
        %v428 = vrot.slane %v414, %v427
        %v429 = vcombine.high %v421, %v421
        %v430 = vcombine.high %v428, %v428
        %431 = vrot.lane.b32.xlu0 %v421, 126
        %v432 = vpop.permute.xlu0 %431
        %433 = vrot.lane.b32.xlu0 %v429, 126
        %v434 = vpop.permute.xlu0 %433
        %435 = vrot.lane.b32.xlu0 %v428, 126
        %v436 = vpop.permute.xlu0 %435
        %437 = vrot.lane.b32.xlu0 %v430, 126
        %v438 = vpop.permute.xlu0 %437
        %vm439 = vcmask 1031168
        %v440 = vsel %vm439, %v432, %v434
        %v441 = vsel %vm439, %v434, %v436
        %v442 = vsel %vm439, %v436, %v438
        %v444 = vsel %vm205, %v412, 0
        %v447 = vsel %vm209, %v440, 0
        %v450 = vsel %vm209, %v441, 0
        %v453 = vsel %vm209, %v442, 0
        %455 = vmatprep.subr.bf16.mxu0 %v450
        %456 = vmatpush1.bf16.msra.mxu0 %v447
        %457 = vmatprep.subr.bf16.mxu0 0
        %458 = vmatpush1.bf16.msra.mxu0 0
        %459 = vmatprep.subr.bf16.mxu0 0
        %460 = vmatpush1.bf16.msra.mxu0 0
        %461 = vmatprep.subr.bf16.mxu0 0
        %462 = vmatpush1.bf16.msra.mxu0 0
        %463 = vmatprep.subr.bf16.mxu0 0
        %464 = vmatpush1.bf16.msra.mxu0 0
        %465 = vmatprep.subr.bf16.mxu0 0
        %466 = vmatpush1.bf16.msra.mxu0 0
        %467 = vmatprep.subr.bf16.mxu0 0
        %468 = vmatpush1.bf16.msra.mxu0 0
        %469 = vmatprep.subr.bf16.mxu0 0
        %470 = vmatpush1.bf16.msra.mxu0 0
        %471 = vmatprep.subr.bf16.mxu0 0
        %472 = vmatpush1.bf16.msra.mxu0 0
        %473 = vmatprep.subr.bf16.mxu0 0
        %474 = vmatpush1.bf16.msra.mxu0 0
        %475 = vmatprep.subr.bf16.mxu0 0
        %476 = vmatpush1.bf16.msra.mxu0 0
        %477 = vmatprep.subr.bf16.mxu0 0
        %478 = vmatpush1.bf16.msra.mxu0 0
        %479 = vmatprep.subr.bf16.mxu0 0
        %480 = vmatpush1.bf16.msra.mxu0 0
        %481 = vmatprep.subr.bf16.mxu0 0
        %482 = vmatpush1.bf16.msra.mxu0 0
        %483 = vmatprep.subr.bf16.mxu0 0
        %484 = vmatpush1.bf16.msra.mxu0 0
        %485 = vmatprep.subr.bf16.mxu0 0
        %486 = vmatpush1.bf16.msra.mxu0 0
        %487 = vmatprep.mubr.bf16.mxu0 0
        %488 = vmatmul.mubr.bf16.gmra.mrb[0].mxu0 %v444
        %v489 = vpop.f32.mrb[0].mxu0
        %v490 = vadd.f32 0.0, %v489
        %v491 = vpop.f32.mrb[0].mxu0
        %v492 = vadd.f32 0.0, %v491
        %v493 = vpop.f32.mrb[0].mxu0
        %v494 = vpop.f32.mrb[0].mxu0
        %495 = vdwg.mxu0
        %496 = vmatprep.subr.bf16.mxu0 0
        %497 = vmatpush1.bf16.msra.mxu0 %v453
        %498 = vmatprep.subr.bf16.mxu0 0
        %499 = vmatpush1.bf16.msra.mxu0 0
        %500 = vmatprep.subr.bf16.mxu0 0
        %501 = vmatpush1.bf16.msra.mxu0 0
        %502 = vmatprep.subr.bf16.mxu0 0
        %503 = vmatpush1.bf16.msra.mxu0 0
        %504 = vmatprep.subr.bf16.mxu0 0
        %505 = vmatpush1.bf16.msra.mxu0 0
        %506 = vmatprep.subr.bf16.mxu0 0
        %507 = vmatpush1.bf16.msra.mxu0 0
        %508 = vmatprep.subr.bf16.mxu0 0
        %509 = vmatpush1.bf16.msra.mxu0 0
        %510 = vmatprep.subr.bf16.mxu0 0
        %511 = vmatpush1.bf16.msra.mxu0 0
        %512 = vmatprep.subr.bf16.mxu0 0
        %513 = vmatpush1.bf16.msra.mxu0 0
        %514 = vmatprep.subr.bf16.mxu0 0
        %515 = vmatpush1.bf16.msra.mxu0 0
        %516 = vmatprep.subr.bf16.mxu0 0
        %517 = vmatpush1.bf16.msra.mxu0 0
        %518 = vmatprep.subr.bf16.mxu0 0
        %519 = vmatpush1.bf16.msra.mxu0 0
        %520 = vmatprep.subr.bf16.mxu0 0
        %521 = vmatpush1.bf16.msra.mxu0 0
        %522 = vmatprep.subr.bf16.mxu0 0
        %523 = vmatpush1.bf16.msra.mxu0 0
        %524 = vmatprep.subr.bf16.mxu0 0
        %525 = vmatpush1.bf16.msra.mxu0 0
        %526 = vmatprep.subr.bf16.mxu0 0
        %527 = vmatpush1.bf16.msra.mxu0 0
        %528 = vmatprep.mubr.bf16.mxu0 0
        %529 = vmatmul.mubr.bf16.gmra.mrb[0].mxu0 %v444
        %v530 = vpop.f32.mrb[0].mxu0
        %v531 = vadd.f32 0.0, %v530
        %v532 = vpop.f32.mrb[0].mxu0
        %v533 = vpop.f32.mrb[0].mxu0
        %v534 = vpop.f32.mrb[0].mxu0
        %535 = vdwg.mxu0
        %v536 = vadd.f32 %v364, %v490
        %v537 = vadd.f32 %v366, %v492
        %v538 = vadd.f32 %v405, %v531
        %v539 = vld [vmem:[%s168] sm:$0xff]
        %s540 = scalar_lea.vmem %s1, 12
        %v541 = vld [vmem:[%s540] sm:$0xf]
        %v543 = vcombine.high %v539, %v539
        %v545 = vunpack.c.l.s4 1983009808
        %v546 = vunpack.c.0.s8 %v545
        %v547 = vlaneseq
        %v548 = vshrl.u32 %v547, 7
        %v549 = vsub.s32 %v546, %v548
        %v550 = vrot.slane %v539, %v549
        %v552 = vunpack.c.l.s4 1983009808
        %v553 = vunpack.c.0.s8 %v552
        %v554 = vlaneseq
        %v555 = vshrl.u32 %v554, 7
        %v556 = vsub.s32 %v553, %v555
        %v557 = vrot.slane %v543, %v556
        %v558 = vcombine.high %v550, %v550
        %v559 = vcombine.high %v557, %v557
        %560 = vrot.lane.b32.xlu0 %v550, 125
        %v561 = vpop.permute.xlu0 %560
        %562 = vrot.lane.b32.xlu0 %v558, 125
        %v563 = vpop.permute.xlu0 %562
        %564 = vrot.lane.b32.xlu0 %v557, 125
        %v565 = vpop.permute.xlu0 %564
        %566 = vrot.lane.b32.xlu0 %v559, 125
        %v567 = vpop.permute.xlu0 %566
        %vm568 = vcmask 1022976
        %v569 = vsel %vm568, %v561, %v563
        %v570 = vsel %vm568, %v563, %v565
        %v571 = vsel %vm568, %v565, %v567
        %v573 = vsel %vm205, %v541, 0
        %v576 = vsel %vm209, %v569, 0
        %v579 = vsel %vm209, %v570, 0
        %v582 = vsel %vm209, %v571, 0
        %584 = vmatprep.subr.bf16.mxu0 %v579
        %585 = vmatpush1.bf16.msra.mxu0 %v576
        %586 = vmatprep.subr.bf16.mxu0 0
        %587 = vmatpush1.bf16.msra.mxu0 0
        %588 = vmatprep.subr.bf16.mxu0 0
        %589 = vmatpush1.bf16.msra.mxu0 0
        %590 = vmatprep.subr.bf16.mxu0 0
        %591 = vmatpush1.bf16.msra.mxu0 0
        %592 = vmatprep.subr.bf16.mxu0 0
        %593 = vmatpush1.bf16.msra.mxu0 0
        %594 = vmatprep.subr.bf16.mxu0 0
        %595 = vmatpush1.bf16.msra.mxu0 0
        %596 = vmatprep.subr.bf16.mxu0 0
        %597 = vmatpush1.bf16.msra.mxu0 0
        %598 = vmatprep.subr.bf16.mxu0 0
        %599 = vmatpush1.bf16.msra.mxu0 0
        %600 = vmatprep.subr.bf16.mxu0 0
        %601 = vmatpush1.bf16.msra.mxu0 0
        %602 = vmatprep.subr.bf16.mxu0 0
        %603 = vmatpush1.bf16.msra.mxu0 0
        %604 = vmatprep.subr.bf16.mxu0 0
        %605 = vmatpush1.bf16.msra.mxu0 0
        %606 = vmatprep.subr.bf16.mxu0 0
        %607 = vmatpush1.bf16.msra.mxu0 0
        %608 = vmatprep.subr.bf16.mxu0 0
        %609 = vmatpush1.bf16.msra.mxu0 0
        %610 = vmatprep.subr.bf16.mxu0 0
        %611 = vmatpush1.bf16.msra.mxu0 0
        %612 = vmatprep.subr.bf16.mxu0 0
        %613 = vmatpush1.bf16.msra.mxu0 0
        %614 = vmatprep.subr.bf16.mxu0 0
        %615 = vmatpush1.bf16.msra.mxu0 0
        %616 = vmatprep.mubr.bf16.mxu0 0
        %617 = vmatmul.mubr.bf16.gmra.mrb[0].mxu0 %v573
        %v618 = vpop.f32.mrb[0].mxu0
        %v619 = vadd.f32 0.0, %v618
        %v620 = vpop.f32.mrb[0].mxu0
        %v621 = vadd.f32 0.0, %v620
        %v622 = vpop.f32.mrb[0].mxu0
        %v623 = vpop.f32.mrb[0].mxu0
        %624 = vdwg.mxu0
        %625 = vmatprep.subr.bf16.mxu0 0
        %626 = vmatpush1.bf16.msra.mxu0 %v582
        %627 = vmatprep.subr.bf16.mxu0 0
        %628 = vmatpush1.bf16.msra.mxu0 0
        %629 = vmatprep.subr.bf16.mxu0 0
        %630 = vmatpush1.bf16.msra.mxu0 0
        %631 = vmatprep.subr.bf16.mxu0 0
        %632 = vmatpush1.bf16.msra.mxu0 0
        %633 = vmatprep.subr.bf16.mxu0 0
        %634 = vmatpush1.bf16.msra.mxu0 0
        %635 = vmatprep.subr.bf16.mxu0 0
        %636 = vmatpush1.bf16.msra.mxu0 0
        %637 = vmatprep.subr.bf16.mxu0 0
        %638 = vmatpush1.bf16.msra.mxu0 0
        %639 = vmatprep.subr.bf16.mxu0 0
        %640 = vmatpush1.bf16.msra.mxu0 0
        %641 = vmatprep.subr.bf16.mxu0 0
        %642 = vmatpush1.bf16.msra.mxu0 0
        %643 = vmatprep.subr.bf16.mxu0 0
        %644 = vmatpush1.bf16.msra.mxu0 0
        %645 = vmatprep.subr.bf16.mxu0 0
        %646 = vmatpush1.bf16.msra.mxu0 0
        %647 = vmatprep.subr.bf16.mxu0 0
        %648 = vmatpush1.bf16.msra.mxu0 0
        %649 = vmatprep.subr.bf16.mxu0 0
        %650 = vmatpush1.bf16.msra.mxu0 0
        %651 = vmatprep.subr.bf16.mxu0 0
        %652 = vmatpush1.bf16.msra.mxu0 0
        %653 = vmatprep.subr.bf16.mxu0 0
        %654 = vmatpush1.bf16.msra.mxu0 0
        %655 = vmatprep.subr.bf16.mxu0 0
        %656 = vmatpush1.bf16.msra.mxu0 0
        %657 = vmatprep.mubr.bf16.mxu0 0
        %658 = vmatmul.mubr.bf16.gmra.mrb[0].mxu0 %v573
        %v659 = vpop.f32.mrb[0].mxu0
        %v660 = vadd.f32 0.0, %v659
        %v661 = vpop.f32.mrb[0].mxu0
        %v662 = vpop.f32.mrb[0].mxu0
        %v663 = vpop.f32.mrb[0].mxu0
        %664 = vdwg.mxu0
        %v665 = vadd.f32 %v536, %v619
        %v666 = vadd.f32 %v537, %v621
        %v667 = vadd.f32 %v538, %v660
        %v668 = vld [vmem:[%s168] sm:$0xff]
        %s669 = scalar_lea.vmem %s1, 16
        %v670 = vld [vmem:[%s669] sm:$0xf]
        %v672 = vcombine.high %v668, %v668
        %v674 = vunpack.c.l.s4 1983009808
        %v675 = vunpack.c.0.s8 %v674
        %v676 = vlaneseq
        %v677 = vshrl.u32 %v676, 7
        %v678 = vsub.s32 %v675, %v677
        %v679 = vrot.slane %v668, %v678
        %v681 = vunpack.c.l.s4 1983009808
        %v682 = vunpack.c.0.s8 %v681
        %v683 = vlaneseq
        %v684 = vshrl.u32 %v683, 7
        %v685 = vsub.s32 %v682, %v684
        %v686 = vrot.slane %v672, %v685
        %v687 = vcombine.high %v679, %v679
        %v688 = vcombine.high %v686, %v686
        %689 = vrot.lane.b32.xlu0 %v679, 124
        %v690 = vpop.permute.xlu0 %689
        %691 = vrot.lane.b32.xlu0 %v687, 124
        %v692 = vpop.permute.xlu0 %691
        %693 = vrot.lane.b32.xlu0 %v686, 124
        %v694 = vpop.permute.xlu0 %693
        %695 = vrot.lane.b32.xlu0 %v688, 124
        %v696 = vpop.permute.xlu0 %695
        %vm697 = vcmask 1014784
        %v698 = vsel %vm697, %v690, %v692
        %v699 = vsel %vm697, %v692, %v694
        %v700 = vsel %vm697, %v694, %v696
        %v702 = vsel %vm205, %v670, 0
        %v705 = vsel %vm209, %v698, 0
        %v708 = vsel %vm209, %v699, 0
        %v711 = vsel %vm209, %v700, 0
        %713 = vmatprep.subr.bf16.mxu0 %v708
        %714 = vmatpush1.bf16.msra.mxu0 %v705
        %715 = vmatprep.subr.bf16.mxu0 0
        %716 = vmatpush1.bf16.msra.mxu0 0
        %717 = vmatprep.subr.bf16.mxu0 0
        %718 = vmatpush1.bf16.msra.mxu0 0
        %719 = vmatprep.subr.bf16.mxu0 0
        %720 = vmatpush1.bf16.msra.mxu0 0
        %721 = vmatprep.subr.bf16.mxu0 0
        %722 = vmatpush1.bf16.msra.mxu0 0
        %723 = vmatprep.subr.bf16.mxu0 0
        %724 = vmatpush1.bf16.msra.mxu0 0
        %725 = vmatprep.subr.bf16.mxu0 0
        %726 = vmatpush1.bf16.msra.mxu0 0
        %727 = vmatprep.subr.bf16.mxu0 0
        %728 = vmatpush1.bf16.msra.mxu0 0
        %729 = vmatprep.subr.bf16.mxu0 0
        %730 = vmatpush1.bf16.msra.mxu0 0
        %731 = vmatprep.subr.bf16.mxu0 0
        %732 = vmatpush1.bf16.msra.mxu0 0
        %733 = vmatprep.subr.bf16.mxu0 0
        %734 = vmatpush1.bf16.msra.mxu0 0
        %735 = vmatprep.subr.bf16.mxu0 0
        %736 = vmatpush1.bf16.msra.mxu0 0
        %737 = vmatprep.subr.bf16.mxu0 0
        %738 = vmatpush1.bf16.msra.mxu0 0
        %739 = vmatprep.subr.bf16.mxu0 0
        %740 = vmatpush1.bf16.msra.mxu0 0
        %741 = vmatprep.subr.bf16.mxu0 0
        %742 = vmatpush1.bf16.msra.mxu0 0
        %743 = vmatprep.subr.bf16.mxu0 0
        %744 = vmatpush1.bf16.msra.mxu0 0
        %745 = vmatprep.mubr.bf16.mxu0 0
        %746 = vmatmul.mubr.bf16.gmra.mrb[0].mxu0 %v702
        %v747 = vpop.f32.mrb[0].mxu0
        %v748 = vadd.f32 0.0, %v747
        %v749 = vpop.f32.mrb[0].mxu0
        %v750 = vadd.f32 0.0, %v749
        %v751 = vpop.f32.mrb[0].mxu0
        %v752 = vpop.f32.mrb[0].mxu0
        %753 = vdwg.mxu0
        %754 = vmatprep.subr.bf16.mxu0 0
        %755 = vmatpush1.bf16.msra.mxu0 %v711
        %756 = vmatprep.subr.bf16.mxu0 0
        %757 = vmatpush1.bf16.msra.mxu0 0
        %758 = vmatprep.subr.bf16.mxu0 0
        %759 = vmatpush1.bf16.msra.mxu0 0
        %760 = vmatprep.subr.bf16.mxu0 0
        %761 = vmatpush1.bf16.msra.mxu0 0
        %762 = vmatprep.subr.bf16.mxu0 0
        %763 = vmatpush1.bf16.msra.mxu0 0
        %764 = vmatprep.subr.bf16.mxu0 0
        %765 = vmatpush1.bf16.msra.mxu0 0
        %766 = vmatprep.subr.bf16.mxu0 0
        %767 = vmatpush1.bf16.msra.mxu0 0
        %768 = vmatprep.subr.bf16.mxu0 0
        %769 = vmatpush1.bf16.msra.mxu0 0
        %770 = vmatprep.subr.bf16.mxu0 0
        %771 = vmatpush1.bf16.msra.mxu0 0
        %772 = vmatprep.subr.bf16.mxu0 0
        %773 = vmatpush1.bf16.msra.mxu0 0
        %774 = vmatprep.subr.bf16.mxu0 0
        %775 = vmatpush1.bf16.msra.mxu0 0
        %776 = vmatprep.subr.bf16.mxu0 0
        %777 = vmatpush1.bf16.msra.mxu0 0
        %778 = vmatprep.subr.bf16.mxu0 0
        %779 = vmatpush1.bf16.msra.mxu0 0
        %780 = vmatprep.subr.bf16.mxu0 0
        %781 = vmatpush1.bf16.msra.mxu0 0
        %782 = vmatprep.subr.bf16.mxu0 0
        %783 = vmatpush1.bf16.msra.mxu0 0
        %784 = vmatprep.subr.bf16.mxu0 0
        %785 = vmatpush1.bf16.msra.mxu0 0
        %786 = vmatprep.mubr.bf16.mxu0 0
        %787 = vmatmul.mubr.bf16.gmra.mrb[0].mxu0 %v702
        %v788 = vpop.f32.mrb[0].mxu0
        %v789 = vadd.f32 0.0, %v788
        %v790 = vpop.f32.mrb[0].mxu0
        %v791 = vpop.f32.mrb[0].mxu0
        %v792 = vpop.f32.mrb[0].mxu0
        %793 = vdwg.mxu0
        %v794 = vadd.f32 %v665, %v748
        %v795 = vadd.f32 %v666, %v750
        %v796 = vadd.f32 %v667, %v789
        %v797 = vld [vmem:[%s168] sm:$0xff]
        %s798 = scalar_lea.vmem %s1, 20
        %v799 = vld [vmem:[%s798] sm:$0xf]
        %v801 = vcombine.high %v797, %v797
        %v803 = vunpack.c.l.s4 1983009808
        %v804 = vunpack.c.0.s8 %v803
        %v805 = vlaneseq
        %v806 = vshrl.u32 %v805, 7
        %v807 = vsub.s32 %v804, %v806
        %v808 = vrot.slane %v797, %v807
        %v810 = vunpack.c.l.s4 1983009808
        %v811 = vunpack.c.0.s8 %v810
        %v812 = vlaneseq
        %v813 = vshrl.u32 %v812, 7
        %v814 = vsub.s32 %v811, %v813
        %v815 = vrot.slane %v801, %v814
        %v816 = vcombine.high %v808, %v808
        %v817 = vcombine.high %v815, %v815
        %818 = vrot.lane.b32.xlu0 %v808, 123
        %v819 = vpop.permute.xlu0 %818
        %820 = vrot.lane.b32.xlu0 %v816, 123
        %v821 = vpop.permute.xlu0 %820
        %822 = vrot.lane.b32.xlu0 %v815, 123
        %v823 = vpop.permute.xlu0 %822
        %824 = vrot.lane.b32.xlu0 %v817, 123
        %v825 = vpop.permute.xlu0 %824
        %vm826 = vcmask 1006592
        %v827 = vsel %vm826, %v819, %v821
        %v828 = vsel %vm826, %v821, %v823
        %v829 = vsel %vm826, %v823, %v825
        %v831 = vsel %vm205, %v799, 0
        %v834 = vsel %vm209, %v827, 0
        %v837 = vsel %vm209, %v828, 0
        %v840 = vsel %vm209, %v829, 0
        %842 = vmatprep.subr.bf16.mxu0 %v837
        %843 = vmatpush1.bf16.msra.mxu0 %v834
        %844 = vmatprep.subr.bf16.mxu0 0
        %845 = vmatpush1.bf16.msra.mxu0 0
        %846 = vmatprep.subr.bf16.mxu0 0
        %847 = vmatpush1.bf16.msra.mxu0 0
        %848 = vmatprep.subr.bf16.mxu0 0
        %849 = vmatpush1.bf16.msra.mxu0 0
        %850 = vmatprep.subr.bf16.mxu0 0
        %851 = vmatpush1.bf16.msra.mxu0 0
        %852 = vmatprep.subr.bf16.mxu0 0
        %853 = vmatpush1.bf16.msra.mxu0 0
        %854 = vmatprep.subr.bf16.mxu0 0
        %855 = vmatpush1.bf16.msra.mxu0 0
        %856 = vmatprep.subr.bf16.mxu0 0
        %857 = vmatpush1.bf16.msra.mxu0 0
        %858 = vmatprep.subr.bf16.mxu0 0
        %859 = vmatpush1.bf16.msra.mxu0 0
        %860 = vmatprep.subr.bf16.mxu0 0
        %861 = vmatpush1.bf16.msra.mxu0 0
        %862 = vmatprep.subr.bf16.mxu0 0
        %863 = vmatpush1.bf16.msra.mxu0 0
        %864 = vmatprep.subr.bf16.mxu0 0
        %865 = vmatpush1.bf16.msra.mxu0 0
        %866 = vmatprep.subr.bf16.mxu0 0
        %867 = vmatpush1.bf16.msra.mxu0 0
        %868 = vmatprep.subr.bf16.mxu0 0
        %869 = vmatpush1.bf16.msra.mxu0 0
        %870 = vmatprep.subr.bf16.mxu0 0
        %871 = vmatpush1.bf16.msra.mxu0 0
        %872 = vmatprep.subr.bf16.mxu0 0
        %873 = vmatpush1.bf16.msra.mxu0 0
        %874 = vmatprep.mubr.bf16.mxu0 0
        %875 = vmatmul.mubr.bf16.gmra.mrb[0].mxu0 %v831
        %v876 = vpop.f32.mrb[0].mxu0
        %v877 = vadd.f32 0.0, %v876
        %v878 = vpop.f32.mrb[0].mxu0
        %v879 = vadd.f32 0.0, %v878
        %v880 = vpop.f32.mrb[0].mxu0
        %v881 = vpop.f32.mrb[0].mxu0
        %882 = vdwg.mxu0
        %883 = vmatprep.subr.bf16.mxu0 0
        %884 = vmatpush1.bf16.msra.mxu0 %v840
        %885 = vmatprep.subr.bf16.mxu0 0
        %886 = vmatpush1.bf16.msra.mxu0 0
        %887 = vmatprep.subr.bf16.mxu0 0
        %888 = vmatpush1.bf16.msra.mxu0 0
        %889 = vmatprep.subr.bf16.mxu0 0
        %890 = vmatpush1.bf16.msra.mxu0 0
        %891 = vmatprep.subr.bf16.mxu0 0
        %892 = vmatpush1.bf16.msra.mxu0 0
        %893 = vmatprep.subr.bf16.mxu0 0
        %894 = vmatpush1.bf16.msra.mxu0 0
        %895 = vmatprep.subr.bf16.mxu0 0
        %896 = vmatpush1.bf16.msra.mxu0 0
        %897 = vmatprep.subr.bf16.mxu0 0
        %898 = vmatpush1.bf16.msra.mxu0 0
        %899 = vmatprep.subr.bf16.mxu0 0
        %900 = vmatpush1.bf16.msra.mxu0 0
        %901 = vmatprep.subr.bf16.mxu0 0
        %902 = vmatpush1.bf16.msra.mxu0 0
        %903 = vmatprep.subr.bf16.mxu0 0
        %904 = vmatpush1.bf16.msra.mxu0 0
        %905 = vmatprep.subr.bf16.mxu0 0
        %906 = vmatpush1.bf16.msra.mxu0 0
        %907 = vmatprep.subr.bf16.mxu0 0
        %908 = vmatpush1.bf16.msra.mxu0 0
        %909 = vmatprep.subr.bf16.mxu0 0
        %910 = vmatpush1.bf16.msra.mxu0 0
        %911 = vmatprep.subr.bf16.mxu0 0
        %912 = vmatpush1.bf16.msra.mxu0 0
        %913 = vmatprep.subr.bf16.mxu0 0
        %914 = vmatpush1.bf16.msra.mxu0 0
        %915 = vmatprep.mubr.bf16.mxu0 0
        %916 = vmatmul.mubr.bf16.gmra.mrb[0].mxu0 %v831
        %v917 = vpop.f32.mrb[0].mxu0
        %v918 = vadd.f32 0.0, %v917
        %v919 = vpop.f32.mrb[0].mxu0
        %v920 = vpop.f32.mrb[0].mxu0
        %v921 = vpop.f32.mrb[0].mxu0
        %922 = vdwg.mxu0
        %v923 = vadd.f32 %v794, %v877
        %v924 = vadd.f32 %v795, %v879
        %v925 = vadd.f32 %v796, %v918
        %v926 = vld [vmem:[%s168] sm:$0xff]
        %s927 = scalar_lea.vmem %s1, 24
        %v928 = vld [vmem:[%s927] sm:$0xf]
        %v930 = vcombine.high %v926, %v926
        %v932 = vunpack.c.l.s4 1983009808
        %v933 = vunpack.c.0.s8 %v932
        %v934 = vlaneseq
        %v935 = vshrl.u32 %v934, 7
        %v936 = vsub.s32 %v933, %v935
        %v937 = vrot.slane %v926, %v936
        %v939 = vunpack.c.l.s4 1983009808
        %v940 = vunpack.c.0.s8 %v939
        %v941 = vlaneseq
        %v942 = vshrl.u32 %v941, 7
        %v943 = vsub.s32 %v940, %v942
        %v944 = vrot.slane %v930, %v943
        %v945 = vcombine.high %v937, %v937
        %v946 = vcombine.high %v944, %v944
        %947 = vrot.lane.b32.xlu0 %v937, 122
        %v948 = vpop.permute.xlu0 %947
        %949 = vrot.lane.b32.xlu0 %v945, 122
        %v950 = vpop.permute.xlu0 %949
        %951 = vrot.lane.b32.xlu0 %v944, 122
        %v952 = vpop.permute.xlu0 %951
        %953 = vrot.lane.b32.xlu0 %v946, 122
        %v954 = vpop.permute.xlu0 %953
        %vm955 = vcmask 998400
        %v956 = vsel %vm955, %v948, %v950
        %v957 = vsel %vm955, %v950, %v952
        %v958 = vsel %vm955, %v952, %v954
        %v960 = vsel %vm205, %v928, 0
        %v963 = vsel %vm209, %v956, 0
        %v966 = vsel %vm209, %v957, 0
        %v969 = vsel %vm209, %v958, 0
        %971 = vmatprep.subr.bf16.mxu0 %v966
        %972 = vmatpush1.bf16.msra.mxu0 %v963
        %973 = vmatprep.subr.bf16.mxu0 0
        %974 = vmatpush1.bf16.msra.mxu0 0
        %975 = vmatprep.subr.bf16.mxu0 0
        %976 = vmatpush1.bf16.msra.mxu0 0
        %977 = vmatprep.subr.bf16.mxu0 0
        %978 = vmatpush1.bf16.msra.mxu0 0
        %979 = vmatprep.subr.bf16.mxu0 0
        %980 = vmatpush1.bf16.msra.mxu0 0
        %981 = vmatprep.subr.bf16.mxu0 0
        %982 = vmatpush1.bf16.msra.mxu0 0
        %983 = vmatprep.subr.bf16.mxu0 0
        %984 = vmatpush1.bf16.msra.mxu0 0
        %985 = vmatprep.subr.bf16.mxu0 0
        %986 = vmatpush1.bf16.msra.mxu0 0
        %987 = vmatprep.subr.bf16.mxu0 0
        %988 = vmatpush1.bf16.msra.mxu0 0
        %989 = vmatprep.subr.bf16.mxu0 0
        %990 = vmatpush1.bf16.msra.mxu0 0
        %991 = vmatprep.subr.bf16.mxu0 0
        %992 = vmatpush1.bf16.msra.mxu0 0
        %993 = vmatprep.subr.bf16.mxu0 0
        %994 = vmatpush1.bf16.msra.mxu0 0
        %995 = vmatprep.subr.bf16.mxu0 0
        %996 = vmatpush1.bf16.msra.mxu0 0
        %997 = vmatprep.subr.bf16.mxu0 0
        %998 = vmatpush1.bf16.msra.mxu0 0
        %999 = vmatprep.subr.bf16.mxu0 0
        %1000 = vmatpush1.bf16.msra.mxu0 0
        %1001 = vmatprep.subr.bf16.mxu0 0
        %1002 = vmatpush1.bf16.msra.mxu0 0
        %1003 = vmatprep.mubr.bf16.mxu0 0
        %1004 = vmatmul.mubr.bf16.gmra.mrb[0].mxu0 %v960
        %v1005 = vpop.f32.mrb[0].mxu0
        %v1006 = vadd.f32 0.0, %v1005
        %v1007 = vpop.f32.mrb[0].mxu0
        %v1008 = vadd.f32 0.0, %v1007
        %v1009 = vpop.f32.mrb[0].mxu0
        %v1010 = vpop.f32.mrb[0].mxu0
        %1011 = vdwg.mxu0
        %1012 = vmatprep.subr.bf16.mxu0 0
        %1013 = vmatpush1.bf16.msra.mxu0 %v969
        %1014 = vmatprep.subr.bf16.mxu0 0
        %1015 = vmatpush1.bf16.msra.mxu0 0
        %1016 = vmatprep.subr.bf16.mxu0 0
        %1017 = vmatpush1.bf16.msra.mxu0 0
        %1018 = vmatprep.subr.bf16.mxu0 0
        %1019 = vmatpush1.bf16.msra.mxu0 0
        %1020 = vmatprep.subr.bf16.mxu0 0
        %1021 = vmatpush1.bf16.msra.mxu0 0
        %1022 = vmatprep.subr.bf16.mxu0 0
        %1023 = vmatpush1.bf16.msra.mxu0 0
        %1024 = vmatprep.subr.bf16.mxu0 0
        %1025 = vmatpush1.bf16.msra.mxu0 0
        %1026 = vmatprep.subr.bf16.mxu0 0
        %1027 = vmatpush1.bf16.msra.mxu0 0
        %1028 = vmatprep.subr.bf16.mxu0 0
        %1029 = vmatpush1.bf16.msra.mxu0 0
        %1030 = vmatprep.subr.bf16.mxu0 0
        %1031 = vmatpush1.bf16.msra.mxu0 0
        %1032 = vmatprep.subr.bf16.mxu0 0
        %1033 = vmatpush1.bf16.msra.mxu0 0
        %1034 = vmatprep.subr.bf16.mxu0 0
        %1035 = vmatpush1.bf16.msra.mxu0 0
        %1036 = vmatprep.subr.bf16.mxu0 0
        %1037 = vmatpush1.bf16.msra.mxu0 0
        %1038 = vmatprep.subr.bf16.mxu0 0
        %1039 = vmatpush1.bf16.msra.mxu0 0
        %1040 = vmatprep.subr.bf16.mxu0 0
        %1041 = vmatpush1.bf16.msra.mxu0 0
        %1042 = vmatprep.subr.bf16.mxu0 0
        %1043 = vmatpush1.bf16.msra.mxu0 0
        %1044 = vmatprep.mubr.bf16.mxu0 0
        %1045 = vmatmul.mubr.bf16.gmra.mrb[0].mxu0 %v960
        %v1046 = vpop.f32.mrb[0].mxu0
        %v1047 = vadd.f32 0.0, %v1046
        %v1048 = vpop.f32.mrb[0].mxu0
        %v1049 = vpop.f32.mrb[0].mxu0
        %v1050 = vpop.f32.mrb[0].mxu0
        %1051 = vdwg.mxu0
        %v1052 = vadd.f32 %v923, %v1006
        %v1053 = vadd.f32 %v924, %v1008
        %v1054 = vadd.f32 %v925, %v1047
        %v1055 = vld [vmem:[%s168] sm:$0xff]
        %s1056 = scalar_lea.vmem %s1, 28
        %v1057 = vld [vmem:[%s1056] sm:$0xf]
        %v1059 = vcombine.high %v1055, %v1055
        %v1061 = vunpack.c.l.s4 1983009808
        %v1062 = vunpack.c.0.s8 %v1061
        %v1063 = vlaneseq
        %v1064 = vshrl.u32 %v1063, 7
        %v1065 = vsub.s32 %v1062, %v1064
        %v1066 = vrot.slane %v1055, %v1065
        %v1068 = vunpack.c.l.s4 1983009808
        %v1069 = vunpack.c.0.s8 %v1068
        %v1070 = vlaneseq
        %v1071 = vshrl.u32 %v1070, 7
        %v1072 = vsub.s32 %v1069, %v1071
        %v1073 = vrot.slane %v1059, %v1072
        %v1074 = vcombine.high %v1066, %v1066
        %v1075 = vcombine.high %v1073, %v1073
        %1076 = vrot.lane.b32.xlu0 %v1066, 106
        %v1077 = vpop.permute.xlu0 %1076
        %1078 = vrot.lane.b32.xlu0 %v1074, 106
        %v1079 = vpop.permute.xlu0 %1078
        %1080 = vrot.lane.b32.xlu0 %v1073, 106
        %v1081 = vpop.permute.xlu0 %1080
        %1082 = vrot.lane.b32.xlu0 %v1075, 106
        %v1083 = vpop.permute.xlu0 %1082
        %vm1084 = vcmask 867328
        %v1085 = vsel %vm1084, %v1077, %v1079
        %v1086 = vsel %vm1084, %v1079, %v1081
        %v1087 = vsel %vm1084, %v1081, %v1083
        %v1089 = vsel %vm205, %v1057, 0
        %v1092 = vsel %vm209, %v1085, 0
        %v1095 = vsel %vm209, %v1086, 0
        %v1098 = vsel %vm209, %v1087, 0
        %1100 = vmatprep.subr.bf16.mxu0 %v1095
        %1101 = vmatpush1.bf16.msra.mxu0 %v1092
        %1102 = vmatprep.subr.bf16.mxu0 0
        %1103 = vmatpush1.bf16.msra.mxu0 0
        %1104 = vmatprep.subr.bf16.mxu0 0
        %1105 = vmatpush1.bf16.msra.mxu0 0
        %1106 = vmatprep.subr.bf16.mxu0 0
        %1107 = vmatpush1.bf16.msra.mxu0 0
        %1108 = vmatprep.subr.bf16.mxu0 0
        %1109 = vmatpush1.bf16.msra.mxu0 0
        %1110 = vmatprep.subr.bf16.mxu0 0
        %1111 = vmatpush1.bf16.msra.mxu0 0
        %1112 = vmatprep.subr.bf16.mxu0 0
        %1113 = vmatpush1.bf16.msra.mxu0 0
        %1114 = vmatprep.subr.bf16.mxu0 0
        %1115 = vmatpush1.bf16.msra.mxu0 0
        %1116 = vmatprep.subr.bf16.mxu0 0
        %1117 = vmatpush1.bf16.msra.mxu0 0
        %1118 = vmatprep.subr.bf16.mxu0 0
        %1119 = vmatpush1.bf16.msra.mxu0 0
        %1120 = vmatprep.subr.bf16.mxu0 0
        %1121 = vmatpush1.bf16.msra.mxu0 0
        %1122 = vmatprep.subr.bf16.mxu0 0
        %1123 = vmatpush1.bf16.msra.mxu0 0
        %1124 = vmatprep.subr.bf16.mxu0 0
        %1125 = vmatpush1.bf16.msra.mxu0 0
        %1126 = vmatprep.subr.bf16.mxu0 0
        %1127 = vmatpush1.bf16.msra.mxu0 0
        %1128 = vmatprep.subr.bf16.mxu0 0
        %1129 = vmatpush1.bf16.msra.mxu0 0
        %1130 = vmatprep.subr.bf16.mxu0 0
        %1131 = vmatpush1.bf16.msra.mxu0 0
        %1132 = vmatprep.mubr.bf16.mxu0 0
        %1133 = vmatmul.mubr.bf16.gmra.mrb[0].mxu0 %v1089
        %v1134 = vpop.f32.mrb[0].mxu0
        %v1135 = vadd.f32 0.0, %v1134
        %v1136 = vpop.f32.mrb[0].mxu0
        %v1137 = vadd.f32 0.0, %v1136
        %v1138 = vpop.f32.mrb[0].mxu0
        %v1139 = vpop.f32.mrb[0].mxu0
        %1140 = vdwg.mxu0
        %1141 = vmatprep.subr.bf16.mxu0 0
        %1142 = vmatpush1.bf16.msra.mxu0 %v1098
        %1143 = vmatprep.subr.bf16.mxu0 0
        %1144 = vmatpush1.bf16.msra.mxu0 0
        %1145 = vmatprep.subr.bf16.mxu0 0
        %1146 = vmatpush1.bf16.msra.mxu0 0
        %1147 = vmatprep.subr.bf16.mxu0 0
        %1148 = vmatpush1.bf16.msra.mxu0 0
        %1149 = vmatprep.subr.bf16.mxu0 0
        %1150 = vmatpush1.bf16.msra.mxu0 0
        %1151 = vmatprep.subr.bf16.mxu0 0
        %1152 = vmatpush1.bf16.msra.mxu0 0
        %1153 = vmatprep.subr.bf16.mxu0 0
        %1154 = vmatpush1.bf16.msra.mxu0 0
        %1155 = vmatprep.subr.bf16.mxu0 0
        %1156 = vmatpush1.bf16.msra.mxu0 0
        %1157 = vmatprep.subr.bf16.mxu0 0
        %1158 = vmatpush1.bf16.msra.mxu0 0
        %1159 = vmatprep.subr.bf16.mxu0 0
        %1160 = vmatpush1.bf16.msra.mxu0 0
        %1161 = vmatprep.subr.bf16.mxu0 0
        %1162 = vmatpush1.bf16.msra.mxu0 0
        %1163 = vmatprep.subr.bf16.mxu0 0
        %1164 = vmatpush1.bf16.msra.mxu0 0
        %1165 = vmatprep.subr.bf16.mxu0 0
        %1166 = vmatpush1.bf16.msra.mxu0 0
        %1167 = vmatprep.subr.bf16.mxu0 0
        %1168 = vmatpush1.bf16.msra.mxu0 0
        %1169 = vmatprep.subr.bf16.mxu0 0
        %1170 = vmatpush1.bf16.msra.mxu0 0
        %1171 = vmatprep.subr.bf16.mxu0 0
        %1172 = vmatpush1.bf16.msra.mxu0 0
        %1173 = vmatprep.mubr.bf16.mxu0 0
        %1174 = vmatmul.mubr.bf16.gmra.mrb[0].mxu0 %v1089
        %v1175 = vpop.f32.mrb[0].mxu0
        %v1176 = vadd.f32 0.0, %v1175
        %v1177 = vpop.f32.mrb[0].mxu0
        %v1178 = vpop.f32.mrb[0].mxu0
        %v1179 = vpop.f32.mrb[0].mxu0
        %1180 = vdwg.mxu0
        %v1181 = vadd.f32 %v1052, %v1135
        %v1182 = vadd.f32 %v1053, %v1137
        %v1183 = vadd.f32 %v1054, %v1176
        %v1184 = vld [vmem:[%s168] sm:$0xff]
        %s1185 = scalar_lea.vmem %s1, 32
        %v1186 = vld [vmem:[%s1185] sm:$0xf]
        %v1188 = vcombine.high %v1184, %v1184
        %v1190 = vunpack.c.l.s4 1983009808
        %v1191 = vunpack.c.0.s8 %v1190
        %v1192 = vlaneseq
        %v1193 = vshrl.u32 %v1192, 7
        %v1194 = vsub.s32 %v1191, %v1193
        %v1195 = vrot.slane %v1184, %v1194
        %v1197 = vunpack.c.l.s4 1983009808
        %v1198 = vunpack.c.0.s8 %v1197
        %v1199 = vlaneseq
        %v1200 = vshrl.u32 %v1199, 7
        %v1201 = vsub.s32 %v1198, %v1200
        %v1202 = vrot.slane %v1188, %v1201
        %v1203 = vcombine.high %v1195, %v1195
        %v1204 = vcombine.high %v1202, %v1202
        %1205 = vrot.lane.b32.xlu0 %v1195, 105
        %v1206 = vpop.permute.xlu0 %1205
        %1207 = vrot.lane.b32.xlu0 %v1203, 105
        %v1208 = vpop.permute.xlu0 %1207
        %1209 = vrot.lane.b32.xlu0 %v1202, 105
        %v1210 = vpop.permute.xlu0 %1209
        %1211 = vrot.lane.b32.xlu0 %v1204, 105
        %v1212 = vpop.permute.xlu0 %1211
        %vm1213 = vcmask 859136
        %v1214 = vsel %vm1213, %v1206, %v1208
        %v1215 = vsel %vm1213, %v1208, %v1210
        %v1216 = vsel %vm1213, %v1210, %v1212
        %v1218 = vsel %vm205, %v1186, 0
        %v1221 = vsel %vm209, %v1214, 0
        %v1224 = vsel %vm209, %v1215, 0
        %v1227 = vsel %vm209, %v1216, 0
        %1229 = vmatprep.subr.bf16.mxu0 %v1224
        %1230 = vmatpush1.bf16.msra.mxu0 %v1221
        %1231 = vmatprep.subr.bf16.mxu0 0
        %1232 = vmatpush1.bf16.msra.mxu0 0
        %1233 = vmatprep.subr.bf16.mxu0 0
        %1234 = vmatpush1.bf16.msra.mxu0 0
        %1235 = vmatprep.subr.bf16.mxu0 0
        %1236 = vmatpush1.bf16.msra.mxu0 0
        %1237 = vmatprep.subr.bf16.mxu0 0
        %1238 = vmatpush1.bf16.msra.mxu0 0
        %1239 = vmatprep.subr.bf16.mxu0 0
        %1240 = vmatpush1.bf16.msra.mxu0 0
        %1241 = vmatprep.subr.bf16.mxu0 0
        %1242 = vmatpush1.bf16.msra.mxu0 0
        %1243 = vmatprep.subr.bf16.mxu0 0
        %1244 = vmatpush1.bf16.msra.mxu0 0
        %1245 = vmatprep.subr.bf16.mxu0 0
        %1246 = vmatpush1.bf16.msra.mxu0 0
        %1247 = vmatprep.subr.bf16.mxu0 0
        %1248 = vmatpush1.bf16.msra.mxu0 0
        %1249 = vmatprep.subr.bf16.mxu0 0
        %1250 = vmatpush1.bf16.msra.mxu0 0
        %1251 = vmatprep.subr.bf16.mxu0 0
        %1252 = vmatpush1.bf16.msra.mxu0 0
        %1253 = vmatprep.subr.bf16.mxu0 0
        %1254 = vmatpush1.bf16.msra.mxu0 0
        %1255 = vmatprep.subr.bf16.mxu0 0
        %1256 = vmatpush1.bf16.msra.mxu0 0
        %1257 = vmatprep.subr.bf16.mxu0 0
        %1258 = vmatpush1.bf16.msra.mxu0 0
        %1259 = vmatprep.subr.bf16.mxu0 0
        %1260 = vmatpush1.bf16.msra.mxu0 0
        %1261 = vmatprep.mubr.bf16.mxu0 0
        %1262 = vmatmul.mubr.bf16.gmra.mrb[0].mxu0 %v1218
        %v1263 = vpop.f32.mrb[0].mxu0
        %v1264 = vadd.f32 0.0, %v1263
        %v1265 = vpop.f32.mrb[0].mxu0
        %v1266 = vadd.f32 0.0, %v1265
        %v1267 = vpop.f32.mrb[0].mxu0
        %v1268 = vpop.f32.mrb[0].mxu0
        %1269 = vdwg.mxu0
        %1270 = vmatprep.subr.bf16.mxu0 0
        %1271 = vmatpush1.bf16.msra.mxu0 %v1227
        %1272 = vmatprep.subr.bf16.mxu0 0
        %1273 = vmatpush1.bf16.msra.mxu0 0
        %1274 = vmatprep.subr.bf16.mxu0 0
        %1275 = vmatpush1.bf16.msra.mxu0 0
        %1276 = vmatprep.subr.bf16.mxu0 0
        %1277 = vmatpush1.bf16.msra.mxu0 0
        %1278 = vmatprep.subr.bf16.mxu0 0
        %1279 = vmatpush1.bf16.msra.mxu0 0
        %1280 = vmatprep.subr.bf16.mxu0 0
        %1281 = vmatpush1.bf16.msra.mxu0 0
        %1282 = vmatprep.subr.bf16.mxu0 0
        %1283 = vmatpush1.bf16.msra.mxu0 0
        %1284 = vmatprep.subr.bf16.mxu0 0
        %1285 = vmatpush1.bf16.msra.mxu0 0
        %1286 = vmatprep.subr.bf16.mxu0 0
        %1287 = vmatpush1.bf16.msra.mxu0 0
        %1288 = vmatprep.subr.bf16.mxu0 0
        %1289 = vmatpush1.bf16.msra.mxu0 0
        %1290 = vmatprep.subr.bf16.mxu0 0
        %1291 = vmatpush1.bf16.msra.mxu0 0
        %1292 = vmatprep.subr.bf16.mxu0 0
        %1293 = vmatpush1.bf16.msra.mxu0 0
        %1294 = vmatprep.subr.bf16.mxu0 0
        %1295 = vmatpush1.bf16.msra.mxu0 0
        %1296 = vmatprep.subr.bf16.mxu0 0
        %1297 = vmatpush1.bf16.msra.mxu0 0
        %1298 = vmatprep.subr.bf16.mxu0 0
        %1299 = vmatpush1.bf16.msra.mxu0 0
        %1300 = vmatprep.subr.bf16.mxu0 0
        %1301 = vmatpush1.bf16.msra.mxu0 0
        %1302 = vmatprep.mubr.bf16.mxu0 0
        %1303 = vmatmul.mubr.bf16.gmra.mrb[0].mxu0 %v1218
        %v1304 = vpop.f32.mrb[0].mxu0
        %v1305 = vadd.f32 0.0, %v1304
        %v1306 = vpop.f32.mrb[0].mxu0
        %v1307 = vpop.f32.mrb[0].mxu0
        %v1308 = vpop.f32.mrb[0].mxu0
        %1309 = vdwg.mxu0
        %v1310 = vadd.f32 %v1181, %v1264
        %v1311 = vadd.f32 %v1182, %v1266
        %v1312 = vadd.f32 %v1183, %v1305
        %v1313 = vld [vmem:[%s168] sm:$0xff]
        %s1314 = scalar_lea.vmem %s1, 36
        %v1315 = vld [vmem:[%s1314] sm:$0xf]
        %v1317 = vcombine.high %v1313, %v1313
        %v1319 = vunpack.c.l.s4 1983009808
        %v1320 = vunpack.c.0.s8 %v1319
        %v1321 = vlaneseq
        %v1322 = vshrl.u32 %v1321, 7
        %v1323 = vsub.s32 %v1320, %v1322
        %v1324 = vrot.slane %v1313, %v1323
        %v1326 = vunpack.c.l.s4 1983009808
        %v1327 = vunpack.c.0.s8 %v1326
        %v1328 = vlaneseq
        %v1329 = vshrl.u32 %v1328, 7
        %v1330 = vsub.s32 %v1327, %v1329
        %v1331 = vrot.slane %v1317, %v1330
        %v1332 = vcombine.high %v1324, %v1324
        %v1333 = vcombine.high %v1331, %v1331
        %1334 = vrot.lane.b32.xlu0 %v1324, 104
        %v1335 = vpop.permute.xlu0 %1334
        %1336 = vrot.lane.b32.xlu0 %v1332, 104
        %v1337 = vpop.permute.xlu0 %1336
        %1338 = vrot.lane.b32.xlu0 %v1331, 104
        %v1339 = vpop.permute.xlu0 %1338
        %1340 = vrot.lane.b32.xlu0 %v1333, 104
        %v1341 = vpop.permute.xlu0 %1340
        %vm1342 = vcmask 850944
        %v1343 = vsel %vm1342, %v1335, %v1337
        %v1344 = vsel %vm1342, %v1337, %v1339
        %v1345 = vsel %vm1342, %v1339, %v1341
        %v1347 = vsel %vm205, %v1315, 0
        %v1350 = vsel %vm209, %v1343, 0
        %v1353 = vsel %vm209, %v1344, 0
        %v1356 = vsel %vm209, %v1345, 0
        %1358 = vmatprep.subr.bf16.mxu0 %v1353
        %1359 = vmatpush1.bf16.msra.mxu0 %v1350
        %1360 = vmatprep.subr.bf16.mxu0 0
        %1361 = vmatpush1.bf16.msra.mxu0 0
        %1362 = vmatprep.subr.bf16.mxu0 0
        %1363 = vmatpush1.bf16.msra.mxu0 0
        %1364 = vmatprep.subr.bf16.mxu0 0
        %1365 = vmatpush1.bf16.msra.mxu0 0
        %1366 = vmatprep.subr.bf16.mxu0 0
        %1367 = vmatpush1.bf16.msra.mxu0 0
        %1368 = vmatprep.subr.bf16.mxu0 0
        %1369 = vmatpush1.bf16.msra.mxu0 0
        %1370 = vmatprep.subr.bf16.mxu0 0
        %1371 = vmatpush1.bf16.msra.mxu0 0
        %1372 = vmatprep.subr.bf16.mxu0 0
        %1373 = vmatpush1.bf16.msra.mxu0 0
        %1374 = vmatprep.subr.bf16.mxu0 0
        %1375 = vmatpush1.bf16.msra.mxu0 0
        %1376 = vmatprep.subr.bf16.mxu0 0
        %1377 = vmatpush1.bf16.msra.mxu0 0
        %1378 = vmatprep.subr.bf16.mxu0 0
        %1379 = vmatpush1.bf16.msra.mxu0 0
        %1380 = vmatprep.subr.bf16.mxu0 0
        %1381 = vmatpush1.bf16.msra.mxu0 0
        %1382 = vmatprep.subr.bf16.mxu0 0
        %1383 = vmatpush1.bf16.msra.mxu0 0
        %1384 = vmatprep.subr.bf16.mxu0 0
        %1385 = vmatpush1.bf16.msra.mxu0 0
        %1386 = vmatprep.subr.bf16.mxu0 0
        %1387 = vmatpush1.bf16.msra.mxu0 0
        %1388 = vmatprep.subr.bf16.mxu0 0
        %1389 = vmatpush1.bf16.msra.mxu0 0
        %1390 = vmatprep.mubr.bf16.mxu0 0
        %1391 = vmatmul.mubr.bf16.gmra.mrb[0].mxu0 %v1347
        %v1392 = vpop.f32.mrb[0].mxu0
        %v1393 = vadd.f32 0.0, %v1392
        %v1394 = vpop.f32.mrb[0].mxu0
        %v1395 = vadd.f32 0.0, %v1394
        %v1396 = vpop.f32.mrb[0].mxu0
        %v1397 = vpop.f32.mrb[0].mxu0
        %1398 = vdwg.mxu0
        %1399 = vmatprep.subr.bf16.mxu0 0
        %1400 = vmatpush1.bf16.msra.mxu0 %v1356
        %1401 = vmatprep.subr.bf16.mxu0 0
        %1402 = vmatpush1.bf16.msra.mxu0 0
        %1403 = vmatprep.subr.bf16.mxu0 0
        %1404 = vmatpush1.bf16.msra.mxu0 0
        %1405 = vmatprep.subr.bf16.mxu0 0
        %1406 = vmatpush1.bf16.msra.mxu0 0
        %1407 = vmatprep.subr.bf16.mxu0 0
        %1408 = vmatpush1.bf16.msra.mxu0 0
        %1409 = vmatprep.subr.bf16.mxu0 0
        %1410 = vmatpush1.bf16.msra.mxu0 0
        %1411 = vmatprep.subr.bf16.mxu0 0
        %1412 = vmatpush1.bf16.msra.mxu0 0
        %1413 = vmatprep.subr.bf16.mxu0 0
        %1414 = vmatpush1.bf16.msra.mxu0 0
        %1415 = vmatprep.subr.bf16.mxu0 0
        %1416 = vmatpush1.bf16.msra.mxu0 0
        %1417 = vmatprep.subr.bf16.mxu0 0
        %1418 = vmatpush1.bf16.msra.mxu0 0
        %1419 = vmatprep.subr.bf16.mxu0 0
        %1420 = vmatpush1.bf16.msra.mxu0 0
        %1421 = vmatprep.subr.bf16.mxu0 0
        %1422 = vmatpush1.bf16.msra.mxu0 0
        %1423 = vmatprep.subr.bf16.mxu0 0
        %1424 = vmatpush1.bf16.msra.mxu0 0
        %1425 = vmatprep.subr.bf16.mxu0 0
        %1426 = vmatpush1.bf16.msra.mxu0 0
        %1427 = vmatprep.subr.bf16.mxu0 0
        %1428 = vmatpush1.bf16.msra.mxu0 0
        %1429 = vmatprep.subr.bf16.mxu0 0
        %1430 = vmatpush1.bf16.msra.mxu0 0
        %1431 = vmatprep.mubr.bf16.mxu0 0
        %1432 = vmatmul.mubr.bf16.gmra.mrb[0].mxu0 %v1347
        %v1433 = vpop.f32.mrb[0].mxu0
        %v1434 = vadd.f32 0.0, %v1433
        %v1435 = vpop.f32.mrb[0].mxu0
        %v1436 = vpop.f32.mrb[0].mxu0
        %v1437 = vpop.f32.mrb[0].mxu0
        %1438 = vdwg.mxu0
        %v1439 = vadd.f32 %v1310, %v1393
        %v1440 = vadd.f32 %v1311, %v1395
        %v1441 = vadd.f32 %v1312, %v1434
        %v1442 = vld [vmem:[%s168] sm:$0xff]
        %s1443 = scalar_lea.vmem %s1, 40
        %v1444 = vld [vmem:[%s1443] sm:$0xf]
        %v1446 = vcombine.high %v1442, %v1442
        %v1448 = vunpack.c.l.s4 1983009808
        %v1449 = vunpack.c.0.s8 %v1448
        %v1450 = vlaneseq
        %v1451 = vshrl.u32 %v1450, 7
        %v1452 = vsub.s32 %v1449, %v1451
        %v1453 = vrot.slane %v1442, %v1452
        %v1455 = vunpack.c.l.s4 1983009808
        %v1456 = vunpack.c.0.s8 %v1455
        %v1457 = vlaneseq
        %v1458 = vshrl.u32 %v1457, 7
        %v1459 = vsub.s32 %v1456, %v1458
        %v1460 = vrot.slane %v1446, %v1459
        %v1461 = vcombine.high %v1453, %v1453
        %v1462 = vcombine.high %v1460, %v1460
        %1463 = vrot.lane.b32.xlu0 %v1453, 103
        %v1464 = vpop.permute.xlu0 %1463
        %1465 = vrot.lane.b32.xlu0 %v1461, 103
        %v1466 = vpop.permute.xlu0 %1465
        %1467 = vrot.lane.b32.xlu0 %v1460, 103
        %v1468 = vpop.permute.xlu0 %1467
        %1469 = vrot.lane.b32.xlu0 %v1462, 103
        %v1470 = vpop.permute.xlu0 %1469
        %vm1471 = vcmask 842752
        %v1472 = vsel %vm1471, %v1464, %v1466
        %v1473 = vsel %vm1471, %v1466, %v1468
        %v1474 = vsel %vm1471, %v1468, %v1470
        %v1476 = vsel %vm205, %v1444, 0
        %v1479 = vsel %vm209, %v1472, 0
        %v1482 = vsel %vm209, %v1473, 0
        %v1485 = vsel %vm209, %v1474, 0
        %1487 = vmatprep.subr.bf16.mxu0 %v1482
        %1488 = vmatpush1.bf16.msra.mxu0 %v1479
        %1489 = vmatprep.subr.bf16.mxu0 0
        %1490 = vmatpush1.bf16.msra.mxu0 0
        %1491 = vmatprep.subr.bf16.mxu0 0
        %1492 = vmatpush1.bf16.msra.mxu0 0
        %1493 = vmatprep.subr.bf16.mxu0 0
        %1494 = vmatpush1.bf16.msra.mxu0 0
        %1495 = vmatprep.subr.bf16.mxu0 0
        %1496 = vmatpush1.bf16.msra.mxu0 0
        %1497 = vmatprep.subr.bf16.mxu0 0
        %1498 = vmatpush1.bf16.msra.mxu0 0
        %1499 = vmatprep.subr.bf16.mxu0 0
        %1500 = vmatpush1.bf16.msra.mxu0 0
        %1501 = vmatprep.subr.bf16.mxu0 0
        %1502 = vmatpush1.bf16.msra.mxu0 0
        %1503 = vmatprep.subr.bf16.mxu0 0
        %1504 = vmatpush1.bf16.msra.mxu0 0
        %1505 = vmatprep.subr.bf16.mxu0 0
        %1506 = vmatpush1.bf16.msra.mxu0 0
        %1507 = vmatprep.subr.bf16.mxu0 0
        %1508 = vmatpush1.bf16.msra.mxu0 0
        %1509 = vmatprep.subr.bf16.mxu0 0
        %1510 = vmatpush1.bf16.msra.mxu0 0
        %1511 = vmatprep.subr.bf16.mxu0 0
        %1512 = vmatpush1.bf16.msra.mxu0 0
        %1513 = vmatprep.subr.bf16.mxu0 0
        %1514 = vmatpush1.bf16.msra.mxu0 0
        %1515 = vmatprep.subr.bf16.mxu0 0
        %1516 = vmatpush1.bf16.msra.mxu0 0
        %1517 = vmatprep.subr.bf16.mxu0 0
        %1518 = vmatpush1.bf16.msra.mxu0 0
        %1519 = vmatprep.mubr.bf16.mxu0 0
        %1520 = vmatmul.mubr.bf16.gmra.mrb[0].mxu0 %v1476
        %v1521 = vpop.f32.mrb[0].mxu0
        %v1522 = vadd.f32 0.0, %v1521
        %v1523 = vpop.f32.mrb[0].mxu0
        %v1524 = vadd.f32 0.0, %v1523
        %v1525 = vpop.f32.mrb[0].mxu0
        %v1526 = vpop.f32.mrb[0].mxu0
        %1527 = vdwg.mxu0
        %1528 = vmatprep.subr.bf16.mxu0 0
        %1529 = vmatpush1.bf16.msra.mxu0 %v1485
        %1530 = vmatprep.subr.bf16.mxu0 0
        %1531 = vmatpush1.bf16.msra.mxu0 0
        %1532 = vmatprep.subr.bf16.mxu0 0
        %1533 = vmatpush1.bf16.msra.mxu0 0
        %1534 = vmatprep.subr.bf16.mxu0 0
        %1535 = vmatpush1.bf16.msra.mxu0 0
        %1536 = vmatprep.subr.bf16.mxu0 0
        %1537 = vmatpush1.bf16.msra.mxu0 0
        %1538 = vmatprep.subr.bf16.mxu0 0
        %1539 = vmatpush1.bf16.msra.mxu0 0
        %1540 = vmatprep.subr.bf16.mxu0 0
        %1541 = vmatpush1.bf16.msra.mxu0 0
        %1542 = vmatprep.subr.bf16.mxu0 0
        %1543 = vmatpush1.bf16.msra.mxu0 0
        %1544 = vmatprep.subr.bf16.mxu0 0
        %1545 = vmatpush1.bf16.msra.mxu0 0
        %1546 = vmatprep.subr.bf16.mxu0 0
        %1547 = vmatpush1.bf16.msra.mxu0 0
        %1548 = vmatprep.subr.bf16.mxu0 0
        %1549 = vmatpush1.bf16.msra.mxu0 0
        %1550 = vmatprep.subr.bf16.mxu0 0
        %1551 = vmatpush1.bf16.msra.mxu0 0
        %1552 = vmatprep.subr.bf16.mxu0 0
        %1553 = vmatpush1.bf16.msra.mxu0 0
        %1554 = vmatprep.subr.bf16.mxu0 0
        %1555 = vmatpush1.bf16.msra.mxu0 0
        %1556 = vmatprep.subr.bf16.mxu0 0
        %1557 = vmatpush1.bf16.msra.mxu0 0
        %1558 = vmatprep.subr.bf16.mxu0 0
        %1559 = vmatpush1.bf16.msra.mxu0 0
        %1560 = vmatprep.mubr.bf16.mxu0 0
        %1561 = vmatmul.mubr.bf16.gmra.mrb[0].mxu0 %v1476
        %v1562 = vpop.f32.mrb[0].mxu0
        %v1563 = vadd.f32 0.0, %v1562
        %v1564 = vpop.f32.mrb[0].mxu0
        %v1565 = vpop.f32.mrb[0].mxu0
        %v1566 = vpop.f32.mrb[0].mxu0
        %1567 = vdwg.mxu0
        %v1568 = vadd.f32 %v1439, %v1522
        %v1569 = vadd.f32 %v1440, %v1524
        %v1570 = vadd.f32 %v1441, %v1563
        %v1571 = vld [vmem:[%s168] sm:$0xff]
        %s1572 = scalar_lea.vmem %s1, 44
        %v1573 = vld [vmem:[%s1572] sm:$0xf]
        %v1575 = vcombine.high %v1571, %v1571
        %v1577 = vunpack.c.l.s4 1983009808
        %v1578 = vunpack.c.0.s8 %v1577
        %v1579 = vlaneseq
        %v1580 = vshrl.u32 %v1579, 7
        %v1581 = vsub.s32 %v1578, %v1580
        %v1582 = vrot.slane %v1571, %v1581
        %v1584 = vunpack.c.l.s4 1983009808
        %v1585 = vunpack.c.0.s8 %v1584
        %v1586 = vlaneseq
        %v1587 = vshrl.u32 %v1586, 7
        %v1588 = vsub.s32 %v1585, %v1587
        %v1589 = vrot.slane %v1575, %v1588
        %v1590 = vcombine.high %v1582, %v1582
        %v1591 = vcombine.high %v1589, %v1589
        %1592 = vrot.lane.b32.xlu0 %v1582, 102
        %v1593 = vpop.permute.xlu0 %1592
        %1594 = vrot.lane.b32.xlu0 %v1590, 102
        %v1595 = vpop.permute.xlu0 %1594
        %1596 = vrot.lane.b32.xlu0 %v1589, 102
        %v1597 = vpop.permute.xlu0 %1596
        %1598 = vrot.lane.b32.xlu0 %v1591, 102
        %v1599 = vpop.permute.xlu0 %1598
        %vm1600 = vcmask 834560
        %v1601 = vsel %vm1600, %v1593, %v1595
        %v1602 = vsel %vm1600, %v1595, %v1597
        %v1603 = vsel %vm1600, %v1597, %v1599
        %v1605 = vsel %vm205, %v1573, 0
        %v1608 = vsel %vm209, %v1601, 0
        %v1611 = vsel %vm209, %v1602, 0
        %v1614 = vsel %vm209, %v1603, 0
        %1616 = vmatprep.subr.bf16.mxu0 %v1611
        %1617 = vmatpush1.bf16.msra.mxu0 %v1608
        %1618 = vmatprep.subr.bf16.mxu0 0
        %1619 = vmatpush1.bf16.msra.mxu0 0
        %1620 = vmatprep.subr.bf16.mxu0 0
        %1621 = vmatpush1.bf16.msra.mxu0 0
        %1622 = vmatprep.subr.bf16.mxu0 0
        %1623 = vmatpush1.bf16.msra.mxu0 0
        %1624 = vmatprep.subr.bf16.mxu0 0
        %1625 = vmatpush1.bf16.msra.mxu0 0
        %1626 = vmatprep.subr.bf16.mxu0 0
        %1627 = vmatpush1.bf16.msra.mxu0 0
        %1628 = vmatprep.subr.bf16.mxu0 0
        %1629 = vmatpush1.bf16.msra.mxu0 0
        %1630 = vmatprep.subr.bf16.mxu0 0
        %1631 = vmatpush1.bf16.msra.mxu0 0
        %1632 = vmatprep.subr.bf16.mxu0 0
        %1633 = vmatpush1.bf16.msra.mxu0 0
        %1634 = vmatprep.subr.bf16.mxu0 0
        %1635 = vmatpush1.bf16.msra.mxu0 0
        %1636 = vmatprep.subr.bf16.mxu0 0
        %1637 = vmatpush1.bf16.msra.mxu0 0
        %1638 = vmatprep.subr.bf16.mxu0 0
        %1639 = vmatpush1.bf16.msra.mxu0 0
        %1640 = vmatprep.subr.bf16.mxu0 0
        %1641 = vmatpush1.bf16.msra.mxu0 0
        %1642 = vmatprep.subr.bf16.mxu0 0
        %1643 = vmatpush1.bf16.msra.mxu0 0
        %1644 = vmatprep.subr.bf16.mxu0 0
        %1645 = vmatpush1.bf16.msra.mxu0 0
        %1646 = vmatprep.subr.bf16.mxu0 0
        %1647 = vmatpush1.bf16.msra.mxu0 0
        %1648 = vmatprep.mubr.bf16.mxu0 0
        %1649 = vmatmul.mubr.bf16.gmra.mrb[0].mxu0 %v1605
        %v1650 = vpop.f32.mrb[0].mxu0
        %v1651 = vadd.f32 0.0, %v1650
        %v1652 = vpop.f32.mrb[0].mxu0
        %v1653 = vadd.f32 0.0, %v1652
        %v1654 = vpop.f32.mrb[0].mxu0
        %v1655 = vpop.f32.mrb[0].mxu0
        %1656 = vdwg.mxu0
        %1657 = vmatprep.subr.bf16.mxu0 0
        %1658 = vmatpush1.bf16.msra.mxu0 %v1614
        %1659 = vmatprep.subr.bf16.mxu0 0
        %1660 = vmatpush1.bf16.msra.mxu0 0
        %1661 = vmatprep.subr.bf16.mxu0 0
        %1662 = vmatpush1.bf16.msra.mxu0 0
        %1663 = vmatprep.subr.bf16.mxu0 0
        %1664 = vmatpush1.bf16.msra.mxu0 0
        %1665 = vmatprep.subr.bf16.mxu0 0
        %1666 = vmatpush1.bf16.msra.mxu0 0
        %1667 = vmatprep.subr.bf16.mxu0 0
        %1668 = vmatpush1.bf16.msra.mxu0 0
        %1669 = vmatprep.subr.bf16.mxu0 0
        %1670 = vmatpush1.bf16.msra.mxu0 0
        %1671 = vmatprep.subr.bf16.mxu0 0
        %1672 = vmatpush1.bf16.msra.mxu0 0
        %1673 = vmatprep.subr.bf16.mxu0 0
        %1674 = vmatpush1.bf16.msra.mxu0 0
        %1675 = vmatprep.subr.bf16.mxu0 0
        %1676 = vmatpush1.bf16.msra.mxu0 0
        %1677 = vmatprep.subr.bf16.mxu0 0
        %1678 = vmatpush1.bf16.msra.mxu0 0
        %1679 = vmatprep.subr.bf16.mxu0 0
        %1680 = vmatpush1.bf16.msra.mxu0 0
        %1681 = vmatprep.subr.bf16.mxu0 0
        %1682 = vmatpush1.bf16.msra.mxu0 0
        %1683 = vmatprep.subr.bf16.mxu0 0
        %1684 = vmatpush1.bf16.msra.mxu0 0
        %1685 = vmatprep.subr.bf16.mxu0 0
        %1686 = vmatpush1.bf16.msra.mxu0 0
        %1687 = vmatprep.subr.bf16.mxu0 0
        %1688 = vmatpush1.bf16.msra.mxu0 0
        %1689 = vmatprep.mubr.bf16.mxu0 0
        %1690 = vmatmul.mubr.bf16.gmra.mrb[0].mxu0 %v1605
        %v1691 = vpop.f32.mrb[0].mxu0
        %v1692 = vadd.f32 0.0, %v1691
        %v1693 = vpop.f32.mrb[0].mxu0
        %v1694 = vpop.f32.mrb[0].mxu0
        %v1695 = vpop.f32.mrb[0].mxu0
        %1696 = vdwg.mxu0
        %v1697 = vadd.f32 %v1568, %v1651
        %v1698 = vadd.f32 %v1569, %v1653
        %v1699 = vadd.f32 %v1570, %v1692
        %v1700 = vld [vmem:[%s168] sm:$0xff]
        %s1701 = scalar_lea.vmem %s1, 48
        %v1702 = vld [vmem:[%s1701] sm:$0xf]
        %v1704 = vcombine.high %v1700, %v1700
        %v1706 = vunpack.c.l.s4 1983009808
        %v1707 = vunpack.c.0.s8 %v1706
        %v1708 = vlaneseq
        %v1709 = vshrl.u32 %v1708, 7
        %v1710 = vsub.s32 %v1707, %v1709
        %v1711 = vrot.slane %v1700, %v1710
        %v1713 = vunpack.c.l.s4 1983009808
        %v1714 = vunpack.c.0.s8 %v1713
        %v1715 = vlaneseq
        %v1716 = vshrl.u32 %v1715, 7
        %v1717 = vsub.s32 %v1714, %v1716
        %v1718 = vrot.slane %v1704, %v1717
        %v1719 = vcombine.high %v1711, %v1711
        %v1720 = vcombine.high %v1718, %v1718
        %1721 = vrot.lane.b32.xlu0 %v1711, 101
        %v1722 = vpop.permute.xlu0 %1721
        %1723 = vrot.lane.b32.xlu0 %v1719, 101
        %v1724 = vpop.permute.xlu0 %1723
        %1725 = vrot.lane.b32.xlu0 %v1718, 101
        %v1726 = vpop.permute.xlu0 %1725
        %1727 = vrot.lane.b32.xlu0 %v1720, 101
        %v1728 = vpop.permute.xlu0 %1727
        %vm1729 = vcmask 826368
        %v1730 = vsel %vm1729, %v1722, %v1724
        %v1731 = vsel %vm1729, %v1724, %v1726
        %v1732 = vsel %vm1729, %v1726, %v1728
        %v1734 = vsel %vm205, %v1702, 0
        %v1737 = vsel %vm209, %v1730, 0
        %v1740 = vsel %vm209, %v1731, 0
        %v1743 = vsel %vm209, %v1732, 0
        %1745 = vmatprep.subr.bf16.mxu0 %v1740
        %1746 = vmatpush1.bf16.msra.mxu0 %v1737
        %1747 = vmatprep.subr.bf16.mxu0 0
        %1748 = vmatpush1.bf16.msra.mxu0 0
        %1749 = vmatprep.subr.bf16.mxu0 0
        %1750 = vmatpush1.bf16.msra.mxu0 0
        %1751 = vmatprep.subr.bf16.mxu0 0
        %1752 = vmatpush1.bf16.msra.mxu0 0
        %1753 = vmatprep.subr.bf16.mxu0 0
        %1754 = vmatpush1.bf16.msra.mxu0 0
        %1755 = vmatprep.subr.bf16.mxu0 0
        %1756 = vmatpush1.bf16.msra.mxu0 0
        %1757 = vmatprep.subr.bf16.mxu0 0
        %1758 = vmatpush1.bf16.msra.mxu0 0
        %1759 = vmatprep.subr.bf16.mxu0 0
        %1760 = vmatpush1.bf16.msra.mxu0 0
        %1761 = vmatprep.subr.bf16.mxu0 0
        %1762 = vmatpush1.bf16.msra.mxu0 0
        %1763 = vmatprep.subr.bf16.mxu0 0
        %1764 = vmatpush1.bf16.msra.mxu0 0
        %1765 = vmatprep.subr.bf16.mxu0 0
        %1766 = vmatpush1.bf16.msra.mxu0 0
        %1767 = vmatprep.subr.bf16.mxu0 0
        %1768 = vmatpush1.bf16.msra.mxu0 0
        %1769 = vmatprep.subr.bf16.mxu0 0
        %1770 = vmatpush1.bf16.msra.mxu0 0
        %1771 = vmatprep.subr.bf16.mxu0 0
        %1772 = vmatpush1.bf16.msra.mxu0 0
        %1773 = vmatprep.subr.bf16.mxu0 0
        %1774 = vmatpush1.bf16.msra.mxu0 0
        %1775 = vmatprep.subr.bf16.mxu0 0
        %1776 = vmatpush1.bf16.msra.mxu0 0
        %1777 = vmatprep.mubr.bf16.mxu0 0
        %1778 = vmatmul.mubr.bf16.gmra.mrb[0].mxu0 %v1734
        %v1779 = vpop.f32.mrb[0].mxu0
        %v1780 = vadd.f32 0.0, %v1779
        %v1781 = vpop.f32.mrb[0].mxu0
        %v1782 = vadd.f32 0.0, %v1781
        %v1783 = vpop.f32.mrb[0].mxu0
        %v1784 = vpop.f32.mrb[0].mxu0
        %1785 = vdwg.mxu0
        %1786 = vmatprep.subr.bf16.mxu0 0
        %1787 = vmatpush1.bf16.msra.mxu0 %v1743
        %1788 = vmatprep.subr.bf16.mxu0 0
        %1789 = vmatpush1.bf16.msra.mxu0 0
        %1790 = vmatprep.subr.bf16.mxu0 0
        %1791 = vmatpush1.bf16.msra.mxu0 0
        %1792 = vmatprep.subr.bf16.mxu0 0
        %1793 = vmatpush1.bf16.msra.mxu0 0
        %1794 = vmatprep.subr.bf16.mxu0 0
        %1795 = vmatpush1.bf16.msra.mxu0 0
        %1796 = vmatprep.subr.bf16.mxu0 0
        %1797 = vmatpush1.bf16.msra.mxu0 0
        %1798 = vmatprep.subr.bf16.mxu0 0
        %1799 = vmatpush1.bf16.msra.mxu0 0
        %1800 = vmatprep.subr.bf16.mxu0 0
        %1801 = vmatpush1.bf16.msra.mxu0 0
        %1802 = vmatprep.subr.bf16.mxu0 0
        %1803 = vmatpush1.bf16.msra.mxu0 0
        %1804 = vmatprep.subr.bf16.mxu0 0
        %1805 = vmatpush1.bf16.msra.mxu0 0
        %1806 = vmatprep.subr.bf16.mxu0 0
        %1807 = vmatpush1.bf16.msra.mxu0 0
        %1808 = vmatprep.subr.bf16.mxu0 0
        %1809 = vmatpush1.bf16.msra.mxu0 0
        %1810 = vmatprep.subr.bf16.mxu0 0
        %1811 = vmatpush1.bf16.msra.mxu0 0
        %1812 = vmatprep.subr.bf16.mxu0 0
        %1813 = vmatpush1.bf16.msra.mxu0 0
        %1814 = vmatprep.subr.bf16.mxu0 0
        %1815 = vmatpush1.bf16.msra.mxu0 0
        %1816 = vmatprep.subr.bf16.mxu0 0
        %1817 = vmatpush1.bf16.msra.mxu0 0
        %1818 = vmatprep.mubr.bf16.mxu0 0
        %1819 = vmatmul.mubr.bf16.gmra.mrb[0].mxu0 %v1734
        %v1820 = vpop.f32.mrb[0].mxu0
        %v1821 = vadd.f32 0.0, %v1820
        %v1822 = vpop.f32.mrb[0].mxu0
        %v1823 = vpop.f32.mrb[0].mxu0
        %v1824 = vpop.f32.mrb[0].mxu0
        %1825 = vdwg.mxu0
        %v1826 = vadd.f32 %v1697, %v1780
        %v1827 = vadd.f32 %v1698, %v1782
        %v1828 = vadd.f32 %v1699, %v1821
        %v1829 = vld [vmem:[%s168] sm:$0xff]
        %s1830 = scalar_lea.vmem %s1, 52
        %v1831 = vld [vmem:[%s1830] sm:$0xf]
        %v1833 = vcombine.high %v1829, %v1829
        %v1835 = vunpack.c.l.s4 1983009808
        %v1836 = vunpack.c.0.s8 %v1835
        %v1837 = vlaneseq
        %v1838 = vshrl.u32 %v1837, 7
        %v1839 = vsub.s32 %v1836, %v1838
        %v1840 = vrot.slane %v1829, %v1839
        %v1842 = vunpack.c.l.s4 1983009808
        %v1843 = vunpack.c.0.s8 %v1842
        %v1844 = vlaneseq
        %v1845 = vshrl.u32 %v1844, 7
        %v1846 = vsub.s32 %v1843, %v1845
        %v1847 = vrot.slane %v1833, %v1846
        %v1848 = vcombine.high %v1840, %v1840
        %v1849 = vcombine.high %v1847, %v1847
        %1850 = vrot.lane.b32.xlu0 %v1840, 100
        %v1851 = vpop.permute.xlu0 %1850
        %1852 = vrot.lane.b32.xlu0 %v1848, 100
        %v1853 = vpop.permute.xlu0 %1852
        %1854 = vrot.lane.b32.xlu0 %v1847, 100
        %v1855 = vpop.permute.xlu0 %1854
        %1856 = vrot.lane.b32.xlu0 %v1849, 100
        %v1857 = vpop.permute.xlu0 %1856
        %vm1858 = vcmask 818176
        %v1859 = vsel %vm1858, %v1851, %v1853
        %v1860 = vsel %vm1858, %v1853, %v1855
        %v1861 = vsel %vm1858, %v1855, %v1857
        %v1863 = vsel %vm205, %v1831, 0
        %v1866 = vsel %vm209, %v1859, 0
        %v1869 = vsel %vm209, %v1860, 0
        %v1872 = vsel %vm209, %v1861, 0
        %1874 = vmatprep.subr.bf16.mxu0 %v1869
        %1875 = vmatpush1.bf16.msra.mxu0 %v1866
        %1876 = vmatprep.subr.bf16.mxu0 0
        %1877 = vmatpush1.bf16.msra.mxu0 0
        %1878 = vmatprep.subr.bf16.mxu0 0
        %1879 = vmatpush1.bf16.msra.mxu0 0
        %1880 = vmatprep.subr.bf16.mxu0 0
        %1881 = vmatpush1.bf16.msra.mxu0 0
        %1882 = vmatprep.subr.bf16.mxu0 0
        %1883 = vmatpush1.bf16.msra.mxu0 0
        %1884 = vmatprep.subr.bf16.mxu0 0
        %1885 = vmatpush1.bf16.msra.mxu0 0
        %1886 = vmatprep.subr.bf16.mxu0 0
        %1887 = vmatpush1.bf16.msra.mxu0 0
        %1888 = vmatprep.subr.bf16.mxu0 0
        %1889 = vmatpush1.bf16.msra.mxu0 0
        %1890 = vmatprep.subr.bf16.mxu0 0
        %1891 = vmatpush1.bf16.msra.mxu0 0
        %1892 = vmatprep.subr.bf16.mxu0 0
        %1893 = vmatpush1.bf16.msra.mxu0 0
        %1894 = vmatprep.subr.bf16.mxu0 0
        %1895 = vmatpush1.bf16.msra.mxu0 0
        %1896 = vmatprep.subr.bf16.mxu0 0
        %1897 = vmatpush1.bf16.msra.mxu0 0
        %1898 = vmatprep.subr.bf16.mxu0 0
        %1899 = vmatpush1.bf16.msra.mxu0 0
        %1900 = vmatprep.subr.bf16.mxu0 0
        %1901 = vmatpush1.bf16.msra.mxu0 0
        %1902 = vmatprep.subr.bf16.mxu0 0
        %1903 = vmatpush1.bf16.msra.mxu0 0
        %1904 = vmatprep.subr.bf16.mxu0 0
        %1905 = vmatpush1.bf16.msra.mxu0 0
        %1906 = vmatprep.mubr.bf16.mxu0 0
        %1907 = vmatmul.mubr.bf16.gmra.mrb[0].mxu0 %v1863
        %v1908 = vpop.f32.mrb[0].mxu0
        %v1909 = vadd.f32 0.0, %v1908
        %v1910 = vpop.f32.mrb[0].mxu0
        %v1911 = vadd.f32 0.0, %v1910
        %v1912 = vpop.f32.mrb[0].mxu0
        %v1913 = vpop.f32.mrb[0].mxu0
        %1914 = vdwg.mxu0
        %1915 = vmatprep.subr.bf16.mxu0 0
        %1916 = vmatpush1.bf16.msra.mxu0 %v1872
        %1917 = vmatprep.subr.bf16.mxu0 0
        %1918 = vmatpush1.bf16.msra.mxu0 0
        %1919 = vmatprep.subr.bf16.mxu0 0
        %1920 = vmatpush1.bf16.msra.mxu0 0
        %1921 = vmatprep.subr.bf16.mxu0 0
        %1922 = vmatpush1.bf16.msra.mxu0 0
        %1923 = vmatprep.subr.bf16.mxu0 0
        %1924 = vmatpush1.bf16.msra.mxu0 0
        %1925 = vmatprep.subr.bf16.mxu0 0
        %1926 = vmatpush1.bf16.msra.mxu0 0
        %1927 = vmatprep.subr.bf16.mxu0 0
        %1928 = vmatpush1.bf16.msra.mxu0 0
        %1929 = vmatprep.subr.bf16.mxu0 0
        %1930 = vmatpush1.bf16.msra.mxu0 0
        %1931 = vmatprep.subr.bf16.mxu0 0
        %1932 = vmatpush1.bf16.msra.mxu0 0
        %1933 = vmatprep.subr.bf16.mxu0 0
        %1934 = vmatpush1.bf16.msra.mxu0 0
        %1935 = vmatprep.subr.bf16.mxu0 0
        %1936 = vmatpush1.bf16.msra.mxu0 0
        %1937 = vmatprep.subr.bf16.mxu0 0
        %1938 = vmatpush1.bf16.msra.mxu0 0
        %1939 = vmatprep.subr.bf16.mxu0 0
        %1940 = vmatpush1.bf16.msra.mxu0 0
        %1941 = vmatprep.subr.bf16.mxu0 0
        %1942 = vmatpush1.bf16.msra.mxu0 0
        %1943 = vmatprep.subr.bf16.mxu0 0
        %1944 = vmatpush1.bf16.msra.mxu0 0
        %1945 = vmatprep.subr.bf16.mxu0 0
        %1946 = vmatpush1.bf16.msra.mxu0 0
        %1947 = vmatprep.mubr.bf16.mxu0 0
        %1948 = vmatmul.mubr.bf16.gmra.mrb[0].mxu0 %v1863
        %v1949 = vpop.f32.mrb[0].mxu0
        %v1950 = vadd.f32 0.0, %v1949
        %v1951 = vpop.f32.mrb[0].mxu0
        %v1952 = vpop.f32.mrb[0].mxu0
        %v1953 = vpop.f32.mrb[0].mxu0
        %1954 = vdwg.mxu0
        %v1955 = vadd.f32 %v1826, %v1909
        %v1956 = vadd.f32 %v1827, %v1911
        %v1957 = vadd.f32 %v1828, %v1950
        %v1958 = vld [vmem:[%s168] sm:$0xff]
        %s1959 = scalar_lea.vmem %s1, 56
        %v1960 = vld [vmem:[%s1959] sm:$0xf]
        %v1962 = vcombine.high %v1958, %v1958
        %v1964 = vunpack.c.l.s4 1983009808
        %v1965 = vunpack.c.0.s8 %v1964
        %v1966 = vlaneseq
        %v1967 = vshrl.u32 %v1966, 7
        %v1968 = vsub.s32 %v1965, %v1967
        %v1969 = vrot.slane %v1958, %v1968
        %v1971 = vunpack.c.l.s4 1983009808
        %v1972 = vunpack.c.0.s8 %v1971
        %v1973 = vlaneseq
        %v1974 = vshrl.u32 %v1973, 7
        %v1975 = vsub.s32 %v1972, %v1974
        %v1976 = vrot.slane %v1962, %v1975
        %v1977 = vcombine.high %v1969, %v1969
        %v1978 = vcombine.high %v1976, %v1976
        %1979 = vrot.lane.b32.xlu0 %v1969, 84
        %v1980 = vpop.permute.xlu0 %1979
        %1981 = vrot.lane.b32.xlu0 %v1977, 84
        %v1982 = vpop.permute.xlu0 %1981
        %1983 = vrot.lane.b32.xlu0 %v1976, 84
        %v1984 = vpop.permute.xlu0 %1983
        %1985 = vrot.lane.b32.xlu0 %v1978, 84
        %v1986 = vpop.permute.xlu0 %1985
        %vm1987 = vcmask 687104
        %v1988 = vsel %vm1987, %v1980, %v1982
        %v1989 = vsel %vm1987, %v1982, %v1984
        %v1990 = vsel %vm1987, %v1984, %v1986
        %v1992 = vsel %vm205, %v1960, 0
        %v1995 = vsel %vm209, %v1988, 0
        %v1998 = vsel %vm209, %v1989, 0
        %v2001 = vsel %vm209, %v1990, 0
        %2003 = vmatprep.subr.bf16.mxu0 %v1998
        %2004 = vmatpush1.bf16.msra.mxu0 %v1995
        %2005 = vmatprep.subr.bf16.mxu0 0
        %2006 = vmatpush1.bf16.msra.mxu0 0
        %2007 = vmatprep.subr.bf16.mxu0 0
        %2008 = vmatpush1.bf16.msra.mxu0 0
        %2009 = vmatprep.subr.bf16.mxu0 0
        %2010 = vmatpush1.bf16.msra.mxu0 0
        %2011 = vmatprep.subr.bf16.mxu0 0
        %2012 = vmatpush1.bf16.msra.mxu0 0
        %2013 = vmatprep.subr.bf16.mxu0 0
        %2014 = vmatpush1.bf16.msra.mxu0 0
        %2015 = vmatprep.subr.bf16.mxu0 0
        %2016 = vmatpush1.bf16.msra.mxu0 0
        %2017 = vmatprep.subr.bf16.mxu0 0
        %2018 = vmatpush1.bf16.msra.mxu0 0
        %2019 = vmatprep.subr.bf16.mxu0 0
        %2020 = vmatpush1.bf16.msra.mxu0 0
        %2021 = vmatprep.subr.bf16.mxu0 0
        %2022 = vmatpush1.bf16.msra.mxu0 0
        %2023 = vmatprep.subr.bf16.mxu0 0
        %2024 = vmatpush1.bf16.msra.mxu0 0
        %2025 = vmatprep.subr.bf16.mxu0 0
        %2026 = vmatpush1.bf16.msra.mxu0 0
        %2027 = vmatprep.subr.bf16.mxu0 0
        %2028 = vmatpush1.bf16.msra.mxu0 0
        %2029 = vmatprep.subr.bf16.mxu0 0
        %2030 = vmatpush1.bf16.msra.mxu0 0
        %2031 = vmatprep.subr.bf16.mxu0 0
        %2032 = vmatpush1.bf16.msra.mxu0 0
        %2033 = vmatprep.subr.bf16.mxu0 0
        %2034 = vmatpush1.bf16.msra.mxu0 0
        %2035 = vmatprep.mubr.bf16.mxu0 0
        %2036 = vmatmul.mubr.bf16.gmra.mrb[0].mxu0 %v1992
        %v2037 = vpop.f32.mrb[0].mxu0
        %v2038 = vadd.f32 0.0, %v2037
        %v2039 = vpop.f32.mrb[0].mxu0
        %v2040 = vadd.f32 0.0, %v2039
        %v2041 = vpop.f32.mrb[0].mxu0
        %v2042 = vpop.f32.mrb[0].mxu0
        %2043 = vdwg.mxu0
        %2044 = vmatprep.subr.bf16.mxu0 0
        %2045 = vmatpush1.bf16.msra.mxu0 %v2001
        %2046 = vmatprep.subr.bf16.mxu0 0
        %2047 = vmatpush1.bf16.msra.mxu0 0
        %2048 = vmatprep.subr.bf16.mxu0 0
        %2049 = vmatpush1.bf16.msra.mxu0 0
        %2050 = vmatprep.subr.bf16.mxu0 0
        %2051 = vmatpush1.bf16.msra.mxu0 0
        %2052 = vmatprep.subr.bf16.mxu0 0
        %2053 = vmatpush1.bf16.msra.mxu0 0
        %2054 = vmatprep.subr.bf16.mxu0 0
        %2055 = vmatpush1.bf16.msra.mxu0 0
        %2056 = vmatprep.subr.bf16.mxu0 0
        %2057 = vmatpush1.bf16.msra.mxu0 0
        %2058 = vmatprep.subr.bf16.mxu0 0
        %2059 = vmatpush1.bf16.msra.mxu0 0
        %2060 = vmatprep.subr.bf16.mxu0 0
        %2061 = vmatpush1.bf16.msra.mxu0 0
        %2062 = vmatprep.subr.bf16.mxu0 0
        %2063 = vmatpush1.bf16.msra.mxu0 0
        %2064 = vmatprep.subr.bf16.mxu0 0
        %2065 = vmatpush1.bf16.msra.mxu0 0
        %2066 = vmatprep.subr.bf16.mxu0 0
        %2067 = vmatpush1.bf16.msra.mxu0 0
        %2068 = vmatprep.subr.bf16.mxu0 0
        %2069 = vmatpush1.bf16.msra.mxu0 0
        %2070 = vmatprep.subr.bf16.mxu0 0
        %2071 = vmatpush1.bf16.msra.mxu0 0
        %2072 = vmatprep.subr.bf16.mxu0 0
        %2073 = vmatpush1.bf16.msra.mxu0 0
        %2074 = vmatprep.subr.bf16.mxu0 0
        %2075 = vmatpush1.bf16.msra.mxu0 0
        %2076 = vmatprep.mubr.bf16.mxu0 0
        %2077 = vmatmul.mubr.bf16.gmra.mrb[0].mxu0 %v1992
        %v2078 = vpop.f32.mrb[0].mxu0
        %v2079 = vadd.f32 0.0, %v2078
        %v2080 = vpop.f32.mrb[0].mxu0
        %v2081 = vpop.f32.mrb[0].mxu0
        %v2082 = vpop.f32.mrb[0].mxu0
        %2083 = vdwg.mxu0
        %v2084 = vadd.f32 %v1955, %v2038
        %v2085 = vadd.f32 %v1956, %v2040
        %v2086 = vadd.f32 %v1957, %v2079
        %v2087 = vld [vmem:[%s168] sm:$0xff]
        %s2088 = scalar_lea.vmem %s1, 60
        %v2089 = vld [vmem:[%s2088] sm:$0xf]
        %v2091 = vcombine.high %v2087, %v2087
        %v2093 = vunpack.c.l.s4 1983009808
        %v2094 = vunpack.c.0.s8 %v2093
        %v2095 = vlaneseq
        %v2096 = vshrl.u32 %v2095, 7
        %v2097 = vsub.s32 %v2094, %v2096
        %v2098 = vrot.slane %v2087, %v2097
        %v2100 = vunpack.c.l.s4 1983009808
        %v2101 = vunpack.c.0.s8 %v2100
        %v2102 = vlaneseq
        %v2103 = vshrl.u32 %v2102, 7
        %v2104 = vsub.s32 %v2101, %v2103
        %v2105 = vrot.slane %v2091, %v2104
        %v2106 = vcombine.high %v2098, %v2098
        %v2107 = vcombine.high %v2105, %v2105
        %2108 = vrot.lane.b32.xlu0 %v2098, 83
        %v2109 = vpop.permute.xlu0 %2108
        %2110 = vrot.lane.b32.xlu0 %v2106, 83
        %v2111 = vpop.permute.xlu0 %2110
        %2112 = vrot.lane.b32.xlu0 %v2105, 83
        %v2113 = vpop.permute.xlu0 %2112
        %2114 = vrot.lane.b32.xlu0 %v2107, 83
        %v2115 = vpop.permute.xlu0 %2114
        %vm2116 = vcmask 678912
        %v2117 = vsel %vm2116, %v2109, %v2111
        %v2118 = vsel %vm2116, %v2111, %v2113
        %v2119 = vsel %vm2116, %v2113, %v2115
        %v2121 = vsel %vm205, %v2089, 0
        %v2124 = vsel %vm209, %v2117, 0
        %v2127 = vsel %vm209, %v2118, 0
        %v2130 = vsel %vm209, %v2119, 0
        %2132 = vmatprep.subr.bf16.mxu0 %v2127
        %2133 = vmatpush1.bf16.msra.mxu0 %v2124
        %2134 = vmatprep.subr.bf16.mxu0 0
        %2135 = vmatpush1.bf16.msra.mxu0 0
        %2136 = vmatprep.subr.bf16.mxu0 0
        %2137 = vmatpush1.bf16.msra.mxu0 0
        %2138 = vmatprep.subr.bf16.mxu0 0
        %2139 = vmatpush1.bf16.msra.mxu0 0
        %2140 = vmatprep.subr.bf16.mxu0 0
        %2141 = vmatpush1.bf16.msra.mxu0 0
        %2142 = vmatprep.subr.bf16.mxu0 0
        %2143 = vmatpush1.bf16.msra.mxu0 0
        %2144 = vmatprep.subr.bf16.mxu0 0
        %2145 = vmatpush1.bf16.msra.mxu0 0
        %2146 = vmatprep.subr.bf16.mxu0 0
        %2147 = vmatpush1.bf16.msra.mxu0 0
        %2148 = vmatprep.subr.bf16.mxu0 0
        %2149 = vmatpush1.bf16.msra.mxu0 0
        %2150 = vmatprep.subr.bf16.mxu0 0
        %2151 = vmatpush1.bf16.msra.mxu0 0
        %2152 = vmatprep.subr.bf16.mxu0 0
        %2153 = vmatpush1.bf16.msra.mxu0 0
        %2154 = vmatprep.subr.bf16.mxu0 0
        %2155 = vmatpush1.bf16.msra.mxu0 0
        %2156 = vmatprep.subr.bf16.mxu0 0
        %2157 = vmatpush1.bf16.msra.mxu0 0
        %2158 = vmatprep.subr.bf16.mxu0 0
        %2159 = vmatpush1.bf16.msra.mxu0 0
        %2160 = vmatprep.subr.bf16.mxu0 0
        %2161 = vmatpush1.bf16.msra.mxu0 0
        %2162 = vmatprep.subr.bf16.mxu0 0
        %2163 = vmatpush1.bf16.msra.mxu0 0
        %2164 = vmatprep.mubr.bf16.mxu0 0
        %2165 = vmatmul.mubr.bf16.gmra.mrb[0].mxu0 %v2121
        %v2166 = vpop.f32.mrb[0].mxu0
        %v2167 = vadd.f32 0.0, %v2166
        %v2168 = vpop.f32.mrb[0].mxu0
        %v2169 = vadd.f32 0.0, %v2168
        %v2170 = vpop.f32.mrb[0].mxu0
        %v2171 = vpop.f32.mrb[0].mxu0
        %2172 = vdwg.mxu0
        %2173 = vmatprep.subr.bf16.mxu0 0
        %2174 = vmatpush1.bf16.msra.mxu0 %v2130
        %2175 = vmatprep.subr.bf16.mxu0 0
        %2176 = vmatpush1.bf16.msra.mxu0 0
        %2177 = vmatprep.subr.bf16.mxu0 0
        %2178 = vmatpush1.bf16.msra.mxu0 0
        %2179 = vmatprep.subr.bf16.mxu0 0
        %2180 = vmatpush1.bf16.msra.mxu0 0
        %2181 = vmatprep.subr.bf16.mxu0 0
        %2182 = vmatpush1.bf16.msra.mxu0 0
        %2183 = vmatprep.subr.bf16.mxu0 0
        %2184 = vmatpush1.bf16.msra.mxu0 0
        %2185 = vmatprep.subr.bf16.mxu0 0
        %2186 = vmatpush1.bf16.msra.mxu0 0
        %2187 = vmatprep.subr.bf16.mxu0 0
        %2188 = vmatpush1.bf16.msra.mxu0 0
        %2189 = vmatprep.subr.bf16.mxu0 0
        %2190 = vmatpush1.bf16.msra.mxu0 0
        %2191 = vmatprep.subr.bf16.mxu0 0
        %2192 = vmatpush1.bf16.msra.mxu0 0
        %2193 = vmatprep.subr.bf16.mxu0 0
        %2194 = vmatpush1.bf16.msra.mxu0 0
        %2195 = vmatprep.subr.bf16.mxu0 0
        %2196 = vmatpush1.bf16.msra.mxu0 0
        %2197 = vmatprep.subr.bf16.mxu0 0
        %2198 = vmatpush1.bf16.msra.mxu0 0
        %2199 = vmatprep.subr.bf16.mxu0 0
        %2200 = vmatpush1.bf16.msra.mxu0 0
        %2201 = vmatprep.subr.bf16.mxu0 0
        %2202 = vmatpush1.bf16.msra.mxu0 0
        %2203 = vmatprep.subr.bf16.mxu0 0
        %2204 = vmatpush1.bf16.msra.mxu0 0
        %2205 = vmatprep.mubr.bf16.mxu0 0
        %2206 = vmatmul.mubr.bf16.gmra.mrb[0].mxu0 %v2121
        %v2207 = vpop.f32.mrb[0].mxu0
        %v2208 = vadd.f32 0.0, %v2207
        %v2209 = vpop.f32.mrb[0].mxu0
        %v2210 = vpop.f32.mrb[0].mxu0
        %v2211 = vpop.f32.mrb[0].mxu0
        %2212 = vdwg.mxu0
        %v2213 = vadd.f32 %v2084, %v2167
        %v2214 = vadd.f32 %v2085, %v2169
        %v2215 = vadd.f32 %v2086, %v2208
        %v2216 = vld [vmem:[%s168] sm:$0xff]
        %s2217 = scalar_lea.vmem %s1, 64
        %v2218 = vld [vmem:[%s2217] sm:$0xf]
        %v2220 = vcombine.high %v2216, %v2216
        %v2222 = vunpack.c.l.s4 1983009808
        %v2223 = vunpack.c.0.s8 %v2222
        %v2224 = vlaneseq
        %v2225 = vshrl.u32 %v2224, 7
        %v2226 = vsub.s32 %v2223, %v2225
        %v2227 = vrot.slane %v2216, %v2226
        %v2229 = vunpack.c.l.s4 1983009808
        %v2230 = vunpack.c.0.s8 %v2229
        %v2231 = vlaneseq
        %v2232 = vshrl.u32 %v2231, 7
        %v2233 = vsub.s32 %v2230, %v2232
        %v2234 = vrot.slane %v2220, %v2233
        %v2235 = vcombine.high %v2227, %v2227
        %v2236 = vcombine.high %v2234, %v2234
        %2237 = vrot.lane.b32.xlu0 %v2227, 82
        %v2238 = vpop.permute.xlu0 %2237
        %2239 = vrot.lane.b32.xlu0 %v2235, 82
        %v2240 = vpop.permute.xlu0 %2239
        %2241 = vrot.lane.b32.xlu0 %v2234, 82
        %v2242 = vpop.permute.xlu0 %2241
        %2243 = vrot.lane.b32.xlu0 %v2236, 82
        %v2244 = vpop.permute.xlu0 %2243
        %vm2245 = vcmask 670720
        %v2246 = vsel %vm2245, %v2238, %v2240
        %v2247 = vsel %vm2245, %v2240, %v2242
        %v2248 = vsel %vm2245, %v2242, %v2244
        %v2250 = vsel %vm205, %v2218, 0
        %v2253 = vsel %vm209, %v2246, 0
        %v2256 = vsel %vm209, %v2247, 0
        %v2259 = vsel %vm209, %v2248, 0
        %2261 = vmatprep.subr.bf16.mxu0 %v2256
        %2262 = vmatpush1.bf16.msra.mxu0 %v2253
        %2263 = vmatprep.subr.bf16.mxu0 0
        %2264 = vmatpush1.bf16.msra.mxu0 0
        %2265 = vmatprep.subr.bf16.mxu0 0
        %2266 = vmatpush1.bf16.msra.mxu0 0
        %2267 = vmatprep.subr.bf16.mxu0 0
        %2268 = vmatpush1.bf16.msra.mxu0 0
        %2269 = vmatprep.subr.bf16.mxu0 0
        %2270 = vmatpush1.bf16.msra.mxu0 0
        %2271 = vmatprep.subr.bf16.mxu0 0
        %2272 = vmatpush1.bf16.msra.mxu0 0
        %2273 = vmatprep.subr.bf16.mxu0 0
        %2274 = vmatpush1.bf16.msra.mxu0 0
        %2275 = vmatprep.subr.bf16.mxu0 0
        %2276 = vmatpush1.bf16.msra.mxu0 0
        %2277 = vmatprep.subr.bf16.mxu0 0
        %2278 = vmatpush1.bf16.msra.mxu0 0
        %2279 = vmatprep.subr.bf16.mxu0 0
        %2280 = vmatpush1.bf16.msra.mxu0 0
        %2281 = vmatprep.subr.bf16.mxu0 0
        %2282 = vmatpush1.bf16.msra.mxu0 0
        %2283 = vmatprep.subr.bf16.mxu0 0
        %2284 = vmatpush1.bf16.msra.mxu0 0
        %2285 = vmatprep.subr.bf16.mxu0 0
        %2286 = vmatpush1.bf16.msra.mxu0 0
        %2287 = vmatprep.subr.bf16.mxu0 0
        %2288 = vmatpush1.bf16.msra.mxu0 0
        %2289 = vmatprep.subr.bf16.mxu0 0
        %2290 = vmatpush1.bf16.msra.mxu0 0
        %2291 = vmatprep.subr.bf16.mxu0 0
        %2292 = vmatpush1.bf16.msra.mxu0 0
        %2293 = vmatprep.mubr.bf16.mxu0 0
        %2294 = vmatmul.mubr.bf16.gmra.mrb[0].mxu0 %v2250
        %v2295 = vpop.f32.mrb[0].mxu0
        %v2296 = vadd.f32 0.0, %v2295
        %v2297 = vpop.f32.mrb[0].mxu0
        %v2298 = vadd.f32 0.0, %v2297
        %v2299 = vpop.f32.mrb[0].mxu0
        %v2300 = vpop.f32.mrb[0].mxu0
        %2301 = vdwg.mxu0
        %2302 = vmatprep.subr.bf16.mxu0 0
        %2303 = vmatpush1.bf16.msra.mxu0 %v2259
        %2304 = vmatprep.subr.bf16.mxu0 0
        %2305 = vmatpush1.bf16.msra.mxu0 0
        %2306 = vmatprep.subr.bf16.mxu0 0
        %2307 = vmatpush1.bf16.msra.mxu0 0
        %2308 = vmatprep.subr.bf16.mxu0 0
        %2309 = vmatpush1.bf16.msra.mxu0 0
        %2310 = vmatprep.subr.bf16.mxu0 0
        %2311 = vmatpush1.bf16.msra.mxu0 0
        %2312 = vmatprep.subr.bf16.mxu0 0
        %2313 = vmatpush1.bf16.msra.mxu0 0
        %2314 = vmatprep.subr.bf16.mxu0 0
        %2315 = vmatpush1.bf16.msra.mxu0 0
        %2316 = vmatprep.subr.bf16.mxu0 0
        %2317 = vmatpush1.bf16.msra.mxu0 0
        %2318 = vmatprep.subr.bf16.mxu0 0
        %2319 = vmatpush1.bf16.msra.mxu0 0
        %2320 = vmatprep.subr.bf16.mxu0 0
        %2321 = vmatpush1.bf16.msra.mxu0 0
        %2322 = vmatprep.subr.bf16.mxu0 0
        %2323 = vmatpush1.bf16.msra.mxu0 0
        %2324 = vmatprep.subr.bf16.mxu0 0
        %2325 = vmatpush1.bf16.msra.mxu0 0
        %2326 = vmatprep.subr.bf16.mxu0 0
        %2327 = vmatpush1.bf16.msra.mxu0 0
        %2328 = vmatprep.subr.bf16.mxu0 0
        %2329 = vmatpush1.bf16.msra.mxu0 0
        %2330 = vmatprep.subr.bf16.mxu0 0
        %2331 = vmatpush1.bf16.msra.mxu0 0
        %2332 = vmatprep.subr.bf16.mxu0 0
        %2333 = vmatpush1.bf16.msra.mxu0 0
        %2334 = vmatprep.mubr.bf16.mxu0 0
        %2335 = vmatmul.mubr.bf16.gmra.mrb[0].mxu0 %v2250
        %v2336 = vpop.f32.mrb[0].mxu0
        %v2337 = vadd.f32 0.0, %v2336
        %v2338 = vpop.f32.mrb[0].mxu0
        %v2339 = vpop.f32.mrb[0].mxu0
        %v2340 = vpop.f32.mrb[0].mxu0
        %2341 = vdwg.mxu0
        %v2342 = vadd.f32 %v2213, %v2296
        %v2343 = vadd.f32 %v2214, %v2298
        %v2344 = vadd.f32 %v2215, %v2337
        %v2345 = vld [vmem:[%s168] sm:$0xff]
        %s2346 = scalar_lea.vmem %s1, 68
        %v2347 = vld [vmem:[%s2346] sm:$0xf]
        %v2349 = vcombine.high %v2345, %v2345
        %v2351 = vunpack.c.l.s4 1983009808
        %v2352 = vunpack.c.0.s8 %v2351
        %v2353 = vlaneseq
        %v2354 = vshrl.u32 %v2353, 7
        %v2355 = vsub.s32 %v2352, %v2354
        %v2356 = vrot.slane %v2345, %v2355
        %v2358 = vunpack.c.l.s4 1983009808
        %v2359 = vunpack.c.0.s8 %v2358
        %v2360 = vlaneseq
        %v2361 = vshrl.u32 %v2360, 7
        %v2362 = vsub.s32 %v2359, %v2361
        %v2363 = vrot.slane %v2349, %v2362
        %v2364 = vcombine.high %v2356, %v2356
        %v2365 = vcombine.high %v2363, %v2363
        %2366 = vrot.lane.b32.xlu0 %v2356, 81
        %v2367 = vpop.permute.xlu0 %2366
        %2368 = vrot.lane.b32.xlu0 %v2364, 81
        %v2369 = vpop.permute.xlu0 %2368
        %2370 = vrot.lane.b32.xlu0 %v2363, 81
        %v2371 = vpop.permute.xlu0 %2370
        %2372 = vrot.lane.b32.xlu0 %v2365, 81
        %v2373 = vpop.permute.xlu0 %2372
        %vm2374 = vcmask 662528
        %v2375 = vsel %vm2374, %v2367, %v2369
        %v2376 = vsel %vm2374, %v2369, %v2371
        %v2377 = vsel %vm2374, %v2371, %v2373
        %v2379 = vsel %vm205, %v2347, 0
        %v2382 = vsel %vm209, %v2375, 0
        %v2385 = vsel %vm209, %v2376, 0
        %v2388 = vsel %vm209, %v2377, 0
        %2390 = vmatprep.subr.bf16.mxu0 %v2385
        %2391 = vmatpush1.bf16.msra.mxu0 %v2382
        %2392 = vmatprep.subr.bf16.mxu0 0
        %2393 = vmatpush1.bf16.msra.mxu0 0
        %2394 = vmatprep.subr.bf16.mxu0 0
        %2395 = vmatpush1.bf16.msra.mxu0 0
        %2396 = vmatprep.subr.bf16.mxu0 0
        %2397 = vmatpush1.bf16.msra.mxu0 0
        %2398 = vmatprep.subr.bf16.mxu0 0
        %2399 = vmatpush1.bf16.msra.mxu0 0
        %2400 = vmatprep.subr.bf16.mxu0 0
        %2401 = vmatpush1.bf16.msra.mxu0 0
        %2402 = vmatprep.subr.bf16.mxu0 0
        %2403 = vmatpush1.bf16.msra.mxu0 0
        %2404 = vmatprep.subr.bf16.mxu0 0
        %2405 = vmatpush1.bf16.msra.mxu0 0
        %2406 = vmatprep.subr.bf16.mxu0 0
        %2407 = vmatpush1.bf16.msra.mxu0 0
        %2408 = vmatprep.subr.bf16.mxu0 0
        %2409 = vmatpush1.bf16.msra.mxu0 0
        %2410 = vmatprep.subr.bf16.mxu0 0
        %2411 = vmatpush1.bf16.msra.mxu0 0
        %2412 = vmatprep.subr.bf16.mxu0 0
        %2413 = vmatpush1.bf16.msra.mxu0 0
        %2414 = vmatprep.subr.bf16.mxu0 0
        %2415 = vmatpush1.bf16.msra.mxu0 0
        %2416 = vmatprep.subr.bf16.mxu0 0
        %2417 = vmatpush1.bf16.msra.mxu0 0
        %2418 = vmatprep.subr.bf16.mxu0 0
        %2419 = vmatpush1.bf16.msra.mxu0 0
        %2420 = vmatprep.subr.bf16.mxu0 0
        %2421 = vmatpush1.bf16.msra.mxu0 0
        %2422 = vmatprep.mubr.bf16.mxu0 0
        %2423 = vmatmul.mubr.bf16.gmra.mrb[0].mxu0 %v2379
        %v2424 = vpop.f32.mrb[0].mxu0
        %v2425 = vadd.f32 0.0, %v2424
        %v2426 = vpop.f32.mrb[0].mxu0
        %v2427 = vadd.f32 0.0, %v2426
        %v2428 = vpop.f32.mrb[0].mxu0
        %v2429 = vpop.f32.mrb[0].mxu0
        %2430 = vdwg.mxu0
        %2431 = vmatprep.subr.bf16.mxu0 0
        %2432 = vmatpush1.bf16.msra.mxu0 %v2388
        %2433 = vmatprep.subr.bf16.mxu0 0
        %2434 = vmatpush1.bf16.msra.mxu0 0
        %2435 = vmatprep.subr.bf16.mxu0 0
        %2436 = vmatpush1.bf16.msra.mxu0 0
        %2437 = vmatprep.subr.bf16.mxu0 0
        %2438 = vmatpush1.bf16.msra.mxu0 0
        %2439 = vmatprep.subr.bf16.mxu0 0
        %2440 = vmatpush1.bf16.msra.mxu0 0
        %2441 = vmatprep.subr.bf16.mxu0 0
        %2442 = vmatpush1.bf16.msra.mxu0 0
        %2443 = vmatprep.subr.bf16.mxu0 0
        %2444 = vmatpush1.bf16.msra.mxu0 0
        %2445 = vmatprep.subr.bf16.mxu0 0
        %2446 = vmatpush1.bf16.msra.mxu0 0
        %2447 = vmatprep.subr.bf16.mxu0 0
        %2448 = vmatpush1.bf16.msra.mxu0 0
        %2449 = vmatprep.subr.bf16.mxu0 0
        %2450 = vmatpush1.bf16.msra.mxu0 0
        %2451 = vmatprep.subr.bf16.mxu0 0
        %2452 = vmatpush1.bf16.msra.mxu0 0
        %2453 = vmatprep.subr.bf16.mxu0 0
        %2454 = vmatpush1.bf16.msra.mxu0 0
        %2455 = vmatprep.subr.bf16.mxu0 0
        %2456 = vmatpush1.bf16.msra.mxu0 0
        %2457 = vmatprep.subr.bf16.mxu0 0
        %2458 = vmatpush1.bf16.msra.mxu0 0
        %2459 = vmatprep.subr.bf16.mxu0 0
        %2460 = vmatpush1.bf16.msra.mxu0 0
        %2461 = vmatprep.subr.bf16.mxu0 0
        %2462 = vmatpush1.bf16.msra.mxu0 0
        %2463 = vmatprep.mubr.bf16.mxu0 0
        %2464 = vmatmul.mubr.bf16.gmra.mrb[0].mxu0 %v2379
        %v2465 = vpop.f32.mrb[0].mxu0
        %v2466 = vadd.f32 0.0, %v2465
        %v2467 = vpop.f32.mrb[0].mxu0
        %v2468 = vpop.f32.mrb[0].mxu0
        %v2469 = vpop.f32.mrb[0].mxu0
        %2470 = vdwg.mxu0
        %v2471 = vadd.f32 %v2342, %v2425
        %v2472 = vadd.f32 %v2343, %v2427
        %v2473 = vadd.f32 %v2344, %v2466
        %v2474 = vld [vmem:[%s168] sm:$0xff]
        %s2475 = scalar_lea.vmem %s1, 72
        %v2476 = vld [vmem:[%s2475] sm:$0xf]
        %v2478 = vcombine.high %v2474, %v2474
        %v2480 = vunpack.c.l.s4 1983009808
        %v2481 = vunpack.c.0.s8 %v2480
        %v2482 = vlaneseq
        %v2483 = vshrl.u32 %v2482, 7
        %v2484 = vsub.s32 %v2481, %v2483
        %v2485 = vrot.slane %v2474, %v2484
        %v2487 = vunpack.c.l.s4 1983009808
        %v2488 = vunpack.c.0.s8 %v2487
        %v2489 = vlaneseq
        %v2490 = vshrl.u32 %v2489, 7
        %v2491 = vsub.s32 %v2488, %v2490
        %v2492 = vrot.slane %v2478, %v2491
        %v2493 = vcombine.high %v2485, %v2485
        %v2494 = vcombine.high %v2492, %v2492
        %2495 = vrot.lane.b32.xlu0 %v2485, 80
        %v2496 = vpop.permute.xlu0 %2495
        %2497 = vrot.lane.b32.xlu0 %v2493, 80
        %v2498 = vpop.permute.xlu0 %2497
        %2499 = vrot.lane.b32.xlu0 %v2492, 80
        %v2500 = vpop.permute.xlu0 %2499
        %2501 = vrot.lane.b32.xlu0 %v2494, 80
        %v2502 = vpop.permute.xlu0 %2501
        %vm2503 = vcmask 654336
        %v2504 = vsel %vm2503, %v2496, %v2498
        %v2505 = vsel %vm2503, %v2498, %v2500
        %v2506 = vsel %vm2503, %v2500, %v2502
        %v2508 = vsel %vm205, %v2476, 0
        %v2511 = vsel %vm209, %v2504, 0
        %v2514 = vsel %vm209, %v2505, 0
        %v2517 = vsel %vm209, %v2506, 0
        %2519 = vmatprep.subr.bf16.mxu0 %v2514
        %2520 = vmatpush1.bf16.msra.mxu0 %v2511
        %2521 = vmatprep.subr.bf16.mxu0 0
        %2522 = vmatpush1.bf16.msra.mxu0 0
        %2523 = vmatprep.subr.bf16.mxu0 0
        %2524 = vmatpush1.bf16.msra.mxu0 0
        %2525 = vmatprep.subr.bf16.mxu0 0
        %2526 = vmatpush1.bf16.msra.mxu0 0
        %2527 = vmatprep.subr.bf16.mxu0 0
        %2528 = vmatpush1.bf16.msra.mxu0 0
        %2529 = vmatprep.subr.bf16.mxu0 0
        %2530 = vmatpush1.bf16.msra.mxu0 0
        %2531 = vmatprep.subr.bf16.mxu0 0
        %2532 = vmatpush1.bf16.msra.mxu0 0
        %2533 = vmatprep.subr.bf16.mxu0 0
        %2534 = vmatpush1.bf16.msra.mxu0 0
        %2535 = vmatprep.subr.bf16.mxu0 0
        %2536 = vmatpush1.bf16.msra.mxu0 0
        %2537 = vmatprep.subr.bf16.mxu0 0
        %2538 = vmatpush1.bf16.msra.mxu0 0
        %2539 = vmatprep.subr.bf16.mxu0 0
        %2540 = vmatpush1.bf16.msra.mxu0 0
        %2541 = vmatprep.subr.bf16.mxu0 0
        %2542 = vmatpush1.bf16.msra.mxu0 0
        %2543 = vmatprep.subr.bf16.mxu0 0
        %2544 = vmatpush1.bf16.msra.mxu0 0
        %2545 = vmatprep.subr.bf16.mxu0 0
        %2546 = vmatpush1.bf16.msra.mxu0 0
        %2547 = vmatprep.subr.bf16.mxu0 0
        %2548 = vmatpush1.bf16.msra.mxu0 0
        %2549 = vmatprep.subr.bf16.mxu0 0
        %2550 = vmatpush1.bf16.msra.mxu0 0
        %2551 = vmatprep.mubr.bf16.mxu0 0
        %2552 = vmatmul.mubr.bf16.gmra.mrb[0].mxu0 %v2508
        %v2553 = vpop.f32.mrb[0].mxu0
        %v2554 = vadd.f32 0.0, %v2553
        %v2555 = vpop.f32.mrb[0].mxu0
        %v2556 = vadd.f32 0.0, %v2555
        %v2557 = vpop.f32.mrb[0].mxu0
        %v2558 = vpop.f32.mrb[0].mxu0
        %2559 = vdwg.mxu0
        %2560 = vmatprep.subr.bf16.mxu0 0
        %2561 = vmatpush1.bf16.msra.mxu0 %v2517
        %2562 = vmatprep.subr.bf16.mxu0 0
        %2563 = vmatpush1.bf16.msra.mxu0 0
        %2564 = vmatprep.subr.bf16.mxu0 0
        %2565 = vmatpush1.bf16.msra.mxu0 0
        %2566 = vmatprep.subr.bf16.mxu0 0
        %2567 = vmatpush1.bf16.msra.mxu0 0
        %2568 = vmatprep.subr.bf16.mxu0 0
        %2569 = vmatpush1.bf16.msra.mxu0 0
        %2570 = vmatprep.subr.bf16.mxu0 0
        %2571 = vmatpush1.bf16.msra.mxu0 0
        %2572 = vmatprep.subr.bf16.mxu0 0
        %2573 = vmatpush1.bf16.msra.mxu0 0
        %2574 = vmatprep.subr.bf16.mxu0 0
        %2575 = vmatpush1.bf16.msra.mxu0 0
        %2576 = vmatprep.subr.bf16.mxu0 0
        %2577 = vmatpush1.bf16.msra.mxu0 0
        %2578 = vmatprep.subr.bf16.mxu0 0
        %2579 = vmatpush1.bf16.msra.mxu0 0
        %2580 = vmatprep.subr.bf16.mxu0 0
        %2581 = vmatpush1.bf16.msra.mxu0 0
        %2582 = vmatprep.subr.bf16.mxu0 0
        %2583 = vmatpush1.bf16.msra.mxu0 0
        %2584 = vmatprep.subr.bf16.mxu0 0
        %2585 = vmatpush1.bf16.msra.mxu0 0
        %2586 = vmatprep.subr.bf16.mxu0 0
        %2587 = vmatpush1.bf16.msra.mxu0 0
        %2588 = vmatprep.subr.bf16.mxu0 0
        %2589 = vmatpush1.bf16.msra.mxu0 0
        %2590 = vmatprep.subr.bf16.mxu0 0
        %2591 = vmatpush1.bf16.msra.mxu0 0
        %2592 = vmatprep.mubr.bf16.mxu0 0
        %2593 = vmatmul.mubr.bf16.gmra.mrb[0].mxu0 %v2508
        %v2594 = vpop.f32.mrb[0].mxu0
        %v2595 = vadd.f32 0.0, %v2594
        %v2596 = vpop.f32.mrb[0].mxu0
        %v2597 = vpop.f32.mrb[0].mxu0
        %v2598 = vpop.f32.mrb[0].mxu0
        %2599 = vdwg.mxu0
        %v2600 = vadd.f32 %v2471, %v2554
        %v2601 = vadd.f32 %v2472, %v2556
        %v2602 = vadd.f32 %v2473, %v2595
        %v2603 = vld [vmem:[%s168] sm:$0xff]
        %s2604 = scalar_lea.vmem %s1, 76
        %v2605 = vld [vmem:[%s2604] sm:$0xf]
        %v2607 = vcombine.high %v2603, %v2603
        %v2609 = vunpack.c.l.s4 1983009808
        %v2610 = vunpack.c.0.s8 %v2609
        %v2611 = vlaneseq
        %v2612 = vshrl.u32 %v2611, 7
        %v2613 = vsub.s32 %v2610, %v2612
        %v2614 = vrot.slane %v2603, %v2613
        %v2616 = vunpack.c.l.s4 1983009808
        %v2617 = vunpack.c.0.s8 %v2616
        %v2618 = vlaneseq
        %v2619 = vshrl.u32 %v2618, 7
        %v2620 = vsub.s32 %v2617, %v2619
        %v2621 = vrot.slane %v2607, %v2620
        %v2622 = vcombine.high %v2614, %v2614
        %v2623 = vcombine.high %v2621, %v2621
        %2624 = vrot.lane.b32.xlu0 %v2614, 79
        %v2625 = vpop.permute.xlu0 %2624
        %2626 = vrot.lane.b32.xlu0 %v2622, 79
        %v2627 = vpop.permute.xlu0 %2626
        %2628 = vrot.lane.b32.xlu0 %v2621, 79
        %v2629 = vpop.permute.xlu0 %2628
        %2630 = vrot.lane.b32.xlu0 %v2623, 79
        %v2631 = vpop.permute.xlu0 %2630
        %vm2632 = vcmask 646144
        %v2633 = vsel %vm2632, %v2625, %v2627
        %v2634 = vsel %vm2632, %v2627, %v2629
        %v2635 = vsel %vm2632, %v2629, %v2631
        %v2637 = vsel %vm205, %v2605, 0
        %v2640 = vsel %vm209, %v2633, 0
        %v2643 = vsel %vm209, %v2634, 0
        %v2646 = vsel %vm209, %v2635, 0
        %2648 = vmatprep.subr.bf16.mxu0 %v2643
        %2649 = vmatpush1.bf16.msra.mxu0 %v2640
        %2650 = vmatprep.subr.bf16.mxu0 0
        %2651 = vmatpush1.bf16.msra.mxu0 0
        %2652 = vmatprep.subr.bf16.mxu0 0
        %2653 = vmatpush1.bf16.msra.mxu0 0
        %2654 = vmatprep.subr.bf16.mxu0 0
        %2655 = vmatpush1.bf16.msra.mxu0 0
        %2656 = vmatprep.subr.bf16.mxu0 0
        %2657 = vmatpush1.bf16.msra.mxu0 0
        %2658 = vmatprep.subr.bf16.mxu0 0
        %2659 = vmatpush1.bf16.msra.mxu0 0
        %2660 = vmatprep.subr.bf16.mxu0 0
        %2661 = vmatpush1.bf16.msra.mxu0 0
        %2662 = vmatprep.subr.bf16.mxu0 0
        %2663 = vmatpush1.bf16.msra.mxu0 0
        %2664 = vmatprep.subr.bf16.mxu0 0
        %2665 = vmatpush1.bf16.msra.mxu0 0
        %2666 = vmatprep.subr.bf16.mxu0 0
        %2667 = vmatpush1.bf16.msra.mxu0 0
        %2668 = vmatprep.subr.bf16.mxu0 0
        %2669 = vmatpush1.bf16.msra.mxu0 0
        %2670 = vmatprep.subr.bf16.mxu0 0
        %2671 = vmatpush1.bf16.msra.mxu0 0
        %2672 = vmatprep.subr.bf16.mxu0 0
        %2673 = vmatpush1.bf16.msra.mxu0 0
        %2674 = vmatprep.subr.bf16.mxu0 0
        %2675 = vmatpush1.bf16.msra.mxu0 0
        %2676 = vmatprep.subr.bf16.mxu0 0
        %2677 = vmatpush1.bf16.msra.mxu0 0
        %2678 = vmatprep.subr.bf16.mxu0 0
        %2679 = vmatpush1.bf16.msra.mxu0 0
        %2680 = vmatprep.mubr.bf16.mxu0 0
        %2681 = vmatmul.mubr.bf16.gmra.mrb[0].mxu0 %v2637
        %v2682 = vpop.f32.mrb[0].mxu0
        %v2683 = vadd.f32 0.0, %v2682
        %v2684 = vpop.f32.mrb[0].mxu0
        %v2685 = vadd.f32 0.0, %v2684
        %v2686 = vpop.f32.mrb[0].mxu0
        %v2687 = vpop.f32.mrb[0].mxu0
        %2688 = vdwg.mxu0
        %2689 = vmatprep.subr.bf16.mxu0 0
        %2690 = vmatpush1.bf16.msra.mxu0 %v2646
        %2691 = vmatprep.subr.bf16.mxu0 0
        %2692 = vmatpush1.bf16.msra.mxu0 0
        %2693 = vmatprep.subr.bf16.mxu0 0
        %2694 = vmatpush1.bf16.msra.mxu0 0
        %2695 = vmatprep.subr.bf16.mxu0 0
        %2696 = vmatpush1.bf16.msra.mxu0 0
        %2697 = vmatprep.subr.bf16.mxu0 0
        %2698 = vmatpush1.bf16.msra.mxu0 0
        %2699 = vmatprep.subr.bf16.mxu0 0
        %2700 = vmatpush1.bf16.msra.mxu0 0
        %2701 = vmatprep.subr.bf16.mxu0 0
        %2702 = vmatpush1.bf16.msra.mxu0 0
        %2703 = vmatprep.subr.bf16.mxu0 0
        %2704 = vmatpush1.bf16.msra.mxu0 0
        %2705 = vmatprep.subr.bf16.mxu0 0
        %2706 = vmatpush1.bf16.msra.mxu0 0
        %2707 = vmatprep.subr.bf16.mxu0 0
        %2708 = vmatpush1.bf16.msra.mxu0 0
        %2709 = vmatprep.subr.bf16.mxu0 0
        %2710 = vmatpush1.bf16.msra.mxu0 0
        %2711 = vmatprep.subr.bf16.mxu0 0
        %2712 = vmatpush1.bf16.msra.mxu0 0
        %2713 = vmatprep.subr.bf16.mxu0 0
        %2714 = vmatpush1.bf16.msra.mxu0 0
        %2715 = vmatprep.subr.bf16.mxu0 0
        %2716 = vmatpush1.bf16.msra.mxu0 0
        %2717 = vmatprep.subr.bf16.mxu0 0
        %2718 = vmatpush1.bf16.msra.mxu0 0
        %2719 = vmatprep.subr.bf16.mxu0 0
        %2720 = vmatpush1.bf16.msra.mxu0 0
        %2721 = vmatprep.mubr.bf16.mxu0 0
        %2722 = vmatmul.mubr.bf16.gmra.mrb[0].mxu0 %v2637
        %v2723 = vpop.f32.mrb[0].mxu0
        %v2724 = vadd.f32 0.0, %v2723
        %v2725 = vpop.f32.mrb[0].mxu0
        %v2726 = vpop.f32.mrb[0].mxu0
        %v2727 = vpop.f32.mrb[0].mxu0
        %2728 = vdwg.mxu0
        %v2729 = vadd.f32 %v2600, %v2683
        %v2730 = vadd.f32 %v2601, %v2685
        %v2731 = vadd.f32 %v2602, %v2724
        %v2732 = vld [vmem:[%s168] sm:$0xff]
        %s2733 = scalar_lea.vmem %s1, 80
        %v2734 = vld [vmem:[%s2733] sm:$0xf]
        %v2736 = vcombine.high %v2732, %v2732
        %v2738 = vunpack.c.l.s4 1983009808
        %v2739 = vunpack.c.0.s8 %v2738
        %v2740 = vlaneseq
        %v2741 = vshrl.u32 %v2740, 7
        %v2742 = vsub.s32 %v2739, %v2741
        %v2743 = vrot.slane %v2732, %v2742
        %v2745 = vunpack.c.l.s4 1983009808
        %v2746 = vunpack.c.0.s8 %v2745
        %v2747 = vlaneseq
        %v2748 = vshrl.u32 %v2747, 7
        %v2749 = vsub.s32 %v2746, %v2748
        %v2750 = vrot.slane %v2736, %v2749
        %v2751 = vcombine.high %v2743, %v2743
        %v2752 = vcombine.high %v2750, %v2750
        %2753 = vrot.lane.b32.xlu0 %v2743, 78
        %v2754 = vpop.permute.xlu0 %2753
        %2755 = vrot.lane.b32.xlu0 %v2751, 78
        %v2756 = vpop.permute.xlu0 %2755
        %2757 = vrot.lane.b32.xlu0 %v2750, 78
        %v2758 = vpop.permute.xlu0 %2757
        %2759 = vrot.lane.b32.xlu0 %v2752, 78
        %v2760 = vpop.permute.xlu0 %2759
        %vm2761 = vcmask 637952
        %v2762 = vsel %vm2761, %v2754, %v2756
        %v2763 = vsel %vm2761, %v2756, %v2758
        %v2764 = vsel %vm2761, %v2758, %v2760
        %v2766 = vsel %vm205, %v2734, 0
        %v2769 = vsel %vm209, %v2762, 0
        %v2772 = vsel %vm209, %v2763, 0
        %v2775 = vsel %vm209, %v2764, 0
        %2777 = vmatprep.subr.bf16.mxu0 %v2772
        %2778 = vmatpush1.bf16.msra.mxu0 %v2769
        %2779 = vmatprep.subr.bf16.mxu0 0
        %2780 = vmatpush1.bf16.msra.mxu0 0
        %2781 = vmatprep.subr.bf16.mxu0 0
        %2782 = vmatpush1.bf16.msra.mxu0 0
        %2783 = vmatprep.subr.bf16.mxu0 0
        %2784 = vmatpush1.bf16.msra.mxu0 0
        %2785 = vmatprep.subr.bf16.mxu0 0
        %2786 = vmatpush1.bf16.msra.mxu0 0
        %2787 = vmatprep.subr.bf16.mxu0 0
        %2788 = vmatpush1.bf16.msra.mxu0 0
        %2789 = vmatprep.subr.bf16.mxu0 0
        %2790 = vmatpush1.bf16.msra.mxu0 0
        %2791 = vmatprep.subr.bf16.mxu0 0
        %2792 = vmatpush1.bf16.msra.mxu0 0
        %2793 = vmatprep.subr.bf16.mxu0 0
        %2794 = vmatpush1.bf16.msra.mxu0 0
        %2795 = vmatprep.subr.bf16.mxu0 0
        %2796 = vmatpush1.bf16.msra.mxu0 0
        %2797 = vmatprep.subr.bf16.mxu0 0
        %2798 = vmatpush1.bf16.msra.mxu0 0
        %2799 = vmatprep.subr.bf16.mxu0 0
        %2800 = vmatpush1.bf16.msra.mxu0 0
        %2801 = vmatprep.subr.bf16.mxu0 0
        %2802 = vmatpush1.bf16.msra.mxu0 0
        %2803 = vmatprep.subr.bf16.mxu0 0
        %2804 = vmatpush1.bf16.msra.mxu0 0
        %2805 = vmatprep.subr.bf16.mxu0 0
        %2806 = vmatpush1.bf16.msra.mxu0 0
        %2807 = vmatprep.subr.bf16.mxu0 0
        %2808 = vmatpush1.bf16.msra.mxu0 0
        %2809 = vmatprep.mubr.bf16.mxu0 0
        %2810 = vmatmul.mubr.bf16.gmra.mrb[0].mxu0 %v2766
        %v2811 = vpop.f32.mrb[0].mxu0
        %v2812 = vadd.f32 0.0, %v2811
        %v2813 = vpop.f32.mrb[0].mxu0
        %v2814 = vadd.f32 0.0, %v2813
        %v2815 = vpop.f32.mrb[0].mxu0
        %v2816 = vpop.f32.mrb[0].mxu0
        %2817 = vdwg.mxu0
        %2818 = vmatprep.subr.bf16.mxu0 0
        %2819 = vmatpush1.bf16.msra.mxu0 %v2775
        %2820 = vmatprep.subr.bf16.mxu0 0
        %2821 = vmatpush1.bf16.msra.mxu0 0
        %2822 = vmatprep.subr.bf16.mxu0 0
        %2823 = vmatpush1.bf16.msra.mxu0 0
        %2824 = vmatprep.subr.bf16.mxu0 0
        %2825 = vmatpush1.bf16.msra.mxu0 0
        %2826 = vmatprep.subr.bf16.mxu0 0
        %2827 = vmatpush1.bf16.msra.mxu0 0
        %2828 = vmatprep.subr.bf16.mxu0 0
        %2829 = vmatpush1.bf16.msra.mxu0 0
        %2830 = vmatprep.subr.bf16.mxu0 0
        %2831 = vmatpush1.bf16.msra.mxu0 0
        %2832 = vmatprep.subr.bf16.mxu0 0
        %2833 = vmatpush1.bf16.msra.mxu0 0
        %2834 = vmatprep.subr.bf16.mxu0 0
        %2835 = vmatpush1.bf16.msra.mxu0 0
        %2836 = vmatprep.subr.bf16.mxu0 0
        %2837 = vmatpush1.bf16.msra.mxu0 0
        %2838 = vmatprep.subr.bf16.mxu0 0
        %2839 = vmatpush1.bf16.msra.mxu0 0
        %2840 = vmatprep.subr.bf16.mxu0 0
        %2841 = vmatpush1.bf16.msra.mxu0 0
        %2842 = vmatprep.subr.bf16.mxu0 0
        %2843 = vmatpush1.bf16.msra.mxu0 0
        %2844 = vmatprep.subr.bf16.mxu0 0
        %2845 = vmatpush1.bf16.msra.mxu0 0
        %2846 = vmatprep.subr.bf16.mxu0 0
        %2847 = vmatpush1.bf16.msra.mxu0 0
        %2848 = vmatprep.subr.bf16.mxu0 0
        %2849 = vmatpush1.bf16.msra.mxu0 0
        %2850 = vmatprep.mubr.bf16.mxu0 0
        %2851 = vmatmul.mubr.bf16.gmra.mrb[0].mxu0 %v2766
        %v2852 = vpop.f32.mrb[0].mxu0
        %v2853 = vadd.f32 0.0, %v2852
        %v2854 = vpop.f32.mrb[0].mxu0
        %v2855 = vpop.f32.mrb[0].mxu0
        %v2856 = vpop.f32.mrb[0].mxu0
        %2857 = vdwg.mxu0
        %v2858 = vadd.f32 %v2729, %v2812
        %v2859 = vadd.f32 %v2730, %v2814
        %v2860 = vadd.f32 %v2731, %v2853
        %v2861 = vld [vmem:[%s168] sm:$0xff]
        %s2862 = scalar_lea.vmem %s1, 84
        %v2863 = vld [vmem:[%s2862] sm:$0xf]
        %v2865 = vcombine.high %v2861, %v2861
        %v2867 = vunpack.c.l.s4 1983009808
        %v2868 = vunpack.c.0.s8 %v2867
        %v2869 = vlaneseq
        %v2870 = vshrl.u32 %v2869, 7
        %v2871 = vsub.s32 %v2868, %v2870
        %v2872 = vrot.slane %v2861, %v2871
        %v2874 = vunpack.c.l.s4 1983009808
        %v2875 = vunpack.c.0.s8 %v2874
        %v2876 = vlaneseq
        %v2877 = vshrl.u32 %v2876, 7
        %v2878 = vsub.s32 %v2875, %v2877
        %v2879 = vrot.slane %v2865, %v2878
        %v2880 = vcombine.high %v2872, %v2872
        %v2881 = vcombine.high %v2879, %v2879
        %2882 = vrot.lane.b32.xlu0 %v2872, 62
        %v2883 = vpop.permute.xlu0 %2882
        %2884 = vrot.lane.b32.xlu0 %v2880, 62
        %v2885 = vpop.permute.xlu0 %2884
        %2886 = vrot.lane.b32.xlu0 %v2879, 62
        %v2887 = vpop.permute.xlu0 %2886
        %2888 = vrot.lane.b32.xlu0 %v2881, 62
        %v2889 = vpop.permute.xlu0 %2888
        %vm2890 = vcmask 506880
        %v2891 = vsel %vm2890, %v2883, %v2885
        %v2892 = vsel %vm2890, %v2885, %v2887
        %v2893 = vsel %vm2890, %v2887, %v2889
        %v2895 = vsel %vm205, %v2863, 0
        %v2898 = vsel %vm209, %v2891, 0
        %v2901 = vsel %vm209, %v2892, 0
        %v2904 = vsel %vm209, %v2893, 0
        %2906 = vmatprep.subr.bf16.mxu0 %v2901
        %2907 = vmatpush1.bf16.msra.mxu0 %v2898
        %2908 = vmatprep.subr.bf16.mxu0 0
        %2909 = vmatpush1.bf16.msra.mxu0 0
        %2910 = vmatprep.subr.bf16.mxu0 0
        %2911 = vmatpush1.bf16.msra.mxu0 0
        %2912 = vmatprep.subr.bf16.mxu0 0
        %2913 = vmatpush1.bf16.msra.mxu0 0
        %2914 = vmatprep.subr.bf16.mxu0 0
        %2915 = vmatpush1.bf16.msra.mxu0 0
        %2916 = vmatprep.subr.bf16.mxu0 0
        %2917 = vmatpush1.bf16.msra.mxu0 0
        %2918 = vmatprep.subr.bf16.mxu0 0
        %2919 = vmatpush1.bf16.msra.mxu0 0
        %2920 = vmatprep.subr.bf16.mxu0 0
        %2921 = vmatpush1.bf16.msra.mxu0 0
        %2922 = vmatprep.subr.bf16.mxu0 0
        %2923 = vmatpush1.bf16.msra.mxu0 0
        %2924 = vmatprep.subr.bf16.mxu0 0
        %2925 = vmatpush1.bf16.msra.mxu0 0
        %2926 = vmatprep.subr.bf16.mxu0 0
        %2927 = vmatpush1.bf16.msra.mxu0 0
        %2928 = vmatprep.subr.bf16.mxu0 0
        %2929 = vmatpush1.bf16.msra.mxu0 0
        %2930 = vmatprep.subr.bf16.mxu0 0
        %2931 = vmatpush1.bf16.msra.mxu0 0
        %2932 = vmatprep.subr.bf16.mxu0 0
        %2933 = vmatpush1.bf16.msra.mxu0 0
        %2934 = vmatprep.subr.bf16.mxu0 0
        %2935 = vmatpush1.bf16.msra.mxu0 0
        %2936 = vmatprep.subr.bf16.mxu0 0
        %2937 = vmatpush1.bf16.msra.mxu0 0
        %2938 = vmatprep.mubr.bf16.mxu0 0
        %2939 = vmatmul.mubr.bf16.gmra.mrb[0].mxu0 %v2895
        %v2940 = vpop.f32.mrb[0].mxu0
        %v2941 = vadd.f32 0.0, %v2940
        %v2942 = vpop.f32.mrb[0].mxu0
        %v2943 = vadd.f32 0.0, %v2942
        %v2944 = vpop.f32.mrb[0].mxu0
        %v2945 = vpop.f32.mrb[0].mxu0
        %2946 = vdwg.mxu0
        %2947 = vmatprep.subr.bf16.mxu0 0
        %2948 = vmatpush1.bf16.msra.mxu0 %v2904
        %2949 = vmatprep.subr.bf16.mxu0 0
        %2950 = vmatpush1.bf16.msra.mxu0 0
        %2951 = vmatprep.subr.bf16.mxu0 0
        %2952 = vmatpush1.bf16.msra.mxu0 0
        %2953 = vmatprep.subr.bf16.mxu0 0
        %2954 = vmatpush1.bf16.msra.mxu0 0
        %2955 = vmatprep.subr.bf16.mxu0 0
        %2956 = vmatpush1.bf16.msra.mxu0 0
        %2957 = vmatprep.subr.bf16.mxu0 0
        %2958 = vmatpush1.bf16.msra.mxu0 0
        %2959 = vmatprep.subr.bf16.mxu0 0
        %2960 = vmatpush1.bf16.msra.mxu0 0
        %2961 = vmatprep.subr.bf16.mxu0 0
        %2962 = vmatpush1.bf16.msra.mxu0 0
        %2963 = vmatprep.subr.bf16.mxu0 0
        %2964 = vmatpush1.bf16.msra.mxu0 0
        %2965 = vmatprep.subr.bf16.mxu0 0
        %2966 = vmatpush1.bf16.msra.mxu0 0
        %2967 = vmatprep.subr.bf16.mxu0 0
        %2968 = vmatpush1.bf16.msra.mxu0 0
        %2969 = vmatprep.subr.bf16.mxu0 0
        %2970 = vmatpush1.bf16.msra.mxu0 0
        %2971 = vmatprep.subr.bf16.mxu0 0
        %2972 = vmatpush1.bf16.msra.mxu0 0
        %2973 = vmatprep.subr.bf16.mxu0 0
        %2974 = vmatpush1.bf16.msra.mxu0 0
        %2975 = vmatprep.subr.bf16.mxu0 0
        %2976 = vmatpush1.bf16.msra.mxu0 0
        %2977 = vmatprep.subr.bf16.mxu0 0
        %2978 = vmatpush1.bf16.msra.mxu0 0
        %2979 = vmatprep.mubr.bf16.mxu0 0
        %2980 = vmatmul.mubr.bf16.gmra.mrb[0].mxu0 %v2895
        %v2981 = vpop.f32.mrb[0].mxu0
        %v2982 = vadd.f32 0.0, %v2981
        %v2983 = vpop.f32.mrb[0].mxu0
        %v2984 = vpop.f32.mrb[0].mxu0
        %v2985 = vpop.f32.mrb[0].mxu0
        %2986 = vdwg.mxu0
        %v2987 = vadd.f32 %v2858, %v2941
        %v2988 = vadd.f32 %v2859, %v2943
        %v2989 = vadd.f32 %v2860, %v2982
        %v2990 = vld [vmem:[%s168] sm:$0xff]
        %s2991 = scalar_lea.vmem %s1, 88
        %v2992 = vld [vmem:[%s2991] sm:$0xf]
        %v2994 = vcombine.high %v2990, %v2990
        %v2996 = vunpack.c.l.s4 1983009808
        %v2997 = vunpack.c.0.s8 %v2996
        %v2998 = vlaneseq
        %v2999 = vshrl.u32 %v2998, 7
        %v3000 = vsub.s32 %v2997, %v2999
        %v3001 = vrot.slane %v2990, %v3000
        %v3003 = vunpack.c.l.s4 1983009808
        %v3004 = vunpack.c.0.s8 %v3003
        %v3005 = vlaneseq
        %v3006 = vshrl.u32 %v3005, 7
        %v3007 = vsub.s32 %v3004, %v3006
        %v3008 = vrot.slane %v2994, %v3007
        %v3009 = vcombine.high %v3001, %v3001
        %v3010 = vcombine.high %v3008, %v3008
        %3011 = vrot.lane.b32.xlu0 %v3001, 61
        %v3012 = vpop.permute.xlu0 %3011
        %3013 = vrot.lane.b32.xlu0 %v3009, 61
        %v3014 = vpop.permute.xlu0 %3013
        %3015 = vrot.lane.b32.xlu0 %v3008, 61
        %v3016 = vpop.permute.xlu0 %3015
        %3017 = vrot.lane.b32.xlu0 %v3010, 61
        %v3018 = vpop.permute.xlu0 %3017
        %vm3019 = vcmask 498688
        %v3020 = vsel %vm3019, %v3012, %v3014
        %v3021 = vsel %vm3019, %v3014, %v3016
        %v3022 = vsel %vm3019, %v3016, %v3018
        %v3024 = vsel %vm205, %v2992, 0
        %v3027 = vsel %vm209, %v3020, 0
        %v3030 = vsel %vm209, %v3021, 0
        %v3033 = vsel %vm209, %v3022, 0
        %3035 = vmatprep.subr.bf16.mxu0 %v3030
        %3036 = vmatpush1.bf16.msra.mxu0 %v3027
        %3037 = vmatprep.subr.bf16.mxu0 0
        %3038 = vmatpush1.bf16.msra.mxu0 0
        %3039 = vmatprep.subr.bf16.mxu0 0
        %3040 = vmatpush1.bf16.msra.mxu0 0
        %3041 = vmatprep.subr.bf16.mxu0 0
        %3042 = vmatpush1.bf16.msra.mxu0 0
        %3043 = vmatprep.subr.bf16.mxu0 0
        %3044 = vmatpush1.bf16.msra.mxu0 0
        %3045 = vmatprep.subr.bf16.mxu0 0
        %3046 = vmatpush1.bf16.msra.mxu0 0
        %3047 = vmatprep.subr.bf16.mxu0 0
        %3048 = vmatpush1.bf16.msra.mxu0 0
        %3049 = vmatprep.subr.bf16.mxu0 0
        %3050 = vmatpush1.bf16.msra.mxu0 0
        %3051 = vmatprep.subr.bf16.mxu0 0
        %3052 = vmatpush1.bf16.msra.mxu0 0
        %3053 = vmatprep.subr.bf16.mxu0 0
        %3054 = vmatpush1.bf16.msra.mxu0 0
        %3055 = vmatprep.subr.bf16.mxu0 0
        %3056 = vmatpush1.bf16.msra.mxu0 0
        %3057 = vmatprep.subr.bf16.mxu0 0
        %3058 = vmatpush1.bf16.msra.mxu0 0
        %3059 = vmatprep.subr.bf16.mxu0 0
        %3060 = vmatpush1.bf16.msra.mxu0 0
        %3061 = vmatprep.subr.bf16.mxu0 0
        %3062 = vmatpush1.bf16.msra.mxu0 0
        %3063 = vmatprep.subr.bf16.mxu0 0
        %3064 = vmatpush1.bf16.msra.mxu0 0
        %3065 = vmatprep.subr.bf16.mxu0 0
        %3066 = vmatpush1.bf16.msra.mxu0 0
        %3067 = vmatprep.mubr.bf16.mxu0 0
        %3068 = vmatmul.mubr.bf16.gmra.mrb[0].mxu0 %v3024
        %v3069 = vpop.f32.mrb[0].mxu0
        %v3070 = vadd.f32 0.0, %v3069
        %v3071 = vpop.f32.mrb[0].mxu0
        %v3072 = vadd.f32 0.0, %v3071
        %v3073 = vpop.f32.mrb[0].mxu0
        %v3074 = vpop.f32.mrb[0].mxu0
        %3075 = vdwg.mxu0
        %3076 = vmatprep.subr.bf16.mxu0 0
        %3077 = vmatpush1.bf16.msra.mxu0 %v3033
        %3078 = vmatprep.subr.bf16.mxu0 0
        %3079 = vmatpush1.bf16.msra.mxu0 0
        %3080 = vmatprep.subr.bf16.mxu0 0
        %3081 = vmatpush1.bf16.msra.mxu0 0
        %3082 = vmatprep.subr.bf16.mxu0 0
        %3083 = vmatpush1.bf16.msra.mxu0 0
        %3084 = vmatprep.subr.bf16.mxu0 0
        %3085 = vmatpush1.bf16.msra.mxu0 0
        %3086 = vmatprep.subr.bf16.mxu0 0
        %3087 = vmatpush1.bf16.msra.mxu0 0
        %3088 = vmatprep.subr.bf16.mxu0 0
        %3089 = vmatpush1.bf16.msra.mxu0 0
        %3090 = vmatprep.subr.bf16.mxu0 0
        %3091 = vmatpush1.bf16.msra.mxu0 0
        %3092 = vmatprep.subr.bf16.mxu0 0
        %3093 = vmatpush1.bf16.msra.mxu0 0
        %3094 = vmatprep.subr.bf16.mxu0 0
        %3095 = vmatpush1.bf16.msra.mxu0 0
        %3096 = vmatprep.subr.bf16.mxu0 0
        %3097 = vmatpush1.bf16.msra.mxu0 0
        %3098 = vmatprep.subr.bf16.mxu0 0
        %3099 = vmatpush1.bf16.msra.mxu0 0
        %3100 = vmatprep.subr.bf16.mxu0 0
        %3101 = vmatpush1.bf16.msra.mxu0 0
        %3102 = vmatprep.subr.bf16.mxu0 0
        %3103 = vmatpush1.bf16.msra.mxu0 0
        %3104 = vmatprep.subr.bf16.mxu0 0
        %3105 = vmatpush1.bf16.msra.mxu0 0
        %3106 = vmatprep.subr.bf16.mxu0 0
        %3107 = vmatpush1.bf16.msra.mxu0 0
        %3108 = vmatprep.mubr.bf16.mxu0 0
        %3109 = vmatmul.mubr.bf16.gmra.mrb[0].mxu0 %v3024
        %v3110 = vpop.f32.mrb[0].mxu0
        %v3111 = vadd.f32 0.0, %v3110
        %v3112 = vpop.f32.mrb[0].mxu0
        %v3113 = vpop.f32.mrb[0].mxu0
        %v3114 = vpop.f32.mrb[0].mxu0
        %3115 = vdwg.mxu0
        %v3116 = vadd.f32 %v2987, %v3070
        %v3117 = vadd.f32 %v2988, %v3072
        %v3118 = vadd.f32 %v2989, %v3111
        %v3119 = vld [vmem:[%s168] sm:$0xff]
        %s3120 = scalar_lea.vmem %s1, 92
        %v3121 = vld [vmem:[%s3120] sm:$0xf]
        %v3123 = vcombine.high %v3119, %v3119
        %v3125 = vunpack.c.l.s4 1983009808
        %v3126 = vunpack.c.0.s8 %v3125
        %v3127 = vlaneseq
        %v3128 = vshrl.u32 %v3127, 7
        %v3129 = vsub.s32 %v3126, %v3128
        %v3130 = vrot.slane %v3119, %v3129
        %v3132 = vunpack.c.l.s4 1983009808
        %v3133 = vunpack.c.0.s8 %v3132
        %v3134 = vlaneseq
        %v3135 = vshrl.u32 %v3134, 7
        %v3136 = vsub.s32 %v3133, %v3135
        %v3137 = vrot.slane %v3123, %v3136
        %v3138 = vcombine.high %v3130, %v3130
        %v3139 = vcombine.high %v3137, %v3137
        %3140 = vrot.lane.b32.xlu0 %v3130, 60
        %v3141 = vpop.permute.xlu0 %3140
        %3142 = vrot.lane.b32.xlu0 %v3138, 60
        %v3143 = vpop.permute.xlu0 %3142
        %3144 = vrot.lane.b32.xlu0 %v3137, 60
        %v3145 = vpop.permute.xlu0 %3144
        %3146 = vrot.lane.b32.xlu0 %v3139, 60
        %v3147 = vpop.permute.xlu0 %3146
        %vm3148 = vcmask 490496
        %v3149 = vsel %vm3148, %v3141, %v3143
        %v3150 = vsel %vm3148, %v3143, %v3145
        %v3151 = vsel %vm3148, %v3145, %v3147
        %v3153 = vsel %vm205, %v3121, 0
        %v3156 = vsel %vm209, %v3149, 0
        %v3159 = vsel %vm209, %v3150, 0
        %v3162 = vsel %vm209, %v3151, 0
        %3164 = vmatprep.subr.bf16.mxu0 %v3159
        %3165 = vmatpush1.bf16.msra.mxu0 %v3156
        %3166 = vmatprep.subr.bf16.mxu0 0
        %3167 = vmatpush1.bf16.msra.mxu0 0
        %3168 = vmatprep.subr.bf16.mxu0 0
        %3169 = vmatpush1.bf16.msra.mxu0 0
        %3170 = vmatprep.subr.bf16.mxu0 0
        %3171 = vmatpush1.bf16.msra.mxu0 0
        %3172 = vmatprep.subr.bf16.mxu0 0
        %3173 = vmatpush1.bf16.msra.mxu0 0
        %3174 = vmatprep.subr.bf16.mxu0 0
        %3175 = vmatpush1.bf16.msra.mxu0 0
        %3176 = vmatprep.subr.bf16.mxu0 0
        %3177 = vmatpush1.bf16.msra.mxu0 0
        %3178 = vmatprep.subr.bf16.mxu0 0
        %3179 = vmatpush1.bf16.msra.mxu0 0
        %3180 = vmatprep.subr.bf16.mxu0 0
        %3181 = vmatpush1.bf16.msra.mxu0 0
        %3182 = vmatprep.subr.bf16.mxu0 0
        %3183 = vmatpush1.bf16.msra.mxu0 0
        %3184 = vmatprep.subr.bf16.mxu0 0
        %3185 = vmatpush1.bf16.msra.mxu0 0
        %3186 = vmatprep.subr.bf16.mxu0 0
        %3187 = vmatpush1.bf16.msra.mxu0 0
        %3188 = vmatprep.subr.bf16.mxu0 0
        %3189 = vmatpush1.bf16.msra.mxu0 0
        %3190 = vmatprep.subr.bf16.mxu0 0
        %3191 = vmatpush1.bf16.msra.mxu0 0
        %3192 = vmatprep.subr.bf16.mxu0 0
        %3193 = vmatpush1.bf16.msra.mxu0 0
        %3194 = vmatprep.subr.bf16.mxu0 0
        %3195 = vmatpush1.bf16.msra.mxu0 0
        %3196 = vmatprep.mubr.bf16.mxu0 0
        %3197 = vmatmul.mubr.bf16.gmra.mrb[0].mxu0 %v3153
        %v3198 = vpop.f32.mrb[0].mxu0
        %v3199 = vadd.f32 0.0, %v3198
        %v3200 = vpop.f32.mrb[0].mxu0
        %v3201 = vadd.f32 0.0, %v3200
        %v3202 = vpop.f32.mrb[0].mxu0
        %v3203 = vpop.f32.mrb[0].mxu0
        %3204 = vdwg.mxu0
        %3205 = vmatprep.subr.bf16.mxu0 0
        %3206 = vmatpush1.bf16.msra.mxu0 %v3162
        %3207 = vmatprep.subr.bf16.mxu0 0
        %3208 = vmatpush1.bf16.msra.mxu0 0
        %3209 = vmatprep.subr.bf16.mxu0 0
        %3210 = vmatpush1.bf16.msra.mxu0 0
        %3211 = vmatprep.subr.bf16.mxu0 0
        %3212 = vmatpush1.bf16.msra.mxu0 0
        %3213 = vmatprep.subr.bf16.mxu0 0
        %3214 = vmatpush1.bf16.msra.mxu0 0
        %3215 = vmatprep.subr.bf16.mxu0 0
        %3216 = vmatpush1.bf16.msra.mxu0 0
        %3217 = vmatprep.subr.bf16.mxu0 0
        %3218 = vmatpush1.bf16.msra.mxu0 0
        %3219 = vmatprep.subr.bf16.mxu0 0
        %3220 = vmatpush1.bf16.msra.mxu0 0
        %3221 = vmatprep.subr.bf16.mxu0 0
        %3222 = vmatpush1.bf16.msra.mxu0 0
        %3223 = vmatprep.subr.bf16.mxu0 0
        %3224 = vmatpush1.bf16.msra.mxu0 0
        %3225 = vmatprep.subr.bf16.mxu0 0
        %3226 = vmatpush1.bf16.msra.mxu0 0
        %3227 = vmatprep.subr.bf16.mxu0 0
        %3228 = vmatpush1.bf16.msra.mxu0 0
        %3229 = vmatprep.subr.bf16.mxu0 0
        %3230 = vmatpush1.bf16.msra.mxu0 0
        %3231 = vmatprep.subr.bf16.mxu0 0
        %3232 = vmatpush1.bf16.msra.mxu0 0
        %3233 = vmatprep.subr.bf16.mxu0 0
        %3234 = vmatpush1.bf16.msra.mxu0 0
        %3235 = vmatprep.subr.bf16.mxu0 0
        %3236 = vmatpush1.bf16.msra.mxu0 0
        %3237 = vmatprep.mubr.bf16.mxu0 0
        %3238 = vmatmul.mubr.bf16.gmra.mrb[0].mxu0 %v3153
        %v3239 = vpop.f32.mrb[0].mxu0
        %v3240 = vadd.f32 0.0, %v3239
        %v3241 = vpop.f32.mrb[0].mxu0
        %v3242 = vpop.f32.mrb[0].mxu0
        %v3243 = vpop.f32.mrb[0].mxu0
        %3244 = vdwg.mxu0
        %v3245 = vadd.f32 %v3116, %v3199
        %v3246 = vadd.f32 %v3117, %v3201
        %v3247 = vadd.f32 %v3118, %v3240
        %v3248 = vld [vmem:[%s168] sm:$0xff]
        %s3249 = scalar_lea.vmem %s1, 96
        %v3250 = vld [vmem:[%s3249] sm:$0xf]
        %v3252 = vcombine.high %v3248, %v3248
        %v3254 = vunpack.c.l.s4 1983009808
        %v3255 = vunpack.c.0.s8 %v3254
        %v3256 = vlaneseq
        %v3257 = vshrl.u32 %v3256, 7
        %v3258 = vsub.s32 %v3255, %v3257
        %v3259 = vrot.slane %v3248, %v3258
        %v3261 = vunpack.c.l.s4 1983009808
        %v3262 = vunpack.c.0.s8 %v3261
        %v3263 = vlaneseq
        %v3264 = vshrl.u32 %v3263, 7
        %v3265 = vsub.s32 %v3262, %v3264
        %v3266 = vrot.slane %v3252, %v3265
        %v3267 = vcombine.high %v3259, %v3259
        %v3268 = vcombine.high %v3266, %v3266
        %3269 = vrot.lane.b32.xlu0 %v3259, 59
        %v3270 = vpop.permute.xlu0 %3269
        %3271 = vrot.lane.b32.xlu0 %v3267, 59
        %v3272 = vpop.permute.xlu0 %3271
        %3273 = vrot.lane.b32.xlu0 %v3266, 59
        %v3274 = vpop.permute.xlu0 %3273
        %3275 = vrot.lane.b32.xlu0 %v3268, 59
        %v3276 = vpop.permute.xlu0 %3275
        %vm3277 = vcmask 482304
        %v3278 = vsel %vm3277, %v3270, %v3272
        %v3279 = vsel %vm3277, %v3272, %v3274
        %v3280 = vsel %vm3277, %v3274, %v3276
        %v3282 = vsel %vm205, %v3250, 0
        %v3285 = vsel %vm209, %v3278, 0
        %v3288 = vsel %vm209, %v3279, 0
        %v3291 = vsel %vm209, %v3280, 0
        %3293 = vmatprep.subr.bf16.mxu0 %v3288
        %3294 = vmatpush1.bf16.msra.mxu0 %v3285
        %3295 = vmatprep.subr.bf16.mxu0 0
        %3296 = vmatpush1.bf16.msra.mxu0 0
        %3297 = vmatprep.subr.bf16.mxu0 0
        %3298 = vmatpush1.bf16.msra.mxu0 0
        %3299 = vmatprep.subr.bf16.mxu0 0
        %3300 = vmatpush1.bf16.msra.mxu0 0
        %3301 = vmatprep.subr.bf16.mxu0 0
        %3302 = vmatpush1.bf16.msra.mxu0 0
        %3303 = vmatprep.subr.bf16.mxu0 0
        %3304 = vmatpush1.bf16.msra.mxu0 0
        %3305 = vmatprep.subr.bf16.mxu0 0
        %3306 = vmatpush1.bf16.msra.mxu0 0
        %3307 = vmatprep.subr.bf16.mxu0 0
        %3308 = vmatpush1.bf16.msra.mxu0 0
        %3309 = vmatprep.subr.bf16.mxu0 0
        %3310 = vmatpush1.bf16.msra.mxu0 0
        %3311 = vmatprep.subr.bf16.mxu0 0
        %3312 = vmatpush1.bf16.msra.mxu0 0
        %3313 = vmatprep.subr.bf16.mxu0 0
        %3314 = vmatpush1.bf16.msra.mxu0 0
        %3315 = vmatprep.subr.bf16.mxu0 0
        %3316 = vmatpush1.bf16.msra.mxu0 0
        %3317 = vmatprep.subr.bf16.mxu0 0
        %3318 = vmatpush1.bf16.msra.mxu0 0
        %3319 = vmatprep.subr.bf16.mxu0 0
        %3320 = vmatpush1.bf16.msra.mxu0 0
        %3321 = vmatprep.subr.bf16.mxu0 0
        %3322 = vmatpush1.bf16.msra.mxu0 0
        %3323 = vmatprep.subr.bf16.mxu0 0
        %3324 = vmatpush1.bf16.msra.mxu0 0
        %3325 = vmatprep.mubr.bf16.mxu0 0
        %3326 = vmatmul.mubr.bf16.gmra.mrb[0].mxu0 %v3282
        %v3327 = vpop.f32.mrb[0].mxu0
        %v3328 = vadd.f32 0.0, %v3327
        %v3329 = vpop.f32.mrb[0].mxu0
        %v3330 = vadd.f32 0.0, %v3329
        %v3331 = vpop.f32.mrb[0].mxu0
        %v3332 = vpop.f32.mrb[0].mxu0
        %3333 = vdwg.mxu0
        %3334 = vmatprep.subr.bf16.mxu0 0
        %3335 = vmatpush1.bf16.msra.mxu0 %v3291
        %3336 = vmatprep.subr.bf16.mxu0 0
        %3337 = vmatpush1.bf16.msra.mxu0 0
        %3338 = vmatprep.subr.bf16.mxu0 0
        %3339 = vmatpush1.bf16.msra.mxu0 0
        %3340 = vmatprep.subr.bf16.mxu0 0
        %3341 = vmatpush1.bf16.msra.mxu0 0
        %3342 = vmatprep.subr.bf16.mxu0 0
        %3343 = vmatpush1.bf16.msra.mxu0 0
        %3344 = vmatprep.subr.bf16.mxu0 0
        %3345 = vmatpush1.bf16.msra.mxu0 0
        %3346 = vmatprep.subr.bf16.mxu0 0
        %3347 = vmatpush1.bf16.msra.mxu0 0
        %3348 = vmatprep.subr.bf16.mxu0 0
        %3349 = vmatpush1.bf16.msra.mxu0 0
        %3350 = vmatprep.subr.bf16.mxu0 0
        %3351 = vmatpush1.bf16.msra.mxu0 0
        %3352 = vmatprep.subr.bf16.mxu0 0
        %3353 = vmatpush1.bf16.msra.mxu0 0
        %3354 = vmatprep.subr.bf16.mxu0 0
        %3355 = vmatpush1.bf16.msra.mxu0 0
        %3356 = vmatprep.subr.bf16.mxu0 0
        %3357 = vmatpush1.bf16.msra.mxu0 0
        %3358 = vmatprep.subr.bf16.mxu0 0
        %3359 = vmatpush1.bf16.msra.mxu0 0
        %3360 = vmatprep.subr.bf16.mxu0 0
        %3361 = vmatpush1.bf16.msra.mxu0 0
        %3362 = vmatprep.subr.bf16.mxu0 0
        %3363 = vmatpush1.bf16.msra.mxu0 0
        %3364 = vmatprep.subr.bf16.mxu0 0
        %3365 = vmatpush1.bf16.msra.mxu0 0
        %3366 = vmatprep.mubr.bf16.mxu0 0
        %3367 = vmatmul.mubr.bf16.gmra.mrb[0].mxu0 %v3282
        %v3368 = vpop.f32.mrb[0].mxu0
        %v3369 = vadd.f32 0.0, %v3368
        %v3370 = vpop.f32.mrb[0].mxu0
        %v3371 = vpop.f32.mrb[0].mxu0
        %v3372 = vpop.f32.mrb[0].mxu0
        %3373 = vdwg.mxu0
        %v3374 = vadd.f32 %v3245, %v3328
        %v3375 = vadd.f32 %v3246, %v3330
        %v3376 = vadd.f32 %v3247, %v3369
        %v3377 = vld [vmem:[%s168] sm:$0xff]
        %s3378 = scalar_lea.vmem %s1, 100
        %v3379 = vld [vmem:[%s3378] sm:$0xf]
        %v3381 = vcombine.high %v3377, %v3377
        %v3383 = vunpack.c.l.s4 1983009808
        %v3384 = vunpack.c.0.s8 %v3383
        %v3385 = vlaneseq
        %v3386 = vshrl.u32 %v3385, 7
        %v3387 = vsub.s32 %v3384, %v3386
        %v3388 = vrot.slane %v3377, %v3387
        %v3390 = vunpack.c.l.s4 1983009808
        %v3391 = vunpack.c.0.s8 %v3390
        %v3392 = vlaneseq
        %v3393 = vshrl.u32 %v3392, 7
        %v3394 = vsub.s32 %v3391, %v3393
        %v3395 = vrot.slane %v3381, %v3394
        %v3396 = vcombine.high %v3388, %v3388
        %v3397 = vcombine.high %v3395, %v3395
        %3398 = vrot.lane.b32.xlu0 %v3388, 58
        %v3399 = vpop.permute.xlu0 %3398
        %3400 = vrot.lane.b32.xlu0 %v3396, 58
        %v3401 = vpop.permute.xlu0 %3400
        %3402 = vrot.lane.b32.xlu0 %v3395, 58
        %v3403 = vpop.permute.xlu0 %3402
        %3404 = vrot.lane.b32.xlu0 %v3397, 58
        %v3405 = vpop.permute.xlu0 %3404
        %vm3406 = vcmask 474112
        %v3407 = vsel %vm3406, %v3399, %v3401
        %v3408 = vsel %vm3406, %v3401, %v3403
        %v3409 = vsel %vm3406, %v3403, %v3405
        %v3411 = vsel %vm205, %v3379, 0
        %v3414 = vsel %vm209, %v3407, 0
        %v3417 = vsel %vm209, %v3408, 0
        %v3420 = vsel %vm209, %v3409, 0
        %3422 = vmatprep.subr.bf16.mxu0 %v3417
        %3423 = vmatpush1.bf16.msra.mxu0 %v3414
        %3424 = vmatprep.subr.bf16.mxu0 0
        %3425 = vmatpush1.bf16.msra.mxu0 0
        %3426 = vmatprep.subr.bf16.mxu0 0
        %3427 = vmatpush1.bf16.msra.mxu0 0
        %3428 = vmatprep.subr.bf16.mxu0 0
        %3429 = vmatpush1.bf16.msra.mxu0 0
        %3430 = vmatprep.subr.bf16.mxu0 0
        %3431 = vmatpush1.bf16.msra.mxu0 0
        %3432 = vmatprep.subr.bf16.mxu0 0
        %3433 = vmatpush1.bf16.msra.mxu0 0
        %3434 = vmatprep.subr.bf16.mxu0 0
        %3435 = vmatpush1.bf16.msra.mxu0 0
        %3436 = vmatprep.subr.bf16.mxu0 0
        %3437 = vmatpush1.bf16.msra.mxu0 0
        %3438 = vmatprep.subr.bf16.mxu0 0
        %3439 = vmatpush1.bf16.msra.mxu0 0
        %3440 = vmatprep.subr.bf16.mxu0 0
        %3441 = vmatpush1.bf16.msra.mxu0 0
        %3442 = vmatprep.subr.bf16.mxu0 0
        %3443 = vmatpush1.bf16.msra.mxu0 0
        %3444 = vmatprep.subr.bf16.mxu0 0
        %3445 = vmatpush1.bf16.msra.mxu0 0
        %3446 = vmatprep.subr.bf16.mxu0 0
        %3447 = vmatpush1.bf16.msra.mxu0 0
        %3448 = vmatprep.subr.bf16.mxu0 0
        %3449 = vmatpush1.bf16.msra.mxu0 0
        %3450 = vmatprep.subr.bf16.mxu0 0
        %3451 = vmatpush1.bf16.msra.mxu0 0
        %3452 = vmatprep.subr.bf16.mxu0 0
        %3453 = vmatpush1.bf16.msra.mxu0 0
        %3454 = vmatprep.mubr.bf16.mxu0 0
        %3455 = vmatmul.mubr.bf16.gmra.mrb[0].mxu0 %v3411
        %v3456 = vpop.f32.mrb[0].mxu0
        %v3457 = vadd.f32 0.0, %v3456
        %v3458 = vpop.f32.mrb[0].mxu0
        %v3459 = vadd.f32 0.0, %v3458
        %v3460 = vpop.f32.mrb[0].mxu0
        %v3461 = vpop.f32.mrb[0].mxu0
        %3462 = vdwg.mxu0
        %3463 = vmatprep.subr.bf16.mxu0 0
        %3464 = vmatpush1.bf16.msra.mxu0 %v3420
        %3465 = vmatprep.subr.bf16.mxu0 0
        %3466 = vmatpush1.bf16.msra.mxu0 0
        %3467 = vmatprep.subr.bf16.mxu0 0
        %3468 = vmatpush1.bf16.msra.mxu0 0
        %3469 = vmatprep.subr.bf16.mxu0 0
        %3470 = vmatpush1.bf16.msra.mxu0 0
        %3471 = vmatprep.subr.bf16.mxu0 0
        %3472 = vmatpush1.bf16.msra.mxu0 0
        %3473 = vmatprep.subr.bf16.mxu0 0
        %3474 = vmatpush1.bf16.msra.mxu0 0
        %3475 = vmatprep.subr.bf16.mxu0 0
        %3476 = vmatpush1.bf16.msra.mxu0 0
        %3477 = vmatprep.subr.bf16.mxu0 0
        %3478 = vmatpush1.bf16.msra.mxu0 0
        %3479 = vmatprep.subr.bf16.mxu0 0
        %3480 = vmatpush1.bf16.msra.mxu0 0
        %3481 = vmatprep.subr.bf16.mxu0 0
        %3482 = vmatpush1.bf16.msra.mxu0 0
        %3483 = vmatprep.subr.bf16.mxu0 0
        %3484 = vmatpush1.bf16.msra.mxu0 0
        %3485 = vmatprep.subr.bf16.mxu0 0
        %3486 = vmatpush1.bf16.msra.mxu0 0
        %3487 = vmatprep.subr.bf16.mxu0 0
        %3488 = vmatpush1.bf16.msra.mxu0 0
        %3489 = vmatprep.subr.bf16.mxu0 0
        %3490 = vmatpush1.bf16.msra.mxu0 0
        %3491 = vmatprep.subr.bf16.mxu0 0
        %3492 = vmatpush1.bf16.msra.mxu0 0
        %3493 = vmatprep.subr.bf16.mxu0 0
        %3494 = vmatpush1.bf16.msra.mxu0 0
        %3495 = vmatprep.mubr.bf16.mxu0 0
        %3496 = vmatmul.mubr.bf16.gmra.mrb[0].mxu0 %v3411
        %v3497 = vpop.f32.mrb[0].mxu0
        %v3498 = vadd.f32 0.0, %v3497
        %v3499 = vpop.f32.mrb[0].mxu0
        %v3500 = vpop.f32.mrb[0].mxu0
        %v3501 = vpop.f32.mrb[0].mxu0
        %3502 = vdwg.mxu0
        %v3503 = vadd.f32 %v3374, %v3457
        %v3504 = vadd.f32 %v3375, %v3459
        %v3505 = vadd.f32 %v3376, %v3498
        %v3506 = vld [vmem:[%s168] sm:$0xff]
        %s3507 = scalar_lea.vmem %s1, 104
        %v3508 = vld [vmem:[%s3507] sm:$0xf]
        %v3510 = vcombine.high %v3506, %v3506
        %v3512 = vunpack.c.l.s4 1983009808
        %v3513 = vunpack.c.0.s8 %v3512
        %v3514 = vlaneseq
        %v3515 = vshrl.u32 %v3514, 7
        %v3516 = vsub.s32 %v3513, %v3515
        %v3517 = vrot.slane %v3506, %v3516
        %v3519 = vunpack.c.l.s4 1983009808
        %v3520 = vunpack.c.0.s8 %v3519
        %v3521 = vlaneseq
        %v3522 = vshrl.u32 %v3521, 7
        %v3523 = vsub.s32 %v3520, %v3522
        %v3524 = vrot.slane %v3510, %v3523
        %v3525 = vcombine.high %v3517, %v3517
        %v3526 = vcombine.high %v3524, %v3524
        %3527 = vrot.lane.b32.xlu0 %v3517, 57
        %v3528 = vpop.permute.xlu0 %3527
        %3529 = vrot.lane.b32.xlu0 %v3525, 57
        %v3530 = vpop.permute.xlu0 %3529
        %3531 = vrot.lane.b32.xlu0 %v3524, 57
        %v3532 = vpop.permute.xlu0 %3531
        %3533 = vrot.lane.b32.xlu0 %v3526, 57
        %v3534 = vpop.permute.xlu0 %3533
        %vm3535 = vcmask 465920
        %v3536 = vsel %vm3535, %v3528, %v3530
        %v3537 = vsel %vm3535, %v3530, %v3532
        %v3538 = vsel %vm3535, %v3532, %v3534
        %v3540 = vsel %vm205, %v3508, 0
        %v3543 = vsel %vm209, %v3536, 0
        %v3546 = vsel %vm209, %v3537, 0
        %v3549 = vsel %vm209, %v3538, 0
        %3551 = vmatprep.subr.bf16.mxu0 %v3546
        %3552 = vmatpush1.bf16.msra.mxu0 %v3543
        %3553 = vmatprep.subr.bf16.mxu0 0
        %3554 = vmatpush1.bf16.msra.mxu0 0
        %3555 = vmatprep.subr.bf16.mxu0 0
        %3556 = vmatpush1.bf16.msra.mxu0 0
        %3557 = vmatprep.subr.bf16.mxu0 0
        %3558 = vmatpush1.bf16.msra.mxu0 0
        %3559 = vmatprep.subr.bf16.mxu0 0
        %3560 = vmatpush1.bf16.msra.mxu0 0
        %3561 = vmatprep.subr.bf16.mxu0 0
        %3562 = vmatpush1.bf16.msra.mxu0 0
        %3563 = vmatprep.subr.bf16.mxu0 0
        %3564 = vmatpush1.bf16.msra.mxu0 0
        %3565 = vmatprep.subr.bf16.mxu0 0
        %3566 = vmatpush1.bf16.msra.mxu0 0
        %3567 = vmatprep.subr.bf16.mxu0 0
        %3568 = vmatpush1.bf16.msra.mxu0 0
        %3569 = vmatprep.subr.bf16.mxu0 0
        %3570 = vmatpush1.bf16.msra.mxu0 0
        %3571 = vmatprep.subr.bf16.mxu0 0
        %3572 = vmatpush1.bf16.msra.mxu0 0
        %3573 = vmatprep.subr.bf16.mxu0 0
        %3574 = vmatpush1.bf16.msra.mxu0 0
        %3575 = vmatprep.subr.bf16.mxu0 0
        %3576 = vmatpush1.bf16.msra.mxu0 0
        %3577 = vmatprep.subr.bf16.mxu0 0
        %3578 = vmatpush1.bf16.msra.mxu0 0
        %3579 = vmatprep.subr.bf16.mxu0 0
        %3580 = vmatpush1.bf16.msra.mxu0 0
        %3581 = vmatprep.subr.bf16.mxu0 0
        %3582 = vmatpush1.bf16.msra.mxu0 0
        %3583 = vmatprep.mubr.bf16.mxu0 0
        %3584 = vmatmul.mubr.bf16.gmra.mrb[0].mxu0 %v3540
        %v3585 = vpop.f32.mrb[0].mxu0
        %v3586 = vadd.f32 0.0, %v3585
        %v3587 = vpop.f32.mrb[0].mxu0
        %v3588 = vadd.f32 0.0, %v3587
        %v3589 = vpop.f32.mrb[0].mxu0
        %v3590 = vpop.f32.mrb[0].mxu0
        %3591 = vdwg.mxu0
        %3592 = vmatprep.subr.bf16.mxu0 0
        %3593 = vmatpush1.bf16.msra.mxu0 %v3549
        %3594 = vmatprep.subr.bf16.mxu0 0
        %3595 = vmatpush1.bf16.msra.mxu0 0
        %3596 = vmatprep.subr.bf16.mxu0 0
        %3597 = vmatpush1.bf16.msra.mxu0 0
        %3598 = vmatprep.subr.bf16.mxu0 0
        %3599 = vmatpush1.bf16.msra.mxu0 0
        %3600 = vmatprep.subr.bf16.mxu0 0
        %3601 = vmatpush1.bf16.msra.mxu0 0
        %3602 = vmatprep.subr.bf16.mxu0 0
        %3603 = vmatpush1.bf16.msra.mxu0 0
        %3604 = vmatprep.subr.bf16.mxu0 0
        %3605 = vmatpush1.bf16.msra.mxu0 0
        %3606 = vmatprep.subr.bf16.mxu0 0
        %3607 = vmatpush1.bf16.msra.mxu0 0
        %3608 = vmatprep.subr.bf16.mxu0 0
        %3609 = vmatpush1.bf16.msra.mxu0 0
        %3610 = vmatprep.subr.bf16.mxu0 0
        %3611 = vmatpush1.bf16.msra.mxu0 0
        %3612 = vmatprep.subr.bf16.mxu0 0
        %3613 = vmatpush1.bf16.msra.mxu0 0
        %3614 = vmatprep.subr.bf16.mxu0 0
        %3615 = vmatpush1.bf16.msra.mxu0 0
        %3616 = vmatprep.subr.bf16.mxu0 0
        %3617 = vmatpush1.bf16.msra.mxu0 0
        %3618 = vmatprep.subr.bf16.mxu0 0
        %3619 = vmatpush1.bf16.msra.mxu0 0
        %3620 = vmatprep.subr.bf16.mxu0 0
        %3621 = vmatpush1.bf16.msra.mxu0 0
        %3622 = vmatprep.subr.bf16.mxu0 0
        %3623 = vmatpush1.bf16.msra.mxu0 0
        %3624 = vmatprep.mubr.bf16.mxu0 0
        %3625 = vmatmul.mubr.bf16.gmra.mrb[0].mxu0 %v3540
        %v3626 = vpop.f32.mrb[0].mxu0
        %v3627 = vadd.f32 0.0, %v3626
        %v3628 = vpop.f32.mrb[0].mxu0
        %v3629 = vpop.f32.mrb[0].mxu0
        %v3630 = vpop.f32.mrb[0].mxu0
        %3631 = vdwg.mxu0
        %v3632 = vadd.f32 %v3503, %v3586
        %v3633 = vadd.f32 %v3504, %v3588
        %v3634 = vadd.f32 %v3505, %v3627
        %v3635 = vld [vmem:[%s168] sm:$0xff]
        %s3636 = scalar_lea.vmem %s1, 108
        %v3637 = vld [vmem:[%s3636] sm:$0xf]
        %v3639 = vcombine.high %v3635, %v3635
        %v3641 = vunpack.c.l.s4 1983009808
        %v3642 = vunpack.c.0.s8 %v3641
        %v3643 = vlaneseq
        %v3644 = vshrl.u32 %v3643, 7
        %v3645 = vsub.s32 %v3642, %v3644
        %v3646 = vrot.slane %v3635, %v3645
        %v3648 = vunpack.c.l.s4 1983009808
        %v3649 = vunpack.c.0.s8 %v3648
        %v3650 = vlaneseq
        %v3651 = vshrl.u32 %v3650, 7
        %v3652 = vsub.s32 %v3649, %v3651
        %v3653 = vrot.slane %v3639, %v3652
        %v3654 = vcombine.high %v3646, %v3646
        %v3655 = vcombine.high %v3653, %v3653
        %3656 = vrot.lane.b32.xlu0 %v3646, 56
        %v3657 = vpop.permute.xlu0 %3656
        %3658 = vrot.lane.b32.xlu0 %v3654, 56
        %v3659 = vpop.permute.xlu0 %3658
        %3660 = vrot.lane.b32.xlu0 %v3653, 56
        %v3661 = vpop.permute.xlu0 %3660
        %3662 = vrot.lane.b32.xlu0 %v3655, 56
        %v3663 = vpop.permute.xlu0 %3662
        %vm3664 = vcmask 457728
        %v3665 = vsel %vm3664, %v3657, %v3659
        %v3666 = vsel %vm3664, %v3659, %v3661
        %v3667 = vsel %vm3664, %v3661, %v3663
        %v3669 = vsel %vm205, %v3637, 0
        %v3672 = vsel %vm209, %v3665, 0
        %v3675 = vsel %vm209, %v3666, 0
        %v3678 = vsel %vm209, %v3667, 0
        %3680 = vmatprep.subr.bf16.mxu0 %v3675
        %3681 = vmatpush1.bf16.msra.mxu0 %v3672
        %3682 = vmatprep.subr.bf16.mxu0 0
        %3683 = vmatpush1.bf16.msra.mxu0 0
        %3684 = vmatprep.subr.bf16.mxu0 0
        %3685 = vmatpush1.bf16.msra.mxu0 0
        %3686 = vmatprep.subr.bf16.mxu0 0
        %3687 = vmatpush1.bf16.msra.mxu0 0
        %3688 = vmatprep.subr.bf16.mxu0 0
        %3689 = vmatpush1.bf16.msra.mxu0 0
        %3690 = vmatprep.subr.bf16.mxu0 0
        %3691 = vmatpush1.bf16.msra.mxu0 0
        %3692 = vmatprep.subr.bf16.mxu0 0
        %3693 = vmatpush1.bf16.msra.mxu0 0
        %3694 = vmatprep.subr.bf16.mxu0 0
        %3695 = vmatpush1.bf16.msra.mxu0 0
        %3696 = vmatprep.subr.bf16.mxu0 0
        %3697 = vmatpush1.bf16.msra.mxu0 0
        %3698 = vmatprep.subr.bf16.mxu0 0
        %3699 = vmatpush1.bf16.msra.mxu0 0
        %3700 = vmatprep.subr.bf16.mxu0 0
        %3701 = vmatpush1.bf16.msra.mxu0 0
        %3702 = vmatprep.subr.bf16.mxu0 0
        %3703 = vmatpush1.bf16.msra.mxu0 0
        %3704 = vmatprep.subr.bf16.mxu0 0
        %3705 = vmatpush1.bf16.msra.mxu0 0
        %3706 = vmatprep.subr.bf16.mxu0 0
        %3707 = vmatpush1.bf16.msra.mxu0 0
        %3708 = vmatprep.subr.bf16.mxu0 0
        %3709 = vmatpush1.bf16.msra.mxu0 0
        %3710 = vmatprep.subr.bf16.mxu0 0
        %3711 = vmatpush1.bf16.msra.mxu0 0
        %3712 = vmatprep.mubr.bf16.mxu0 0
        %3713 = vmatmul.mubr.bf16.gmra.mrb[0].mxu0 %v3669
        %v3714 = vpop.f32.mrb[0].mxu0
        %v3715 = vadd.f32 0.0, %v3714
        %v3716 = vpop.f32.mrb[0].mxu0
        %v3717 = vadd.f32 0.0, %v3716
        %v3718 = vpop.f32.mrb[0].mxu0
        %v3719 = vpop.f32.mrb[0].mxu0
        %3720 = vdwg.mxu0
        %3721 = vmatprep.subr.bf16.mxu0 0
        %3722 = vmatpush1.bf16.msra.mxu0 %v3678
        %3723 = vmatprep.subr.bf16.mxu0 0
        %3724 = vmatpush1.bf16.msra.mxu0 0
        %3725 = vmatprep.subr.bf16.mxu0 0
        %3726 = vmatpush1.bf16.msra.mxu0 0
        %3727 = vmatprep.subr.bf16.mxu0 0
        %3728 = vmatpush1.bf16.msra.mxu0 0
        %3729 = vmatprep.subr.bf16.mxu0 0
        %3730 = vmatpush1.bf16.msra.mxu0 0
        %3731 = vmatprep.subr.bf16.mxu0 0
        %3732 = vmatpush1.bf16.msra.mxu0 0
        %3733 = vmatprep.subr.bf16.mxu0 0
        %3734 = vmatpush1.bf16.msra.mxu0 0
        %3735 = vmatprep.subr.bf16.mxu0 0
        %3736 = vmatpush1.bf16.msra.mxu0 0
        %3737 = vmatprep.subr.bf16.mxu0 0
        %3738 = vmatpush1.bf16.msra.mxu0 0
        %3739 = vmatprep.subr.bf16.mxu0 0
        %3740 = vmatpush1.bf16.msra.mxu0 0
        %3741 = vmatprep.subr.bf16.mxu0 0
        %3742 = vmatpush1.bf16.msra.mxu0 0
        %3743 = vmatprep.subr.bf16.mxu0 0
        %3744 = vmatpush1.bf16.msra.mxu0 0
        %3745 = vmatprep.subr.bf16.mxu0 0
        %3746 = vmatpush1.bf16.msra.mxu0 0
        %3747 = vmatprep.subr.bf16.mxu0 0
        %3748 = vmatpush1.bf16.msra.mxu0 0
        %3749 = vmatprep.subr.bf16.mxu0 0
        %3750 = vmatpush1.bf16.msra.mxu0 0
        %3751 = vmatprep.subr.bf16.mxu0 0
        %3752 = vmatpush1.bf16.msra.mxu0 0
        %3753 = vmatprep.mubr.bf16.mxu0 0
        %3754 = vmatmul.mubr.bf16.gmra.mrb[0].mxu0 %v3669
        %v3755 = vpop.f32.mrb[0].mxu0
        %v3756 = vadd.f32 0.0, %v3755
        %v3757 = vpop.f32.mrb[0].mxu0
        %v3758 = vpop.f32.mrb[0].mxu0
        %v3759 = vpop.f32.mrb[0].mxu0
        %3760 = vdwg.mxu0
        %v3761 = vadd.f32 %v3632, %v3715
        %v3762 = vadd.f32 %v3633, %v3717
        %v3763 = vadd.f32 %v3634, %v3756
        %v3764 = vld [vmem:[%s168] sm:$0xff]
        %s3765 = scalar_lea.vmem %s1, 112
        %v3766 = vld [vmem:[%s3765] sm:$0xf]
        %v3768 = vcombine.high %v3764, %v3764
        %v3770 = vunpack.c.l.s4 1983009808
        %v3771 = vunpack.c.0.s8 %v3770
        %v3772 = vlaneseq
        %v3773 = vshrl.u32 %v3772, 7
        %v3774 = vsub.s32 %v3771, %v3773
        %v3775 = vrot.slane %v3764, %v3774
        %v3777 = vunpack.c.l.s4 1983009808
        %v3778 = vunpack.c.0.s8 %v3777
        %v3779 = vlaneseq
        %v3780 = vshrl.u32 %v3779, 7
        %v3781 = vsub.s32 %v3778, %v3780
        %v3782 = vrot.slane %v3768, %v3781
        %v3783 = vcombine.high %v3775, %v3775
        %v3784 = vcombine.high %v3782, %v3782
        %3785 = vrot.lane.b32.xlu0 %v3775, 40
        %v3786 = vpop.permute.xlu0 %3785
        %3787 = vrot.lane.b32.xlu0 %v3783, 40
        %v3788 = vpop.permute.xlu0 %3787
        %3789 = vrot.lane.b32.xlu0 %v3782, 40
        %v3790 = vpop.permute.xlu0 %3789
        %3791 = vrot.lane.b32.xlu0 %v3784, 40
        %v3792 = vpop.permute.xlu0 %3791
        %vm3793 = vcmask 326656
        %v3794 = vsel %vm3793, %v3786, %v3788
        %v3795 = vsel %vm3793, %v3788, %v3790
        %v3796 = vsel %vm3793, %v3790, %v3792
        %v3798 = vsel %vm205, %v3766, 0
        %v3801 = vsel %vm209, %v3794, 0
        %v3804 = vsel %vm209, %v3795, 0
        %v3807 = vsel %vm209, %v3796, 0
        %3809 = vmatprep.subr.bf16.mxu0 %v3804
        %3810 = vmatpush1.bf16.msra.mxu0 %v3801
        %3811 = vmatprep.subr.bf16.mxu0 0
        %3812 = vmatpush1.bf16.msra.mxu0 0
        %3813 = vmatprep.subr.bf16.mxu0 0
        %3814 = vmatpush1.bf16.msra.mxu0 0
        %3815 = vmatprep.subr.bf16.mxu0 0
        %3816 = vmatpush1.bf16.msra.mxu0 0
        %3817 = vmatprep.subr.bf16.mxu0 0
        %3818 = vmatpush1.bf16.msra.mxu0 0
        %3819 = vmatprep.subr.bf16.mxu0 0
        %3820 = vmatpush1.bf16.msra.mxu0 0
        %3821 = vmatprep.subr.bf16.mxu0 0
        %3822 = vmatpush1.bf16.msra.mxu0 0
        %3823 = vmatprep.subr.bf16.mxu0 0
        %3824 = vmatpush1.bf16.msra.mxu0 0
        %3825 = vmatprep.subr.bf16.mxu0 0
        %3826 = vmatpush1.bf16.msra.mxu0 0
        %3827 = vmatprep.subr.bf16.mxu0 0
        %3828 = vmatpush1.bf16.msra.mxu0 0
        %3829 = vmatprep.subr.bf16.mxu0 0
        %3830 = vmatpush1.bf16.msra.mxu0 0
        %3831 = vmatprep.subr.bf16.mxu0 0
        %3832 = vmatpush1.bf16.msra.mxu0 0
        %3833 = vmatprep.subr.bf16.mxu0 0
        %3834 = vmatpush1.bf16.msra.mxu0 0
        %3835 = vmatprep.subr.bf16.mxu0 0
        %3836 = vmatpush1.bf16.msra.mxu0 0
        %3837 = vmatprep.subr.bf16.mxu0 0
        %3838 = vmatpush1.bf16.msra.mxu0 0
        %3839 = vmatprep.subr.bf16.mxu0 0
        %3840 = vmatpush1.bf16.msra.mxu0 0
        %3841 = vmatprep.mubr.bf16.mxu0 0
        %3842 = vmatmul.mubr.bf16.gmra.mrb[0].mxu0 %v3798
        %v3843 = vpop.f32.mrb[0].mxu0
        %v3844 = vadd.f32 0.0, %v3843
        %v3845 = vpop.f32.mrb[0].mxu0
        %v3846 = vadd.f32 0.0, %v3845
        %v3847 = vpop.f32.mrb[0].mxu0
        %v3848 = vpop.f32.mrb[0].mxu0
        %3849 = vdwg.mxu0
        %3850 = vmatprep.subr.bf16.mxu0 0
        %3851 = vmatpush1.bf16.msra.mxu0 %v3807
        %3852 = vmatprep.subr.bf16.mxu0 0
        %3853 = vmatpush1.bf16.msra.mxu0 0
        %3854 = vmatprep.subr.bf16.mxu0 0
        %3855 = vmatpush1.bf16.msra.mxu0 0
        %3856 = vmatprep.subr.bf16.mxu0 0
        %3857 = vmatpush1.bf16.msra.mxu0 0
        %3858 = vmatprep.subr.bf16.mxu0 0
        %3859 = vmatpush1.bf16.msra.mxu0 0
        %3860 = vmatprep.subr.bf16.mxu0 0
        %3861 = vmatpush1.bf16.msra.mxu0 0
        %3862 = vmatprep.subr.bf16.mxu0 0
        %3863 = vmatpush1.bf16.msra.mxu0 0
        %3864 = vmatprep.subr.bf16.mxu0 0
        %3865 = vmatpush1.bf16.msra.mxu0 0
        %3866 = vmatprep.subr.bf16.mxu0 0
        %3867 = vmatpush1.bf16.msra.mxu0 0
        %3868 = vmatprep.subr.bf16.mxu0 0
        %3869 = vmatpush1.bf16.msra.mxu0 0
        %3870 = vmatprep.subr.bf16.mxu0 0
        %3871 = vmatpush1.bf16.msra.mxu0 0
        %3872 = vmatprep.subr.bf16.mxu0 0
        %3873 = vmatpush1.bf16.msra.mxu0 0
        %3874 = vmatprep.subr.bf16.mxu0 0
        %3875 = vmatpush1.bf16.msra.mxu0 0
        %3876 = vmatprep.subr.bf16.mxu0 0
        %3877 = vmatpush1.bf16.msra.mxu0 0
        %3878 = vmatprep.subr.bf16.mxu0 0
        %3879 = vmatpush1.bf16.msra.mxu0 0
        %3880 = vmatprep.subr.bf16.mxu0 0
        %3881 = vmatpush1.bf16.msra.mxu0 0
        %3882 = vmatprep.mubr.bf16.mxu0 0
        %3883 = vmatmul.mubr.bf16.gmra.mrb[0].mxu0 %v3798
        %v3884 = vpop.f32.mrb[0].mxu0
        %v3885 = vadd.f32 0.0, %v3884
        %v3886 = vpop.f32.mrb[0].mxu0
        %v3887 = vpop.f32.mrb[0].mxu0
        %v3888 = vpop.f32.mrb[0].mxu0
        %3889 = vdwg.mxu0
        %v3890 = vadd.f32 %v3761, %v3844
        %v3891 = vadd.f32 %v3762, %v3846
        %v3892 = vadd.f32 %v3763, %v3885
        %v3893 = vld [vmem:[%s168] sm:$0xff]
        %s3894 = scalar_lea.vmem %s1, 116
        %v3895 = vld [vmem:[%s3894] sm:$0xf]
        %v3897 = vcombine.high %v3893, %v3893
        %v3899 = vunpack.c.l.s4 1983009808
        %v3900 = vunpack.c.0.s8 %v3899
        %v3901 = vlaneseq
        %v3902 = vshrl.u32 %v3901, 7
        %v3903 = vsub.s32 %v3900, %v3902
        %v3904 = vrot.slane %v3893, %v3903
        %v3906 = vunpack.c.l.s4 1983009808
        %v3907 = vunpack.c.0.s8 %v3906
        %v3908 = vlaneseq
        %v3909 = vshrl.u32 %v3908, 7
        %v3910 = vsub.s32 %v3907, %v3909
        %v3911 = vrot.slane %v3897, %v3910
        %v3912 = vcombine.high %v3904, %v3904
        %v3913 = vcombine.high %v3911, %v3911
        %3914 = vrot.lane.b32.xlu0 %v3904, 39
        %v3915 = vpop.permute.xlu0 %3914
        %3916 = vrot.lane.b32.xlu0 %v3912, 39
        %v3917 = vpop.permute.xlu0 %3916
        %3918 = vrot.lane.b32.xlu0 %v3911, 39
        %v3919 = vpop.permute.xlu0 %3918
        %3920 = vrot.lane.b32.xlu0 %v3913, 39
        %v3921 = vpop.permute.xlu0 %3920
        %vm3922 = vcmask 318464
        %v3923 = vsel %vm3922, %v3915, %v3917
        %v3924 = vsel %vm3922, %v3917, %v3919
        %v3925 = vsel %vm3922, %v3919, %v3921
        %v3927 = vsel %vm205, %v3895, 0
        %v3930 = vsel %vm209, %v3923, 0
        %v3933 = vsel %vm209, %v3924, 0
        %v3936 = vsel %vm209, %v3925, 0
        %3938 = vmatprep.subr.bf16.mxu0 %v3933
        %3939 = vmatpush1.bf16.msra.mxu0 %v3930
        %3940 = vmatprep.subr.bf16.mxu0 0
        %3941 = vmatpush1.bf16.msra.mxu0 0
        %3942 = vmatprep.subr.bf16.mxu0 0
        %3943 = vmatpush1.bf16.msra.mxu0 0
        %3944 = vmatprep.subr.bf16.mxu0 0
        %3945 = vmatpush1.bf16.msra.mxu0 0
        %3946 = vmatprep.subr.bf16.mxu0 0
        %3947 = vmatpush1.bf16.msra.mxu0 0
        %3948 = vmatprep.subr.bf16.mxu0 0
        %3949 = vmatpush1.bf16.msra.mxu0 0
        %3950 = vmatprep.subr.bf16.mxu0 0
        %3951 = vmatpush1.bf16.msra.mxu0 0
        %3952 = vmatprep.subr.bf16.mxu0 0
        %3953 = vmatpush1.bf16.msra.mxu0 0
        %3954 = vmatprep.subr.bf16.mxu0 0
        %3955 = vmatpush1.bf16.msra.mxu0 0
        %3956 = vmatprep.subr.bf16.mxu0 0
        %3957 = vmatpush1.bf16.msra.mxu0 0
        %3958 = vmatprep.subr.bf16.mxu0 0
        %3959 = vmatpush1.bf16.msra.mxu0 0
        %3960 = vmatprep.subr.bf16.mxu0 0
        %3961 = vmatpush1.bf16.msra.mxu0 0
        %3962 = vmatprep.subr.bf16.mxu0 0
        %3963 = vmatpush1.bf16.msra.mxu0 0
        %3964 = vmatprep.subr.bf16.mxu0 0
        %3965 = vmatpush1.bf16.msra.mxu0 0
        %3966 = vmatprep.subr.bf16.mxu0 0
        %3967 = vmatpush1.bf16.msra.mxu0 0
        %3968 = vmatprep.subr.bf16.mxu0 0
        %3969 = vmatpush1.bf16.msra.mxu0 0
        %3970 = vmatprep.mubr.bf16.mxu0 0
        %3971 = vmatmul.mubr.bf16.gmra.mrb[0].mxu0 %v3927
        %v3972 = vpop.f32.mrb[0].mxu0
        %v3973 = vadd.f32 0.0, %v3972
        %v3974 = vpop.f32.mrb[0].mxu0
        %v3975 = vadd.f32 0.0, %v3974
        %v3976 = vpop.f32.mrb[0].mxu0
        %v3977 = vpop.f32.mrb[0].mxu0
        %3978 = vdwg.mxu0
        %3979 = vmatprep.subr.bf16.mxu0 0
        %3980 = vmatpush1.bf16.msra.mxu0 %v3936
        %3981 = vmatprep.subr.bf16.mxu0 0
        %3982 = vmatpush1.bf16.msra.mxu0 0
        %3983 = vmatprep.subr.bf16.mxu0 0
        %3984 = vmatpush1.bf16.msra.mxu0 0
        %3985 = vmatprep.subr.bf16.mxu0 0
        %3986 = vmatpush1.bf16.msra.mxu0 0
        %3987 = vmatprep.subr.bf16.mxu0 0
        %3988 = vmatpush1.bf16.msra.mxu0 0
        %3989 = vmatprep.subr.bf16.mxu0 0
        %3990 = vmatpush1.bf16.msra.mxu0 0
        %3991 = vmatprep.subr.bf16.mxu0 0
        %3992 = vmatpush1.bf16.msra.mxu0 0
        %3993 = vmatprep.subr.bf16.mxu0 0
        %3994 = vmatpush1.bf16.msra.mxu0 0
        %3995 = vmatprep.subr.bf16.mxu0 0
        %3996 = vmatpush1.bf16.msra.mxu0 0
        %3997 = vmatprep.subr.bf16.mxu0 0
        %3998 = vmatpush1.bf16.msra.mxu0 0
        %3999 = vmatprep.subr.bf16.mxu0 0
        %4000 = vmatpush1.bf16.msra.mxu0 0
        %4001 = vmatprep.subr.bf16.mxu0 0
        %4002 = vmatpush1.bf16.msra.mxu0 0
        %4003 = vmatprep.subr.bf16.mxu0 0
        %4004 = vmatpush1.bf16.msra.mxu0 0
        %4005 = vmatprep.subr.bf16.mxu0 0
        %4006 = vmatpush1.bf16.msra.mxu0 0
        %4007 = vmatprep.subr.bf16.mxu0 0
        %4008 = vmatpush1.bf16.msra.mxu0 0
        %4009 = vmatprep.subr.bf16.mxu0 0
        %4010 = vmatpush1.bf16.msra.mxu0 0
        %4011 = vmatprep.mubr.bf16.mxu0 0
        %4012 = vmatmul.mubr.bf16.gmra.mrb[0].mxu0 %v3927
        %v4013 = vpop.f32.mrb[0].mxu0
        %v4014 = vadd.f32 0.0, %v4013
        %v4015 = vpop.f32.mrb[0].mxu0
        %v4016 = vpop.f32.mrb[0].mxu0
        %v4017 = vpop.f32.mrb[0].mxu0
        %4018 = vdwg.mxu0
        %v4019 = vadd.f32 %v3890, %v3973
        %v4020 = vadd.f32 %v3891, %v3975
        %v4021 = vadd.f32 %v3892, %v4014
        %v4022 = vld [vmem:[%s168] sm:$0xff]
        %s4023 = scalar_lea.vmem %s1, 120
        %v4024 = vld [vmem:[%s4023] sm:$0xf]
        %v4026 = vcombine.high %v4022, %v4022
        %v4028 = vunpack.c.l.s4 1983009808
        %v4029 = vunpack.c.0.s8 %v4028
        %v4030 = vlaneseq
        %v4031 = vshrl.u32 %v4030, 7
        %v4032 = vsub.s32 %v4029, %v4031
        %v4033 = vrot.slane %v4022, %v4032
        %v4035 = vunpack.c.l.s4 1983009808
        %v4036 = vunpack.c.0.s8 %v4035
        %v4037 = vlaneseq
        %v4038 = vshrl.u32 %v4037, 7
        %v4039 = vsub.s32 %v4036, %v4038
        %v4040 = vrot.slane %v4026, %v4039
        %v4041 = vcombine.high %v4033, %v4033
        %v4042 = vcombine.high %v4040, %v4040
        %4043 = vrot.lane.b32.xlu0 %v4033, 38
        %v4044 = vpop.permute.xlu0 %4043
        %4045 = vrot.lane.b32.xlu0 %v4041, 38
        %v4046 = vpop.permute.xlu0 %4045
        %4047 = vrot.lane.b32.xlu0 %v4040, 38
        %v4048 = vpop.permute.xlu0 %4047
        %4049 = vrot.lane.b32.xlu0 %v4042, 38
        %v4050 = vpop.permute.xlu0 %4049
        %vm4051 = vcmask 310272
        %v4052 = vsel %vm4051, %v4044, %v4046
        %v4053 = vsel %vm4051, %v4046, %v4048
        %v4054 = vsel %vm4051, %v4048, %v4050
        %v4056 = vsel %vm205, %v4024, 0
        %v4059 = vsel %vm209, %v4052, 0
        %v4062 = vsel %vm209, %v4053, 0
        %v4065 = vsel %vm209, %v4054, 0
        %4067 = vmatprep.subr.bf16.mxu0 %v4062
        %4068 = vmatpush1.bf16.msra.mxu0 %v4059
        %4069 = vmatprep.subr.bf16.mxu0 0
        %4070 = vmatpush1.bf16.msra.mxu0 0
        %4071 = vmatprep.subr.bf16.mxu0 0
        %4072 = vmatpush1.bf16.msra.mxu0 0
        %4073 = vmatprep.subr.bf16.mxu0 0
        %4074 = vmatpush1.bf16.msra.mxu0 0
        %4075 = vmatprep.subr.bf16.mxu0 0
        %4076 = vmatpush1.bf16.msra.mxu0 0
        %4077 = vmatprep.subr.bf16.mxu0 0
        %4078 = vmatpush1.bf16.msra.mxu0 0
        %4079 = vmatprep.subr.bf16.mxu0 0
        %4080 = vmatpush1.bf16.msra.mxu0 0
        %4081 = vmatprep.subr.bf16.mxu0 0
        %4082 = vmatpush1.bf16.msra.mxu0 0
        %4083 = vmatprep.subr.bf16.mxu0 0
        %4084 = vmatpush1.bf16.msra.mxu0 0
        %4085 = vmatprep.subr.bf16.mxu0 0
        %4086 = vmatpush1.bf16.msra.mxu0 0
        %4087 = vmatprep.subr.bf16.mxu0 0
        %4088 = vmatpush1.bf16.msra.mxu0 0
        %4089 = vmatprep.subr.bf16.mxu0 0
        %4090 = vmatpush1.bf16.msra.mxu0 0
        %4091 = vmatprep.subr.bf16.mxu0 0
        %4092 = vmatpush1.bf16.msra.mxu0 0
        %4093 = vmatprep.subr.bf16.mxu0 0
        %4094 = vmatpush1.bf16.msra.mxu0 0
        %4095 = vmatprep.subr.bf16.mxu0 0
        %4096 = vmatpush1.bf16.msra.mxu0 0
        %4097 = vmatprep.subr.bf16.mxu0 0
        %4098 = vmatpush1.bf16.msra.mxu0 0
        %4099 = vmatprep.mubr.bf16.mxu0 0
        %4100 = vmatmul.mubr.bf16.gmra.mrb[0].mxu0 %v4056
        %v4101 = vpop.f32.mrb[0].mxu0
        %v4102 = vadd.f32 0.0, %v4101
        %v4103 = vpop.f32.mrb[0].mxu0
        %v4104 = vadd.f32 0.0, %v4103
        %v4105 = vpop.f32.mrb[0].mxu0
        %v4106 = vpop.f32.mrb[0].mxu0
        %4107 = vdwg.mxu0
        %4108 = vmatprep.subr.bf16.mxu0 0
        %4109 = vmatpush1.bf16.msra.mxu0 %v4065
        %4110 = vmatprep.subr.bf16.mxu0 0
        %4111 = vmatpush1.bf16.msra.mxu0 0
        %4112 = vmatprep.subr.bf16.mxu0 0
        %4113 = vmatpush1.bf16.msra.mxu0 0
        %4114 = vmatprep.subr.bf16.mxu0 0
        %4115 = vmatpush1.bf16.msra.mxu0 0
        %4116 = vmatprep.subr.bf16.mxu0 0
        %4117 = vmatpush1.bf16.msra.mxu0 0
        %4118 = vmatprep.subr.bf16.mxu0 0
        %4119 = vmatpush1.bf16.msra.mxu0 0
        %4120 = vmatprep.subr.bf16.mxu0 0
        %4121 = vmatpush1.bf16.msra.mxu0 0
        %4122 = vmatprep.subr.bf16.mxu0 0
        %4123 = vmatpush1.bf16.msra.mxu0 0
        %4124 = vmatprep.subr.bf16.mxu0 0
        %4125 = vmatpush1.bf16.msra.mxu0 0
        %4126 = vmatprep.subr.bf16.mxu0 0
        %4127 = vmatpush1.bf16.msra.mxu0 0
        %4128 = vmatprep.subr.bf16.mxu0 0
        %4129 = vmatpush1.bf16.msra.mxu0 0
        %4130 = vmatprep.subr.bf16.mxu0 0
        %4131 = vmatpush1.bf16.msra.mxu0 0
        %4132 = vmatprep.subr.bf16.mxu0 0
        %4133 = vmatpush1.bf16.msra.mxu0 0
        %4134 = vmatprep.subr.bf16.mxu0 0
        %4135 = vmatpush1.bf16.msra.mxu0 0
        %4136 = vmatprep.subr.bf16.mxu0 0
        %4137 = vmatpush1.bf16.msra.mxu0 0
        %4138 = vmatprep.subr.bf16.mxu0 0
        %4139 = vmatpush1.bf16.msra.mxu0 0
        %4140 = vmatprep.mubr.bf16.mxu0 0
        %4141 = vmatmul.mubr.bf16.gmra.mrb[0].mxu0 %v4056
        %v4142 = vpop.f32.mrb[0].mxu0
        %v4143 = vadd.f32 0.0, %v4142
        %v4144 = vpop.f32.mrb[0].mxu0
        %v4145 = vpop.f32.mrb[0].mxu0
        %v4146 = vpop.f32.mrb[0].mxu0
        %4147 = vdwg.mxu0
        %v4148 = vadd.f32 %v4019, %v4102
        %v4149 = vadd.f32 %v4020, %v4104
        %v4150 = vadd.f32 %v4021, %v4143
        %v4151 = vld [vmem:[%s168] sm:$0xff]
        %s4152 = scalar_lea.vmem %s1, 124
        %v4153 = vld [vmem:[%s4152] sm:$0xf]
        %v4155 = vcombine.high %v4151, %v4151
        %v4157 = vunpack.c.l.s4 1983009808
        %v4158 = vunpack.c.0.s8 %v4157
        %v4159 = vlaneseq
        %v4160 = vshrl.u32 %v4159, 7
        %v4161 = vsub.s32 %v4158, %v4160
        %v4162 = vrot.slane %v4151, %v4161
        %v4164 = vunpack.c.l.s4 1983009808
        %v4165 = vunpack.c.0.s8 %v4164
        %v4166 = vlaneseq
        %v4167 = vshrl.u32 %v4166, 7
        %v4168 = vsub.s32 %v4165, %v4167
        %v4169 = vrot.slane %v4155, %v4168
        %v4170 = vcombine.high %v4162, %v4162
        %v4171 = vcombine.high %v4169, %v4169
        %4172 = vrot.lane.b32.xlu0 %v4162, 37
        %v4173 = vpop.permute.xlu0 %4172
        %4174 = vrot.lane.b32.xlu0 %v4170, 37
        %v4175 = vpop.permute.xlu0 %4174
        %4176 = vrot.lane.b32.xlu0 %v4169, 37
        %v4177 = vpop.permute.xlu0 %4176
        %4178 = vrot.lane.b32.xlu0 %v4171, 37
        %v4179 = vpop.permute.xlu0 %4178
        %vm4180 = vcmask 302080
        %v4181 = vsel %vm4180, %v4173, %v4175
        %v4182 = vsel %vm4180, %v4175, %v4177
        %v4183 = vsel %vm4180, %v4177, %v4179
        %v4185 = vsel %vm205, %v4153, 0
        %v4188 = vsel %vm209, %v4181, 0
        %v4191 = vsel %vm209, %v4182, 0
        %v4194 = vsel %vm209, %v4183, 0
        %4196 = vmatprep.subr.bf16.mxu0 %v4191
        %4197 = vmatpush1.bf16.msra.mxu0 %v4188
        %4198 = vmatprep.subr.bf16.mxu0 0
        %4199 = vmatpush1.bf16.msra.mxu0 0
        %4200 = vmatprep.subr.bf16.mxu0 0
        %4201 = vmatpush1.bf16.msra.mxu0 0
        %4202 = vmatprep.subr.bf16.mxu0 0
        %4203 = vmatpush1.bf16.msra.mxu0 0
        %4204 = vmatprep.subr.bf16.mxu0 0
        %4205 = vmatpush1.bf16.msra.mxu0 0
        %4206 = vmatprep.subr.bf16.mxu0 0
        %4207 = vmatpush1.bf16.msra.mxu0 0
        %4208 = vmatprep.subr.bf16.mxu0 0
        %4209 = vmatpush1.bf16.msra.mxu0 0
        %4210 = vmatprep.subr.bf16.mxu0 0
        %4211 = vmatpush1.bf16.msra.mxu0 0
        %4212 = vmatprep.subr.bf16.mxu0 0
        %4213 = vmatpush1.bf16.msra.mxu0 0
        %4214 = vmatprep.subr.bf16.mxu0 0
        %4215 = vmatpush1.bf16.msra.mxu0 0
        %4216 = vmatprep.subr.bf16.mxu0 0
        %4217 = vmatpush1.bf16.msra.mxu0 0
        %4218 = vmatprep.subr.bf16.mxu0 0
        %4219 = vmatpush1.bf16.msra.mxu0 0
        %4220 = vmatprep.subr.bf16.mxu0 0
        %4221 = vmatpush1.bf16.msra.mxu0 0
        %4222 = vmatprep.subr.bf16.mxu0 0
        %4223 = vmatpush1.bf16.msra.mxu0 0
        %4224 = vmatprep.subr.bf16.mxu0 0
        %4225 = vmatpush1.bf16.msra.mxu0 0
        %4226 = vmatprep.subr.bf16.mxu0 0
        %4227 = vmatpush1.bf16.msra.mxu0 0
        %4228 = vmatprep.mubr.bf16.mxu0 0
        %4229 = vmatmul.mubr.bf16.gmra.mrb[0].mxu0 %v4185
        %v4230 = vpop.f32.mrb[0].mxu0
        %v4231 = vadd.f32 0.0, %v4230
        %v4232 = vpop.f32.mrb[0].mxu0
        %v4233 = vadd.f32 0.0, %v4232
        %v4234 = vpop.f32.mrb[0].mxu0
        %v4235 = vpop.f32.mrb[0].mxu0
        %4236 = vdwg.mxu0
        %4237 = vmatprep.subr.bf16.mxu0 0
        %4238 = vmatpush1.bf16.msra.mxu0 %v4194
        %4239 = vmatprep.subr.bf16.mxu0 0
        %4240 = vmatpush1.bf16.msra.mxu0 0
        %4241 = vmatprep.subr.bf16.mxu0 0
        %4242 = vmatpush1.bf16.msra.mxu0 0
        %4243 = vmatprep.subr.bf16.mxu0 0
        %4244 = vmatpush1.bf16.msra.mxu0 0
        %4245 = vmatprep.subr.bf16.mxu0 0
        %4246 = vmatpush1.bf16.msra.mxu0 0
        %4247 = vmatprep.subr.bf16.mxu0 0
        %4248 = vmatpush1.bf16.msra.mxu0 0
        %4249 = vmatprep.subr.bf16.mxu0 0
        %4250 = vmatpush1.bf16.msra.mxu0 0
        %4251 = vmatprep.subr.bf16.mxu0 0
        %4252 = vmatpush1.bf16.msra.mxu0 0
        %4253 = vmatprep.subr.bf16.mxu0 0
        %4254 = vmatpush1.bf16.msra.mxu0 0
        %4255 = vmatprep.subr.bf16.mxu0 0
        %4256 = vmatpush1.bf16.msra.mxu0 0
        %4257 = vmatprep.subr.bf16.mxu0 0
        %4258 = vmatpush1.bf16.msra.mxu0 0
        %4259 = vmatprep.subr.bf16.mxu0 0
        %4260 = vmatpush1.bf16.msra.mxu0 0
        %4261 = vmatprep.subr.bf16.mxu0 0
        %4262 = vmatpush1.bf16.msra.mxu0 0
        %4263 = vmatprep.subr.bf16.mxu0 0
        %4264 = vmatpush1.bf16.msra.mxu0 0
        %4265 = vmatprep.subr.bf16.mxu0 0
        %4266 = vmatpush1.bf16.msra.mxu0 0
        %4267 = vmatprep.subr.bf16.mxu0 0
        %4268 = vmatpush1.bf16.msra.mxu0 0
        %4269 = vmatprep.mubr.bf16.mxu0 0
        %4270 = vmatmul.mubr.bf16.gmra.mrb[0].mxu0 %v4185
        %v4271 = vpop.f32.mrb[0].mxu0
        %v4272 = vadd.f32 0.0, %v4271
        %v4273 = vpop.f32.mrb[0].mxu0
        %v4274 = vpop.f32.mrb[0].mxu0
        %v4275 = vpop.f32.mrb[0].mxu0
        %4276 = vdwg.mxu0
        %v4277 = vadd.f32 %v4148, %v4231
        %v4278 = vadd.f32 %v4149, %v4233
        %v4279 = vadd.f32 %v4150, %v4272
        %v4280 = vld [vmem:[%s168] sm:$0xff]
        %s4281 = scalar_lea.vmem %s1, 128
        %v4282 = vld [vmem:[%s4281] sm:$0xf]
        %v4284 = vcombine.high %v4280, %v4280
        %v4286 = vunpack.c.l.s4 1983009808
        %v4287 = vunpack.c.0.s8 %v4286
        %v4288 = vlaneseq
        %v4289 = vshrl.u32 %v4288, 7
        %v4290 = vsub.s32 %v4287, %v4289
        %v4291 = vrot.slane %v4280, %v4290
        %v4293 = vunpack.c.l.s4 1983009808
        %v4294 = vunpack.c.0.s8 %v4293
        %v4295 = vlaneseq
        %v4296 = vshrl.u32 %v4295, 7
        %v4297 = vsub.s32 %v4294, %v4296
        %v4298 = vrot.slane %v4284, %v4297
        %v4299 = vcombine.high %v4291, %v4291
        %v4300 = vcombine.high %v4298, %v4298
        %4301 = vrot.lane.b32.xlu0 %v4291, 36
        %v4302 = vpop.permute.xlu0 %4301
        %4303 = vrot.lane.b32.xlu0 %v4299, 36
        %v4304 = vpop.permute.xlu0 %4303
        %4305 = vrot.lane.b32.xlu0 %v4298, 36
        %v4306 = vpop.permute.xlu0 %4305
        %4307 = vrot.lane.b32.xlu0 %v4300, 36
        %v4308 = vpop.permute.xlu0 %4307
        %vm4309 = vcmask 293888
        %v4310 = vsel %vm4309, %v4302, %v4304
        %v4311 = vsel %vm4309, %v4304, %v4306
        %v4312 = vsel %vm4309, %v4306, %v4308
        %v4314 = vsel %vm205, %v4282, 0
        %v4317 = vsel %vm209, %v4310, 0
        %v4320 = vsel %vm209, %v4311, 0
        %v4323 = vsel %vm209, %v4312, 0
        %4325 = vmatprep.subr.bf16.mxu0 %v4320
        %4326 = vmatpush1.bf16.msra.mxu0 %v4317
        %4327 = vmatprep.subr.bf16.mxu0 0
        %4328 = vmatpush1.bf16.msra.mxu0 0
        %4329 = vmatprep.subr.bf16.mxu0 0
        %4330 = vmatpush1.bf16.msra.mxu0 0
        %4331 = vmatprep.subr.bf16.mxu0 0
        %4332 = vmatpush1.bf16.msra.mxu0 0
        %4333 = vmatprep.subr.bf16.mxu0 0
        %4334 = vmatpush1.bf16.msra.mxu0 0
        %4335 = vmatprep.subr.bf16.mxu0 0
        %4336 = vmatpush1.bf16.msra.mxu0 0
        %4337 = vmatprep.subr.bf16.mxu0 0
        %4338 = vmatpush1.bf16.msra.mxu0 0
        %4339 = vmatprep.subr.bf16.mxu0 0
        %4340 = vmatpush1.bf16.msra.mxu0 0
        %4341 = vmatprep.subr.bf16.mxu0 0
        %4342 = vmatpush1.bf16.msra.mxu0 0
        %4343 = vmatprep.subr.bf16.mxu0 0
        %4344 = vmatpush1.bf16.msra.mxu0 0
        %4345 = vmatprep.subr.bf16.mxu0 0
        %4346 = vmatpush1.bf16.msra.mxu0 0
        %4347 = vmatprep.subr.bf16.mxu0 0
        %4348 = vmatpush1.bf16.msra.mxu0 0
        %4349 = vmatprep.subr.bf16.mxu0 0
        %4350 = vmatpush1.bf16.msra.mxu0 0
        %4351 = vmatprep.subr.bf16.mxu0 0
        %4352 = vmatpush1.bf16.msra.mxu0 0
        %4353 = vmatprep.subr.bf16.mxu0 0
        %4354 = vmatpush1.bf16.msra.mxu0 0
        %4355 = vmatprep.subr.bf16.mxu0 0
        %4356 = vmatpush1.bf16.msra.mxu0 0
        %4357 = vmatprep.mubr.bf16.mxu0 0
        %4358 = vmatmul.mubr.bf16.gmra.mrb[0].mxu0 %v4314
        %v4359 = vpop.f32.mrb[0].mxu0
        %v4360 = vadd.f32 0.0, %v4359
        %v4361 = vpop.f32.mrb[0].mxu0
        %v4362 = vadd.f32 0.0, %v4361
        %v4363 = vpop.f32.mrb[0].mxu0
        %v4364 = vpop.f32.mrb[0].mxu0
        %4365 = vdwg.mxu0
        %4366 = vmatprep.subr.bf16.mxu0 0
        %4367 = vmatpush1.bf16.msra.mxu0 %v4323
        %4368 = vmatprep.subr.bf16.mxu0 0
        %4369 = vmatpush1.bf16.msra.mxu0 0
        %4370 = vmatprep.subr.bf16.mxu0 0
        %4371 = vmatpush1.bf16.msra.mxu0 0
        %4372 = vmatprep.subr.bf16.mxu0 0
        %4373 = vmatpush1.bf16.msra.mxu0 0
        %4374 = vmatprep.subr.bf16.mxu0 0
        %4375 = vmatpush1.bf16.msra.mxu0 0
        %4376 = vmatprep.subr.bf16.mxu0 0
        %4377 = vmatpush1.bf16.msra.mxu0 0
        %4378 = vmatprep.subr.bf16.mxu0 0
        %4379 = vmatpush1.bf16.msra.mxu0 0
        %4380 = vmatprep.subr.bf16.mxu0 0
        %4381 = vmatpush1.bf16.msra.mxu0 0
        %4382 = vmatprep.subr.bf16.mxu0 0
        %4383 = vmatpush1.bf16.msra.mxu0 0
        %4384 = vmatprep.subr.bf16.mxu0 0
        %4385 = vmatpush1.bf16.msra.mxu0 0
        %4386 = vmatprep.subr.bf16.mxu0 0
        %4387 = vmatpush1.bf16.msra.mxu0 0
        %4388 = vmatprep.subr.bf16.mxu0 0
        %4389 = vmatpush1.bf16.msra.mxu0 0
        %4390 = vmatprep.subr.bf16.mxu0 0
        %4391 = vmatpush1.bf16.msra.mxu0 0
        %4392 = vmatprep.subr.bf16.mxu0 0
        %4393 = vmatpush1.bf16.msra.mxu0 0
        %4394 = vmatprep.subr.bf16.mxu0 0
        %4395 = vmatpush1.bf16.msra.mxu0 0
        %4396 = vmatprep.subr.bf16.mxu0 0
        %4397 = vmatpush1.bf16.msra.mxu0 0
        %4398 = vmatprep.mubr.bf16.mxu0 0
        %4399 = vmatmul.mubr.bf16.gmra.mrb[0].mxu0 %v4314
        %v4400 = vpop.f32.mrb[0].mxu0
        %v4401 = vadd.f32 0.0, %v4400
        %v4402 = vpop.f32.mrb[0].mxu0
        %v4403 = vpop.f32.mrb[0].mxu0
        %v4404 = vpop.f32.mrb[0].mxu0
        %4405 = vdwg.mxu0
        %v4406 = vadd.f32 %v4277, %v4360
        %v4407 = vadd.f32 %v4278, %v4362
        %v4408 = vadd.f32 %v4279, %v4401
        %v4409 = vld [vmem:[%s168] sm:$0xff]
        %s4410 = scalar_lea.vmem %s1, 132
        %v4411 = vld [vmem:[%s4410] sm:$0xf]
        %v4413 = vcombine.high %v4409, %v4409
        %v4415 = vunpack.c.l.s4 1983009808
        %v4416 = vunpack.c.0.s8 %v4415
        %v4417 = vlaneseq
        %v4418 = vshrl.u32 %v4417, 7
        %v4419 = vsub.s32 %v4416, %v4418
        %v4420 = vrot.slane %v4409, %v4419
        %v4422 = vunpack.c.l.s4 1983009808
        %v4423 = vunpack.c.0.s8 %v4422
        %v4424 = vlaneseq
        %v4425 = vshrl.u32 %v4424, 7
        %v4426 = vsub.s32 %v4423, %v4425
        %v4427 = vrot.slane %v4413, %v4426
        %v4428 = vcombine.high %v4420, %v4420
        %v4429 = vcombine.high %v4427, %v4427
        %4430 = vrot.lane.b32.xlu0 %v4420, 35
        %v4431 = vpop.permute.xlu0 %4430
        %4432 = vrot.lane.b32.xlu0 %v4428, 35
        %v4433 = vpop.permute.xlu0 %4432
        %4434 = vrot.lane.b32.xlu0 %v4427, 35
        %v4435 = vpop.permute.xlu0 %4434
        %4436 = vrot.lane.b32.xlu0 %v4429, 35
        %v4437 = vpop.permute.xlu0 %4436
        %vm4438 = vcmask 285696
        %v4439 = vsel %vm4438, %v4431, %v4433
        %v4440 = vsel %vm4438, %v4433, %v4435
        %v4441 = vsel %vm4438, %v4435, %v4437
        %v4443 = vsel %vm205, %v4411, 0
        %v4446 = vsel %vm209, %v4439, 0
        %v4449 = vsel %vm209, %v4440, 0
        %v4452 = vsel %vm209, %v4441, 0
        %4454 = vmatprep.subr.bf16.mxu0 %v4449
        %4455 = vmatpush1.bf16.msra.mxu0 %v4446
        %4456 = vmatprep.subr.bf16.mxu0 0
        %4457 = vmatpush1.bf16.msra.mxu0 0
        %4458 = vmatprep.subr.bf16.mxu0 0
        %4459 = vmatpush1.bf16.msra.mxu0 0
        %4460 = vmatprep.subr.bf16.mxu0 0
        %4461 = vmatpush1.bf16.msra.mxu0 0
        %4462 = vmatprep.subr.bf16.mxu0 0
        %4463 = vmatpush1.bf16.msra.mxu0 0
        %4464 = vmatprep.subr.bf16.mxu0 0
        %4465 = vmatpush1.bf16.msra.mxu0 0
        %4466 = vmatprep.subr.bf16.mxu0 0
        %4467 = vmatpush1.bf16.msra.mxu0 0
        %4468 = vmatprep.subr.bf16.mxu0 0
        %4469 = vmatpush1.bf16.msra.mxu0 0
        %4470 = vmatprep.subr.bf16.mxu0 0
        %4471 = vmatpush1.bf16.msra.mxu0 0
        %4472 = vmatprep.subr.bf16.mxu0 0
        %4473 = vmatpush1.bf16.msra.mxu0 0
        %4474 = vmatprep.subr.bf16.mxu0 0
        %4475 = vmatpush1.bf16.msra.mxu0 0
        %4476 = vmatprep.subr.bf16.mxu0 0
        %4477 = vmatpush1.bf16.msra.mxu0 0
        %4478 = vmatprep.subr.bf16.mxu0 0
        %4479 = vmatpush1.bf16.msra.mxu0 0
        %4480 = vmatprep.subr.bf16.mxu0 0
        %4481 = vmatpush1.bf16.msra.mxu0 0
        %4482 = vmatprep.subr.bf16.mxu0 0
        %4483 = vmatpush1.bf16.msra.mxu0 0
        %4484 = vmatprep.subr.bf16.mxu0 0
        %4485 = vmatpush1.bf16.msra.mxu0 0
        %4486 = vmatprep.mubr.bf16.mxu0 0
        %4487 = vmatmul.mubr.bf16.gmra.mrb[0].mxu0 %v4443
        %v4488 = vpop.f32.mrb[0].mxu0
        %v4489 = vadd.f32 0.0, %v4488
        %v4490 = vpop.f32.mrb[0].mxu0
        %v4491 = vadd.f32 0.0, %v4490
        %v4492 = vpop.f32.mrb[0].mxu0
        %v4493 = vpop.f32.mrb[0].mxu0
        %4494 = vdwg.mxu0
        %4495 = vmatprep.subr.bf16.mxu0 0
        %4496 = vmatpush1.bf16.msra.mxu0 %v4452
        %4497 = vmatprep.subr.bf16.mxu0 0
        %4498 = vmatpush1.bf16.msra.mxu0 0
        %4499 = vmatprep.subr.bf16.mxu0 0
        %4500 = vmatpush1.bf16.msra.mxu0 0
        %4501 = vmatprep.subr.bf16.mxu0 0
        %4502 = vmatpush1.bf16.msra.mxu0 0
        %4503 = vmatprep.subr.bf16.mxu0 0
        %4504 = vmatpush1.bf16.msra.mxu0 0
        %4505 = vmatprep.subr.bf16.mxu0 0
        %4506 = vmatpush1.bf16.msra.mxu0 0
        %4507 = vmatprep.subr.bf16.mxu0 0
        %4508 = vmatpush1.bf16.msra.mxu0 0
        %4509 = vmatprep.subr.bf16.mxu0 0
        %4510 = vmatpush1.bf16.msra.mxu0 0
        %4511 = vmatprep.subr.bf16.mxu0 0
        %4512 = vmatpush1.bf16.msra.mxu0 0
        %4513 = vmatprep.subr.bf16.mxu0 0
        %4514 = vmatpush1.bf16.msra.mxu0 0
        %4515 = vmatprep.subr.bf16.mxu0 0
        %4516 = vmatpush1.bf16.msra.mxu0 0
        %4517 = vmatprep.subr.bf16.mxu0 0
        %4518 = vmatpush1.bf16.msra.mxu0 0
        %4519 = vmatprep.subr.bf16.mxu0 0
        %4520 = vmatpush1.bf16.msra.mxu0 0
        %4521 = vmatprep.subr.bf16.mxu0 0
        %4522 = vmatpush1.bf16.msra.mxu0 0
        %4523 = vmatprep.subr.bf16.mxu0 0
        %4524 = vmatpush1.bf16.msra.mxu0 0
        %4525 = vmatprep.subr.bf16.mxu0 0
        %4526 = vmatpush1.bf16.msra.mxu0 0
        %4527 = vmatprep.mubr.bf16.mxu0 0
        %4528 = vmatmul.mubr.bf16.gmra.mrb[0].mxu0 %v4443
        %v4529 = vpop.f32.mrb[0].mxu0
        %v4530 = vadd.f32 0.0, %v4529
        %v4531 = vpop.f32.mrb[0].mxu0
        %v4532 = vpop.f32.mrb[0].mxu0
        %v4533 = vpop.f32.mrb[0].mxu0
        %4534 = vdwg.mxu0
        %v4535 = vadd.f32 %v4406, %v4489
        %v4536 = vadd.f32 %v4407, %v4491
        %v4537 = vadd.f32 %v4408, %v4530
        %v4538 = vld [vmem:[%s168] sm:$0xff]
        %s4539 = scalar_lea.vmem %s1, 136
        %v4540 = vld [vmem:[%s4539] sm:$0xf]
        %v4542 = vcombine.high %v4538, %v4538
        %v4544 = vunpack.c.l.s4 1983009808
        %v4545 = vunpack.c.0.s8 %v4544
        %v4546 = vlaneseq
        %v4547 = vshrl.u32 %v4546, 7
        %v4548 = vsub.s32 %v4545, %v4547
        %v4549 = vrot.slane %v4538, %v4548
        %v4551 = vunpack.c.l.s4 1983009808
        %v4552 = vunpack.c.0.s8 %v4551
        %v4553 = vlaneseq
        %v4554 = vshrl.u32 %v4553, 7
        %v4555 = vsub.s32 %v4552, %v4554
        %v4556 = vrot.slane %v4542, %v4555
        %v4557 = vcombine.high %v4549, %v4549
        %v4558 = vcombine.high %v4556, %v4556
        %4559 = vrot.lane.b32.xlu0 %v4549, 34
        %v4560 = vpop.permute.xlu0 %4559
        %4561 = vrot.lane.b32.xlu0 %v4557, 34
        %v4562 = vpop.permute.xlu0 %4561
        %4563 = vrot.lane.b32.xlu0 %v4556, 34
        %v4564 = vpop.permute.xlu0 %4563
        %4565 = vrot.lane.b32.xlu0 %v4558, 34
        %v4566 = vpop.permute.xlu0 %4565
        %vm4567 = vcmask 277504
        %v4568 = vsel %vm4567, %v4560, %v4562
        %v4569 = vsel %vm4567, %v4562, %v4564
        %v4570 = vsel %vm4567, %v4564, %v4566
        %v4572 = vsel %vm205, %v4540, 0
        %v4575 = vsel %vm209, %v4568, 0
        %v4578 = vsel %vm209, %v4569, 0
        %v4581 = vsel %vm209, %v4570, 0
        %4583 = vmatprep.subr.bf16.mxu0 %v4578
        %4584 = vmatpush1.bf16.msra.mxu0 %v4575
        %4585 = vmatprep.subr.bf16.mxu0 0
        %4586 = vmatpush1.bf16.msra.mxu0 0
        %4587 = vmatprep.subr.bf16.mxu0 0
        %4588 = vmatpush1.bf16.msra.mxu0 0
        %4589 = vmatprep.subr.bf16.mxu0 0
        %4590 = vmatpush1.bf16.msra.mxu0 0
        %4591 = vmatprep.subr.bf16.mxu0 0
        %4592 = vmatpush1.bf16.msra.mxu0 0
        %4593 = vmatprep.subr.bf16.mxu0 0
        %4594 = vmatpush1.bf16.msra.mxu0 0
        %4595 = vmatprep.subr.bf16.mxu0 0
        %4596 = vmatpush1.bf16.msra.mxu0 0
        %4597 = vmatprep.subr.bf16.mxu0 0
        %4598 = vmatpush1.bf16.msra.mxu0 0
        %4599 = vmatprep.subr.bf16.mxu0 0
        %4600 = vmatpush1.bf16.msra.mxu0 0
        %4601 = vmatprep.subr.bf16.mxu0 0
        %4602 = vmatpush1.bf16.msra.mxu0 0
        %4603 = vmatprep.subr.bf16.mxu0 0
        %4604 = vmatpush1.bf16.msra.mxu0 0
        %4605 = vmatprep.subr.bf16.mxu0 0
        %4606 = vmatpush1.bf16.msra.mxu0 0
        %4607 = vmatprep.subr.bf16.mxu0 0
        %4608 = vmatpush1.bf16.msra.mxu0 0
        %4609 = vmatprep.subr.bf16.mxu0 0
        %4610 = vmatpush1.bf16.msra.mxu0 0
        %4611 = vmatprep.subr.bf16.mxu0 0
        %4612 = vmatpush1.bf16.msra.mxu0 0
        %4613 = vmatprep.subr.bf16.mxu0 0
        %4614 = vmatpush1.bf16.msra.mxu0 0
        %4615 = vmatprep.mubr.bf16.mxu0 0
        %4616 = vmatmul.mubr.bf16.gmra.mrb[0].mxu0 %v4572
        %v4617 = vpop.f32.mrb[0].mxu0
        %v4618 = vadd.f32 0.0, %v4617
        %v4619 = vpop.f32.mrb[0].mxu0
        %v4620 = vadd.f32 0.0, %v4619
        %v4621 = vpop.f32.mrb[0].mxu0
        %v4622 = vpop.f32.mrb[0].mxu0
        %4623 = vdwg.mxu0
        %4624 = vmatprep.subr.bf16.mxu0 0
        %4625 = vmatpush1.bf16.msra.mxu0 %v4581
        %4626 = vmatprep.subr.bf16.mxu0 0
        %4627 = vmatpush1.bf16.msra.mxu0 0
        %4628 = vmatprep.subr.bf16.mxu0 0
        %4629 = vmatpush1.bf16.msra.mxu0 0
        %4630 = vmatprep.subr.bf16.mxu0 0
        %4631 = vmatpush1.bf16.msra.mxu0 0
        %4632 = vmatprep.subr.bf16.mxu0 0
        %4633 = vmatpush1.bf16.msra.mxu0 0
        %4634 = vmatprep.subr.bf16.mxu0 0
        %4635 = vmatpush1.bf16.msra.mxu0 0
        %4636 = vmatprep.subr.bf16.mxu0 0
        %4637 = vmatpush1.bf16.msra.mxu0 0
        %4638 = vmatprep.subr.bf16.mxu0 0
        %4639 = vmatpush1.bf16.msra.mxu0 0
        %4640 = vmatprep.subr.bf16.mxu0 0
        %4641 = vmatpush1.bf16.msra.mxu0 0
        %4642 = vmatprep.subr.bf16.mxu0 0
        %4643 = vmatpush1.bf16.msra.mxu0 0
        %4644 = vmatprep.subr.bf16.mxu0 0
        %4645 = vmatpush1.bf16.msra.mxu0 0
        %4646 = vmatprep.subr.bf16.mxu0 0
        %4647 = vmatpush1.bf16.msra.mxu0 0
        %4648 = vmatprep.subr.bf16.mxu0 0
        %4649 = vmatpush1.bf16.msra.mxu0 0
        %4650 = vmatprep.subr.bf16.mxu0 0
        %4651 = vmatpush1.bf16.msra.mxu0 0
        %4652 = vmatprep.subr.bf16.mxu0 0
        %4653 = vmatpush1.bf16.msra.mxu0 0
        %4654 = vmatprep.subr.bf16.mxu0 0
        %4655 = vmatpush1.bf16.msra.mxu0 0
        %4656 = vmatprep.mubr.bf16.mxu0 0
        %4657 = vmatmul.mubr.bf16.gmra.mrb[0].mxu0 %v4572
        %v4658 = vpop.f32.mrb[0].mxu0
        %v4659 = vadd.f32 0.0, %v4658
        %v4660 = vpop.f32.mrb[0].mxu0
        %v4661 = vpop.f32.mrb[0].mxu0
        %v4662 = vpop.f32.mrb[0].mxu0
        %4663 = vdwg.mxu0
        %v4664 = vadd.f32 %v4535, %v4618
        %v4665 = vadd.f32 %v4536, %v4620
        %v4666 = vadd.f32 %v4537, %v4659
        %v4667 = vld [vmem:[%s168] sm:$0xff]
        %s4668 = scalar_lea.vmem %s1, 140
        %v4669 = vld [vmem:[%s4668] sm:$0xf]
        %v4671 = vcombine.high %v4667, %v4667
        %v4673 = vunpack.c.l.s4 1983009808
        %v4674 = vunpack.c.0.s8 %v4673
        %v4675 = vlaneseq
        %v4676 = vshrl.u32 %v4675, 7
        %v4677 = vsub.s32 %v4674, %v4676
        %v4678 = vrot.slane %v4667, %v4677
        %v4680 = vunpack.c.l.s4 1983009808
        %v4681 = vunpack.c.0.s8 %v4680
        %v4682 = vlaneseq
        %v4683 = vshrl.u32 %v4682, 7
        %v4684 = vsub.s32 %v4681, %v4683
        %v4685 = vrot.slane %v4671, %v4684
        %v4686 = vcombine.high %v4678, %v4678
        %v4687 = vcombine.high %v4685, %v4685
        %4688 = vrot.lane.b32.xlu0 %v4678, 18
        %v4689 = vpop.permute.xlu0 %4688
        %4690 = vrot.lane.b32.xlu0 %v4686, 18
        %v4691 = vpop.permute.xlu0 %4690
        %4692 = vrot.lane.b32.xlu0 %v4685, 18
        %v4693 = vpop.permute.xlu0 %4692
        %4694 = vrot.lane.b32.xlu0 %v4687, 18
        %v4695 = vpop.permute.xlu0 %4694
        %vm4696 = vcmask 146432
        %v4697 = vsel %vm4696, %v4689, %v4691
        %v4698 = vsel %vm4696, %v4691, %v4693
        %v4699 = vsel %vm4696, %v4693, %v4695
        %v4701 = vsel %vm205, %v4669, 0
        %v4704 = vsel %vm209, %v4697, 0
        %v4707 = vsel %vm209, %v4698, 0
        %v4710 = vsel %vm209, %v4699, 0
        %4712 = vmatprep.subr.bf16.mxu0 %v4707
        %4713 = vmatpush1.bf16.msra.mxu0 %v4704
        %4714 = vmatprep.subr.bf16.mxu0 0
        %4715 = vmatpush1.bf16.msra.mxu0 0
        %4716 = vmatprep.subr.bf16.mxu0 0
        %4717 = vmatpush1.bf16.msra.mxu0 0
        %4718 = vmatprep.subr.bf16.mxu0 0
        %4719 = vmatpush1.bf16.msra.mxu0 0
        %4720 = vmatprep.subr.bf16.mxu0 0
        %4721 = vmatpush1.bf16.msra.mxu0 0
        %4722 = vmatprep.subr.bf16.mxu0 0
        %4723 = vmatpush1.bf16.msra.mxu0 0
        %4724 = vmatprep.subr.bf16.mxu0 0
        %4725 = vmatpush1.bf16.msra.mxu0 0
        %4726 = vmatprep.subr.bf16.mxu0 0
        %4727 = vmatpush1.bf16.msra.mxu0 0
        %4728 = vmatprep.subr.bf16.mxu0 0
        %4729 = vmatpush1.bf16.msra.mxu0 0
        %4730 = vmatprep.subr.bf16.mxu0 0
        %4731 = vmatpush1.bf16.msra.mxu0 0
        %4732 = vmatprep.subr.bf16.mxu0 0
        %4733 = vmatpush1.bf16.msra.mxu0 0
        %4734 = vmatprep.subr.bf16.mxu0 0
        %4735 = vmatpush1.bf16.msra.mxu0 0
        %4736 = vmatprep.subr.bf16.mxu0 0
        %4737 = vmatpush1.bf16.msra.mxu0 0
        %4738 = vmatprep.subr.bf16.mxu0 0
        %4739 = vmatpush1.bf16.msra.mxu0 0
        %4740 = vmatprep.subr.bf16.mxu0 0
        %4741 = vmatpush1.bf16.msra.mxu0 0
        %4742 = vmatprep.subr.bf16.mxu0 0
        %4743 = vmatpush1.bf16.msra.mxu0 0
        %4744 = vmatprep.mubr.bf16.mxu0 0
        %4745 = vmatmul.mubr.bf16.gmra.mrb[0].mxu0 %v4701
        %v4746 = vpop.f32.mrb[0].mxu0
        %v4747 = vadd.f32 0.0, %v4746
        %v4748 = vpop.f32.mrb[0].mxu0
        %v4749 = vadd.f32 0.0, %v4748
        %v4750 = vpop.f32.mrb[0].mxu0
        %v4751 = vpop.f32.mrb[0].mxu0
        %4752 = vdwg.mxu0
        %4753 = vmatprep.subr.bf16.mxu0 0
        %4754 = vmatpush1.bf16.msra.mxu0 %v4710
        %4755 = vmatprep.subr.bf16.mxu0 0
        %4756 = vmatpush1.bf16.msra.mxu0 0
        %4757 = vmatprep.subr.bf16.mxu0 0
        %4758 = vmatpush1.bf16.msra.mxu0 0
        %4759 = vmatprep.subr.bf16.mxu0 0
        %4760 = vmatpush1.bf16.msra.mxu0 0
        %4761 = vmatprep.subr.bf16.mxu0 0
        %4762 = vmatpush1.bf16.msra.mxu0 0
        %4763 = vmatprep.subr.bf16.mxu0 0
        %4764 = vmatpush1.bf16.msra.mxu0 0
        %4765 = vmatprep.subr.bf16.mxu0 0
        %4766 = vmatpush1.bf16.msra.mxu0 0
        %4767 = vmatprep.subr.bf16.mxu0 0
        %4768 = vmatpush1.bf16.msra.mxu0 0
        %4769 = vmatprep.subr.bf16.mxu0 0
        %4770 = vmatpush1.bf16.msra.mxu0 0
        %4771 = vmatprep.subr.bf16.mxu0 0
        %4772 = vmatpush1.bf16.msra.mxu0 0
        %4773 = vmatprep.subr.bf16.mxu0 0
        %4774 = vmatpush1.bf16.msra.mxu0 0
        %4775 = vmatprep.subr.bf16.mxu0 0
        %4776 = vmatpush1.bf16.msra.mxu0 0
        %4777 = vmatprep.subr.bf16.mxu0 0
        %4778 = vmatpush1.bf16.msra.mxu0 0
        %4779 = vmatprep.subr.bf16.mxu0 0
        %4780 = vmatpush1.bf16.msra.mxu0 0
        %4781 = vmatprep.subr.bf16.mxu0 0
        %4782 = vmatpush1.bf16.msra.mxu0 0
        %4783 = vmatprep.subr.bf16.mxu0 0
        %4784 = vmatpush1.bf16.msra.mxu0 0
        %4785 = vmatprep.mubr.bf16.mxu0 0
        %4786 = vmatmul.mubr.bf16.gmra.mrb[0].mxu0 %v4701
        %v4787 = vpop.f32.mrb[0].mxu0
        %v4788 = vadd.f32 0.0, %v4787
        %v4789 = vpop.f32.mrb[0].mxu0
        %v4790 = vpop.f32.mrb[0].mxu0
        %v4791 = vpop.f32.mrb[0].mxu0
        %4792 = vdwg.mxu0
        %v4793 = vadd.f32 %v4664, %v4747
        %v4794 = vadd.f32 %v4665, %v4749
        %v4795 = vadd.f32 %v4666, %v4788
        %v4796 = vld [vmem:[%s168] sm:$0xff]
        %s4797 = scalar_lea.vmem %s1, 144
        %v4798 = vld [vmem:[%s4797] sm:$0xf]
        %v4800 = vcombine.high %v4796, %v4796
        %v4802 = vunpack.c.l.s4 1983009808
        %v4803 = vunpack.c.0.s8 %v4802
        %v4804 = vlaneseq
        %v4805 = vshrl.u32 %v4804, 7
        %v4806 = vsub.s32 %v4803, %v4805
        %v4807 = vrot.slane %v4796, %v4806
        %v4809 = vunpack.c.l.s4 1983009808
        %v4810 = vunpack.c.0.s8 %v4809
        %v4811 = vlaneseq
        %v4812 = vshrl.u32 %v4811, 7
        %v4813 = vsub.s32 %v4810, %v4812
        %v4814 = vrot.slane %v4800, %v4813
        %v4815 = vcombine.high %v4807, %v4807
        %v4816 = vcombine.high %v4814, %v4814
        %4817 = vrot.lane.b32.xlu0 %v4807, 17
        %v4818 = vpop.permute.xlu0 %4817
        %4819 = vrot.lane.b32.xlu0 %v4815, 17
        %v4820 = vpop.permute.xlu0 %4819
        %4821 = vrot.lane.b32.xlu0 %v4814, 17
        %v4822 = vpop.permute.xlu0 %4821
        %4823 = vrot.lane.b32.xlu0 %v4816, 17
        %v4824 = vpop.permute.xlu0 %4823
        %vm4825 = vcmask 138240
        %v4826 = vsel %vm4825, %v4818, %v4820
        %v4827 = vsel %vm4825, %v4820, %v4822
        %v4828 = vsel %vm4825, %v4822, %v4824
        %v4830 = vsel %vm205, %v4798, 0
        %v4833 = vsel %vm209, %v4826, 0
        %v4836 = vsel %vm209, %v4827, 0
        %v4839 = vsel %vm209, %v4828, 0
        %4841 = vmatprep.subr.bf16.mxu0 %v4836
        %4842 = vmatpush1.bf16.msra.mxu0 %v4833
        %4843 = vmatprep.subr.bf16.mxu0 0
        %4844 = vmatpush1.bf16.msra.mxu0 0
        %4845 = vmatprep.subr.bf16.mxu0 0
        %4846 = vmatpush1.bf16.msra.mxu0 0
        %4847 = vmatprep.subr.bf16.mxu0 0
        %4848 = vmatpush1.bf16.msra.mxu0 0
        %4849 = vmatprep.subr.bf16.mxu0 0
        %4850 = vmatpush1.bf16.msra.mxu0 0
        %4851 = vmatprep.subr.bf16.mxu0 0
        %4852 = vmatpush1.bf16.msra.mxu0 0
        %4853 = vmatprep.subr.bf16.mxu0 0
        %4854 = vmatpush1.bf16.msra.mxu0 0
        %4855 = vmatprep.subr.bf16.mxu0 0
        %4856 = vmatpush1.bf16.msra.mxu0 0
        %4857 = vmatprep.subr.bf16.mxu0 0
        %4858 = vmatpush1.bf16.msra.mxu0 0
        %4859 = vmatprep.subr.bf16.mxu0 0
        %4860 = vmatpush1.bf16.msra.mxu0 0
        %4861 = vmatprep.subr.bf16.mxu0 0
        %4862 = vmatpush1.bf16.msra.mxu0 0
        %4863 = vmatprep.subr.bf16.mxu0 0
        %4864 = vmatpush1.bf16.msra.mxu0 0
        %4865 = vmatprep.subr.bf16.mxu0 0
        %4866 = vmatpush1.bf16.msra.mxu0 0
        %4867 = vmatprep.subr.bf16.mxu0 0
        %4868 = vmatpush1.bf16.msra.mxu0 0
        %4869 = vmatprep.subr.bf16.mxu0 0
        %4870 = vmatpush1.bf16.msra.mxu0 0
        %4871 = vmatprep.subr.bf16.mxu0 0
        %4872 = vmatpush1.bf16.msra.mxu0 0
        %4873 = vmatprep.mubr.bf16.mxu0 0
        %4874 = vmatmul.mubr.bf16.gmra.mrb[0].mxu0 %v4830
        %v4875 = vpop.f32.mrb[0].mxu0
        %v4876 = vadd.f32 0.0, %v4875
        %v4877 = vpop.f32.mrb[0].mxu0
        %v4878 = vadd.f32 0.0, %v4877
        %v4879 = vpop.f32.mrb[0].mxu0
        %v4880 = vpop.f32.mrb[0].mxu0
        %4881 = vdwg.mxu0
        %4882 = vmatprep.subr.bf16.mxu0 0
        %4883 = vmatpush1.bf16.msra.mxu0 %v4839
        %4884 = vmatprep.subr.bf16.mxu0 0
        %4885 = vmatpush1.bf16.msra.mxu0 0
        %4886 = vmatprep.subr.bf16.mxu0 0
        %4887 = vmatpush1.bf16.msra.mxu0 0
        %4888 = vmatprep.subr.bf16.mxu0 0
        %4889 = vmatpush1.bf16.msra.mxu0 0
        %4890 = vmatprep.subr.bf16.mxu0 0
        %4891 = vmatpush1.bf16.msra.mxu0 0
        %4892 = vmatprep.subr.bf16.mxu0 0
        %4893 = vmatpush1.bf16.msra.mxu0 0
        %4894 = vmatprep.subr.bf16.mxu0 0
        %4895 = vmatpush1.bf16.msra.mxu0 0
        %4896 = vmatprep.subr.bf16.mxu0 0
        %4897 = vmatpush1.bf16.msra.mxu0 0
        %4898 = vmatprep.subr.bf16.mxu0 0
        %4899 = vmatpush1.bf16.msra.mxu0 0
        %4900 = vmatprep.subr.bf16.mxu0 0
        %4901 = vmatpush1.bf16.msra.mxu0 0
        %4902 = vmatprep.subr.bf16.mxu0 0
        %4903 = vmatpush1.bf16.msra.mxu0 0
        %4904 = vmatprep.subr.bf16.mxu0 0
        %4905 = vmatpush1.bf16.msra.mxu0 0
        %4906 = vmatprep.subr.bf16.mxu0 0
        %4907 = vmatpush1.bf16.msra.mxu0 0
        %4908 = vmatprep.subr.bf16.mxu0 0
        %4909 = vmatpush1.bf16.msra.mxu0 0
        %4910 = vmatprep.subr.bf16.mxu0 0
        %4911 = vmatpush1.bf16.msra.mxu0 0
        %4912 = vmatprep.subr.bf16.mxu0 0
        %4913 = vmatpush1.bf16.msra.mxu0 0
        %4914 = vmatprep.mubr.bf16.mxu0 0
        %4915 = vmatmul.mubr.bf16.gmra.mrb[0].mxu0 %v4830
        %v4916 = vpop.f32.mrb[0].mxu0
        %v4917 = vadd.f32 0.0, %v4916
        %v4918 = vpop.f32.mrb[0].mxu0
        %v4919 = vpop.f32.mrb[0].mxu0
        %v4920 = vpop.f32.mrb[0].mxu0
        %4921 = vdwg.mxu0
        %v4922 = vadd.f32 %v4793, %v4876
        %v4923 = vadd.f32 %v4794, %v4878
        %v4924 = vadd.f32 %v4795, %v4917
        %v4925 = vld [vmem:[%s168] sm:$0xff]
        %s4926 = scalar_lea.vmem %s1, 148
        %v4927 = vld [vmem:[%s4926] sm:$0xf]
        %v4929 = vcombine.high %v4925, %v4925
        %v4931 = vunpack.c.l.s4 1983009808
        %v4932 = vunpack.c.0.s8 %v4931
        %v4933 = vlaneseq
        %v4934 = vshrl.u32 %v4933, 7
        %v4935 = vsub.s32 %v4932, %v4934
        %v4936 = vrot.slane %v4925, %v4935
        %v4938 = vunpack.c.l.s4 1983009808
        %v4939 = vunpack.c.0.s8 %v4938
        %v4940 = vlaneseq
        %v4941 = vshrl.u32 %v4940, 7
        %v4942 = vsub.s32 %v4939, %v4941
        %v4943 = vrot.slane %v4929, %v4942
        %v4944 = vcombine.high %v4936, %v4936
        %v4945 = vcombine.high %v4943, %v4943
        %4946 = vrot.lane.b32.xlu0 %v4936, 16
        %v4947 = vpop.permute.xlu0 %4946
        %4948 = vrot.lane.b32.xlu0 %v4944, 16
        %v4949 = vpop.permute.xlu0 %4948
        %4950 = vrot.lane.b32.xlu0 %v4943, 16
        %v4951 = vpop.permute.xlu0 %4950
        %4952 = vrot.lane.b32.xlu0 %v4945, 16
        %v4953 = vpop.permute.xlu0 %4952
        %vm4954 = vcmask 130048
        %v4955 = vsel %vm4954, %v4947, %v4949
        %v4956 = vsel %vm4954, %v4949, %v4951
        %v4957 = vsel %vm4954, %v4951, %v4953
        %v4959 = vsel %vm205, %v4927, 0
        %v4962 = vsel %vm209, %v4955, 0
        %v4965 = vsel %vm209, %v4956, 0
        %v4968 = vsel %vm209, %v4957, 0
        %4970 = vmatprep.subr.bf16.mxu0 %v4965
        %4971 = vmatpush1.bf16.msra.mxu0 %v4962
        %4972 = vmatprep.subr.bf16.mxu0 0
        %4973 = vmatpush1.bf16.msra.mxu0 0
        %4974 = vmatprep.subr.bf16.mxu0 0
        %4975 = vmatpush1.bf16.msra.mxu0 0
        %4976 = vmatprep.subr.bf16.mxu0 0
        %4977 = vmatpush1.bf16.msra.mxu0 0
        %4978 = vmatprep.subr.bf16.mxu0 0
        %4979 = vmatpush1.bf16.msra.mxu0 0
        %4980 = vmatprep.subr.bf16.mxu0 0
        %4981 = vmatpush1.bf16.msra.mxu0 0
        %4982 = vmatprep.subr.bf16.mxu0 0
        %4983 = vmatpush1.bf16.msra.mxu0 0
        %4984 = vmatprep.subr.bf16.mxu0 0
        %4985 = vmatpush1.bf16.msra.mxu0 0
        %4986 = vmatprep.subr.bf16.mxu0 0
        %4987 = vmatpush1.bf16.msra.mxu0 0
        %4988 = vmatprep.subr.bf16.mxu0 0
        %4989 = vmatpush1.bf16.msra.mxu0 0
        %4990 = vmatprep.subr.bf16.mxu0 0
        %4991 = vmatpush1.bf16.msra.mxu0 0
        %4992 = vmatprep.subr.bf16.mxu0 0
        %4993 = vmatpush1.bf16.msra.mxu0 0
        %4994 = vmatprep.subr.bf16.mxu0 0
        %4995 = vmatpush1.bf16.msra.mxu0 0
        %4996 = vmatprep.subr.bf16.mxu0 0
        %4997 = vmatpush1.bf16.msra.mxu0 0
        %4998 = vmatprep.subr.bf16.mxu0 0
        %4999 = vmatpush1.bf16.msra.mxu0 0
        %5000 = vmatprep.subr.bf16.mxu0 0
        %5001 = vmatpush1.bf16.msra.mxu0 0
        %5002 = vmatprep.mubr.bf16.mxu0 0
        %5003 = vmatmul.mubr.bf16.gmra.mrb[0].mxu0 %v4959
        %v5004 = vpop.f32.mrb[0].mxu0
        %v5005 = vadd.f32 0.0, %v5004
        %v5006 = vpop.f32.mrb[0].mxu0
        %v5007 = vadd.f32 0.0, %v5006
        %v5008 = vpop.f32.mrb[0].mxu0
        %v5009 = vpop.f32.mrb[0].mxu0
        %5010 = vdwg.mxu0
        %5011 = vmatprep.subr.bf16.mxu0 0
        %5012 = vmatpush1.bf16.msra.mxu0 %v4968
        %5013 = vmatprep.subr.bf16.mxu0 0
        %5014 = vmatpush1.bf16.msra.mxu0 0
        %5015 = vmatprep.subr.bf16.mxu0 0
        %5016 = vmatpush1.bf16.msra.mxu0 0
        %5017 = vmatprep.subr.bf16.mxu0 0
        %5018 = vmatpush1.bf16.msra.mxu0 0
        %5019 = vmatprep.subr.bf16.mxu0 0
        %5020 = vmatpush1.bf16.msra.mxu0 0
        %5021 = vmatprep.subr.bf16.mxu0 0
        %5022 = vmatpush1.bf16.msra.mxu0 0
        %5023 = vmatprep.subr.bf16.mxu0 0
        %5024 = vmatpush1.bf16.msra.mxu0 0
        %5025 = vmatprep.subr.bf16.mxu0 0
        %5026 = vmatpush1.bf16.msra.mxu0 0
        %5027 = vmatprep.subr.bf16.mxu0 0
        %5028 = vmatpush1.bf16.msra.mxu0 0
        %5029 = vmatprep.subr.bf16.mxu0 0
        %5030 = vmatpush1.bf16.msra.mxu0 0
        %5031 = vmatprep.subr.bf16.mxu0 0
        %5032 = vmatpush1.bf16.msra.mxu0 0
        %5033 = vmatprep.subr.bf16.mxu0 0
        %5034 = vmatpush1.bf16.msra.mxu0 0
        %5035 = vmatprep.subr.bf16.mxu0 0
        %5036 = vmatpush1.bf16.msra.mxu0 0
        %5037 = vmatprep.subr.bf16.mxu0 0
        %5038 = vmatpush1.bf16.msra.mxu0 0
        %5039 = vmatprep.subr.bf16.mxu0 0
        %5040 = vmatpush1.bf16.msra.mxu0 0
        %5041 = vmatprep.subr.bf16.mxu0 0
        %5042 = vmatpush1.bf16.msra.mxu0 0
        %5043 = vmatprep.mubr.bf16.mxu0 0
        %5044 = vmatmul.mubr.bf16.gmra.mrb[0].mxu0 %v4959
        %v5045 = vpop.f32.mrb[0].mxu0
        %v5046 = vadd.f32 0.0, %v5045
        %v5047 = vpop.f32.mrb[0].mxu0
        %v5048 = vpop.f32.mrb[0].mxu0
        %v5049 = vpop.f32.mrb[0].mxu0
        %5050 = vdwg.mxu0
        %v5051 = vadd.f32 %v4922, %v5005
        %v5052 = vadd.f32 %v4923, %v5007
        %v5053 = vadd.f32 %v4924, %v5046
        %v5054 = vld [vmem:[%s168] sm:$0xff]
        %s5055 = scalar_lea.vmem %s1, 152
        %v5056 = vld [vmem:[%s5055] sm:$0xf]
        %v5058 = vcombine.high %v5054, %v5054
        %v5060 = vunpack.c.l.s4 1983009808
        %v5061 = vunpack.c.0.s8 %v5060
        %v5062 = vlaneseq
        %v5063 = vshrl.u32 %v5062, 7
        %v5064 = vsub.s32 %v5061, %v5063
        %v5065 = vrot.slane %v5054, %v5064
        %v5067 = vunpack.c.l.s4 1983009808
        %v5068 = vunpack.c.0.s8 %v5067
        %v5069 = vlaneseq
        %v5070 = vshrl.u32 %v5069, 7
        %v5071 = vsub.s32 %v5068, %v5070
        %v5072 = vrot.slane %v5058, %v5071
        %v5073 = vcombine.high %v5065, %v5065
        %v5074 = vcombine.high %v5072, %v5072
        %5075 = vrot.lane.b32.xlu0 %v5065, 15
        %v5076 = vpop.permute.xlu0 %5075
        %5077 = vrot.lane.b32.xlu0 %v5073, 15
        %v5078 = vpop.permute.xlu0 %5077
        %5079 = vrot.lane.b32.xlu0 %v5072, 15
        %v5080 = vpop.permute.xlu0 %5079
        %5081 = vrot.lane.b32.xlu0 %v5074, 15
        %v5082 = vpop.permute.xlu0 %5081
        %vm5083 = vcmask 121856
        %v5084 = vsel %vm5083, %v5076, %v5078
        %v5085 = vsel %vm5083, %v5078, %v5080
        %v5086 = vsel %vm5083, %v5080, %v5082
        %v5088 = vsel %vm205, %v5056, 0
        %v5091 = vsel %vm209, %v5084, 0
        %v5094 = vsel %vm209, %v5085, 0
        %v5097 = vsel %vm209, %v5086, 0
        %5099 = vmatprep.subr.bf16.mxu0 %v5094
        %5100 = vmatpush1.bf16.msra.mxu0 %v5091
        %5101 = vmatprep.subr.bf16.mxu0 0
        %5102 = vmatpush1.bf16.msra.mxu0 0
        %5103 = vmatprep.subr.bf16.mxu0 0
        %5104 = vmatpush1.bf16.msra.mxu0 0
        %5105 = vmatprep.subr.bf16.mxu0 0
        %5106 = vmatpush1.bf16.msra.mxu0 0
        %5107 = vmatprep.subr.bf16.mxu0 0
        %5108 = vmatpush1.bf16.msra.mxu0 0
        %5109 = vmatprep.subr.bf16.mxu0 0
        %5110 = vmatpush1.bf16.msra.mxu0 0
        %5111 = vmatprep.subr.bf16.mxu0 0
        %5112 = vmatpush1.bf16.msra.mxu0 0
        %5113 = vmatprep.subr.bf16.mxu0 0
        %5114 = vmatpush1.bf16.msra.mxu0 0
        %5115 = vmatprep.subr.bf16.mxu0 0
        %5116 = vmatpush1.bf16.msra.mxu0 0
        %5117 = vmatprep.subr.bf16.mxu0 0
        %5118 = vmatpush1.bf16.msra.mxu0 0
        %5119 = vmatprep.subr.bf16.mxu0 0
        %5120 = vmatpush1.bf16.msra.mxu0 0
        %5121 = vmatprep.subr.bf16.mxu0 0
        %5122 = vmatpush1.bf16.msra.mxu0 0
        %5123 = vmatprep.subr.bf16.mxu0 0
        %5124 = vmatpush1.bf16.msra.mxu0 0
        %5125 = vmatprep.subr.bf16.mxu0 0
        %5126 = vmatpush1.bf16.msra.mxu0 0
        %5127 = vmatprep.subr.bf16.mxu0 0
        %5128 = vmatpush1.bf16.msra.mxu0 0
        %5129 = vmatprep.subr.bf16.mxu0 0
        %5130 = vmatpush1.bf16.msra.mxu0 0
        %5131 = vmatprep.mubr.bf16.mxu0 0
        %5132 = vmatmul.mubr.bf16.gmra.mrb[0].mxu0 %v5088
        %v5133 = vpop.f32.mrb[0].mxu0
        %v5134 = vadd.f32 0.0, %v5133
        %v5135 = vpop.f32.mrb[0].mxu0
        %v5136 = vadd.f32 0.0, %v5135
        %v5137 = vpop.f32.mrb[0].mxu0
        %v5138 = vpop.f32.mrb[0].mxu0
        %5139 = vdwg.mxu0
        %5140 = vmatprep.subr.bf16.mxu0 0
        %5141 = vmatpush1.bf16.msra.mxu0 %v5097
        %5142 = vmatprep.subr.bf16.mxu0 0
        %5143 = vmatpush1.bf16.msra.mxu0 0
        %5144 = vmatprep.subr.bf16.mxu0 0
        %5145 = vmatpush1.bf16.msra.mxu0 0
        %5146 = vmatprep.subr.bf16.mxu0 0
        %5147 = vmatpush1.bf16.msra.mxu0 0
        %5148 = vmatprep.subr.bf16.mxu0 0
        %5149 = vmatpush1.bf16.msra.mxu0 0
        %5150 = vmatprep.subr.bf16.mxu0 0
        %5151 = vmatpush1.bf16.msra.mxu0 0
        %5152 = vmatprep.subr.bf16.mxu0 0
        %5153 = vmatpush1.bf16.msra.mxu0 0
        %5154 = vmatprep.subr.bf16.mxu0 0
        %5155 = vmatpush1.bf16.msra.mxu0 0
        %5156 = vmatprep.subr.bf16.mxu0 0
        %5157 = vmatpush1.bf16.msra.mxu0 0
        %5158 = vmatprep.subr.bf16.mxu0 0
        %5159 = vmatpush1.bf16.msra.mxu0 0
        %5160 = vmatprep.subr.bf16.mxu0 0
        %5161 = vmatpush1.bf16.msra.mxu0 0
        %5162 = vmatprep.subr.bf16.mxu0 0
        %5163 = vmatpush1.bf16.msra.mxu0 0
        %5164 = vmatprep.subr.bf16.mxu0 0
        %5165 = vmatpush1.bf16.msra.mxu0 0
        %5166 = vmatprep.subr.bf16.mxu0 0
        %5167 = vmatpush1.bf16.msra.mxu0 0
        %5168 = vmatprep.subr.bf16.mxu0 0
        %5169 = vmatpush1.bf16.msra.mxu0 0
        %5170 = vmatprep.subr.bf16.mxu0 0
        %5171 = vmatpush1.bf16.msra.mxu0 0
        %5172 = vmatprep.mubr.bf16.mxu0 0
        %5173 = vmatmul.mubr.bf16.gmra.mrb[0].mxu0 %v5088
        %v5174 = vpop.f32.mrb[0].mxu0
        %v5175 = vadd.f32 0.0, %v5174
        %v5176 = vpop.f32.mrb[0].mxu0
        %v5177 = vpop.f32.mrb[0].mxu0
        %v5178 = vpop.f32.mrb[0].mxu0
        %5179 = vdwg.mxu0
        %v5180 = vadd.f32 %v5051, %v5134
        %v5181 = vadd.f32 %v5052, %v5136
        %v5182 = vadd.f32 %v5053, %v5175
        %v5183 = vld [vmem:[%s168] sm:$0xff]
        %s5184 = scalar_lea.vmem %s1, 156
        %v5185 = vld [vmem:[%s5184] sm:$0xf]
        %v5187 = vcombine.high %v5183, %v5183
        %v5189 = vunpack.c.l.s4 1983009808
        %v5190 = vunpack.c.0.s8 %v5189
        %v5191 = vlaneseq
        %v5192 = vshrl.u32 %v5191, 7
        %v5193 = vsub.s32 %v5190, %v5192
        %v5194 = vrot.slane %v5183, %v5193
        %v5196 = vunpack.c.l.s4 1983009808
        %v5197 = vunpack.c.0.s8 %v5196
        %v5198 = vlaneseq
        %v5199 = vshrl.u32 %v5198, 7
        %v5200 = vsub.s32 %v5197, %v5199
        %v5201 = vrot.slane %v5187, %v5200
        %v5202 = vcombine.high %v5194, %v5194
        %v5203 = vcombine.high %v5201, %v5201
        %5204 = vrot.lane.b32.xlu0 %v5194, 14
        %v5205 = vpop.permute.xlu0 %5204
        %5206 = vrot.lane.b32.xlu0 %v5202, 14
        %v5207 = vpop.permute.xlu0 %5206
        %5208 = vrot.lane.b32.xlu0 %v5201, 14
        %v5209 = vpop.permute.xlu0 %5208
        %5210 = vrot.lane.b32.xlu0 %v5203, 14
        %v5211 = vpop.permute.xlu0 %5210
        %vm5212 = vcmask 113664
        %v5213 = vsel %vm5212, %v5205, %v5207
        %v5214 = vsel %vm5212, %v5207, %v5209
        %v5215 = vsel %vm5212, %v5209, %v5211
        %v5217 = vsel %vm205, %v5185, 0
        %v5220 = vsel %vm209, %v5213, 0
        %v5223 = vsel %vm209, %v5214, 0
        %v5226 = vsel %vm209, %v5215, 0
        %5228 = vmatprep.subr.bf16.mxu0 %v5223
        %5229 = vmatpush1.bf16.msra.mxu0 %v5220
        %5230 = vmatprep.subr.bf16.mxu0 0
        %5231 = vmatpush1.bf16.msra.mxu0 0
        %5232 = vmatprep.subr.bf16.mxu0 0
        %5233 = vmatpush1.bf16.msra.mxu0 0
        %5234 = vmatprep.subr.bf16.mxu0 0
        %5235 = vmatpush1.bf16.msra.mxu0 0
        %5236 = vmatprep.subr.bf16.mxu0 0
        %5237 = vmatpush1.bf16.msra.mxu0 0
        %5238 = vmatprep.subr.bf16.mxu0 0
        %5239 = vmatpush1.bf16.msra.mxu0 0
        %5240 = vmatprep.subr.bf16.mxu0 0
        %5241 = vmatpush1.bf16.msra.mxu0 0
        %5242 = vmatprep.subr.bf16.mxu0 0
        %5243 = vmatpush1.bf16.msra.mxu0 0
        %5244 = vmatprep.subr.bf16.mxu0 0
        %5245 = vmatpush1.bf16.msra.mxu0 0
        %5246 = vmatprep.subr.bf16.mxu0 0
        %5247 = vmatpush1.bf16.msra.mxu0 0
        %5248 = vmatprep.subr.bf16.mxu0 0
        %5249 = vmatpush1.bf16.msra.mxu0 0
        %5250 = vmatprep.subr.bf16.mxu0 0
        %5251 = vmatpush1.bf16.msra.mxu0 0
        %5252 = vmatprep.subr.bf16.mxu0 0
        %5253 = vmatpush1.bf16.msra.mxu0 0
        %5254 = vmatprep.subr.bf16.mxu0 0
        %5255 = vmatpush1.bf16.msra.mxu0 0
        %5256 = vmatprep.subr.bf16.mxu0 0
        %5257 = vmatpush1.bf16.msra.mxu0 0
        %5258 = vmatprep.subr.bf16.mxu0 0
        %5259 = vmatpush1.bf16.msra.mxu0 0
        %5260 = vmatprep.mubr.bf16.mxu0 0
        %5261 = vmatmul.mubr.bf16.gmra.mrb[0].mxu0 %v5217
        %v5262 = vpop.f32.mrb[0].mxu0
        %v5263 = vadd.f32 0.0, %v5262
        %v5264 = vpop.f32.mrb[0].mxu0
        %v5265 = vadd.f32 0.0, %v5264
        %v5266 = vpop.f32.mrb[0].mxu0
        %v5267 = vpop.f32.mrb[0].mxu0
        %5268 = vdwg.mxu0
        %5269 = vmatprep.subr.bf16.mxu0 0
        %5270 = vmatpush1.bf16.msra.mxu0 %v5226
        %5271 = vmatprep.subr.bf16.mxu0 0
        %5272 = vmatpush1.bf16.msra.mxu0 0
        %5273 = vmatprep.subr.bf16.mxu0 0
        %5274 = vmatpush1.bf16.msra.mxu0 0
        %5275 = vmatprep.subr.bf16.mxu0 0
        %5276 = vmatpush1.bf16.msra.mxu0 0
        %5277 = vmatprep.subr.bf16.mxu0 0
        %5278 = vmatpush1.bf16.msra.mxu0 0
        %5279 = vmatprep.subr.bf16.mxu0 0
        %5280 = vmatpush1.bf16.msra.mxu0 0
        %5281 = vmatprep.subr.bf16.mxu0 0
        %5282 = vmatpush1.bf16.msra.mxu0 0
        %5283 = vmatprep.subr.bf16.mxu0 0
        %5284 = vmatpush1.bf16.msra.mxu0 0
        %5285 = vmatprep.subr.bf16.mxu0 0
        %5286 = vmatpush1.bf16.msra.mxu0 0
        %5287 = vmatprep.subr.bf16.mxu0 0
        %5288 = vmatpush1.bf16.msra.mxu0 0
        %5289 = vmatprep.subr.bf16.mxu0 0
        %5290 = vmatpush1.bf16.msra.mxu0 0
        %5291 = vmatprep.subr.bf16.mxu0 0
        %5292 = vmatpush1.bf16.msra.mxu0 0
        %5293 = vmatprep.subr.bf16.mxu0 0
        %5294 = vmatpush1.bf16.msra.mxu0 0
        %5295 = vmatprep.subr.bf16.mxu0 0
        %5296 = vmatpush1.bf16.msra.mxu0 0
        %5297 = vmatprep.subr.bf16.mxu0 0
        %5298 = vmatpush1.bf16.msra.mxu0 0
        %5299 = vmatprep.subr.bf16.mxu0 0
        %5300 = vmatpush1.bf16.msra.mxu0 0
        %5301 = vmatprep.mubr.bf16.mxu0 0
        %5302 = vmatmul.mubr.bf16.gmra.mrb[0].mxu0 %v5217
        %v5303 = vpop.f32.mrb[0].mxu0
        %v5304 = vadd.f32 0.0, %v5303
        %v5305 = vpop.f32.mrb[0].mxu0
        %v5306 = vpop.f32.mrb[0].mxu0
        %v5307 = vpop.f32.mrb[0].mxu0
        %5308 = vdwg.mxu0
        %v5309 = vadd.f32 %v5180, %v5263
        %v5310 = vadd.f32 %v5181, %v5265
        %v5311 = vadd.f32 %v5182, %v5304
        %v5312 = vld [vmem:[%s168] sm:$0xff]
        %s5313 = scalar_lea.vmem %s1, 160
        %v5314 = vld [vmem:[%s5313] sm:$0xf]
        %v5316 = vcombine.high %v5312, %v5312
        %v5318 = vunpack.c.l.s4 1983009808
        %v5319 = vunpack.c.0.s8 %v5318
        %v5320 = vlaneseq
        %v5321 = vshrl.u32 %v5320, 7
        %v5322 = vsub.s32 %v5319, %v5321
        %v5323 = vrot.slane %v5312, %v5322
        %v5325 = vunpack.c.l.s4 1983009808
        %v5326 = vunpack.c.0.s8 %v5325
        %v5327 = vlaneseq
        %v5328 = vshrl.u32 %v5327, 7
        %v5329 = vsub.s32 %v5326, %v5328
        %v5330 = vrot.slane %v5316, %v5329
        %v5331 = vcombine.high %v5323, %v5323
        %v5332 = vcombine.high %v5330, %v5330
        %5333 = vrot.lane.b32.xlu0 %v5323, 13
        %v5334 = vpop.permute.xlu0 %5333
        %5335 = vrot.lane.b32.xlu0 %v5331, 13
        %v5336 = vpop.permute.xlu0 %5335
        %5337 = vrot.lane.b32.xlu0 %v5330, 13
        %v5338 = vpop.permute.xlu0 %5337
        %5339 = vrot.lane.b32.xlu0 %v5332, 13
        %v5340 = vpop.permute.xlu0 %5339
        %vm5341 = vcmask 105472
        %v5342 = vsel %vm5341, %v5334, %v5336
        %v5343 = vsel %vm5341, %v5336, %v5338
        %v5344 = vsel %vm5341, %v5338, %v5340
        %v5346 = vsel %vm205, %v5314, 0
        %v5349 = vsel %vm209, %v5342, 0
        %v5352 = vsel %vm209, %v5343, 0
        %v5355 = vsel %vm209, %v5344, 0
        %5357 = vmatprep.subr.bf16.mxu0 %v5352
        %5358 = vmatpush1.bf16.msra.mxu0 %v5349
        %5359 = vmatprep.subr.bf16.mxu0 0
        %5360 = vmatpush1.bf16.msra.mxu0 0
        %5361 = vmatprep.subr.bf16.mxu0 0
        %5362 = vmatpush1.bf16.msra.mxu0 0
        %5363 = vmatprep.subr.bf16.mxu0 0
        %5364 = vmatpush1.bf16.msra.mxu0 0
        %5365 = vmatprep.subr.bf16.mxu0 0
        %5366 = vmatpush1.bf16.msra.mxu0 0
        %5367 = vmatprep.subr.bf16.mxu0 0
        %5368 = vmatpush1.bf16.msra.mxu0 0
        %5369 = vmatprep.subr.bf16.mxu0 0
        %5370 = vmatpush1.bf16.msra.mxu0 0
        %5371 = vmatprep.subr.bf16.mxu0 0
        %5372 = vmatpush1.bf16.msra.mxu0 0
        %5373 = vmatprep.subr.bf16.mxu0 0
        %5374 = vmatpush1.bf16.msra.mxu0 0
        %5375 = vmatprep.subr.bf16.mxu0 0
        %5376 = vmatpush1.bf16.msra.mxu0 0
        %5377 = vmatprep.subr.bf16.mxu0 0
        %5378 = vmatpush1.bf16.msra.mxu0 0
        %5379 = vmatprep.subr.bf16.mxu0 0
        %5380 = vmatpush1.bf16.msra.mxu0 0
        %5381 = vmatprep.subr.bf16.mxu0 0
        %5382 = vmatpush1.bf16.msra.mxu0 0
        %5383 = vmatprep.subr.bf16.mxu0 0
        %5384 = vmatpush1.bf16.msra.mxu0 0
        %5385 = vmatprep.subr.bf16.mxu0 0
        %5386 = vmatpush1.bf16.msra.mxu0 0
        %5387 = vmatprep.subr.bf16.mxu0 0
        %5388 = vmatpush1.bf16.msra.mxu0 0
        %5389 = vmatprep.mubr.bf16.mxu0 0
        %5390 = vmatmul.mubr.bf16.gmra.mrb[0].mxu0 %v5346
        %v5391 = vpop.f32.mrb[0].mxu0
        %v5392 = vadd.f32 0.0, %v5391
        %v5393 = vpop.f32.mrb[0].mxu0
        %v5394 = vadd.f32 0.0, %v5393
        %v5395 = vpop.f32.mrb[0].mxu0
        %v5396 = vpop.f32.mrb[0].mxu0
        %5397 = vdwg.mxu0
        %5398 = vmatprep.subr.bf16.mxu0 0
        %5399 = vmatpush1.bf16.msra.mxu0 %v5355
        %5400 = vmatprep.subr.bf16.mxu0 0
        %5401 = vmatpush1.bf16.msra.mxu0 0
        %5402 = vmatprep.subr.bf16.mxu0 0
        %5403 = vmatpush1.bf16.msra.mxu0 0
        %5404 = vmatprep.subr.bf16.mxu0 0
        %5405 = vmatpush1.bf16.msra.mxu0 0
        %5406 = vmatprep.subr.bf16.mxu0 0
        %5407 = vmatpush1.bf16.msra.mxu0 0
        %5408 = vmatprep.subr.bf16.mxu0 0
        %5409 = vmatpush1.bf16.msra.mxu0 0
        %5410 = vmatprep.subr.bf16.mxu0 0
        %5411 = vmatpush1.bf16.msra.mxu0 0
        %5412 = vmatprep.subr.bf16.mxu0 0
        %5413 = vmatpush1.bf16.msra.mxu0 0
        %5414 = vmatprep.subr.bf16.mxu0 0
        %5415 = vmatpush1.bf16.msra.mxu0 0
        %5416 = vmatprep.subr.bf16.mxu0 0
        %5417 = vmatpush1.bf16.msra.mxu0 0
        %5418 = vmatprep.subr.bf16.mxu0 0
        %5419 = vmatpush1.bf16.msra.mxu0 0
        %5420 = vmatprep.subr.bf16.mxu0 0
        %5421 = vmatpush1.bf16.msra.mxu0 0
        %5422 = vmatprep.subr.bf16.mxu0 0
        %5423 = vmatpush1.bf16.msra.mxu0 0
        %5424 = vmatprep.subr.bf16.mxu0 0
        %5425 = vmatpush1.bf16.msra.mxu0 0
        %5426 = vmatprep.subr.bf16.mxu0 0
        %5427 = vmatpush1.bf16.msra.mxu0 0
        %5428 = vmatprep.subr.bf16.mxu0 0
        %5429 = vmatpush1.bf16.msra.mxu0 0
        %5430 = vmatprep.mubr.bf16.mxu0 0
        %5431 = vmatmul.mubr.bf16.gmra.mrb[0].mxu0 %v5346
        %v5432 = vpop.f32.mrb[0].mxu0
        %v5433 = vadd.f32 0.0, %v5432
        %v5434 = vpop.f32.mrb[0].mxu0
        %v5435 = vpop.f32.mrb[0].mxu0
        %v5436 = vpop.f32.mrb[0].mxu0
        %5437 = vdwg.mxu0
        %v5438 = vadd.f32 %v5309, %v5392
        %v5439 = vadd.f32 %v5310, %v5394
        %v5440 = vadd.f32 %v5311, %v5433
        %v5441 = vld [vmem:[%s168] sm:$0xff]
        %s5442 = scalar_lea.vmem %s1, 164
        %v5443 = vld [vmem:[%s5442] sm:$0xf]
        %v5445 = vcombine.high %v5441, %v5441
        %v5447 = vunpack.c.l.s4 1983009808
        %v5448 = vunpack.c.0.s8 %v5447
        %v5449 = vlaneseq
        %v5450 = vshrl.u32 %v5449, 7
        %v5451 = vsub.s32 %v5448, %v5450
        %v5452 = vrot.slane %v5441, %v5451
        %v5454 = vunpack.c.l.s4 1983009808
        %v5455 = vunpack.c.0.s8 %v5454
        %v5456 = vlaneseq
        %v5457 = vshrl.u32 %v5456, 7
        %v5458 = vsub.s32 %v5455, %v5457
        %v5459 = vrot.slane %v5445, %v5458
        %v5460 = vcombine.high %v5452, %v5452
        %v5461 = vcombine.high %v5459, %v5459
        %5462 = vrot.lane.b32.xlu0 %v5452, 12
        %v5463 = vpop.permute.xlu0 %5462
        %5464 = vrot.lane.b32.xlu0 %v5460, 12
        %v5465 = vpop.permute.xlu0 %5464
        %5466 = vrot.lane.b32.xlu0 %v5459, 12
        %v5467 = vpop.permute.xlu0 %5466
        %5468 = vrot.lane.b32.xlu0 %v5461, 12
        %v5469 = vpop.permute.xlu0 %5468
        %vm5470 = vcmask 97280
        %v5471 = vsel %vm5470, %v5463, %v5465
        %v5472 = vsel %vm5470, %v5465, %v5467
        %v5473 = vsel %vm5470, %v5467, %v5469
        %v5475 = vsel %vm205, %v5443, 0
        %v5478 = vsel %vm209, %v5471, 0
        %v5481 = vsel %vm209, %v5472, 0
        %v5484 = vsel %vm209, %v5473, 0
        %5486 = vmatprep.subr.bf16.mxu0 %v5481
        %5487 = vmatpush1.bf16.msra.mxu0 %v5478
        %5488 = vmatprep.subr.bf16.mxu0 0
        %5489 = vmatpush1.bf16.msra.mxu0 0
        %5490 = vmatprep.subr.bf16.mxu0 0
        %5491 = vmatpush1.bf16.msra.mxu0 0
        %5492 = vmatprep.subr.bf16.mxu0 0
        %5493 = vmatpush1.bf16.msra.mxu0 0
        %5494 = vmatprep.subr.bf16.mxu0 0
        %5495 = vmatpush1.bf16.msra.mxu0 0
        %5496 = vmatprep.subr.bf16.mxu0 0
        %5497 = vmatpush1.bf16.msra.mxu0 0
        %5498 = vmatprep.subr.bf16.mxu0 0
        %5499 = vmatpush1.bf16.msra.mxu0 0
        %5500 = vmatprep.subr.bf16.mxu0 0
        %5501 = vmatpush1.bf16.msra.mxu0 0
        %5502 = vmatprep.subr.bf16.mxu0 0
        %5503 = vmatpush1.bf16.msra.mxu0 0
        %5504 = vmatprep.subr.bf16.mxu0 0
        %5505 = vmatpush1.bf16.msra.mxu0 0
        %5506 = vmatprep.subr.bf16.mxu0 0
        %5507 = vmatpush1.bf16.msra.mxu0 0
        %5508 = vmatprep.subr.bf16.mxu0 0
        %5509 = vmatpush1.bf16.msra.mxu0 0
        %5510 = vmatprep.subr.bf16.mxu0 0
        %5511 = vmatpush1.bf16.msra.mxu0 0
        %5512 = vmatprep.subr.bf16.mxu0 0
        %5513 = vmatpush1.bf16.msra.mxu0 0
        %5514 = vmatprep.subr.bf16.mxu0 0
        %5515 = vmatpush1.bf16.msra.mxu0 0
        %5516 = vmatprep.subr.bf16.mxu0 0
        %5517 = vmatpush1.bf16.msra.mxu0 0
        %5518 = vmatprep.mubr.bf16.mxu0 0
        %5519 = vmatmul.mubr.bf16.gmra.mrb[0].mxu0 %v5475
        %v5520 = vpop.f32.mrb[0].mxu0
        %v5521 = vadd.f32 0.0, %v5520
        %v5522 = vpop.f32.mrb[0].mxu0
        %v5523 = vadd.f32 0.0, %v5522
        %v5524 = vpop.f32.mrb[0].mxu0
        %v5525 = vpop.f32.mrb[0].mxu0
        %5526 = vdwg.mxu0
        %5527 = vmatprep.subr.bf16.mxu0 0
        %5528 = vmatpush1.bf16.msra.mxu0 %v5484
        %5529 = vmatprep.subr.bf16.mxu0 0
        %5530 = vmatpush1.bf16.msra.mxu0 0
        %5531 = vmatprep.subr.bf16.mxu0 0
        %5532 = vmatpush1.bf16.msra.mxu0 0
        %5533 = vmatprep.subr.bf16.mxu0 0
        %5534 = vmatpush1.bf16.msra.mxu0 0
        %5535 = vmatprep.subr.bf16.mxu0 0
        %5536 = vmatpush1.bf16.msra.mxu0 0
        %5537 = vmatprep.subr.bf16.mxu0 0
        %5538 = vmatpush1.bf16.msra.mxu0 0
        %5539 = vmatprep.subr.bf16.mxu0 0
        %5540 = vmatpush1.bf16.msra.mxu0 0
        %5541 = vmatprep.subr.bf16.mxu0 0
        %5542 = vmatpush1.bf16.msra.mxu0 0
        %5543 = vmatprep.subr.bf16.mxu0 0
        %5544 = vmatpush1.bf16.msra.mxu0 0
        %5545 = vmatprep.subr.bf16.mxu0 0
        %5546 = vmatpush1.bf16.msra.mxu0 0
        %5547 = vmatprep.subr.bf16.mxu0 0
        %5548 = vmatpush1.bf16.msra.mxu0 0
        %5549 = vmatprep.subr.bf16.mxu0 0
        %5550 = vmatpush1.bf16.msra.mxu0 0
        %5551 = vmatprep.subr.bf16.mxu0 0
        %5552 = vmatpush1.bf16.msra.mxu0 0
        %5553 = vmatprep.subr.bf16.mxu0 0
        %5554 = vmatpush1.bf16.msra.mxu0 0
        %5555 = vmatprep.subr.bf16.mxu0 0
        %5556 = vmatpush1.bf16.msra.mxu0 0
        %5557 = vmatprep.subr.bf16.mxu0 0
        %5558 = vmatpush1.bf16.msra.mxu0 0
        %5559 = vmatprep.mubr.bf16.mxu0 0
        %5560 = vmatmul.mubr.bf16.gmra.mrb[0].mxu0 %v5475
        %v5561 = vpop.f32.mrb[0].mxu0
        %v5562 = vadd.f32 0.0, %v5561
        %v5563 = vpop.f32.mrb[0].mxu0
        %v5564 = vpop.f32.mrb[0].mxu0
        %v5565 = vpop.f32.mrb[0].mxu0
        %5566 = vdwg.mxu0
        %v5567 = vadd.f32 %v5438, %v5521
        %v5568 = vadd.f32 %v5439, %v5523
        %v5569 = vadd.f32 %v5440, %v5562
        %v5570 = vld [vmem:[%s168 + $0x2] sm:$0xff]
        %s5571 = scalar_lea.vmem %s1, 168
        %v5572 = vld [vmem:[%s5571] sm:$0xf]
        %v5574 = vcombine.high %v5570, %v5570
        %v5576 = vunpack.c.l.s4 1983009808
        %v5577 = vunpack.c.0.s8 %v5576
        %v5578 = vlaneseq
        %v5579 = vshrl.u32 %v5578, 7
        %v5580 = vsub.s32 %v5577, %v5579
        %v5581 = vrot.slane %v5570, %v5580
        %v5583 = vunpack.c.l.s4 1983009808
        %v5584 = vunpack.c.0.s8 %v5583
        %v5585 = vlaneseq
        %v5586 = vshrl.u32 %v5585, 7
        %v5587 = vsub.s32 %v5584, %v5586
        %v5588 = vrot.slane %v5574, %v5587
        %v5589 = vcombine.high %v5581, %v5581
        %v5590 = vcombine.high %v5588, %v5588
        %5591 = vrot.lane.b32.xlu0 %v5581, 124
        %v5592 = vpop.permute.xlu0 %5591
        %5593 = vrot.lane.b32.xlu0 %v5589, 124
        %v5594 = vpop.permute.xlu0 %5593
        %5595 = vrot.lane.b32.xlu0 %v5588, 124
        %v5596 = vpop.permute.xlu0 %5595
        %5597 = vrot.lane.b32.xlu0 %v5590, 124
        %v5598 = vpop.permute.xlu0 %5597
        %v5599 = vsel %vm697, %v5592, %v5594
        %v5600 = vsel %vm697, %v5594, %v5596
        %v5601 = vsel %vm697, %v5596, %v5598
        %v5603 = vsel %vm205, %v5572, 0
        %v5606 = vsel %vm209, %v5599, 0
        %v5609 = vsel %vm209, %v5600, 0
        %v5612 = vsel %vm209, %v5601, 0
        %5614 = vmatprep.subr.bf16.mxu0 %v5609
        %5615 = vmatpush1.bf16.msra.mxu0 %v5606
        %5616 = vmatprep.subr.bf16.mxu0 0
        %5617 = vmatpush1.bf16.msra.mxu0 0
        %5618 = vmatprep.subr.bf16.mxu0 0
        %5619 = vmatpush1.bf16.msra.mxu0 0
        %5620 = vmatprep.subr.bf16.mxu0 0
        %5621 = vmatpush1.bf16.msra.mxu0 0
        %5622 = vmatprep.subr.bf16.mxu0 0
        %5623 = vmatpush1.bf16.msra.mxu0 0
        %5624 = vmatprep.subr.bf16.mxu0 0
        %5625 = vmatpush1.bf16.msra.mxu0 0
        %5626 = vmatprep.subr.bf16.mxu0 0
        %5627 = vmatpush1.bf16.msra.mxu0 0
        %5628 = vmatprep.subr.bf16.mxu0 0
        %5629 = vmatpush1.bf16.msra.mxu0 0
        %5630 = vmatprep.subr.bf16.mxu0 0
        %5631 = vmatpush1.bf16.msra.mxu0 0
        %5632 = vmatprep.subr.bf16.mxu0 0
        %5633 = vmatpush1.bf16.msra.mxu0 0
        %5634 = vmatprep.subr.bf16.mxu0 0
        %5635 = vmatpush1.bf16.msra.mxu0 0
        %5636 = vmatprep.subr.bf16.mxu0 0
        %5637 = vmatpush1.bf16.msra.mxu0 0
        %5638 = vmatprep.subr.bf16.mxu0 0
        %5639 = vmatpush1.bf16.msra.mxu0 0
        %5640 = vmatprep.subr.bf16.mxu0 0
        %5641 = vmatpush1.bf16.msra.mxu0 0
        %5642 = vmatprep.subr.bf16.mxu0 0
        %5643 = vmatpush1.bf16.msra.mxu0 0
        %5644 = vmatprep.subr.bf16.mxu0 0
        %5645 = vmatpush1.bf16.msra.mxu0 0
        %5646 = vmatprep.mubr.bf16.mxu0 0
        %5647 = vmatmul.mubr.bf16.gmra.mrb[0].mxu0 %v5603
        %v5648 = vpop.f32.mrb[0].mxu0
        %v5649 = vadd.f32 0.0, %v5648
        %v5650 = vpop.f32.mrb[0].mxu0
        %v5651 = vadd.f32 0.0, %v5650
        %v5652 = vpop.f32.mrb[0].mxu0
        %v5653 = vpop.f32.mrb[0].mxu0
        %5654 = vdwg.mxu0
        %5655 = vmatprep.subr.bf16.mxu0 0
        %5656 = vmatpush1.bf16.msra.mxu0 %v5612
        %5657 = vmatprep.subr.bf16.mxu0 0
        %5658 = vmatpush1.bf16.msra.mxu0 0
        %5659 = vmatprep.subr.bf16.mxu0 0
        %5660 = vmatpush1.bf16.msra.mxu0 0
        %5661 = vmatprep.subr.bf16.mxu0 0
        %5662 = vmatpush1.bf16.msra.mxu0 0
        %5663 = vmatprep.subr.bf16.mxu0 0
        %5664 = vmatpush1.bf16.msra.mxu0 0
        %5665 = vmatprep.subr.bf16.mxu0 0
        %5666 = vmatpush1.bf16.msra.mxu0 0
        %5667 = vmatprep.subr.bf16.mxu0 0
        %5668 = vmatpush1.bf16.msra.mxu0 0
        %5669 = vmatprep.subr.bf16.mxu0 0
        %5670 = vmatpush1.bf16.msra.mxu0 0
        %5671 = vmatprep.subr.bf16.mxu0 0
        %5672 = vmatpush1.bf16.msra.mxu0 0
        %5673 = vmatprep.subr.bf16.mxu0 0
        %5674 = vmatpush1.bf16.msra.mxu0 0
        %5675 = vmatprep.subr.bf16.mxu0 0
        %5676 = vmatpush1.bf16.msra.mxu0 0
        %5677 = vmatprep.subr.bf16.mxu0 0
        %5678 = vmatpush1.bf16.msra.mxu0 0
        %5679 = vmatprep.subr.bf16.mxu0 0
        %5680 = vmatpush1.bf16.msra.mxu0 0
        %5681 = vmatprep.subr.bf16.mxu0 0
        %5682 = vmatpush1.bf16.msra.mxu0 0
        %5683 = vmatprep.subr.bf16.mxu0 0
        %5684 = vmatpush1.bf16.msra.mxu0 0
        %5685 = vmatprep.subr.bf16.mxu0 0
        %5686 = vmatpush1.bf16.msra.mxu0 0
        %5687 = vmatprep.mubr.bf16.mxu0 0
        %5688 = vmatmul.mubr.bf16.gmra.mrb[0].mxu0 %v5603
        %v5689 = vpop.f32.mrb[0].mxu0
        %v5690 = vadd.f32 0.0, %v5689
        %v5691 = vpop.f32.mrb[0].mxu0
        %v5692 = vpop.f32.mrb[0].mxu0
        %v5693 = vpop.f32.mrb[0].mxu0
        %5694 = vdwg.mxu0
        %v5695 = vadd.f32 %v5567, %v5649
        %v5696 = vadd.f32 %v5568, %v5651
        %v5697 = vadd.f32 %v5569, %v5690
        %v5698 = vld [vmem:[%s168 + $0x2] sm:$0xff]
        %s5699 = scalar_lea.vmem %s1, 172
        %v5700 = vld [vmem:[%s5699] sm:$0xf]
        %v5702 = vcombine.high %v5698, %v5698
        %v5704 = vunpack.c.l.s4 1983009808
        %v5705 = vunpack.c.0.s8 %v5704
        %v5706 = vlaneseq
        %v5707 = vshrl.u32 %v5706, 7
        %v5708 = vsub.s32 %v5705, %v5707
        %v5709 = vrot.slane %v5698, %v5708
        %v5711 = vunpack.c.l.s4 1983009808
        %v5712 = vunpack.c.0.s8 %v5711
        %v5713 = vlaneseq
        %v5714 = vshrl.u32 %v5713, 7
        %v5715 = vsub.s32 %v5712, %v5714
        %v5716 = vrot.slane %v5702, %v5715
        %v5717 = vcombine.high %v5709, %v5709
        %v5718 = vcombine.high %v5716, %v5716
        %5719 = vrot.lane.b32.xlu0 %v5709, 123
        %v5720 = vpop.permute.xlu0 %5719
        %5721 = vrot.lane.b32.xlu0 %v5717, 123
        %v5722 = vpop.permute.xlu0 %5721
        %5723 = vrot.lane.b32.xlu0 %v5716, 123
        %v5724 = vpop.permute.xlu0 %5723
        %5725 = vrot.lane.b32.xlu0 %v5718, 123
        %v5726 = vpop.permute.xlu0 %5725
        %v5727 = vsel %vm826, %v5720, %v5722
        %v5728 = vsel %vm826, %v5722, %v5724
        %v5729 = vsel %vm826, %v5724, %v5726
        %v5731 = vsel %vm205, %v5700, 0
        %v5734 = vsel %vm209, %v5727, 0
        %v5737 = vsel %vm209, %v5728, 0
        %v5740 = vsel %vm209, %v5729, 0
        %5742 = vmatprep.subr.bf16.mxu0 %v5737
        %5743 = vmatpush1.bf16.msra.mxu0 %v5734
        %5744 = vmatprep.subr.bf16.mxu0 0
        %5745 = vmatpush1.bf16.msra.mxu0 0
        %5746 = vmatprep.subr.bf16.mxu0 0
        %5747 = vmatpush1.bf16.msra.mxu0 0
        %5748 = vmatprep.subr.bf16.mxu0 0
        %5749 = vmatpush1.bf16.msra.mxu0 0
        %5750 = vmatprep.subr.bf16.mxu0 0
        %5751 = vmatpush1.bf16.msra.mxu0 0
        %5752 = vmatprep.subr.bf16.mxu0 0
        %5753 = vmatpush1.bf16.msra.mxu0 0
        %5754 = vmatprep.subr.bf16.mxu0 0
        %5755 = vmatpush1.bf16.msra.mxu0 0
        %5756 = vmatprep.subr.bf16.mxu0 0
        %5757 = vmatpush1.bf16.msra.mxu0 0
        %5758 = vmatprep.subr.bf16.mxu0 0
        %5759 = vmatpush1.bf16.msra.mxu0 0
        %5760 = vmatprep.subr.bf16.mxu0 0
        %5761 = vmatpush1.bf16.msra.mxu0 0
        %5762 = vmatprep.subr.bf16.mxu0 0
        %5763 = vmatpush1.bf16.msra.mxu0 0
        %5764 = vmatprep.subr.bf16.mxu0 0
        %5765 = vmatpush1.bf16.msra.mxu0 0
        %5766 = vmatprep.subr.bf16.mxu0 0
        %5767 = vmatpush1.bf16.msra.mxu0 0
        %5768 = vmatprep.subr.bf16.mxu0 0
        %5769 = vmatpush1.bf16.msra.mxu0 0
        %5770 = vmatprep.subr.bf16.mxu0 0
        %5771 = vmatpush1.bf16.msra.mxu0 0
        %5772 = vmatprep.subr.bf16.mxu0 0
        %5773 = vmatpush1.bf16.msra.mxu0 0
        %5774 = vmatprep.mubr.bf16.mxu0 0
        %5775 = vmatmul.mubr.bf16.gmra.mrb[0].mxu0 %v5731
        %v5776 = vpop.f32.mrb[0].mxu0
        %v5777 = vadd.f32 0.0, %v5776
        %v5778 = vpop.f32.mrb[0].mxu0
        %v5779 = vadd.f32 0.0, %v5778
        %v5780 = vpop.f32.mrb[0].mxu0
        %v5781 = vpop.f32.mrb[0].mxu0
        %5782 = vdwg.mxu0
        %5783 = vmatprep.subr.bf16.mxu0 0
        %5784 = vmatpush1.bf16.msra.mxu0 %v5740
        %5785 = vmatprep.subr.bf16.mxu0 0
        %5786 = vmatpush1.bf16.msra.mxu0 0
        %5787 = vmatprep.subr.bf16.mxu0 0
        %5788 = vmatpush1.bf16.msra.mxu0 0
        %5789 = vmatprep.subr.bf16.mxu0 0
        %5790 = vmatpush1.bf16.msra.mxu0 0
        %5791 = vmatprep.subr.bf16.mxu0 0
        %5792 = vmatpush1.bf16.msra.mxu0 0
        %5793 = vmatprep.subr.bf16.mxu0 0
        %5794 = vmatpush1.bf16.msra.mxu0 0
        %5795 = vmatprep.subr.bf16.mxu0 0
        %5796 = vmatpush1.bf16.msra.mxu0 0
        %5797 = vmatprep.subr.bf16.mxu0 0
        %5798 = vmatpush1.bf16.msra.mxu0 0
        %5799 = vmatprep.subr.bf16.mxu0 0
        %5800 = vmatpush1.bf16.msra.mxu0 0
        %5801 = vmatprep.subr.bf16.mxu0 0
        %5802 = vmatpush1.bf16.msra.mxu0 0
        %5803 = vmatprep.subr.bf16.mxu0 0
        %5804 = vmatpush1.bf16.msra.mxu0 0
        %5805 = vmatprep.subr.bf16.mxu0 0
        %5806 = vmatpush1.bf16.msra.mxu0 0
        %5807 = vmatprep.subr.bf16.mxu0 0
        %5808 = vmatpush1.bf16.msra.mxu0 0
        %5809 = vmatprep.subr.bf16.mxu0 0
        %5810 = vmatpush1.bf16.msra.mxu0 0
        %5811 = vmatprep.subr.bf16.mxu0 0
        %5812 = vmatpush1.bf16.msra.mxu0 0
        %5813 = vmatprep.subr.bf16.mxu0 0
        %5814 = vmatpush1.bf16.msra.mxu0 0
        %5815 = vmatprep.mubr.bf16.mxu0 0
        %5816 = vmatmul.mubr.bf16.gmra.mrb[0].mxu0 %v5731
        %v5817 = vpop.f32.mrb[0].mxu0
        %v5818 = vadd.f32 0.0, %v5817
        %v5819 = vpop.f32.mrb[0].mxu0
        %v5820 = vpop.f32.mrb[0].mxu0
        %v5821 = vpop.f32.mrb[0].mxu0
        %5822 = vdwg.mxu0
        %v5823 = vadd.f32 %v5695, %v5777
        %v5824 = vadd.f32 %v5696, %v5779
        %v5825 = vadd.f32 %v5697, %v5818
        %v5826 = vld [vmem:[%s168 + $0x2] sm:$0xff]
        %s5827 = scalar_lea.vmem %s1, 176
        %v5828 = vld [vmem:[%s5827] sm:$0xf]
        %v5830 = vcombine.high %v5826, %v5826
        %v5832 = vunpack.c.l.s4 1983009808
        %v5833 = vunpack.c.0.s8 %v5832
        %v5834 = vlaneseq
        %v5835 = vshrl.u32 %v5834, 7
        %v5836 = vsub.s32 %v5833, %v5835
        %v5837 = vrot.slane %v5826, %v5836
        %v5839 = vunpack.c.l.s4 1983009808
        %v5840 = vunpack.c.0.s8 %v5839
        %v5841 = vlaneseq
        %v5842 = vshrl.u32 %v5841, 7
        %v5843 = vsub.s32 %v5840, %v5842
        %v5844 = vrot.slane %v5830, %v5843
        %v5845 = vcombine.high %v5837, %v5837
        %v5846 = vcombine.high %v5844, %v5844
        %5847 = vrot.lane.b32.xlu0 %v5837, 122
        %v5848 = vpop.permute.xlu0 %5847
        %5849 = vrot.lane.b32.xlu0 %v5845, 122
        %v5850 = vpop.permute.xlu0 %5849
        %5851 = vrot.lane.b32.xlu0 %v5844, 122
        %v5852 = vpop.permute.xlu0 %5851
        %5853 = vrot.lane.b32.xlu0 %v5846, 122
        %v5854 = vpop.permute.xlu0 %5853
        %v5855 = vsel %vm955, %v5848, %v5850
        %v5856 = vsel %vm955, %v5850, %v5852
        %v5857 = vsel %vm955, %v5852, %v5854
        %v5859 = vsel %vm205, %v5828, 0
        %v5862 = vsel %vm209, %v5855, 0
        %v5865 = vsel %vm209, %v5856, 0
        %v5868 = vsel %vm209, %v5857, 0
        %5870 = vmatprep.subr.bf16.mxu0 %v5865
        %5871 = vmatpush1.bf16.msra.mxu0 %v5862
        %5872 = vmatprep.subr.bf16.mxu0 0
        %5873 = vmatpush1.bf16.msra.mxu0 0
        %5874 = vmatprep.subr.bf16.mxu0 0
        %5875 = vmatpush1.bf16.msra.mxu0 0
        %5876 = vmatprep.subr.bf16.mxu0 0
        %5877 = vmatpush1.bf16.msra.mxu0 0
        %5878 = vmatprep.subr.bf16.mxu0 0
        %5879 = vmatpush1.bf16.msra.mxu0 0
        %5880 = vmatprep.subr.bf16.mxu0 0
        %5881 = vmatpush1.bf16.msra.mxu0 0
        %5882 = vmatprep.subr.bf16.mxu0 0
        %5883 = vmatpush1.bf16.msra.mxu0 0
        %5884 = vmatprep.subr.bf16.mxu0 0
        %5885 = vmatpush1.bf16.msra.mxu0 0
        %5886 = vmatprep.subr.bf16.mxu0 0
        %5887 = vmatpush1.bf16.msra.mxu0 0
        %5888 = vmatprep.subr.bf16.mxu0 0
        %5889 = vmatpush1.bf16.msra.mxu0 0
        %5890 = vmatprep.subr.bf16.mxu0 0
        %5891 = vmatpush1.bf16.msra.mxu0 0
        %5892 = vmatprep.subr.bf16.mxu0 0
        %5893 = vmatpush1.bf16.msra.mxu0 0
        %5894 = vmatprep.subr.bf16.mxu0 0
        %5895 = vmatpush1.bf16.msra.mxu0 0
        %5896 = vmatprep.subr.bf16.mxu0 0
        %5897 = vmatpush1.bf16.msra.mxu0 0
        %5898 = vmatprep.subr.bf16.mxu0 0
        %5899 = vmatpush1.bf16.msra.mxu0 0
        %5900 = vmatprep.subr.bf16.mxu0 0
        %5901 = vmatpush1.bf16.msra.mxu0 0
        %5902 = vmatprep.mubr.bf16.mxu0 0
        %5903 = vmatmul.mubr.bf16.gmra.mrb[0].mxu0 %v5859
        %v5904 = vpop.f32.mrb[0].mxu0
        %v5905 = vadd.f32 0.0, %v5904
        %v5906 = vpop.f32.mrb[0].mxu0
        %v5907 = vadd.f32 0.0, %v5906
        %v5908 = vpop.f32.mrb[0].mxu0
        %v5909 = vpop.f32.mrb[0].mxu0
        %5910 = vdwg.mxu0
        %5911 = vmatprep.subr.bf16.mxu0 0
        %5912 = vmatpush1.bf16.msra.mxu0 %v5868
        %5913 = vmatprep.subr.bf16.mxu0 0
        %5914 = vmatpush1.bf16.msra.mxu0 0
        %5915 = vmatprep.subr.bf16.mxu0 0
        %5916 = vmatpush1.bf16.msra.mxu0 0
        %5917 = vmatprep.subr.bf16.mxu0 0
        %5918 = vmatpush1.bf16.msra.mxu0 0
        %5919 = vmatprep.subr.bf16.mxu0 0
        %5920 = vmatpush1.bf16.msra.mxu0 0
        %5921 = vmatprep.subr.bf16.mxu0 0
        %5922 = vmatpush1.bf16.msra.mxu0 0
        %5923 = vmatprep.subr.bf16.mxu0 0
        %5924 = vmatpush1.bf16.msra.mxu0 0
        %5925 = vmatprep.subr.bf16.mxu0 0
        %5926 = vmatpush1.bf16.msra.mxu0 0
        %5927 = vmatprep.subr.bf16.mxu0 0
        %5928 = vmatpush1.bf16.msra.mxu0 0
        %5929 = vmatprep.subr.bf16.mxu0 0
        %5930 = vmatpush1.bf16.msra.mxu0 0
        %5931 = vmatprep.subr.bf16.mxu0 0
        %5932 = vmatpush1.bf16.msra.mxu0 0
        %5933 = vmatprep.subr.bf16.mxu0 0
        %5934 = vmatpush1.bf16.msra.mxu0 0
        %5935 = vmatprep.subr.bf16.mxu0 0
        %5936 = vmatpush1.bf16.msra.mxu0 0
        %5937 = vmatprep.subr.bf16.mxu0 0
        %5938 = vmatpush1.bf16.msra.mxu0 0
        %5939 = vmatprep.subr.bf16.mxu0 0
        %5940 = vmatpush1.bf16.msra.mxu0 0
        %5941 = vmatprep.subr.bf16.mxu0 0
        %5942 = vmatpush1.bf16.msra.mxu0 0
        %5943 = vmatprep.mubr.bf16.mxu0 0
        %5944 = vmatmul.mubr.bf16.gmra.mrb[0].mxu0 %v5859
        %v5945 = vpop.f32.mrb[0].mxu0
        %v5946 = vadd.f32 0.0, %v5945
        %v5947 = vpop.f32.mrb[0].mxu0
        %v5948 = vpop.f32.mrb[0].mxu0
        %v5949 = vpop.f32.mrb[0].mxu0
        %5950 = vdwg.mxu0
        %v5951 = vadd.f32 %v5823, %v5905
        %v5952 = vadd.f32 %v5824, %v5907
        %v5953 = vadd.f32 %v5825, %v5946
        %v5954 = vld [vmem:[%s168 + $0x2] sm:$0xff]
        %s5955 = scalar_lea.vmem %s1, 180
        %v5956 = vld [vmem:[%s5955] sm:$0xf]
        %v5958 = vcombine.high %v5954, %v5954
        %v5960 = vunpack.c.l.s4 1983009808
        %v5961 = vunpack.c.0.s8 %v5960
        %v5962 = vlaneseq
        %v5963 = vshrl.u32 %v5962, 7
        %v5964 = vsub.s32 %v5961, %v5963
        %v5965 = vrot.slane %v5954, %v5964
        %v5967 = vunpack.c.l.s4 1983009808
        %v5968 = vunpack.c.0.s8 %v5967
        %v5969 = vlaneseq
        %v5970 = vshrl.u32 %v5969, 7
        %v5971 = vsub.s32 %v5968, %v5970
        %v5972 = vrot.slane %v5958, %v5971
        %v5973 = vcombine.high %v5965, %v5965
        %v5974 = vcombine.high %v5972, %v5972
        %5975 = vrot.lane.b32.xlu0 %v5965, 121
        %v5976 = vpop.permute.xlu0 %5975
        %5977 = vrot.lane.b32.xlu0 %v5973, 121
        %v5978 = vpop.permute.xlu0 %5977
        %5979 = vrot.lane.b32.xlu0 %v5972, 121
        %v5980 = vpop.permute.xlu0 %5979
        %5981 = vrot.lane.b32.xlu0 %v5974, 121
        %v5982 = vpop.permute.xlu0 %5981
        %vm5983 = vcmask 990208
        %v5984 = vsel %vm5983, %v5976, %v5978
        %v5985 = vsel %vm5983, %v5978, %v5980
        %v5986 = vsel %vm5983, %v5980, %v5982
        %v5988 = vsel %vm205, %v5956, 0
        %v5991 = vsel %vm209, %v5984, 0
        %v5994 = vsel %vm209, %v5985, 0
        %v5997 = vsel %vm209, %v5986, 0
        %5999 = vmatprep.subr.bf16.mxu0 %v5994
        %6000 = vmatpush1.bf16.msra.mxu0 %v5991
        %6001 = vmatprep.subr.bf16.mxu0 0
        %6002 = vmatpush1.bf16.msra.mxu0 0
        %6003 = vmatprep.subr.bf16.mxu0 0
        %6004 = vmatpush1.bf16.msra.mxu0 0
        %6005 = vmatprep.subr.bf16.mxu0 0
        %6006 = vmatpush1.bf16.msra.mxu0 0
        %6007 = vmatprep.subr.bf16.mxu0 0
        %6008 = vmatpush1.bf16.msra.mxu0 0
        %6009 = vmatprep.subr.bf16.mxu0 0
        %6010 = vmatpush1.bf16.msra.mxu0 0
        %6011 = vmatprep.subr.bf16.mxu0 0
        %6012 = vmatpush1.bf16.msra.mxu0 0
        %6013 = vmatprep.subr.bf16.mxu0 0
        %6014 = vmatpush1.bf16.msra.mxu0 0
        %6015 = vmatprep.subr.bf16.mxu0 0
        %6016 = vmatpush1.bf16.msra.mxu0 0
        %6017 = vmatprep.subr.bf16.mxu0 0
        %6018 = vmatpush1.bf16.msra.mxu0 0
        %6019 = vmatprep.subr.bf16.mxu0 0
        %6020 = vmatpush1.bf16.msra.mxu0 0
        %6021 = vmatprep.subr.bf16.mxu0 0
        %6022 = vmatpush1.bf16.msra.mxu0 0
        %6023 = vmatprep.subr.bf16.mxu0 0
        %6024 = vmatpush1.bf16.msra.mxu0 0
        %6025 = vmatprep.subr.bf16.mxu0 0
        %6026 = vmatpush1.bf16.msra.mxu0 0
        %6027 = vmatprep.subr.bf16.mxu0 0
        %6028 = vmatpush1.bf16.msra.mxu0 0
        %6029 = vmatprep.subr.bf16.mxu0 0
        %6030 = vmatpush1.bf16.msra.mxu0 0
        %6031 = vmatprep.mubr.bf16.mxu0 0
        %6032 = vmatmul.mubr.bf16.gmra.mrb[0].mxu0 %v5988
        %v6033 = vpop.f32.mrb[0].mxu0
        %v6034 = vadd.f32 0.0, %v6033
        %v6035 = vpop.f32.mrb[0].mxu0
        %v6036 = vadd.f32 0.0, %v6035
        %v6037 = vpop.f32.mrb[0].mxu0
        %v6038 = vpop.f32.mrb[0].mxu0
        %6039 = vdwg.mxu0
        %6040 = vmatprep.subr.bf16.mxu0 0
        %6041 = vmatpush1.bf16.msra.mxu0 %v5997
        %6042 = vmatprep.subr.bf16.mxu0 0
        %6043 = vmatpush1.bf16.msra.mxu0 0
        %6044 = vmatprep.subr.bf16.mxu0 0
        %6045 = vmatpush1.bf16.msra.mxu0 0
        %6046 = vmatprep.subr.bf16.mxu0 0
        %6047 = vmatpush1.bf16.msra.mxu0 0
        %6048 = vmatprep.subr.bf16.mxu0 0
        %6049 = vmatpush1.bf16.msra.mxu0 0
        %6050 = vmatprep.subr.bf16.mxu0 0
        %6051 = vmatpush1.bf16.msra.mxu0 0
        %6052 = vmatprep.subr.bf16.mxu0 0
        %6053 = vmatpush1.bf16.msra.mxu0 0
        %6054 = vmatprep.subr.bf16.mxu0 0
        %6055 = vmatpush1.bf16.msra.mxu0 0
        %6056 = vmatprep.subr.bf16.mxu0 0
        %6057 = vmatpush1.bf16.msra.mxu0 0
        %6058 = vmatprep.subr.bf16.mxu0 0
        %6059 = vmatpush1.bf16.msra.mxu0 0
        %6060 = vmatprep.subr.bf16.mxu0 0
        %6061 = vmatpush1.bf16.msra.mxu0 0
        %6062 = vmatprep.subr.bf16.mxu0 0
        %6063 = vmatpush1.bf16.msra.mxu0 0
        %6064 = vmatprep.subr.bf16.mxu0 0
        %6065 = vmatpush1.bf16.msra.mxu0 0
        %6066 = vmatprep.subr.bf16.mxu0 0
        %6067 = vmatpush1.bf16.msra.mxu0 0
        %6068 = vmatprep.subr.bf16.mxu0 0
        %6069 = vmatpush1.bf16.msra.mxu0 0
        %6070 = vmatprep.subr.bf16.mxu0 0
        %6071 = vmatpush1.bf16.msra.mxu0 0
        %6072 = vmatprep.mubr.bf16.mxu0 0
        %6073 = vmatmul.mubr.bf16.gmra.mrb[0].mxu0 %v5988
        %v6074 = vpop.f32.mrb[0].mxu0
        %v6075 = vadd.f32 0.0, %v6074
        %v6076 = vpop.f32.mrb[0].mxu0
        %v6077 = vpop.f32.mrb[0].mxu0
        %v6078 = vpop.f32.mrb[0].mxu0
        %6079 = vdwg.mxu0
        %v6080 = vadd.f32 %v5951, %v6034
        %v6081 = vadd.f32 %v5952, %v6036
        %v6082 = vadd.f32 %v5953, %v6075
        %v6083 = vld [vmem:[%s168 + $0x2] sm:$0xff]
        %s6084 = scalar_lea.vmem %s1, 184
        %v6085 = vld [vmem:[%s6084] sm:$0xf]
        %v6087 = vcombine.high %v6083, %v6083
        %v6089 = vunpack.c.l.s4 1983009808
        %v6090 = vunpack.c.0.s8 %v6089
        %v6091 = vlaneseq
        %v6092 = vshrl.u32 %v6091, 7
        %v6093 = vsub.s32 %v6090, %v6092
        %v6094 = vrot.slane %v6083, %v6093
        %v6096 = vunpack.c.l.s4 1983009808
        %v6097 = vunpack.c.0.s8 %v6096
        %v6098 = vlaneseq
        %v6099 = vshrl.u32 %v6098, 7
        %v6100 = vsub.s32 %v6097, %v6099
        %v6101 = vrot.slane %v6087, %v6100
        %v6102 = vcombine.high %v6094, %v6094
        %v6103 = vcombine.high %v6101, %v6101
        %6104 = vrot.lane.b32.xlu0 %v6094, 120
        %v6105 = vpop.permute.xlu0 %6104
        %6106 = vrot.lane.b32.xlu0 %v6102, 120
        %v6107 = vpop.permute.xlu0 %6106
        %6108 = vrot.lane.b32.xlu0 %v6101, 120
        %v6109 = vpop.permute.xlu0 %6108
        %6110 = vrot.lane.b32.xlu0 %v6103, 120
        %v6111 = vpop.permute.xlu0 %6110
        %vm6112 = vcmask 982016
        %v6113 = vsel %vm6112, %v6105, %v6107
        %v6114 = vsel %vm6112, %v6107, %v6109
        %v6115 = vsel %vm6112, %v6109, %v6111
        %v6117 = vsel %vm205, %v6085, 0
        %v6120 = vsel %vm209, %v6113, 0
        %v6123 = vsel %vm209, %v6114, 0
        %v6126 = vsel %vm209, %v6115, 0
        %6128 = vmatprep.subr.bf16.mxu0 %v6123
        %6129 = vmatpush1.bf16.msra.mxu0 %v6120
        %6130 = vmatprep.subr.bf16.mxu0 0
        %6131 = vmatpush1.bf16.msra.mxu0 0
        %6132 = vmatprep.subr.bf16.mxu0 0
        %6133 = vmatpush1.bf16.msra.mxu0 0
        %6134 = vmatprep.subr.bf16.mxu0 0
        %6135 = vmatpush1.bf16.msra.mxu0 0
        %6136 = vmatprep.subr.bf16.mxu0 0
        %6137 = vmatpush1.bf16.msra.mxu0 0
        %6138 = vmatprep.subr.bf16.mxu0 0
        %6139 = vmatpush1.bf16.msra.mxu0 0
        %6140 = vmatprep.subr.bf16.mxu0 0
        %6141 = vmatpush1.bf16.msra.mxu0 0
        %6142 = vmatprep.subr.bf16.mxu0 0
        %6143 = vmatpush1.bf16.msra.mxu0 0
        %6144 = vmatprep.subr.bf16.mxu0 0
        %6145 = vmatpush1.bf16.msra.mxu0 0
        %6146 = vmatprep.subr.bf16.mxu0 0
        %6147 = vmatpush1.bf16.msra.mxu0 0
        %6148 = vmatprep.subr.bf16.mxu0 0
        %6149 = vmatpush1.bf16.msra.mxu0 0
        %6150 = vmatprep.subr.bf16.mxu0 0
        %6151 = vmatpush1.bf16.msra.mxu0 0
        %6152 = vmatprep.subr.bf16.mxu0 0
        %6153 = vmatpush1.bf16.msra.mxu0 0
        %6154 = vmatprep.subr.bf16.mxu0 0
        %6155 = vmatpush1.bf16.msra.mxu0 0
        %6156 = vmatprep.subr.bf16.mxu0 0
        %6157 = vmatpush1.bf16.msra.mxu0 0
        %6158 = vmatprep.subr.bf16.mxu0 0
        %6159 = vmatpush1.bf16.msra.mxu0 0
        %6160 = vmatprep.mubr.bf16.mxu0 0
        %6161 = vmatmul.mubr.bf16.gmra.mrb[0].mxu0 %v6117
        %v6162 = vpop.f32.mrb[0].mxu0
        %v6163 = vadd.f32 0.0, %v6162
        %v6164 = vpop.f32.mrb[0].mxu0
        %v6165 = vadd.f32 0.0, %v6164
        %v6166 = vpop.f32.mrb[0].mxu0
        %v6167 = vpop.f32.mrb[0].mxu0
        %6168 = vdwg.mxu0
        %6169 = vmatprep.subr.bf16.mxu0 0
        %6170 = vmatpush1.bf16.msra.mxu0 %v6126
        %6171 = vmatprep.subr.bf16.mxu0 0
        %6172 = vmatpush1.bf16.msra.mxu0 0
        %6173 = vmatprep.subr.bf16.mxu0 0
        %6174 = vmatpush1.bf16.msra.mxu0 0
        %6175 = vmatprep.subr.bf16.mxu0 0
        %6176 = vmatpush1.bf16.msra.mxu0 0
        %6177 = vmatprep.subr.bf16.mxu0 0
        %6178 = vmatpush1.bf16.msra.mxu0 0
        %6179 = vmatprep.subr.bf16.mxu0 0
        %6180 = vmatpush1.bf16.msra.mxu0 0
        %6181 = vmatprep.subr.bf16.mxu0 0
        %6182 = vmatpush1.bf16.msra.mxu0 0
        %6183 = vmatprep.subr.bf16.mxu0 0
        %6184 = vmatpush1.bf16.msra.mxu0 0
        %6185 = vmatprep.subr.bf16.mxu0 0
        %6186 = vmatpush1.bf16.msra.mxu0 0
        %6187 = vmatprep.subr.bf16.mxu0 0
        %6188 = vmatpush1.bf16.msra.mxu0 0
        %6189 = vmatprep.subr.bf16.mxu0 0
        %6190 = vmatpush1.bf16.msra.mxu0 0
        %6191 = vmatprep.subr.bf16.mxu0 0
        %6192 = vmatpush1.bf16.msra.mxu0 0
        %6193 = vmatprep.subr.bf16.mxu0 0
        %6194 = vmatpush1.bf16.msra.mxu0 0
        %6195 = vmatprep.subr.bf16.mxu0 0
        %6196 = vmatpush1.bf16.msra.mxu0 0
        %6197 = vmatprep.subr.bf16.mxu0 0
        %6198 = vmatpush1.bf16.msra.mxu0 0
        %6199 = vmatprep.subr.bf16.mxu0 0
        %6200 = vmatpush1.bf16.msra.mxu0 0
        %6201 = vmatprep.mubr.bf16.mxu0 0
        %6202 = vmatmul.mubr.bf16.gmra.mrb[0].mxu0 %v6117
        %v6203 = vpop.f32.mrb[0].mxu0
        %v6204 = vadd.f32 0.0, %v6203
        %v6205 = vpop.f32.mrb[0].mxu0
        %v6206 = vpop.f32.mrb[0].mxu0
        %v6207 = vpop.f32.mrb[0].mxu0
        %6208 = vdwg.mxu0
        %v6209 = vadd.f32 %v6080, %v6163
        %v6210 = vadd.f32 %v6081, %v6165
        %v6211 = vadd.f32 %v6082, %v6204
        %v6212 = vld [vmem:[%s168 + $0x2] sm:$0xff]
        %s6213 = scalar_lea.vmem %s1, 188
        %v6214 = vld [vmem:[%s6213] sm:$0xf]
        %v6216 = vcombine.high %v6212, %v6212
        %v6218 = vunpack.c.l.s4 1983009808
        %v6219 = vunpack.c.0.s8 %v6218
        %v6220 = vlaneseq
        %v6221 = vshrl.u32 %v6220, 7
        %v6222 = vsub.s32 %v6219, %v6221
        %v6223 = vrot.slane %v6212, %v6222
        %v6225 = vunpack.c.l.s4 1983009808
        %v6226 = vunpack.c.0.s8 %v6225
        %v6227 = vlaneseq
        %v6228 = vshrl.u32 %v6227, 7
        %v6229 = vsub.s32 %v6226, %v6228
        %v6230 = vrot.slane %v6216, %v6229
        %v6231 = vcombine.high %v6223, %v6223
        %v6232 = vcombine.high %v6230, %v6230
        %6233 = vrot.lane.b32.xlu0 %v6223, 119
        %v6234 = vpop.permute.xlu0 %6233
        %6235 = vrot.lane.b32.xlu0 %v6231, 119
        %v6236 = vpop.permute.xlu0 %6235
        %6237 = vrot.lane.b32.xlu0 %v6230, 119
        %v6238 = vpop.permute.xlu0 %6237
        %6239 = vrot.lane.b32.xlu0 %v6232, 119
        %v6240 = vpop.permute.xlu0 %6239
        %vm6241 = vcmask 973824
        %v6242 = vsel %vm6241, %v6234, %v6236
        %v6243 = vsel %vm6241, %v6236, %v6238
        %v6244 = vsel %vm6241, %v6238, %v6240
        %v6246 = vsel %vm205, %v6214, 0
        %v6249 = vsel %vm209, %v6242, 0
        %v6252 = vsel %vm209, %v6243, 0
        %v6255 = vsel %vm209, %v6244, 0
        %6257 = vmatprep.subr.bf16.mxu0 %v6252
        %6258 = vmatpush1.bf16.msra.mxu0 %v6249
        %6259 = vmatprep.subr.bf16.mxu0 0
        %6260 = vmatpush1.bf16.msra.mxu0 0
        %6261 = vmatprep.subr.bf16.mxu0 0
        %6262 = vmatpush1.bf16.msra.mxu0 0
        %6263 = vmatprep.subr.bf16.mxu0 0
        %6264 = vmatpush1.bf16.msra.mxu0 0
        %6265 = vmatprep.subr.bf16.mxu0 0
        %6266 = vmatpush1.bf16.msra.mxu0 0
        %6267 = vmatprep.subr.bf16.mxu0 0
        %6268 = vmatpush1.bf16.msra.mxu0 0
        %6269 = vmatprep.subr.bf16.mxu0 0
        %6270 = vmatpush1.bf16.msra.mxu0 0
        %6271 = vmatprep.subr.bf16.mxu0 0
        %6272 = vmatpush1.bf16.msra.mxu0 0
        %6273 = vmatprep.subr.bf16.mxu0 0
        %6274 = vmatpush1.bf16.msra.mxu0 0
        %6275 = vmatprep.subr.bf16.mxu0 0
        %6276 = vmatpush1.bf16.msra.mxu0 0
        %6277 = vmatprep.subr.bf16.mxu0 0
        %6278 = vmatpush1.bf16.msra.mxu0 0
        %6279 = vmatprep.subr.bf16.mxu0 0
        %6280 = vmatpush1.bf16.msra.mxu0 0
        %6281 = vmatprep.subr.bf16.mxu0 0
        %6282 = vmatpush1.bf16.msra.mxu0 0
        %6283 = vmatprep.subr.bf16.mxu0 0
        %6284 = vmatpush1.bf16.msra.mxu0 0
        %6285 = vmatprep.subr.bf16.mxu0 0
        %6286 = vmatpush1.bf16.msra.mxu0 0
        %6287 = vmatprep.subr.bf16.mxu0 0
        %6288 = vmatpush1.bf16.msra.mxu0 0
        %6289 = vmatprep.mubr.bf16.mxu0 0
        %6290 = vmatmul.mubr.bf16.gmra.mrb[0].mxu0 %v6246
        %v6291 = vpop.f32.mrb[0].mxu0
        %v6292 = vadd.f32 0.0, %v6291
        %v6293 = vpop.f32.mrb[0].mxu0
        %v6294 = vadd.f32 0.0, %v6293
        %v6295 = vpop.f32.mrb[0].mxu0
        %v6296 = vpop.f32.mrb[0].mxu0
        %6297 = vdwg.mxu0
        %6298 = vmatprep.subr.bf16.mxu0 0
        %6299 = vmatpush1.bf16.msra.mxu0 %v6255
        %6300 = vmatprep.subr.bf16.mxu0 0
        %6301 = vmatpush1.bf16.msra.mxu0 0
        %6302 = vmatprep.subr.bf16.mxu0 0
        %6303 = vmatpush1.bf16.msra.mxu0 0
        %6304 = vmatprep.subr.bf16.mxu0 0
        %6305 = vmatpush1.bf16.msra.mxu0 0
        %6306 = vmatprep.subr.bf16.mxu0 0
        %6307 = vmatpush1.bf16.msra.mxu0 0
        %6308 = vmatprep.subr.bf16.mxu0 0
        %6309 = vmatpush1.bf16.msra.mxu0 0
        %6310 = vmatprep.subr.bf16.mxu0 0
        %6311 = vmatpush1.bf16.msra.mxu0 0
        %6312 = vmatprep.subr.bf16.mxu0 0
        %6313 = vmatpush1.bf16.msra.mxu0 0
        %6314 = vmatprep.subr.bf16.mxu0 0
        %6315 = vmatpush1.bf16.msra.mxu0 0
        %6316 = vmatprep.subr.bf16.mxu0 0
        %6317 = vmatpush1.bf16.msra.mxu0 0
        %6318 = vmatprep.subr.bf16.mxu0 0
        %6319 = vmatpush1.bf16.msra.mxu0 0
        %6320 = vmatprep.subr.bf16.mxu0 0
        %6321 = vmatpush1.bf16.msra.mxu0 0
        %6322 = vmatprep.subr.bf16.mxu0 0
        %6323 = vmatpush1.bf16.msra.mxu0 0
        %6324 = vmatprep.subr.bf16.mxu0 0
        %6325 = vmatpush1.bf16.msra.mxu0 0
        %6326 = vmatprep.subr.bf16.mxu0 0
        %6327 = vmatpush1.bf16.msra.mxu0 0
        %6328 = vmatprep.subr.bf16.mxu0 0
        %6329 = vmatpush1.bf16.msra.mxu0 0
        %6330 = vmatprep.mubr.bf16.mxu0 0
        %6331 = vmatmul.mubr.bf16.gmra.mrb[0].mxu0 %v6246
        %v6332 = vpop.f32.mrb[0].mxu0
        %v6333 = vadd.f32 0.0, %v6332
        %v6334 = vpop.f32.mrb[0].mxu0
        %v6335 = vpop.f32.mrb[0].mxu0
        %v6336 = vpop.f32.mrb[0].mxu0
        %6337 = vdwg.mxu0
        %v6338 = vadd.f32 %v6209, %v6292
        %v6339 = vadd.f32 %v6210, %v6294
        %v6340 = vadd.f32 %v6211, %v6333
        %v6341 = vld [vmem:[%s168 + $0x2] sm:$0xff]
        %s6342 = scalar_lea.vmem %s1, 192
        %v6343 = vld [vmem:[%s6342] sm:$0xf]
        %v6345 = vcombine.high %v6341, %v6341
        %v6347 = vunpack.c.l.s4 1983009808
        %v6348 = vunpack.c.0.s8 %v6347
        %v6349 = vlaneseq
        %v6350 = vshrl.u32 %v6349, 7
        %v6351 = vsub.s32 %v6348, %v6350
        %v6352 = vrot.slane %v6341, %v6351
        %v6354 = vunpack.c.l.s4 1983009808
        %v6355 = vunpack.c.0.s8 %v6354
        %v6356 = vlaneseq
        %v6357 = vshrl.u32 %v6356, 7
        %v6358 = vsub.s32 %v6355, %v6357
        %v6359 = vrot.slane %v6345, %v6358
        %v6360 = vcombine.high %v6352, %v6352
        %v6361 = vcombine.high %v6359, %v6359
        %6362 = vrot.lane.b32.xlu0 %v6352, 118
        %v6363 = vpop.permute.xlu0 %6362
        %6364 = vrot.lane.b32.xlu0 %v6360, 118
        %v6365 = vpop.permute.xlu0 %6364
        %6366 = vrot.lane.b32.xlu0 %v6359, 118
        %v6367 = vpop.permute.xlu0 %6366
        %6368 = vrot.lane.b32.xlu0 %v6361, 118
        %v6369 = vpop.permute.xlu0 %6368
        %vm6370 = vcmask 965632
        %v6371 = vsel %vm6370, %v6363, %v6365
        %v6372 = vsel %vm6370, %v6365, %v6367
        %v6373 = vsel %vm6370, %v6367, %v6369
        %v6375 = vsel %vm205, %v6343, 0
        %v6378 = vsel %vm209, %v6371, 0
        %v6381 = vsel %vm209, %v6372, 0
        %v6384 = vsel %vm209, %v6373, 0
        %6386 = vmatprep.subr.bf16.mxu0 %v6381
        %6387 = vmatpush1.bf16.msra.mxu0 %v6378
        %6388 = vmatprep.subr.bf16.mxu0 0
        %6389 = vmatpush1.bf16.msra.mxu0 0
        %6390 = vmatprep.subr.bf16.mxu0 0
        %6391 = vmatpush1.bf16.msra.mxu0 0
        %6392 = vmatprep.subr.bf16.mxu0 0
        %6393 = vmatpush1.bf16.msra.mxu0 0
        %6394 = vmatprep.subr.bf16.mxu0 0
        %6395 = vmatpush1.bf16.msra.mxu0 0
        %6396 = vmatprep.subr.bf16.mxu0 0
        %6397 = vmatpush1.bf16.msra.mxu0 0
        %6398 = vmatprep.subr.bf16.mxu0 0
        %6399 = vmatpush1.bf16.msra.mxu0 0
        %6400 = vmatprep.subr.bf16.mxu0 0
        %6401 = vmatpush1.bf16.msra.mxu0 0
        %6402 = vmatprep.subr.bf16.mxu0 0
        %6403 = vmatpush1.bf16.msra.mxu0 0
        %6404 = vmatprep.subr.bf16.mxu0 0
        %6405 = vmatpush1.bf16.msra.mxu0 0
        %6406 = vmatprep.subr.bf16.mxu0 0
        %6407 = vmatpush1.bf16.msra.mxu0 0
        %6408 = vmatprep.subr.bf16.mxu0 0
        %6409 = vmatpush1.bf16.msra.mxu0 0
        %6410 = vmatprep.subr.bf16.mxu0 0
        %6411 = vmatpush1.bf16.msra.mxu0 0
        %6412 = vmatprep.subr.bf16.mxu0 0
        %6413 = vmatpush1.bf16.msra.mxu0 0
        %6414 = vmatprep.subr.bf16.mxu0 0
        %6415 = vmatpush1.bf16.msra.mxu0 0
        %6416 = vmatprep.subr.bf16.mxu0 0
        %6417 = vmatpush1.bf16.msra.mxu0 0
        %6418 = vmatprep.mubr.bf16.mxu0 0
        %6419 = vmatmul.mubr.bf16.gmra.mrb[0].mxu0 %v6375
        %v6420 = vpop.f32.mrb[0].mxu0
        %v6421 = vadd.f32 0.0, %v6420
        %v6422 = vpop.f32.mrb[0].mxu0
        %v6423 = vadd.f32 0.0, %v6422
        %v6424 = vpop.f32.mrb[0].mxu0
        %v6425 = vpop.f32.mrb[0].mxu0
        %6426 = vdwg.mxu0
        %6427 = vmatprep.subr.bf16.mxu0 0
        %6428 = vmatpush1.bf16.msra.mxu0 %v6384
        %6429 = vmatprep.subr.bf16.mxu0 0
        %6430 = vmatpush1.bf16.msra.mxu0 0
        %6431 = vmatprep.subr.bf16.mxu0 0
        %6432 = vmatpush1.bf16.msra.mxu0 0
        %6433 = vmatprep.subr.bf16.mxu0 0
        %6434 = vmatpush1.bf16.msra.mxu0 0
        %6435 = vmatprep.subr.bf16.mxu0 0
        %6436 = vmatpush1.bf16.msra.mxu0 0
        %6437 = vmatprep.subr.bf16.mxu0 0
        %6438 = vmatpush1.bf16.msra.mxu0 0
        %6439 = vmatprep.subr.bf16.mxu0 0
        %6440 = vmatpush1.bf16.msra.mxu0 0
        %6441 = vmatprep.subr.bf16.mxu0 0
        %6442 = vmatpush1.bf16.msra.mxu0 0
        %6443 = vmatprep.subr.bf16.mxu0 0
        %6444 = vmatpush1.bf16.msra.mxu0 0
        %6445 = vmatprep.subr.bf16.mxu0 0
        %6446 = vmatpush1.bf16.msra.mxu0 0
        %6447 = vmatprep.subr.bf16.mxu0 0
        %6448 = vmatpush1.bf16.msra.mxu0 0
        %6449 = vmatprep.subr.bf16.mxu0 0
        %6450 = vmatpush1.bf16.msra.mxu0 0
        %6451 = vmatprep.subr.bf16.mxu0 0
        %6452 = vmatpush1.bf16.msra.mxu0 0
        %6453 = vmatprep.subr.bf16.mxu0 0
        %6454 = vmatpush1.bf16.msra.mxu0 0
        %6455 = vmatprep.subr.bf16.mxu0 0
        %6456 = vmatpush1.bf16.msra.mxu0 0
        %6457 = vmatprep.subr.bf16.mxu0 0
        %6458 = vmatpush1.bf16.msra.mxu0 0
        %6459 = vmatprep.mubr.bf16.mxu0 0
        %6460 = vmatmul.mubr.bf16.gmra.mrb[0].mxu0 %v6375
        %v6461 = vpop.f32.mrb[0].mxu0
        %v6462 = vadd.f32 0.0, %v6461
        %v6463 = vpop.f32.mrb[0].mxu0
        %v6464 = vpop.f32.mrb[0].mxu0
        %v6465 = vpop.f32.mrb[0].mxu0
        %6466 = vdwg.mxu0
        %v6467 = vadd.f32 %v6338, %v6421
        %v6468 = vadd.f32 %v6339, %v6423
        %v6469 = vadd.f32 %v6340, %v6462
        %v6470 = vld [vmem:[%s2] sm:$0xff]
        %6472 = vset.pattern.permute.xlu0 0
        %6473 = vperm.xlu0 %6472, %v6470
        %v6474 = vpop.permute.xlu0 %6473
        %v6476 = vadd.f32 %v6467, %v6474
        %v6477 = vadd.f32 %v6468, %v6474
        %v6478 = vadd.f32 %v6469, %v6474
        %v6479 = vtanh.pop %v6476
        %v6480 = vtanh.pop %v6477
        %v6481 = vtanh.pop %v6478
        %6482 = vst [vmem:[%s163] sm:$0xff] %v6479
        %6483 = vst [vmem:[%s163 + $0x8] sm:$0xff] %v6480
        %6484 = vst [vmem:[%s163 + $0x10] sm:$0xff] %v6481
        %s6485 = sand.u32 %s93, 1
        %s6486 = scalar_lea.sflag [#allocation3], %s6485
        %s6487 = sand.u32 %s93, 1
        %s6488 = smul.addr %s6487, 24
        %s6489 = scalar_lea.vmem [#allocation2], %s6488
        // Predicated region
        $region33: #{tpu_custom_call.1} parent=31 // pred_check
          %p6490 = pneg %p103
        $region34: #{tpu_custom_call.1} parent=31 // pred_check_branch
          %6492 = sbr.rel (%p6490) target = $region36
        $region35: #{tpu_custom_call.1} parent=31 // pred_region
          %s6494 = ssub.s32 384, 384
          %6495 = vsyncadd %s6486, %s6494
          %s6496 = smul.addr %s17, 3
          %s6497 = smul.addr %s6496, 128
          %s6498 = scalar_lea.hbm %s3, %s6497
          %s6500 = sshll.u32 %s6489, 4
          %s6501 = int_to_ptr.vmem [resolvable:$true] %s6500
          %6503 = dma.vmem_to_hbm [thread:$0]  %s6501, 384, %s6498, %s6486
        $region36: #{tpu_custom_call.1} parent=31 // pred_fallthru
          _
      $region32: #{tpu_custom_call.1} parent=5 // pred_fallthru
        _
      %p6504 = scmp.le.s32.totalorder 2, %s12
      // Predicated region
      $region37: #{tpu_custom_call.1} parent=5 // pred_check
        %p6505 = pneg %p6504
      $region38: #{tpu_custom_call.1} parent=5 // pred_check_branch
        %6507 = sbr.rel (%p6505) target = $region40
      $region39: #{tpu_custom_call.1} parent=5 // pred_region
        %s6508 = ssub.s32 %s12, 2
        // Predicated region
        $region41: #{tpu_custom_call.1} parent=39 // pred_check
          %p6509 = pneg %p109
        $region42: #{tpu_custom_call.1} parent=39 // pred_check_branch
          %6511 = sbr.rel (%p6509) target = $region44
        $region43: #{tpu_custom_call.1} parent=39 // pred_region
          %s6512 = sand.u32 %s94, 1
          %s6513 = scalar_lea.sflag [#allocation3], %s6512
          %s6514 = sand.u32 %s94, 1
          %s6515 = smul.addr %s6514, 24
          %s6516 = scalar_lea.vmem [#allocation2], %s6515
          %6517 = dma.done %s6513, 384
        $region44: #{tpu_custom_call.1} parent=39 // pred_fallthru
          _
      $region40: #{tpu_custom_call.1} parent=5 // pred_fallthru
        _
    $region6: #{tpu_custom_call.1} parent=1 // loop_footer
      %s16 = sadd.s32 1, %s12
    $region7: #{tpu_custom_call.1} parent=1 // loop_footer_branch
      %11 = sbr.rel target = $region3
    $region8: #{tpu_custom_call.1} parent=1 // loop_exit
      _
    %6518 = vsyncpa [#allocation3], 1
    %s6519 = scalar_lea.sflag [#allocation3], 1
    %6520 = vsyncpa %s6519, 1

</llo_original>
